<compile_context>
chip_gen: v7x
topology: tpu7x:2x2x1
jax: 0.10.0
libtpu: 0.0.40
codegen_flags: <defaults>
</compile_context>

<pallas_src>
import functools

import jax
import jax.numpy as jnp
from jax.experimental import pallas as pl
from jax.experimental.pallas import tpu as pltpu

IN_FEATURES = 10000
OUT_FEATURES = 500
TN = 256  # output-column tile (lane-dense; j extent 2 so v7x megacore can split)


def _linear_kernel(x_ref, w_ref, b_ref, o_ref):
    """o = x @ w + b for one (tm, tn) output tile, full-K contraction."""
    o_ref[...] = (
        jnp.dot(x_ref[...], w_ref[...], preferred_element_type=jnp.float32)
        + b_ref[...]
    )


def _round_up(v, m):
    return ((v + m - 1) // m) * m


def _device_kind() -> str:
    try:
        return jax.devices()[0].device_kind.lower()
    except Exception:
        return ""


def prepare_params(weight, bias, *, tn=TN):
    """One-time parameter prep (do at init, NOT per forward call).

    weight: (500, 10000) PyTorch nn.Linear layout -> transposed to (K, N),
            zero-padded along N to a tn multiple, and stored tile-major as
            (N_tiles, K, tn) so each weight-tile DMA is a single contiguous
            run on every chip (incl. tn=256 tiles on v7x).
    bias:   (500,) -> (1, Np).
    """
    N, K = weight.shape
    Np = _round_up(N, tn)
    G = Np // tn
    wt = jnp.zeros((K, Np), weight.dtype).at[:, :N].set(weight.T)
    w_p = wt.reshape(K, G, tn).transpose(1, 0, 2)  # (G, K, tn), tile-major
    b_p = jnp.zeros((1, Np), bias.dtype).at[0, :N].set(bias)
    return w_p, b_p


@functools.partial(jax.jit, static_argnames=("n_out", "use_core_parallel"))
def _linear_m_forward_impl(x, w_p, b_p, *, n_out, use_core_parallel):
    """Pallas LinearM.forward on pre-tiled params: logits = x @ W^T + b.

    x:   (B, 10000) float32
    w_p: (G, 10000, tn) float32   (from prepare_params)
    b_p: (1, G*tn)      float32
    returns (B, n_out) float32
    """
    B, K = x.shape
    G, Kw, tn = w_p.shape
    assert Kw == K, "weight K dim must match activation K dim"
    Np = G * tn

    # tm scales with batch so the i axis stays extent 1 for small B; the
    # j-outer grid order below keeps the weight streamed exactly once even
    # if i extent grows past 1.
    tm = min(_round_up(max(B, 1), 8), 128)
    Mp = _round_up(B, tm)

    # K is untiled (Kp == K), so only axis 0 of the tiny activation is padded.
    x_p = jnp.pad(x, ((0, Mp - B), (0, 0)))

    n_i = Mp // tm
    grid = (G, n_i)  # j outermost: weight tile resident across all M blocks

    j_sem = pltpu.CORE_PARALLEL if use_core_parallel else "parallel"

    # Double-buffered VMEM need: x, w, bias, out blocks (+ headroom).
    vmem_bytes = 4 * 2 * (tm * K + K * tn + tm * tn + tn) + (8 << 20)

    cost = pl.CostEstimate(
        flops=2 * Mp * K * Np,
        transcendentals=0,
        bytes_accessed=4 * (Mp * K + K * Np + Mp * Np + Np),
    )

    out_p = pl.pallas_call(
        _linear_kernel,
        out_shape=jax.ShapeDtypeStruct((Mp, Np), jnp.float32),
        grid_spec=pltpu.PrefetchScalarGridSpec(
            num_scalar_prefetch=0,
            grid=grid,
            in_specs=[
                pl.BlockSpec((tm, K), lambda j, i: (i, 0)),           # x block
                pl.BlockSpec((None, K, tn), lambda j, i: (j, 0, 0)),  # weight tile
                pl.BlockSpec((1, tn), lambda j, i: (0, j)),           # bias tile
            ],
            out_specs=pl.BlockSpec((tm, tn), lambda j, i: (i, j)),
        ),
        compiler_params=pltpu.CompilerParams(
            dimension_semantics=(j_sem, "arbitrary"),
            vmem_limit_bytes=int(vmem_bytes),
        ),
        cost_estimate=cost,
    )(x_p, w_p, b_p)

    # Callers that can consume the padded (Mp, Np) slab may skip this slice.
    return out_p[:B, :n_out]


def linear_m_forward(x, w_p, b_p, *, n_out=OUT_FEATURES):
    """Public forward. On v7x, try to force the cross-TensorCore split on the
    output-column axis (CORE_PARALLEL); fall back to plain 'parallel' if that
    semantics is unavailable / does not lower on this toolchain."""
    if "v7" in _device_kind():
        try:
            out = _linear_m_forward_impl(
                x, w_p, b_p, n_out=n_out, use_core_parallel=True
            )
            return jax.block_until_ready(out)
        except Exception:
            pass  # fall back to portable semantics below
    return _linear_m_forward_impl(x, w_p, b_p, n_out=n_out, use_core_parallel=False)


def init_params(key):
    """Deterministic init mimicking nn.Linear's uniform(-1/sqrt(K), 1/sqrt(K))."""
    kw, kb = jax.random.split(key)
    bound = 1.0 / jnp.sqrt(jnp.float32(IN_FEATURES))
    weight = jax.random.uniform(
        kw, (OUT_FEATURES, IN_FEATURES), jnp.float32, -bound, bound
    )
    bias = jax.random.uniform(kb, (OUT_FEATURES,), jnp.float32, -bound, bound)
    return weight, bias


if __name__ == "__main__":
    key = jax.random.PRNGKey(0)
    k_x, k_p = jax.random.split(key)

    batch = 2
    x = jax.random.normal(k_x, (batch, IN_FEATURES), jnp.float32)
    weight, bias = init_params(k_p)

    # One-time weight/bias prep (analogous to module construction).
    w_p, b_p = prepare_params(weight, bias)
    w_p, b_p = jax.block_until_ready((w_p, b_p))

    logits = linear_m_forward(x, w_p, b_p, n_out=OUT_FEATURES)
    logits = jax.block_until_ready(logits)

    # Sanity check against a plain-JAX reference.
    ref = x @ weight.T + bias
    assert logits.shape == (batch, OUT_FEATURES)
    assert jnp.allclose(logits, ref, atol=1e-4, rtol=1e-4)

    print("KERNEL_OK")
</pallas_src>

<mosaic_0001>
module attributes {stable_mosaic.version = 11 : i64} {
  func.func @_linear_kernel(%arg0: i32, %arg1: i32, %arg2: memref<8x10000xf32, #tpu.memory_space<vmem>>, %arg3: memref<1x10000x256xf32, #tpu.memory_space<vmem>>, %arg4: memref<1x256xf32, #tpu.memory_space<vmem>>, %arg5: memref<8x256xf32, #tpu.memory_space<vmem>>) attributes {dimension_semantics = [#tpu.dimension_semantics<parallel>, #tpu.dimension_semantics<arbitrary>], iteration_bounds = array<i64: 2, 1>, scalar_prefetch = 0 : i64, scratch_operands = 0 : i64, tpu.core_type = #tpu.core_type<tc>, window_params = [{transform_indices = @transform_0, window_bounds = array<i64: 8, 10000>}, {transform_indices = @transform_1, window_bounds = array<i64: 1, 10000, 256>}, {transform_indices = @transform_2, window_bounds = array<i64: 1, 256>}, {transform_indices = @transform_3, window_bounds = array<i64: 8, 256>}]} {
    %c0 = arith.constant 0 : index
    %c0_0 = arith.constant 0 : index
    %0 = vector.load %arg2[%c0, %c0_0] : memref<8x10000xf32, #tpu.memory_space<vmem>>, vector<8x10000xf32>
    %c0_1 = arith.constant 0 : index
    %c0_2 = arith.constant 0 : index
    %c0_3 = arith.constant 0 : index
    %1 = vector.load %arg3[%c0_1, %c0_2, %c0_3] : memref<1x10000x256xf32, #tpu.memory_space<vmem>>, vector<1x10000x256xf32>
    %2 = vector.shape_cast %1 : vector<1x10000x256xf32> to vector<10000x256xf32>
    %cst = arith.constant dense<0.000000e+00> : vector<8x256xf32>
    %3 = tpu.matmul %0, %2, %cst {dimension_numbers = #tpu.dot_dimension_numbers<[1], [0], [0], [1], [0, 0, 1, 1], [], []>} : vector<8x10000xf32>, vector<10000x256xf32>, vector<8x256xf32> -> vector<8x256xf32>
    %c0_4 = arith.constant 0 : index
    %c0_5 = arith.constant 0 : index
    %4 = vector.load %arg4[%c0_4, %c0_5] : memref<1x256xf32, #tpu.memory_space<vmem>>, vector<1x256xf32>
    %5 = vector.broadcast %4 : vector<1x256xf32> to vector<8x256xf32>
    %6 = arith.addf %3, %5 : vector<8x256xf32>
    %c0_6 = arith.constant 0 : index
    %c0_7 = arith.constant 0 : index
    %7 = vector.load %arg5[%c0_6, %c0_7] : memref<8x256xf32, #tpu.memory_space<vmem>>, vector<8x256xf32>
    tpu.vector_store %arg5[%c0_6, %c0_7], %6 {strides = array<i32>} : memref<8x256xf32, #tpu.memory_space<vmem>>, vector<8x256xf32>,
    return
  }
  func.func @transform_0(%arg0: i32, %arg1: i32) -> (i32, i32) {
    %c0_i32 = arith.constant 0 : i32
    %c0_i32_0 = arith.constant 0 : i32
    return %arg1, %c0_i32 : i32, i32
  }
  func.func @transform_1(%arg0: i32, %arg1: i32) -> (i32, i32, i32) {
    %c0_i32 = arith.constant 0 : i32
    %c0_i32_0 = arith.constant 0 : i32
    %c0_i32_1 = arith.constant 0 : i32
    return %arg0, %c0_i32, %c0_i32_0 : i32, i32, i32
  }
  func.func @transform_2(%arg0: i32, %arg1: i32) -> (i32, i32) {
    %c0_i32 = arith.constant 0 : i32
    %c0_i32_0 = arith.constant 0 : i32
    return %c0_i32, %arg0 : i32, i32
  }
  func.func @transform_3(%arg0: i32, %arg1: i32) -> (i32, i32) {
    %c0_i32 = arith.constant 0 : i32
    return %arg1, %arg0 : i32, i32
  }
}

</mosaic_0001>

<llo_original>
// kernel: _linear_m_forward_impl.1
$region0: #{_linear_m_forward_impl.1}
  #allocation0 [shape = 'u32[]', space=smem, size = 0x4, offset = 0x4, fixed_abs, tag = 'smem constant byte address 0x4 - core index']
  #allocation1 [shape = 'u32[144,128]{1,0:T(1,128)}', space=vmem, size = 0x12000, scoped, tag = 'internal scratch']
  %s0 = inlined_call_operand.vmem [shape: f32[8,10000], index: 0, kind: input, shape index: {}]
  %s1 = inlined_call_operand.hbm [shape: f32[2,10000,256], index: 1, kind: input, shape index: {}]
  %s2 = inlined_call_operand.hbm [shape: f32[1,512], index: 2, kind: input, shape index: {}]
  %s3 = inlined_call_operand.vmem [shape: f32[8,512], index: 3, kind: output, shape index: {}]
  %s4 = sld [smem:[#allocation0]]
  $region53: #{_linear_m_forward_impl.1} parent=0
    _
  %s6 = ssub.s32 1, %s4
  %s7 = scalar_select 0, %s6, %s4
  $region1: #{_linear_m_forward_impl.1} parent=0
    #allocation2 [shape = 'u8[20480000]{0}', space=vmem, size = 0x1388000, scoped, tag = 'input window, operand 1']
    #allocation3 [shape = 's32[2]{0}', space=sflag, size = 0x8, scoped, tag = 'scoped memory for _linear_m_forward_impl.1']
    #allocation4 [shape = 'u8[2048]{0}', space=vmem, size = 0x800, scoped, tag = 'input window, operand 2']
    #allocation5 [shape = 's32[2]{0}', space=sflag, size = 0x8, scoped, tag = 'scoped memory for _linear_m_forward_impl.1']
    %8 = vsyncpa [#allocation3], 0
    %s9 = scalar_lea.sflag [#allocation3], 1
    %10 = vsyncpa %s9, 0
    %11 = vsyncpa [#allocation5], 0
    %s12 = scalar_lea.sflag [#allocation5], 1
    %13 = vsyncpa %s12, 0
    loop: start=0, step=1, limit=4
    $region2: #{_linear_m_forward_impl.1} parent=1 // loop_pre_header
      _
    $region3: #{_linear_m_forward_impl.1} parent=1 // loop_header
      %s15 = sphi 0, %s19
      %p16 = scmp.ge.s32.totalorder %s15, 4
      %s22 = sphi 0, %s34
      %s23 = sphi 0, %s30
      %s24 = sphi 0, %s22
      %s25 = sphi 0, %s23
      %s26 = sphi 0, %s24
      %s27 = sphi 0, %s25
      %s37 = sphi 0, %s39
      %s40 = sphi 0, %s37
      %s41 = sphi 0, %s40
      %s57 = sphi 0, %s41
      %s63 = sphi 0, %s65
      %s66 = sphi 0, %s63
      %s67 = sphi 0, %s66
      %s83 = sphi 0, %s67
      %s89 = sphi 0, %s91
      %s92 = sphi 0, %s89
      %s93 = sphi 0, %s92
      %s109 = sphi 0, %s93
      %s117 = sphi 0, %s119
      %s120 = sphi 0, %s117
      %s121 = sphi 0, %s120
      %s137 = sphi 0, %s121
    $region4: #{_linear_m_forward_impl.1} parent=1 // loop_header_branch
      %18 = sbr.rel (%p16) target = $region8
    $region5: #{_linear_m_forward_impl.1} parent=1 // loop_body
      %s20 = ssub.s32 %s15, 1
      %s21 = ssub.s32 %s15, 2
      %s28 = sadd.s32 1, %s23
      %p29 = scmp.ge.s32.totalorder %s28, 1
      %s30 = scalar_select %p29, 0, %s28
      %s31 = sadd.s32 1, %s22
      %s32 = scalar_select %p29, %s31, %s22
      %p33 = scmp.ge.s32.totalorder %s32, 2
      %s34 = scalar_select %p33, 0, %s32
      %s35 = ssub.s32 %s23, %s30
      %p36 = scmp.eq.s32.totalorder %s35, 0
      %s38 = sadd.s32 %s37, 1
      %s39 = scalar_select %p36, %s37, %s38
      %p42 = pneg %p36
      %p43 = scmp.eq.s32.totalorder %s15, 1
      %p44 = por %p42, %p43
      %p45 = scmp.ne.s32.totalorder %s37, %s40
      %p46 = scmp.eq.s32.totalorder %s15, 0
      %p47 = por %p45, %p46
      %p48 = scmp.ne.s32.totalorder %s37, %s40
      %p49 = scmp.eq.s32.totalorder %s20, 1
      %p50 = por %p48, %p49
      %p51 = scmp.ne.s32.totalorder %s40, %s41
      %p52 = scmp.eq.s32.totalorder %s20, 0
      %p53 = por %p51, %p52
      %p54 = scmp.ne.s32.totalorder %s40, %s41
      %p55 = scmp.eq.s32.totalorder %s21, 1
      %p56 = por %p54, %p55
      %p58 = scmp.ne.s32.totalorder %s41, %s57
      %p59 = scmp.eq.s32.totalorder %s21, 0
      %p60 = por %p58, %p59
      %s61 = ssub.s32 %s22, %s34
      %p62 = scmp.eq.s32.totalorder %s61, 0
      %s64 = sadd.s32 %s63, 1
      %s65 = scalar_select %p62, %s63, %s64
      %p68 = pneg %p62
      %p69 = scmp.eq.s32.totalorder %s15, 1
      %p70 = por %p68, %p69
      %p71 = scmp.ne.s32.totalorder %s63, %s66
      %p72 = scmp.eq.s32.totalorder %s15, 0
      %p73 = por %p71, %p72
      %p74 = scmp.ne.s32.totalorder %s63, %s66
      %p75 = scmp.eq.s32.totalorder %s20, 1
      %p76 = por %p74, %p75
      %p77 = scmp.ne.s32.totalorder %s66, %s67
      %p78 = scmp.eq.s32.totalorder %s20, 0
      %p79 = por %p77, %p78
      %p80 = scmp.ne.s32.totalorder %s66, %s67
      %p81 = scmp.eq.s32.totalorder %s21, 1
      %p82 = por %p80, %p81
      %p84 = scmp.ne.s32.totalorder %s67, %s83
      %p85 = scmp.eq.s32.totalorder %s21, 0
      %p86 = por %p84, %p85
      %s87 = ssub.s32 %s22, %s34
      %p88 = scmp.eq.s32.totalorder %s87, 0
      %s90 = sadd.s32 %s89, 1
      %s91 = scalar_select %p88, %s89, %s90
      %p94 = pneg %p88
      %p95 = scmp.eq.s32.totalorder %s15, 1
      %p96 = por %p94, %p95
      %p97 = scmp.ne.s32.totalorder %s89, %s92
      %p98 = scmp.eq.s32.totalorder %s15, 0
      %p99 = por %p97, %p98
      %p100 = scmp.ne.s32.totalorder %s89, %s92
      %p101 = scmp.eq.s32.totalorder %s20, 1
      %p102 = por %p100, %p101
      %p103 = scmp.ne.s32.totalorder %s92, %s93
      %p104 = scmp.eq.s32.totalorder %s20, 0
      %p105 = por %p103, %p104
      %p106 = scmp.ne.s32.totalorder %s92, %s93
      %p107 = scmp.eq.s32.totalorder %s21, 1
      %p108 = por %p106, %p107
      %p110 = scmp.ne.s32.totalorder %s93, %s109
      %p111 = scmp.eq.s32.totalorder %s21, 0
      %p112 = por %p110, %p111
      %s113 = ssub.s32 %s23, %s30
      %s114 = ssub.s32 %s22, %s34
      %s115 = sor.u32 %s113, %s114
      %p116 = scmp.eq.s32.totalorder %s115, 0
      %s118 = sadd.s32 %s117, 1
      %s119 = scalar_select %p116, %s117, %s118
      %p122 = pneg %p116
      %p123 = scmp.eq.s32.totalorder %s15, 1
      %p124 = por %p122, %p123
      %p125 = scmp.ne.s32.totalorder %s117, %s120
      %p126 = scmp.eq.s32.totalorder %s15, 0
      %p127 = por %p125, %p126
      %p128 = scmp.ne.s32.totalorder %s117, %s120
      %p129 = scmp.eq.s32.totalorder %s20, 1
      %p130 = por %p128, %p129
      %p131 = scmp.ne.s32.totalorder %s120, %s121
      %p132 = scmp.eq.s32.totalorder %s20, 0
      %p133 = por %p131, %p132
      %p134 = scmp.ne.s32.totalorder %s120, %s121
      %p135 = scmp.eq.s32.totalorder %s21, 1
      %p136 = por %p134, %p135
      %p138 = scmp.ne.s32.totalorder %s121, %s137
      %p139 = scmp.eq.s32.totalorder %s21, 0
      %p140 = por %p138, %p139
      %p141 = scmp.le.s32.totalorder 1, %s15
      %p142 = scmp.lt.s32.totalorder %s15, 3
      %p143 = pnand %p141, %p142
      %p144 = pneg %p143
      // Predicated region
      $region9: #{_linear_m_forward_impl.1} parent=5 // pred_check
        _
      $region10: #{_linear_m_forward_impl.1} parent=5 // pred_check_branch
        %146 = sbr.rel (%p143) target = $region12
      $region11: #{_linear_m_forward_impl.1} parent=5 // pred_region
        %s147 = ssub.s32 %s15, 1
        // Predicated region
        $region13: #{_linear_m_forward_impl.1} parent=11 // pred_check
          %p148 = pneg %p53
        $region14: #{_linear_m_forward_impl.1} parent=11 // pred_check_branch
          %150 = sbr.rel (%p148) target = $region16
        $region15: #{_linear_m_forward_impl.1} parent=11 // pred_region
          %p151 = scmp.lt.s32.totalorder %s25, 0
          %s152 = scalar_select %p151, %s25, 0
          %s153 = smul.addr %s152, 79
          %s154 = smul.addr %s153, 8
          %s155 = scalar_lea.vmem %s0, %s154
        $region16: #{_linear_m_forward_impl.1} parent=11 // pred_fallthru
          _
      $region12: #{_linear_m_forward_impl.1} parent=5 // pred_fallthru
        _
      %p156 = scmp.lt.s32.totalorder %s15, 2
      // Predicated region
      $region17: #{_linear_m_forward_impl.1} parent=5 // pred_check
        %p157 = pneg %p156
      $region18: #{_linear_m_forward_impl.1} parent=5 // pred_check_branch
        %159 = sbr.rel (%p157) target = $region20
      $region19: #{_linear_m_forward_impl.1} parent=5 // pred_region
        // Predicated region
        $region21: #{_linear_m_forward_impl.1} parent=19 // pred_check
          %p160 = pneg %p73
        $region22: #{_linear_m_forward_impl.1} parent=19 // pred_check_branch
          %162 = sbr.rel (%p160) target = $region24
        $region23: #{_linear_m_forward_impl.1} parent=19 // pred_region
          %s163 = sand.u32 %s63, 1
          %s164 = scalar_lea.sflag [#allocation3], %s163
          %s165 = sand.u32 %s63, 1
          %s166 = smul.addr %s165, 20000
          %s167 = scalar_lea.vmem [#allocation2], %s166
          %s169 = ssub.s32 320000, 320000
          %170 = vsyncadd %s164, %s169
          %s171 = smul.addr %s22, 2500
          %s172 = smul.addr %s171, 128
          %s173 = scalar_lea.hbm %s1, %s172
          %s174 = sshll.u32 %s167, 4
          %s175 = int_to_ptr.vmem [resolvable:$true] %s174
          %180 = dma.hbm_to_vmem [thread:$0]  %s173, 320000, %s175, %s164, 256, 256, 16
        $region24: #{_linear_m_forward_impl.1} parent=19 // pred_fallthru
          _
        // Predicated region
        $region25: #{_linear_m_forward_impl.1} parent=19 // pred_check
          %p181 = pneg %p99
        $region26: #{_linear_m_forward_impl.1} parent=19 // pred_check_branch
          %183 = sbr.rel (%p181) target = $region28
        $region27: #{_linear_m_forward_impl.1} parent=19 // pred_region
          %s184 = sand.u32 %s89, 1
          %s185 = scalar_lea.sflag [#allocation5], %s184
          %s186 = sand.u32 %s89, 1
          %s187 = smul.addr %s186, 2
          %s188 = scalar_lea.vmem [#allocation4], %s187
          %s189 = smul.u32 2, %s22
          %s191 = ssub.s32 32, 32
          %192 = vsyncadd %s185, %s191
          %s193 = smul.addr %s189, 16
          %s194 = scalar_lea.hbm %s2, %s193
          %s196 = sshll.u32 %s188, 4
          %s197 = int_to_ptr.vmem [resolvable:$true] %s196
          %199 = dma.hbm_to_vmem [thread:$0]  %s194, 32, %s197, %s185
        $region28: #{_linear_m_forward_impl.1} parent=19 // pred_fallthru
          _
      $region20: #{_linear_m_forward_impl.1} parent=5 // pred_fallthru
        _
      %p200 = scmp.le.s32.totalorder 1, %s15
      %p201 = scmp.lt.s32.totalorder %s15, 3
      %p202 = pnand %p200, %p201
      %p203 = pneg %p202
      // Predicated region
      $region29: #{_linear_m_forward_impl.1} parent=5 // pred_check
        _
      $region30: #{_linear_m_forward_impl.1} parent=5 // pred_check_branch
        %205 = sbr.rel (%p202) target = $region32
      $region31: #{_linear_m_forward_impl.1} parent=5 // pred_region
        %s206 = ssub.s32 %s15, 1
        %s207 = sand.u32 %s66, 1
        %s208 = scalar_lea.sflag [#allocation3], %s207
        %s209 = sand.u32 %s66, 1
        %s210 = smul.addr %s209, 20000
        %s211 = scalar_lea.vmem [#allocation2], %s210
        // Predicated region
        $region33: #{_linear_m_forward_impl.1} parent=31 // pred_check
          %p212 = pneg %p79
        $region34: #{_linear_m_forward_impl.1} parent=31 // pred_check_branch
          %214 = sbr.rel (%p212) target = $region36
        $region35: #{_linear_m_forward_impl.1} parent=31 // pred_region
          %215 = dma.done %s208, 320000
        $region36: #{_linear_m_forward_impl.1} parent=31 // pred_fallthru
          _
        %s216 = sand.u32 %s92, 1
        %s217 = scalar_lea.sflag [#allocation5], %s216
        %s218 = sand.u32 %s92, 1
        %s219 = smul.addr %s218, 2
        %s220 = scalar_lea.vmem [#allocation4], %s219
        // Predicated region
        $region37: #{_linear_m_forward_impl.1} parent=31 // pred_check
          %p221 = pneg %p105
        $region38: #{_linear_m_forward_impl.1} parent=31 // pred_check_branch
          %223 = sbr.rel (%p221) target = $region40
        $region39: #{_linear_m_forward_impl.1} parent=31 // pred_region
          %224 = dma.done %s217, 32
        $region40: #{_linear_m_forward_impl.1} parent=31 // pred_fallthru
          _
        %p225 = scmp.lt.s32.totalorder %s25, 0
        %s226 = scalar_select %p225, %s25, 0
        %s227 = smul.addr %s226, 79
        %s228 = smul.addr %s227, 8
        %s229 = scalar_lea.vmem %s0, %s228
        %p230 = pneg %p53
        %p231 = pneg %p50
        %s232 = sand.u32 %s66, 1
        %s233 = scalar_lea.sflag [#allocation3], %s232
        %s234 = sand.u32 %s66, 1
        %s235 = smul.addr %s234, 20000
        %s236 = scalar_lea.vmem [#allocation2], %s235
        %p237 = pneg %p79
        %p238 = pneg %p76
        %s239 = sand.u32 %s92, 1
        %s240 = scalar_lea.sflag [#allocation5], %s239
        %s241 = sand.u32 %s92, 1
        %s242 = smul.addr %s241, 2
        %s243 = scalar_lea.vmem [#allocation4], %s242
        %p244 = pneg %p105
        %p245 = pneg %p102
        %p246 = pneg %p133
        %p247 = pneg %p130
        %s248 = smul.u32 2, %s24
        %p249 = scmp.lt.s32.totalorder %s25, 0
        %s250 = scalar_select %p249, %s25, 0
        %p251 = scmp.lt.s32.totalorder %s248, 3
        %s252 = scalar_select %p251, %s248, 3
        %s253 = smul.addr %s250, 4
        %s254 = sadd.s32 %s252, %s253
        %s255 = smul.addr %s254, 8
        %s256 = scalar_lea.vmem %s3, %s255
        %p257 = scmp.lt.s32.totalorder %s25, 0
        %s258 = scalar_select %p257, %s25, 0
        %s259 = smul.addr %s258, 79
        %s260 = smul.addr %s259, 8
        %s261 = scalar_lea.vmem %s0, %s260
        %s262 = smul.u32 2, %s24
        %s263 = smul.u32 2, %s24
        %p264 = scmp.lt.s32.totalorder %s25, 0
        %s265 = scalar_select %p264, %s25, 0
        %p266 = scmp.lt.s32.totalorder %s263, 3
        %s267 = scalar_select %p266, %s263, 3
        %s268 = smul.addr %s265, 4
        %s269 = sadd.s32 %s267, %s268
        %s270 = smul.addr %s269, 8
        %s271 = scalar_lea.vmem %s3, %s270
        %s272 = smul.u32 2, %s24
        %v273 = vld [vmem:[%s261] sm:$0xff]
        %v274 = vld [vmem:[%s261 + $0x8] sm:$0xff]
        %v275 = vld [vmem:[%s261 + $0x10] sm:$0xff]
        %v276 = vld [vmem:[%s261 + $0x18] sm:$0xff]
        %v277 = vld [vmem:[%s261 + $0x20] sm:$0xff]
        %v278 = vld [vmem:[%s261 + $0x28] sm:$0xff]
        %v279 = vld [vmem:[%s261 + $0x30] sm:$0xff]
        %v280 = vld [vmem:[%s261 + $0x38] sm:$0xff]
        %v281 = vld [vmem:[%s261 + $0x40] sm:$0xff]
        %v282 = vld [vmem:[%s261 + $0x48] sm:$0xff]
        %v283 = vld [vmem:[%s261 + $0x50] sm:$0xff]
        %v284 = vld [vmem:[%s261 + $0x58] sm:$0xff]
        %v285 = vld [vmem:[%s261 + $0x60] sm:$0xff]
        %v286 = vld [vmem:[%s261 + $0x68] sm:$0xff]
        %v287 = vld [vmem:[%s261 + $0x70] sm:$0xff]
        %v288 = vld [vmem:[%s261 + $0x78] sm:$0xff]
        %v289 = vld [vmem:[%s261 + $0x80] sm:$0xff]
        %v290 = vld [vmem:[%s261 + $0x88] sm:$0xff]
        %v291 = vld [vmem:[%s261 + $0x90] sm:$0xff]
        %v292 = vld [vmem:[%s261 + $0x98] sm:$0xff]
        %v293 = vld [vmem:[%s261 + $0xa0] sm:$0xff]
        %v294 = vld [vmem:[%s261 + $0xa8] sm:$0xff]
        %v295 = vld [vmem:[%s261 + $0xb0] sm:$0xff]
        %v296 = vld [vmem:[%s261 + $0xb8] sm:$0xff]
        %v297 = vld [vmem:[%s261 + $0xc0] sm:$0xff]
        %v298 = vld [vmem:[%s261 + $0xc8] sm:$0xff]
        %v299 = vld [vmem:[%s261 + $0xd0] sm:$0xff]
        %v300 = vld [vmem:[%s261 + $0xd8] sm:$0xff]
        %v301 = vld [vmem:[%s261 + $0xe0] sm:$0xff]
        %v302 = vld [vmem:[%s261 + $0xe8] sm:$0xff]
        %v303 = vld [vmem:[%s261 + $0xf0] sm:$0xff]
        %v304 = vld [vmem:[%s261 + $0xf8] sm:$0xff]
        %v305 = vld [vmem:[%s261 + $0x100] sm:$0xff]
        %v306 = vld [vmem:[%s261 + $0x108] sm:$0xff]
        %v307 = vld [vmem:[%s261 + $0x110] sm:$0xff]
        %v308 = vld [vmem:[%s261 + $0x118] sm:$0xff]
        %v309 = vld [vmem:[%s261 + $0x120] sm:$0xff]
        %v310 = vld [vmem:[%s261 + $0x128] sm:$0xff]
        %v311 = vld [vmem:[%s261 + $0x130] sm:$0xff]
        %v312 = vld [vmem:[%s261 + $0x138] sm:$0xff]
        %v313 = vld [vmem:[%s261 + $0x140] sm:$0xff]
        %v314 = vld [vmem:[%s261 + $0x148] sm:$0xff]
        %v315 = vld [vmem:[%s261 + $0x150] sm:$0xff]
        %v316 = vld [vmem:[%s261 + $0x158] sm:$0xff]
        %v317 = vld [vmem:[%s261 + $0x160] sm:$0xff]
        %v318 = vld [vmem:[%s261 + $0x168] sm:$0xff]
        %v319 = vld [vmem:[%s261 + $0x170] sm:$0xff]
        %v320 = vld [vmem:[%s261 + $0x178] sm:$0xff]
        %v321 = vld [vmem:[%s261 + $0x180] sm:$0xff]
        %v322 = vld [vmem:[%s261 + $0x188] sm:$0xff]
        %v323 = vld [vmem:[%s261 + $0x190] sm:$0xff]
        %v324 = vld [vmem:[%s261 + $0x198] sm:$0xff]
        %v325 = vld [vmem:[%s261 + $0x1a0] sm:$0xff]
        %v326 = vld [vmem:[%s261 + $0x1a8] sm:$0xff]
        %v327 = vld [vmem:[%s261 + $0x1b0] sm:$0xff]
        %v328 = vld [vmem:[%s261 + $0x1b8] sm:$0xff]
        %v329 = vld [vmem:[%s261 + $0x1c0] sm:$0xff]
        %v330 = vld [vmem:[%s261 + $0x1c8] sm:$0xff]
        %v331 = vld [vmem:[%s261 + $0x1d0] sm:$0xff]
        %v332 = vld [vmem:[%s261 + $0x1d8] sm:$0xff]
        %v333 = vld [vmem:[%s261 + $0x1e0] sm:$0xff]
        %v334 = vld [vmem:[%s261 + $0x1e8] sm:$0xff]
        %v335 = vld [vmem:[%s261 + $0x1f0] sm:$0xff]
        %v336 = vld [vmem:[%s261 + $0x1f8] sm:$0xff]
        %v337 = vld [vmem:[%s261 + $0x200] sm:$0xff]
        %v338 = vld [vmem:[%s261 + $0x208] sm:$0xff]
        %v339 = vld [vmem:[%s261 + $0x210] sm:$0xff]
        %v340 = vld [vmem:[%s261 + $0x218] sm:$0xff]
        %v341 = vld [vmem:[%s261 + $0x220] sm:$0xff]
        %v342 = vld [vmem:[%s261 + $0x228] sm:$0xff]
        %v343 = vld [vmem:[%s261 + $0x230] sm:$0xff]
        %v344 = vld [vmem:[%s261 + $0x238] sm:$0xff]
        %v345 = vld [vmem:[%s261 + $0x240] sm:$0xff]
        %v346 = vld [vmem:[%s261 + $0x248] sm:$0xff]
        %v347 = vld [vmem:[%s261 + $0x250] sm:$0xff]
        %v348 = vld [vmem:[%s261 + $0x258] sm:$0xff]
        %v349 = vld [vmem:[%s261 + $0x260] sm:$0xff]
        %v350 = vld [vmem:[%s261 + $0x268] sm:$0xff]
        %v351 = vld [vmem:[%s261 + $0x270] sm:$0xff]
        %v352 = vld [vmem:[%s211] sm:$0xff]
        %v353 = vld [vmem:[%s211 + $0x8] sm:$0xff]
        %v354 = vld [vmem:[%s211 + $0x10] sm:$0xff]
        %v355 = vld [vmem:[%s211 + $0x18] sm:$0xff]
        %v356 = vld [vmem:[%s211 + $0x20] sm:$0xff]
        %v357 = vld [vmem:[%s211 + $0x28] sm:$0xff]
        %v358 = vld [vmem:[%s211 + $0x30] sm:$0xff]
        %v359 = vld [vmem:[%s211 + $0x38] sm:$0xff]
        %v360 = vld [vmem:[%s211 + $0x40] sm:$0xff]
        %v361 = vld [vmem:[%s211 + $0x48] sm:$0xff]
        %v362 = vld [vmem:[%s211 + $0x50] sm:$0xff]
        %v363 = vld [vmem:[%s211 + $0x58] sm:$0xff]
        %v364 = vld [vmem:[%s211 + $0x60] sm:$0xff]
        %v365 = vld [vmem:[%s211 + $0x68] sm:$0xff]
        %v366 = vld [vmem:[%s211 + $0x70] sm:$0xff]
        %v367 = vld [vmem:[%s211 + $0x78] sm:$0xff]
        %v368 = vld [vmem:[%s211 + $0x80] sm:$0xff]
        %v369 = vld [vmem:[%s211 + $0x88] sm:$0xff]
        %v370 = vld [vmem:[%s211 + $0x90] sm:$0xff]
        %v371 = vld [vmem:[%s211 + $0x98] sm:$0xff]
        %v372 = vld [vmem:[%s211 + $0xa0] sm:$0xff]
        %v373 = vld [vmem:[%s211 + $0xa8] sm:$0xff]
        %v374 = vld [vmem:[%s211 + $0xb0] sm:$0xff]
        %v375 = vld [vmem:[%s211 + $0xb8] sm:$0xff]
        %v376 = vld [vmem:[%s211 + $0xc0] sm:$0xff]
        %v377 = vld [vmem:[%s211 + $0xc8] sm:$0xff]
        %v378 = vld [vmem:[%s211 + $0xd0] sm:$0xff]
        %v379 = vld [vmem:[%s211 + $0xd8] sm:$0xff]
        %v380 = vld [vmem:[%s211 + $0xe0] sm:$0xff]
        %v381 = vld [vmem:[%s211 + $0xe8] sm:$0xff]
        %v382 = vld [vmem:[%s211 + $0xf0] sm:$0xff]
        %v383 = vld [vmem:[%s211 + $0xf8] sm:$0xff]
        %v384 = vld [vmem:[%s211 + $0x100] sm:$0xff]
        %v385 = vld [vmem:[%s211 + $0x108] sm:$0xff]
        %v386 = vld [vmem:[%s211 + $0x110] sm:$0xff]
        %v387 = vld [vmem:[%s211 + $0x118] sm:$0xff]
        %v388 = vld [vmem:[%s211 + $0x120] sm:$0xff]
        %v389 = vld [vmem:[%s211 + $0x128] sm:$0xff]
        %v390 = vld [vmem:[%s211 + $0x130] sm:$0xff]
        %v391 = vld [vmem:[%s211 + $0x138] sm:$0xff]
        %v392 = vld [vmem:[%s211 + $0x140] sm:$0xff]
        %v393 = vld [vmem:[%s211 + $0x148] sm:$0xff]
        %v394 = vld [vmem:[%s211 + $0x150] sm:$0xff]
        %v395 = vld [vmem:[%s211 + $0x158] sm:$0xff]
        %v396 = vld [vmem:[%s211 + $0x160] sm:$0xff]
        %v397 = vld [vmem:[%s211 + $0x168] sm:$0xff]
        %v398 = vld [vmem:[%s211 + $0x170] sm:$0xff]
        %v399 = vld [vmem:[%s211 + $0x178] sm:$0xff]
        %v400 = vld [vmem:[%s211 + $0x180] sm:$0xff]
        %v401 = vld [vmem:[%s211 + $0x188] sm:$0xff]
        %v402 = vld [vmem:[%s211 + $0x190] sm:$0xff]
        %v403 = vld [vmem:[%s211 + $0x198] sm:$0xff]
        %v404 = vld [vmem:[%s211 + $0x1a0] sm:$0xff]
        %v405 = vld [vmem:[%s211 + $0x1a8] sm:$0xff]
        %v406 = vld [vmem:[%s211 + $0x1b0] sm:$0xff]
        %v407 = vld [vmem:[%s211 + $0x1b8] sm:$0xff]
        %v408 = vld [vmem:[%s211 + $0x1c0] sm:$0xff]
        %v409 = vld [vmem:[%s211 + $0x1c8] sm:$0xff]
        %v410 = vld [vmem:[%s211 + $0x1d0] sm:$0xff]
        %v411 = vld [vmem:[%s211 + $0x1d8] sm:$0xff]
        %v412 = vld [vmem:[%s211 + $0x1e0] sm:$0xff]
        %v413 = vld [vmem:[%s211 + $0x1e8] sm:$0xff]
        %v414 = vld [vmem:[%s211 + $0x1f0] sm:$0xff]
        %v415 = vld [vmem:[%s211 + $0x1f8] sm:$0xff]
        %v416 = vld [vmem:[%s211 + $0x200] sm:$0xff]
        %v417 = vld [vmem:[%s211 + $0x208] sm:$0xff]
        %v418 = vld [vmem:[%s211 + $0x210] sm:$0xff]
        %v419 = vld [vmem:[%s211 + $0x218] sm:$0xff]
        %v420 = vld [vmem:[%s211 + $0x220] sm:$0xff]
        %v421 = vld [vmem:[%s211 + $0x228] sm:$0xff]
        %v422 = vld [vmem:[%s211 + $0x230] sm:$0xff]
        %v423 = vld [vmem:[%s211 + $0x238] sm:$0xff]
        %v424 = vld [vmem:[%s211 + $0x240] sm:$0xff]
        %v425 = vld [vmem:[%s211 + $0x248] sm:$0xff]
        %v426 = vld [vmem:[%s211 + $0x250] sm:$0xff]
        %v427 = vld [vmem:[%s211 + $0x258] sm:$0xff]
        %v428 = vld [vmem:[%s211 + $0x260] sm:$0xff]
        %v429 = vld [vmem:[%s211 + $0x268] sm:$0xff]
        %v430 = vld [vmem:[%s211 + $0x270] sm:$0xff]
        %v431 = vld [vmem:[%s211 + $0x278] sm:$0xff]
        %v432 = vld [vmem:[%s211 + $0x280] sm:$0xff]
        %v433 = vld [vmem:[%s211 + $0x288] sm:$0xff]
        %v434 = vld [vmem:[%s211 + $0x290] sm:$0xff]
        %v435 = vld [vmem:[%s211 + $0x298] sm:$0xff]
        %v436 = vld [vmem:[%s211 + $0x2a0] sm:$0xff]
        %v437 = vld [vmem:[%s211 + $0x2a8] sm:$0xff]
        %v438 = vld [vmem:[%s211 + $0x2b0] sm:$0xff]
        %v439 = vld [vmem:[%s211 + $0x2b8] sm:$0xff]
        %v440 = vld [vmem:[%s211 + $0x2c0] sm:$0xff]
        %v441 = vld [vmem:[%s211 + $0x2c8] sm:$0xff]
        %v442 = vld [vmem:[%s211 + $0x2d0] sm:$0xff]
        %v443 = vld [vmem:[%s211 + $0x2d8] sm:$0xff]
        %v444 = vld [vmem:[%s211 + $0x2e0] sm:$0xff]
        %v445 = vld [vmem:[%s211 + $0x2e8] sm:$0xff]
        %v446 = vld [vmem:[%s211 + $0x2f0] sm:$0xff]
        %v447 = vld [vmem:[%s211 + $0x2f8] sm:$0xff]
        %v448 = vld [vmem:[%s211 + $0x300] sm:$0xff]
        %v449 = vld [vmem:[%s211 + $0x308] sm:$0xff]
        %v450 = vld [vmem:[%s211 + $0x310] sm:$0xff]
        %v451 = vld [vmem:[%s211 + $0x318] sm:$0xff]
        %v452 = vld [vmem:[%s211 + $0x320] sm:$0xff]
        %v453 = vld [vmem:[%s211 + $0x328] sm:$0xff]
        %v454 = vld [vmem:[%s211 + $0x330] sm:$0xff]
        %v455 = vld [vmem:[%s211 + $0x338] sm:$0xff]
        %v456 = vld [vmem:[%s211 + $0x340] sm:$0xff]
        %v457 = vld [vmem:[%s211 + $0x348] sm:$0xff]
        %v458 = vld [vmem:[%s211 + $0x350] sm:$0xff]
        %v459 = vld [vmem:[%s211 + $0x358] sm:$0xff]
        %v460 = vld [vmem:[%s211 + $0x360] sm:$0xff]
        %v461 = vld [vmem:[%s211 + $0x368] sm:$0xff]
        %v462 = vld [vmem:[%s211 + $0x370] sm:$0xff]
        %v463 = vld [vmem:[%s211 + $0x378] sm:$0xff]
        %v464 = vld [vmem:[%s211 + $0x380] sm:$0xff]
        %v465 = vld [vmem:[%s211 + $0x388] sm:$0xff]
        %v466 = vld [vmem:[%s211 + $0x390] sm:$0xff]
        %v467 = vld [vmem:[%s211 + $0x398] sm:$0xff]
        %v468 = vld [vmem:[%s211 + $0x3a0] sm:$0xff]
        %v469 = vld [vmem:[%s211 + $0x3a8] sm:$0xff]
        %v470 = vld [vmem:[%s211 + $0x3b0] sm:$0xff]
        %v471 = vld [vmem:[%s211 + $0x3b8] sm:$0xff]
        %v472 = vld [vmem:[%s211 + $0x3c0] sm:$0xff]
        %v473 = vld [vmem:[%s211 + $0x3c8] sm:$0xff]
        %v474 = vld [vmem:[%s211 + $0x3d0] sm:$0xff]
        %v475 = vld [vmem:[%s211 + $0x3d8] sm:$0xff]
        %v476 = vld [vmem:[%s211 + $0x3e0] sm:$0xff]
        %v477 = vld [vmem:[%s211 + $0x3e8] sm:$0xff]
        %v478 = vld [vmem:[%s211 + $0x3f0] sm:$0xff]
        %v479 = vld [vmem:[%s211 + $0x3f8] sm:$0xff]
        %v480 = vld [vmem:[%s211 + $0x400] sm:$0xff]
        %v481 = vld [vmem:[%s211 + $0x408] sm:$0xff]
        %v482 = vld [vmem:[%s211 + $0x410] sm:$0xff]
        %v483 = vld [vmem:[%s211 + $0x418] sm:$0xff]
        %v484 = vld [vmem:[%s211 + $0x420] sm:$0xff]
        %v485 = vld [vmem:[%s211 + $0x428] sm:$0xff]
        %v486 = vld [vmem:[%s211 + $0x430] sm:$0xff]
        %v487 = vld [vmem:[%s211 + $0x438] sm:$0xff]
        %v488 = vld [vmem:[%s211 + $0x440] sm:$0xff]
        %v489 = vld [vmem:[%s211 + $0x448] sm:$0xff]
        %v490 = vld [vmem:[%s211 + $0x450] sm:$0xff]
        %v491 = vld [vmem:[%s211 + $0x458] sm:$0xff]
        %v492 = vld [vmem:[%s211 + $0x460] sm:$0xff]
        %v493 = vld [vmem:[%s211 + $0x468] sm:$0xff]
        %v494 = vld [vmem:[%s211 + $0x470] sm:$0xff]
        %v495 = vld [vmem:[%s211 + $0x478] sm:$0xff]
        %v496 = vld [vmem:[%s211 + $0x480] sm:$0xff]
        %v497 = vld [vmem:[%s211 + $0x488] sm:$0xff]
        %v498 = vld [vmem:[%s211 + $0x490] sm:$0xff]
        %v499 = vld [vmem:[%s211 + $0x498] sm:$0xff]
        %v500 = vld [vmem:[%s211 + $0x4a0] sm:$0xff]
        %v501 = vld [vmem:[%s211 + $0x4a8] sm:$0xff]
        %v502 = vld [vmem:[%s211 + $0x4b0] sm:$0xff]
        %v503 = vld [vmem:[%s211 + $0x4b8] sm:$0xff]
        %v504 = vld [vmem:[%s211 + $0x4c0] sm:$0xff]
        %v505 = vld [vmem:[%s211 + $0x4c8] sm:$0xff]
        %v506 = vld [vmem:[%s211 + $0x4d0] sm:$0xff]
        %v507 = vld [vmem:[%s211 + $0x4d8] sm:$0xff]
        %v508 = vld [vmem:[%s211 + $0x4e0] sm:$0xff]
        %v509 = vld [vmem:[%s211 + $0x4e8] sm:$0xff]
        %v510 = vld [vmem:[%s211 + $0x4f0] sm:$0xff]
        %v511 = vld [vmem:[%s211 + $0x4f8] sm:$0xff]
        %v512 = vld [vmem:[%s211 + $0x500] sm:$0xff]
        %v513 = vld [vmem:[%s211 + $0x508] sm:$0xff]
        %v514 = vld [vmem:[%s211 + $0x510] sm:$0xff]
        %v515 = vld [vmem:[%s211 + $0x518] sm:$0xff]
        %v516 = vld [vmem:[%s211 + $0x520] sm:$0xff]
        %v517 = vld [vmem:[%s211 + $0x528] sm:$0xff]
        %v518 = vld [vmem:[%s211 + $0x530] sm:$0xff]
        %v519 = vld [vmem:[%s211 + $0x538] sm:$0xff]
        %v520 = vld [vmem:[%s211 + $0x540] sm:$0xff]
        %v521 = vld [vmem:[%s211 + $0x548] sm:$0xff]
        %v522 = vld [vmem:[%s211 + $0x550] sm:$0xff]
        %v523 = vld [vmem:[%s211 + $0x558] sm:$0xff]
        %v524 = vld [vmem:[%s211 + $0x560] sm:$0xff]
        %v525 = vld [vmem:[%s211 + $0x568] sm:$0xff]
        %v526 = vld [vmem:[%s211 + $0x570] sm:$0xff]
        %v527 = vld [vmem:[%s211 + $0x578] sm:$0xff]
        %v528 = vld [vmem:[%s211 + $0x580] sm:$0xff]
        %v529 = vld [vmem:[%s211 + $0x588] sm:$0xff]
        %v530 = vld [vmem:[%s211 + $0x590] sm:$0xff]
        %v531 = vld [vmem:[%s211 + $0x598] sm:$0xff]
        %v532 = vld [vmem:[%s211 + $0x5a0] sm:$0xff]
        %v533 = vld [vmem:[%s211 + $0x5a8] sm:$0xff]
        %v534 = vld [vmem:[%s211 + $0x5b0] sm:$0xff]
        %v535 = vld [vmem:[%s211 + $0x5b8] sm:$0xff]
        %v536 = vld [vmem:[%s211 + $0x5c0] sm:$0xff]
        %v537 = vld [vmem:[%s211 + $0x5c8] sm:$0xff]
        %v538 = vld [vmem:[%s211 + $0x5d0] sm:$0xff]
        %v539 = vld [vmem:[%s211 + $0x5d8] sm:$0xff]
        %v540 = vld [vmem:[%s211 + $0x5e0] sm:$0xff]
        %v541 = vld [vmem:[%s211 + $0x5e8] sm:$0xff]
        %v542 = vld [vmem:[%s211 + $0x5f0] sm:$0xff]
        %v543 = vld [vmem:[%s211 + $0x5f8] sm:$0xff]
        %v544 = vld [vmem:[%s211 + $0x600] sm:$0xff]
        %v545 = vld [vmem:[%s211 + $0x608] sm:$0xff]
        %v546 = vld [vmem:[%s211 + $0x610] sm:$0xff]
        %v547 = vld [vmem:[%s211 + $0x618] sm:$0xff]
        %v548 = vld [vmem:[%s211 + $0x620] sm:$0xff]
        %v549 = vld [vmem:[%s211 + $0x628] sm:$0xff]
        %v550 = vld [vmem:[%s211 + $0x630] sm:$0xff]
        %v551 = vld [vmem:[%s211 + $0x638] sm:$0xff]
        %v552 = vld [vmem:[%s211 + $0x640] sm:$0xff]
        %v553 = vld [vmem:[%s211 + $0x648] sm:$0xff]
        %v554 = vld [vmem:[%s211 + $0x650] sm:$0xff]
        %v555 = vld [vmem:[%s211 + $0x658] sm:$0xff]
        %v556 = vld [vmem:[%s211 + $0x660] sm:$0xff]
        %v557 = vld [vmem:[%s211 + $0x668] sm:$0xff]
        %v558 = vld [vmem:[%s211 + $0x670] sm:$0xff]
        %v559 = vld [vmem:[%s211 + $0x678] sm:$0xff]
        %v560 = vld [vmem:[%s211 + $0x680] sm:$0xff]
        %v561 = vld [vmem:[%s211 + $0x688] sm:$0xff]
        %v562 = vld [vmem:[%s211 + $0x690] sm:$0xff]
        %v563 = vld [vmem:[%s211 + $0x698] sm:$0xff]
        %v564 = vld [vmem:[%s211 + $0x6a0] sm:$0xff]
        %v565 = vld [vmem:[%s211 + $0x6a8] sm:$0xff]
        %v566 = vld [vmem:[%s211 + $0x6b0] sm:$0xff]
        %v567 = vld [vmem:[%s211 + $0x6b8] sm:$0xff]
        %v568 = vld [vmem:[%s211 + $0x6c0] sm:$0xff]
        %v569 = vld [vmem:[%s211 + $0x6c8] sm:$0xff]
        %v570 = vld [vmem:[%s211 + $0x6d0] sm:$0xff]
        %v571 = vld [vmem:[%s211 + $0x6d8] sm:$0xff]
        %v572 = vld [vmem:[%s211 + $0x6e0] sm:$0xff]
        %v573 = vld [vmem:[%s211 + $0x6e8] sm:$0xff]
        %v574 = vld [vmem:[%s211 + $0x6f0] sm:$0xff]
        %v575 = vld [vmem:[%s211 + $0x6f8] sm:$0xff]
        %v576 = vld [vmem:[%s211 + $0x700] sm:$0xff]
        %v577 = vld [vmem:[%s211 + $0x708] sm:$0xff]
        %v578 = vld [vmem:[%s211 + $0x710] sm:$0xff]
        %v579 = vld [vmem:[%s211 + $0x718] sm:$0xff]
        %v580 = vld [vmem:[%s211 + $0x720] sm:$0xff]
        %v581 = vld [vmem:[%s211 + $0x728] sm:$0xff]
        %v582 = vld [vmem:[%s211 + $0x730] sm:$0xff]
        %v583 = vld [vmem:[%s211 + $0x738] sm:$0xff]
        %v584 = vld [vmem:[%s211 + $0x740] sm:$0xff]
        %v585 = vld [vmem:[%s211 + $0x748] sm:$0xff]
        %v586 = vld [vmem:[%s211 + $0x750] sm:$0xff]
        %v587 = vld [vmem:[%s211 + $0x758] sm:$0xff]
        %v588 = vld [vmem:[%s211 + $0x760] sm:$0xff]
        %v589 = vld [vmem:[%s211 + $0x768] sm:$0xff]
        %v590 = vld [vmem:[%s211 + $0x770] sm:$0xff]
        %v591 = vld [vmem:[%s211 + $0x778] sm:$0xff]
        %v592 = vld [vmem:[%s211 + $0x780] sm:$0xff]
        %v593 = vld [vmem:[%s211 + $0x788] sm:$0xff]
        %v594 = vld [vmem:[%s211 + $0x790] sm:$0xff]
        %v595 = vld [vmem:[%s211 + $0x798] sm:$0xff]
        %v596 = vld [vmem:[%s211 + $0x7a0] sm:$0xff]
        %v597 = vld [vmem:[%s211 + $0x7a8] sm:$0xff]
        %v598 = vld [vmem:[%s211 + $0x7b0] sm:$0xff]
        %v599 = vld [vmem:[%s211 + $0x7b8] sm:$0xff]
        %v600 = vld [vmem:[%s211 + $0x7c0] sm:$0xff]
        %v601 = vld [vmem:[%s211 + $0x7c8] sm:$0xff]
        %v602 = vld [vmem:[%s211 + $0x7d0] sm:$0xff]
        %v603 = vld [vmem:[%s211 + $0x7d8] sm:$0xff]
        %v604 = vld [vmem:[%s211 + $0x7e0] sm:$0xff]
        %v605 = vld [vmem:[%s211 + $0x7e8] sm:$0xff]
        %v606 = vld [vmem:[%s211 + $0x7f0] sm:$0xff]
        %v607 = vld [vmem:[%s211 + $0x7f8] sm:$0xff]
        %v608 = vld [vmem:[%s211 + $0x800] sm:$0xff]
        %v609 = vld [vmem:[%s211 + $0x808] sm:$0xff]
        %v610 = vld [vmem:[%s211 + $0x810] sm:$0xff]
        %v611 = vld [vmem:[%s211 + $0x818] sm:$0xff]
        %v612 = vld [vmem:[%s211 + $0x820] sm:$0xff]
        %v613 = vld [vmem:[%s211 + $0x828] sm:$0xff]
        %v614 = vld [vmem:[%s211 + $0x830] sm:$0xff]
        %v615 = vld [vmem:[%s211 + $0x838] sm:$0xff]
        %v616 = vld [vmem:[%s211 + $0x840] sm:$0xff]
        %v617 = vld [vmem:[%s211 + $0x848] sm:$0xff]
        %v618 = vld [vmem:[%s211 + $0x850] sm:$0xff]
        %v619 = vld [vmem:[%s211 + $0x858] sm:$0xff]
        %v620 = vld [vmem:[%s211 + $0x860] sm:$0xff]
        %v621 = vld [vmem:[%s211 + $0x868] sm:$0xff]
        %v622 = vld [vmem:[%s211 + $0x870] sm:$0xff]
        %v623 = vld [vmem:[%s211 + $0x878] sm:$0xff]
        %v624 = vld [vmem:[%s211 + $0x880] sm:$0xff]
        %v625 = vld [vmem:[%s211 + $0x888] sm:$0xff]
        %v626 = vld [vmem:[%s211 + $0x890] sm:$0xff]
        %v627 = vld [vmem:[%s211 + $0x898] sm:$0xff]
        %v628 = vld [vmem:[%s211 + $0x8a0] sm:$0xff]
        %v629 = vld [vmem:[%s211 + $0x8a8] sm:$0xff]
        %v630 = vld [vmem:[%s211 + $0x8b0] sm:$0xff]
        %v631 = vld [vmem:[%s211 + $0x8b8] sm:$0xff]
        %v632 = vld [vmem:[%s211 + $0x8c0] sm:$0xff]
        %v633 = vld [vmem:[%s211 + $0x8c8] sm:$0xff]
        %v634 = vld [vmem:[%s211 + $0x8d0] sm:$0xff]
        %v635 = vld [vmem:[%s211 + $0x8d8] sm:$0xff]
        %v636 = vld [vmem:[%s211 + $0x8e0] sm:$0xff]
        %v637 = vld [vmem:[%s211 + $0x8e8] sm:$0xff]
        %v638 = vld [vmem:[%s211 + $0x8f0] sm:$0xff]
        %v639 = vld [vmem:[%s211 + $0x8f8] sm:$0xff]
        %v640 = vld [vmem:[%s211 + $0x900] sm:$0xff]
        %v641 = vld [vmem:[%s211 + $0x908] sm:$0xff]
        %v642 = vld [vmem:[%s211 + $0x910] sm:$0xff]
        %v643 = vld [vmem:[%s211 + $0x918] sm:$0xff]
        %v644 = vld [vmem:[%s211 + $0x920] sm:$0xff]
        %v645 = vld [vmem:[%s211 + $0x928] sm:$0xff]
        %v646 = vld [vmem:[%s211 + $0x930] sm:$0xff]
        %v647 = vld [vmem:[%s211 + $0x938] sm:$0xff]
        %v648 = vld [vmem:[%s211 + $0x940] sm:$0xff]
        %v649 = vld [vmem:[%s211 + $0x948] sm:$0xff]
        %v650 = vld [vmem:[%s211 + $0x950] sm:$0xff]
        %v651 = vld [vmem:[%s211 + $0x958] sm:$0xff]
        %v652 = vld [vmem:[%s211 + $0x960] sm:$0xff]
        %v653 = vld [vmem:[%s211 + $0x968] sm:$0xff]
        %v654 = vld [vmem:[%s211 + $0x970] sm:$0xff]
        %v655 = vld [vmem:[%s211 + $0x978] sm:$0xff]
        %v656 = vld [vmem:[%s211 + $0x980] sm:$0xff]
        %v657 = vld [vmem:[%s211 + $0x988] sm:$0xff]
        %v658 = vld [vmem:[%s211 + $0x990] sm:$0xff]
        %v659 = vld [vmem:[%s211 + $0x998] sm:$0xff]
        %v660 = vld [vmem:[%s211 + $0x9a0] sm:$0xff]
        %v661 = vld [vmem:[%s211 + $0x9a8] sm:$0xff]
        %v662 = vld [vmem:[%s211 + $0x9b0] sm:$0xff]
        %v663 = vld [vmem:[%s211 + $0x9b8] sm:$0xff]
        %v664 = vld [vmem:[%s211 + $0x9c0] sm:$0xff]
        %v665 = vld [vmem:[%s211 + $0x9c8] sm:$0xff]
        %v666 = vld [vmem:[%s211 + $0x9d0] sm:$0xff]
        %v667 = vld [vmem:[%s211 + $0x9d8] sm:$0xff]
        %v668 = vld [vmem:[%s211 + $0x9e0] sm:$0xff]
        %v669 = vld [vmem:[%s211 + $0x9e8] sm:$0xff]
        %v670 = vld [vmem:[%s211 + $0x9f0] sm:$0xff]
        %v671 = vld [vmem:[%s211 + $0x9f8] sm:$0xff]
        %v672 = vld [vmem:[%s211 + $0xa00] sm:$0xff]
        %v673 = vld [vmem:[%s211 + $0xa08] sm:$0xff]
        %v674 = vld [vmem:[%s211 + $0xa10] sm:$0xff]
        %v675 = vld [vmem:[%s211 + $0xa18] sm:$0xff]
        %v676 = vld [vmem:[%s211 + $0xa20] sm:$0xff]
        %v677 = vld [vmem:[%s211 + $0xa28] sm:$0xff]
        %v678 = vld [vmem:[%s211 + $0xa30] sm:$0xff]
        %v679 = vld [vmem:[%s211 + $0xa38] sm:$0xff]
        %v680 = vld [vmem:[%s211 + $0xa40] sm:$0xff]
        %v681 = vld [vmem:[%s211 + $0xa48] sm:$0xff]
        %v682 = vld [vmem:[%s211 + $0xa50] sm:$0xff]
        %v683 = vld [vmem:[%s211 + $0xa58] sm:$0xff]
        %v684 = vld [vmem:[%s211 + $0xa60] sm:$0xff]
        %v685 = vld [vmem:[%s211 + $0xa68] sm:$0xff]
        %v686 = vld [vmem:[%s211 + $0xa70] sm:$0xff]
        %v687 = vld [vmem:[%s211 + $0xa78] sm:$0xff]
        %v688 = vld [vmem:[%s211 + $0xa80] sm:$0xff]
        %v689 = vld [vmem:[%s211 + $0xa88] sm:$0xff]
        %v690 = vld [vmem:[%s211 + $0xa90] sm:$0xff]
        %v691 = vld [vmem:[%s211 + $0xa98] sm:$0xff]
        %v692 = vld [vmem:[%s211 + $0xaa0] sm:$0xff]
        %v693 = vld [vmem:[%s211 + $0xaa8] sm:$0xff]
        %v694 = vld [vmem:[%s211 + $0xab0] sm:$0xff]
        %v695 = vld [vmem:[%s211 + $0xab8] sm:$0xff]
        %v696 = vld [vmem:[%s211 + $0xac0] sm:$0xff]
        %v697 = vld [vmem:[%s211 + $0xac8] sm:$0xff]
        %v698 = vld [vmem:[%s211 + $0xad0] sm:$0xff]
        %v699 = vld [vmem:[%s211 + $0xad8] sm:$0xff]
        %v700 = vld [vmem:[%s211 + $0xae0] sm:$0xff]
        %v701 = vld [vmem:[%s211 + $0xae8] sm:$0xff]
        %v702 = vld [vmem:[%s211 + $0xaf0] sm:$0xff]
        %v703 = vld [vmem:[%s211 + $0xaf8] sm:$0xff]
        %v704 = vld [vmem:[%s211 + $0xb00] sm:$0xff]
        %v705 = vld [vmem:[%s211 + $0xb08] sm:$0xff]
        %v706 = vld [vmem:[%s211 + $0xb10] sm:$0xff]
        %v707 = vld [vmem:[%s211 + $0xb18] sm:$0xff]
        %v708 = vld [vmem:[%s211 + $0xb20] sm:$0xff]
        %v709 = vld [vmem:[%s211 + $0xb28] sm:$0xff]
        %v710 = vld [vmem:[%s211 + $0xb30] sm:$0xff]
        %v711 = vld [vmem:[%s211 + $0xb38] sm:$0xff]
        %v712 = vld [vmem:[%s211 + $0xb40] sm:$0xff]
        %v713 = vld [vmem:[%s211 + $0xb48] sm:$0xff]
        %v714 = vld [vmem:[%s211 + $0xb50] sm:$0xff]
        %v715 = vld [vmem:[%s211 + $0xb58] sm:$0xff]
        %v716 = vld [vmem:[%s211 + $0xb60] sm:$0xff]
        %v717 = vld [vmem:[%s211 + $0xb68] sm:$0xff]
        %v718 = vld [vmem:[%s211 + $0xb70] sm:$0xff]
        %v719 = vld [vmem:[%s211 + $0xb78] sm:$0xff]
        %v720 = vld [vmem:[%s211 + $0xb80] sm:$0xff]
        %v721 = vld [vmem:[%s211 + $0xb88] sm:$0xff]
        %v722 = vld [vmem:[%s211 + $0xb90] sm:$0xff]
        %v723 = vld [vmem:[%s211 + $0xb98] sm:$0xff]
        %v724 = vld [vmem:[%s211 + $0xba0] sm:$0xff]
        %v725 = vld [vmem:[%s211 + $0xba8] sm:$0xff]
        %v726 = vld [vmem:[%s211 + $0xbb0] sm:$0xff]
        %v727 = vld [vmem:[%s211 + $0xbb8] sm:$0xff]
        %v728 = vld [vmem:[%s211 + $0xbc0] sm:$0xff]
        %v729 = vld [vmem:[%s211 + $0xbc8] sm:$0xff]
        %v730 = vld [vmem:[%s211 + $0xbd0] sm:$0xff]
        %v731 = vld [vmem:[%s211 + $0xbd8] sm:$0xff]
        %v732 = vld [vmem:[%s211 + $0xbe0] sm:$0xff]
        %v733 = vld [vmem:[%s211 + $0xbe8] sm:$0xff]
        %v734 = vld [vmem:[%s211 + $0xbf0] sm:$0xff]
        %v735 = vld [vmem:[%s211 + $0xbf8] sm:$0xff]
        %v736 = vld [vmem:[%s211 + $0xc00] sm:$0xff]
        %v737 = vld [vmem:[%s211 + $0xc08] sm:$0xff]
        %v738 = vld [vmem:[%s211 + $0xc10] sm:$0xff]
        %v739 = vld [vmem:[%s211 + $0xc18] sm:$0xff]
        %v740 = vld [vmem:[%s211 + $0xc20] sm:$0xff]
        %v741 = vld [vmem:[%s211 + $0xc28] sm:$0xff]
        %v742 = vld [vmem:[%s211 + $0xc30] sm:$0xff]
        %v743 = vld [vmem:[%s211 + $0xc38] sm:$0xff]
        %v744 = vld [vmem:[%s211 + $0xc40] sm:$0xff]
        %v745 = vld [vmem:[%s211 + $0xc48] sm:$0xff]
        %v746 = vld [vmem:[%s211 + $0xc50] sm:$0xff]
        %v747 = vld [vmem:[%s211 + $0xc58] sm:$0xff]
        %v748 = vld [vmem:[%s211 + $0xc60] sm:$0xff]
        %v749 = vld [vmem:[%s211 + $0xc68] sm:$0xff]
        %v750 = vld [vmem:[%s211 + $0xc70] sm:$0xff]
        %v751 = vld [vmem:[%s211 + $0xc78] sm:$0xff]
        %v752 = vld [vmem:[%s211 + $0xc80] sm:$0xff]
        %v753 = vld [vmem:[%s211 + $0xc88] sm:$0xff]
        %v754 = vld [vmem:[%s211 + $0xc90] sm:$0xff]
        %v755 = vld [vmem:[%s211 + $0xc98] sm:$0xff]
        %v756 = vld [vmem:[%s211 + $0xca0] sm:$0xff]
        %v757 = vld [vmem:[%s211 + $0xca8] sm:$0xff]
        %v758 = vld [vmem:[%s211 + $0xcb0] sm:$0xff]
        %v759 = vld [vmem:[%s211 + $0xcb8] sm:$0xff]
        %v760 = vld [vmem:[%s211 + $0xcc0] sm:$0xff]
        %v761 = vld [vmem:[%s211 + $0xcc8] sm:$0xff]
        %v762 = vld [vmem:[%s211 + $0xcd0] sm:$0xff]
        %v763 = vld [vmem:[%s211 + $0xcd8] sm:$0xff]
        %v764 = vld [vmem:[%s211 + $0xce0] sm:$0xff]
        %v765 = vld [vmem:[%s211 + $0xce8] sm:$0xff]
        %v766 = vld [vmem:[%s211 + $0xcf0] sm:$0xff]
        %v767 = vld [vmem:[%s211 + $0xcf8] sm:$0xff]
        %v768 = vld [vmem:[%s211 + $0xd00] sm:$0xff]
        %v769 = vld [vmem:[%s211 + $0xd08] sm:$0xff]
        %v770 = vld [vmem:[%s211 + $0xd10] sm:$0xff]
        %v771 = vld [vmem:[%s211 + $0xd18] sm:$0xff]
        %v772 = vld [vmem:[%s211 + $0xd20] sm:$0xff]
        %v773 = vld [vmem:[%s211 + $0xd28] sm:$0xff]
        %v774 = vld [vmem:[%s211 + $0xd30] sm:$0xff]
        %v775 = vld [vmem:[%s211 + $0xd38] sm:$0xff]
        %v776 = vld [vmem:[%s211 + $0xd40] sm:$0xff]
        %v777 = vld [vmem:[%s211 + $0xd48] sm:$0xff]
        %v778 = vld [vmem:[%s211 + $0xd50] sm:$0xff]
        %v779 = vld [vmem:[%s211 + $0xd58] sm:$0xff]
        %v780 = vld [vmem:[%s211 + $0xd60] sm:$0xff]
        %v781 = vld [vmem:[%s211 + $0xd68] sm:$0xff]
        %v782 = vld [vmem:[%s211 + $0xd70] sm:$0xff]
        %v783 = vld [vmem:[%s211 + $0xd78] sm:$0xff]
        %v784 = vld [vmem:[%s211 + $0xd80] sm:$0xff]
        %v785 = vld [vmem:[%s211 + $0xd88] sm:$0xff]
        %v786 = vld [vmem:[%s211 + $0xd90] sm:$0xff]
        %v787 = vld [vmem:[%s211 + $0xd98] sm:$0xff]
        %v788 = vld [vmem:[%s211 + $0xda0] sm:$0xff]
        %v789 = vld [vmem:[%s211 + $0xda8] sm:$0xff]
        %v790 = vld [vmem:[%s211 + $0xdb0] sm:$0xff]
        %v791 = vld [vmem:[%s211 + $0xdb8] sm:$0xff]
        %v792 = vld [vmem:[%s211 + $0xdc0] sm:$0xff]
        %v793 = vld [vmem:[%s211 + $0xdc8] sm:$0xff]
        %v794 = vld [vmem:[%s211 + $0xdd0] sm:$0xff]
        %v795 = vld [vmem:[%s211 + $0xdd8] sm:$0xff]
        %v796 = vld [vmem:[%s211 + $0xde0] sm:$0xff]
        %v797 = vld [vmem:[%s211 + $0xde8] sm:$0xff]
        %v798 = vld [vmem:[%s211 + $0xdf0] sm:$0xff]
        %v799 = vld [vmem:[%s211 + $0xdf8] sm:$0xff]
        %v800 = vld [vmem:[%s211 + $0xe00] sm:$0xff]
        %v801 = vld [vmem:[%s211 + $0xe08] sm:$0xff]
        %v802 = vld [vmem:[%s211 + $0xe10] sm:$0xff]
        %v803 = vld [vmem:[%s211 + $0xe18] sm:$0xff]
        %v804 = vld [vmem:[%s211 + $0xe20] sm:$0xff]
        %v805 = vld [vmem:[%s211 + $0xe28] sm:$0xff]
        %v806 = vld [vmem:[%s211 + $0xe30] sm:$0xff]
        %v807 = vld [vmem:[%s211 + $0xe38] sm:$0xff]
        %v808 = vld [vmem:[%s211 + $0xe40] sm:$0xff]
        %v809 = vld [vmem:[%s211 + $0xe48] sm:$0xff]
        %v810 = vld [vmem:[%s211 + $0xe50] sm:$0xff]
        %v811 = vld [vmem:[%s211 + $0xe58] sm:$0xff]
        %v812 = vld [vmem:[%s211 + $0xe60] sm:$0xff]
        %v813 = vld [vmem:[%s211 + $0xe68] sm:$0xff]
        %v814 = vld [vmem:[%s211 + $0xe70] sm:$0xff]
        %v815 = vld [vmem:[%s211 + $0xe78] sm:$0xff]
        %v816 = vld [vmem:[%s211 + $0xe80] sm:$0xff]
        %v817 = vld [vmem:[%s211 + $0xe88] sm:$0xff]
        %v818 = vld [vmem:[%s211 + $0xe90] sm:$0xff]
        %v819 = vld [vmem:[%s211 + $0xe98] sm:$0xff]
        %v820 = vld [vmem:[%s211 + $0xea0] sm:$0xff]
        %v821 = vld [vmem:[%s211 + $0xea8] sm:$0xff]
        %v822 = vld [vmem:[%s211 + $0xeb0] sm:$0xff]
        %v823 = vld [vmem:[%s211 + $0xeb8] sm:$0xff]
        %v824 = vld [vmem:[%s211 + $0xec0] sm:$0xff]
        %v825 = vld [vmem:[%s211 + $0xec8] sm:$0xff]
        %v826 = vld [vmem:[%s211 + $0xed0] sm:$0xff]
        %v827 = vld [vmem:[%s211 + $0xed8] sm:$0xff]
        %v828 = vld [vmem:[%s211 + $0xee0] sm:$0xff]
        %v829 = vld [vmem:[%s211 + $0xee8] sm:$0xff]
        %v830 = vld [vmem:[%s211 + $0xef0] sm:$0xff]
        %v831 = vld [vmem:[%s211 + $0xef8] sm:$0xff]
        %v832 = vld [vmem:[%s211 + $0xf00] sm:$0xff]
        %v833 = vld [vmem:[%s211 + $0xf08] sm:$0xff]
        %v834 = vld [vmem:[%s211 + $0xf10] sm:$0xff]
        %v835 = vld [vmem:[%s211 + $0xf18] sm:$0xff]
        %v836 = vld [vmem:[%s211 + $0xf20] sm:$0xff]
        %v837 = vld [vmem:[%s211 + $0xf28] sm:$0xff]
        %v838 = vld [vmem:[%s211 + $0xf30] sm:$0xff]
        %v839 = vld [vmem:[%s211 + $0xf38] sm:$0xff]
        %v840 = vld [vmem:[%s211 + $0xf40] sm:$0xff]
        %v841 = vld [vmem:[%s211 + $0xf48] sm:$0xff]
        %v842 = vld [vmem:[%s211 + $0xf50] sm:$0xff]
        %v843 = vld [vmem:[%s211 + $0xf58] sm:$0xff]
        %v844 = vld [vmem:[%s211 + $0xf60] sm:$0xff]
        %v845 = vld [vmem:[%s211 + $0xf68] sm:$0xff]
        %v846 = vld [vmem:[%s211 + $0xf70] sm:$0xff]
        %v847 = vld [vmem:[%s211 + $0xf78] sm:$0xff]
        %v848 = vld [vmem:[%s211 + $0xf80] sm:$0xff]
        %v849 = vld [vmem:[%s211 + $0xf88] sm:$0xff]
        %v850 = vld [vmem:[%s211 + $0xf90] sm:$0xff]
        %v851 = vld [vmem:[%s211 + $0xf98] sm:$0xff]
        %v852 = vld [vmem:[%s211 + $0xfa0] sm:$0xff]
        %v853 = vld [vmem:[%s211 + $0xfa8] sm:$0xff]
        %v854 = vld [vmem:[%s211 + $0xfb0] sm:$0xff]
        %v855 = vld [vmem:[%s211 + $0xfb8] sm:$0xff]
        %v856 = vld [vmem:[%s211 + $0xfc0] sm:$0xff]
        %v857 = vld [vmem:[%s211 + $0xfc8] sm:$0xff]
        %v858 = vld [vmem:[%s211 + $0xfd0] sm:$0xff]
        %v859 = vld [vmem:[%s211 + $0xfd8] sm:$0xff]
        %v860 = vld [vmem:[%s211 + $0xfe0] sm:$0xff]
        %v861 = vld [vmem:[%s211 + $0xfe8] sm:$0xff]
        %v862 = vld [vmem:[%s211 + $0xff0] sm:$0xff]
        %v863 = vld [vmem:[%s211 + $0xff8] sm:$0xff]
        %v864 = vld [vmem:[%s211 + $0x1000] sm:$0xff]
        %v865 = vld [vmem:[%s211 + $0x1008] sm:$0xff]
        %v866 = vld [vmem:[%s211 + $0x1010] sm:$0xff]
        %v867 = vld [vmem:[%s211 + $0x1018] sm:$0xff]
        %v868 = vld [vmem:[%s211 + $0x1020] sm:$0xff]
        %v869 = vld [vmem:[%s211 + $0x1028] sm:$0xff]
        %v870 = vld [vmem:[%s211 + $0x1030] sm:$0xff]
        %v871 = vld [vmem:[%s211 + $0x1038] sm:$0xff]
        %v872 = vld [vmem:[%s211 + $0x1040] sm:$0xff]
        %v873 = vld [vmem:[%s211 + $0x1048] sm:$0xff]
        %v874 = vld [vmem:[%s211 + $0x1050] sm:$0xff]
        %v875 = vld [vmem:[%s211 + $0x1058] sm:$0xff]
        %v876 = vld [vmem:[%s211 + $0x1060] sm:$0xff]
        %v877 = vld [vmem:[%s211 + $0x1068] sm:$0xff]
        %v878 = vld [vmem:[%s211 + $0x1070] sm:$0xff]
        %v879 = vld [vmem:[%s211 + $0x1078] sm:$0xff]
        %v880 = vld [vmem:[%s211 + $0x1080] sm:$0xff]
        %v881 = vld [vmem:[%s211 + $0x1088] sm:$0xff]
        %v882 = vld [vmem:[%s211 + $0x1090] sm:$0xff]
        %v883 = vld [vmem:[%s211 + $0x1098] sm:$0xff]
        %v884 = vld [vmem:[%s211 + $0x10a0] sm:$0xff]
        %v885 = vld [vmem:[%s211 + $0x10a8] sm:$0xff]
        %v886 = vld [vmem:[%s211 + $0x10b0] sm:$0xff]
        %v887 = vld [vmem:[%s211 + $0x10b8] sm:$0xff]
        %v888 = vld [vmem:[%s211 + $0x10c0] sm:$0xff]
        %v889 = vld [vmem:[%s211 + $0x10c8] sm:$0xff]
        %v890 = vld [vmem:[%s211 + $0x10d0] sm:$0xff]
        %v891 = vld [vmem:[%s211 + $0x10d8] sm:$0xff]
        %v892 = vld [vmem:[%s211 + $0x10e0] sm:$0xff]
        %v893 = vld [vmem:[%s211 + $0x10e8] sm:$0xff]
        %v894 = vld [vmem:[%s211 + $0x10f0] sm:$0xff]
        %v895 = vld [vmem:[%s211 + $0x10f8] sm:$0xff]
        %v896 = vld [vmem:[%s211 + $0x1100] sm:$0xff]
        %v897 = vld [vmem:[%s211 + $0x1108] sm:$0xff]
        %v898 = vld [vmem:[%s211 + $0x1110] sm:$0xff]
        %v899 = vld [vmem:[%s211 + $0x1118] sm:$0xff]
        %v900 = vld [vmem:[%s211 + $0x1120] sm:$0xff]
        %v901 = vld [vmem:[%s211 + $0x1128] sm:$0xff]
        %v902 = vld [vmem:[%s211 + $0x1130] sm:$0xff]
        %v903 = vld [vmem:[%s211 + $0x1138] sm:$0xff]
        %v904 = vld [vmem:[%s211 + $0x1140] sm:$0xff]
        %v905 = vld [vmem:[%s211 + $0x1148] sm:$0xff]
        %v906 = vld [vmem:[%s211 + $0x1150] sm:$0xff]
        %v907 = vld [vmem:[%s211 + $0x1158] sm:$0xff]
        %v908 = vld [vmem:[%s211 + $0x1160] sm:$0xff]
        %v909 = vld [vmem:[%s211 + $0x1168] sm:$0xff]
        %v910 = vld [vmem:[%s211 + $0x1170] sm:$0xff]
        %v911 = vld [vmem:[%s211 + $0x1178] sm:$0xff]
        %v912 = vld [vmem:[%s211 + $0x1180] sm:$0xff]
        %v913 = vld [vmem:[%s211 + $0x1188] sm:$0xff]
        %v914 = vld [vmem:[%s211 + $0x1190] sm:$0xff]
        %v915 = vld [vmem:[%s211 + $0x1198] sm:$0xff]
        %v916 = vld [vmem:[%s211 + $0x11a0] sm:$0xff]
        %v917 = vld [vmem:[%s211 + $0x11a8] sm:$0xff]
        %v918 = vld [vmem:[%s211 + $0x11b0] sm:$0xff]
        %v919 = vld [vmem:[%s211 + $0x11b8] sm:$0xff]
        %v920 = vld [vmem:[%s211 + $0x11c0] sm:$0xff]
        %v921 = vld [vmem:[%s211 + $0x11c8] sm:$0xff]
        %v922 = vld [vmem:[%s211 + $0x11d0] sm:$0xff]
        %v923 = vld [vmem:[%s211 + $0x11d8] sm:$0xff]
        %v924 = vld [vmem:[%s211 + $0x11e0] sm:$0xff]
        %v925 = vld [vmem:[%s211 + $0x11e8] sm:$0xff]
        %v926 = vld [vmem:[%s211 + $0x11f0] sm:$0xff]
        %v927 = vld [vmem:[%s211 + $0x11f8] sm:$0xff]
        %v928 = vld [vmem:[%s211 + $0x1200] sm:$0xff]
        %v929 = vld [vmem:[%s211 + $0x1208] sm:$0xff]
        %v930 = vld [vmem:[%s211 + $0x1210] sm:$0xff]
        %v931 = vld [vmem:[%s211 + $0x1218] sm:$0xff]
        %v932 = vld [vmem:[%s211 + $0x1220] sm:$0xff]
        %v933 = vld [vmem:[%s211 + $0x1228] sm:$0xff]
        %v934 = vld [vmem:[%s211 + $0x1230] sm:$0xff]
        %v935 = vld [vmem:[%s211 + $0x1238] sm:$0xff]
        %v936 = vld [vmem:[%s211 + $0x1240] sm:$0xff]
        %v937 = vld [vmem:[%s211 + $0x1248] sm:$0xff]
        %v938 = vld [vmem:[%s211 + $0x1250] sm:$0xff]
        %v939 = vld [vmem:[%s211 + $0x1258] sm:$0xff]
        %v940 = vld [vmem:[%s211 + $0x1260] sm:$0xff]
        %v941 = vld [vmem:[%s211 + $0x1268] sm:$0xff]
        %v942 = vld [vmem:[%s211 + $0x1270] sm:$0xff]
        %v943 = vld [vmem:[%s211 + $0x1278] sm:$0xff]
        %v944 = vld [vmem:[%s211 + $0x1280] sm:$0xff]
        %v945 = vld [vmem:[%s211 + $0x1288] sm:$0xff]
        %v946 = vld [vmem:[%s211 + $0x1290] sm:$0xff]
        %v947 = vld [vmem:[%s211 + $0x1298] sm:$0xff]
        %v948 = vld [vmem:[%s211 + $0x12a0] sm:$0xff]
        %v949 = vld [vmem:[%s211 + $0x12a8] sm:$0xff]
        %v950 = vld [vmem:[%s211 + $0x12b0] sm:$0xff]
        %v951 = vld [vmem:[%s211 + $0x12b8] sm:$0xff]
        %v952 = vld [vmem:[%s211 + $0x12c0] sm:$0xff]
        %v953 = vld [vmem:[%s211 + $0x12c8] sm:$0xff]
        %v954 = vld [vmem:[%s211 + $0x12d0] sm:$0xff]
        %v955 = vld [vmem:[%s211 + $0x12d8] sm:$0xff]
        %v956 = vld [vmem:[%s211 + $0x12e0] sm:$0xff]
        %v957 = vld [vmem:[%s211 + $0x12e8] sm:$0xff]
        %v958 = vld [vmem:[%s211 + $0x12f0] sm:$0xff]
        %v959 = vld [vmem:[%s211 + $0x12f8] sm:$0xff]
        %v960 = vld [vmem:[%s211 + $0x1300] sm:$0xff]
        %v961 = vld [vmem:[%s211 + $0x1308] sm:$0xff]
        %v962 = vld [vmem:[%s211 + $0x1310] sm:$0xff]
        %v963 = vld [vmem:[%s211 + $0x1318] sm:$0xff]
        %v964 = vld [vmem:[%s211 + $0x1320] sm:$0xff]
        %v965 = vld [vmem:[%s211 + $0x1328] sm:$0xff]
        %v966 = vld [vmem:[%s211 + $0x1330] sm:$0xff]
        %v967 = vld [vmem:[%s211 + $0x1338] sm:$0xff]
        %v968 = vld [vmem:[%s211 + $0x1340] sm:$0xff]
        %v969 = vld [vmem:[%s211 + $0x1348] sm:$0xff]
        %v970 = vld [vmem:[%s211 + $0x1350] sm:$0xff]
        %v971 = vld [vmem:[%s211 + $0x1358] sm:$0xff]
        %v972 = vld [vmem:[%s211 + $0x1360] sm:$0xff]
        %v973 = vld [vmem:[%s211 + $0x1368] sm:$0xff]
        %v974 = vld [vmem:[%s211 + $0x1370] sm:$0xff]
        %v975 = vld [vmem:[%s211 + $0x1378] sm:$0xff]
        %v976 = vld [vmem:[%s211 + $0x1380] sm:$0xff]
        %v977 = vld [vmem:[%s211 + $0x1388] sm:$0xff]
        %v978 = vld [vmem:[%s211 + $0x1390] sm:$0xff]
        %v979 = vld [vmem:[%s211 + $0x1398] sm:$0xff]
        %v980 = vld [vmem:[%s211 + $0x13a0] sm:$0xff]
        %v981 = vld [vmem:[%s211 + $0x13a8] sm:$0xff]
        %v982 = vld [vmem:[%s211 + $0x13b0] sm:$0xff]
        %v983 = vld [vmem:[%s211 + $0x13b8] sm:$0xff]
        %v984 = vld [vmem:[%s211 + $0x13c0] sm:$0xff]
        %v985 = vld [vmem:[%s211 + $0x13c8] sm:$0xff]
        %v986 = vld [vmem:[%s211 + $0x13d0] sm:$0xff]
        %v987 = vld [vmem:[%s211 + $0x13d8] sm:$0xff]
        %v988 = vld [vmem:[%s211 + $0x13e0] sm:$0xff]
        %v989 = vld [vmem:[%s211 + $0x13e8] sm:$0xff]
        %v990 = vld [vmem:[%s211 + $0x13f0] sm:$0xff]
        %v991 = vld [vmem:[%s211 + $0x13f8] sm:$0xff]
        %v992 = vld [vmem:[%s211 + $0x1400] sm:$0xff]
        %v993 = vld [vmem:[%s211 + $0x1408] sm:$0xff]
        %v994 = vld [vmem:[%s211 + $0x1410] sm:$0xff]
        %v995 = vld [vmem:[%s211 + $0x1418] sm:$0xff]
        %v996 = vld [vmem:[%s211 + $0x1420] sm:$0xff]
        %v997 = vld [vmem:[%s211 + $0x1428] sm:$0xff]
        %v998 = vld [vmem:[%s211 + $0x1430] sm:$0xff]
        %v999 = vld [vmem:[%s211 + $0x1438] sm:$0xff]
        %v1000 = vld [vmem:[%s211 + $0x1440] sm:$0xff]
        %v1001 = vld [vmem:[%s211 + $0x1448] sm:$0xff]
        %v1002 = vld [vmem:[%s211 + $0x1450] sm:$0xff]
        %v1003 = vld [vmem:[%s211 + $0x1458] sm:$0xff]
        %v1004 = vld [vmem:[%s211 + $0x1460] sm:$0xff]
        %v1005 = vld [vmem:[%s211 + $0x1468] sm:$0xff]
        %v1006 = vld [vmem:[%s211 + $0x1470] sm:$0xff]
        %v1007 = vld [vmem:[%s211 + $0x1478] sm:$0xff]
        %v1008 = vld [vmem:[%s211 + $0x1480] sm:$0xff]
        %v1009 = vld [vmem:[%s211 + $0x1488] sm:$0xff]
        %v1010 = vld [vmem:[%s211 + $0x1490] sm:$0xff]
        %v1011 = vld [vmem:[%s211 + $0x1498] sm:$0xff]
        %v1012 = vld [vmem:[%s211 + $0x14a0] sm:$0xff]
        %v1013 = vld [vmem:[%s211 + $0x14a8] sm:$0xff]
        %v1014 = vld [vmem:[%s211 + $0x14b0] sm:$0xff]
        %v1015 = vld [vmem:[%s211 + $0x14b8] sm:$0xff]
        %v1016 = vld [vmem:[%s211 + $0x14c0] sm:$0xff]
        %v1017 = vld [vmem:[%s211 + $0x14c8] sm:$0xff]
        %v1018 = vld [vmem:[%s211 + $0x14d0] sm:$0xff]
        %v1019 = vld [vmem:[%s211 + $0x14d8] sm:$0xff]
        %v1020 = vld [vmem:[%s211 + $0x14e0] sm:$0xff]
        %v1021 = vld [vmem:[%s211 + $0x14e8] sm:$0xff]
        %v1022 = vld [vmem:[%s211 + $0x14f0] sm:$0xff]
        %v1023 = vld [vmem:[%s211 + $0x14f8] sm:$0xff]
        %v1024 = vld [vmem:[%s211 + $0x1500] sm:$0xff]
        %v1025 = vld [vmem:[%s211 + $0x1508] sm:$0xff]
        %v1026 = vld [vmem:[%s211 + $0x1510] sm:$0xff]
        %v1027 = vld [vmem:[%s211 + $0x1518] sm:$0xff]
        %v1028 = vld [vmem:[%s211 + $0x1520] sm:$0xff]
        %v1029 = vld [vmem:[%s211 + $0x1528] sm:$0xff]
        %v1030 = vld [vmem:[%s211 + $0x1530] sm:$0xff]
        %v1031 = vld [vmem:[%s211 + $0x1538] sm:$0xff]
        %v1032 = vld [vmem:[%s211 + $0x1540] sm:$0xff]
        %v1033 = vld [vmem:[%s211 + $0x1548] sm:$0xff]
        %v1034 = vld [vmem:[%s211 + $0x1550] sm:$0xff]
        %v1035 = vld [vmem:[%s211 + $0x1558] sm:$0xff]
        %v1036 = vld [vmem:[%s211 + $0x1560] sm:$0xff]
        %v1037 = vld [vmem:[%s211 + $0x1568] sm:$0xff]
        %v1038 = vld [vmem:[%s211 + $0x1570] sm:$0xff]
        %v1039 = vld [vmem:[%s211 + $0x1578] sm:$0xff]
        %v1040 = vld [vmem:[%s211 + $0x1580] sm:$0xff]
        %v1041 = vld [vmem:[%s211 + $0x1588] sm:$0xff]
        %v1042 = vld [vmem:[%s211 + $0x1590] sm:$0xff]
        %v1043 = vld [vmem:[%s211 + $0x1598] sm:$0xff]
        %v1044 = vld [vmem:[%s211 + $0x15a0] sm:$0xff]
        %v1045 = vld [vmem:[%s211 + $0x15a8] sm:$0xff]
        %v1046 = vld [vmem:[%s211 + $0x15b0] sm:$0xff]
        %v1047 = vld [vmem:[%s211 + $0x15b8] sm:$0xff]
        %v1048 = vld [vmem:[%s211 + $0x15c0] sm:$0xff]
        %v1049 = vld [vmem:[%s211 + $0x15c8] sm:$0xff]
        %v1050 = vld [vmem:[%s211 + $0x15d0] sm:$0xff]
        %v1051 = vld [vmem:[%s211 + $0x15d8] sm:$0xff]
        %v1052 = vld [vmem:[%s211 + $0x15e0] sm:$0xff]
        %v1053 = vld [vmem:[%s211 + $0x15e8] sm:$0xff]
        %v1054 = vld [vmem:[%s211 + $0x15f0] sm:$0xff]
        %v1055 = vld [vmem:[%s211 + $0x15f8] sm:$0xff]
        %v1056 = vld [vmem:[%s211 + $0x1600] sm:$0xff]
        %v1057 = vld [vmem:[%s211 + $0x1608] sm:$0xff]
        %v1058 = vld [vmem:[%s211 + $0x1610] sm:$0xff]
        %v1059 = vld [vmem:[%s211 + $0x1618] sm:$0xff]
        %v1060 = vld [vmem:[%s211 + $0x1620] sm:$0xff]
        %v1061 = vld [vmem:[%s211 + $0x1628] sm:$0xff]
        %v1062 = vld [vmem:[%s211 + $0x1630] sm:$0xff]
        %v1063 = vld [vmem:[%s211 + $0x1638] sm:$0xff]
        %v1064 = vld [vmem:[%s211 + $0x1640] sm:$0xff]
        %v1065 = vld [vmem:[%s211 + $0x1648] sm:$0xff]
        %v1066 = vld [vmem:[%s211 + $0x1650] sm:$0xff]
        %v1067 = vld [vmem:[%s211 + $0x1658] sm:$0xff]
        %v1068 = vld [vmem:[%s211 + $0x1660] sm:$0xff]
        %v1069 = vld [vmem:[%s211 + $0x1668] sm:$0xff]
        %v1070 = vld [vmem:[%s211 + $0x1670] sm:$0xff]
        %v1071 = vld [vmem:[%s211 + $0x1678] sm:$0xff]
        %v1072 = vld [vmem:[%s211 + $0x1680] sm:$0xff]
        %v1073 = vld [vmem:[%s211 + $0x1688] sm:$0xff]
        %v1074 = vld [vmem:[%s211 + $0x1690] sm:$0xff]
        %v1075 = vld [vmem:[%s211 + $0x1698] sm:$0xff]
        %v1076 = vld [vmem:[%s211 + $0x16a0] sm:$0xff]
        %v1077 = vld [vmem:[%s211 + $0x16a8] sm:$0xff]
        %v1078 = vld [vmem:[%s211 + $0x16b0] sm:$0xff]
        %v1079 = vld [vmem:[%s211 + $0x16b8] sm:$0xff]
        %v1080 = vld [vmem:[%s211 + $0x16c0] sm:$0xff]
        %v1081 = vld [vmem:[%s211 + $0x16c8] sm:$0xff]
        %v1082 = vld [vmem:[%s211 + $0x16d0] sm:$0xff]
        %v1083 = vld [vmem:[%s211 + $0x16d8] sm:$0xff]
        %v1084 = vld [vmem:[%s211 + $0x16e0] sm:$0xff]
        %v1085 = vld [vmem:[%s211 + $0x16e8] sm:$0xff]
        %v1086 = vld [vmem:[%s211 + $0x16f0] sm:$0xff]
        %v1087 = vld [vmem:[%s211 + $0x16f8] sm:$0xff]
        %v1088 = vld [vmem:[%s211 + $0x1700] sm:$0xff]
        %v1089 = vld [vmem:[%s211 + $0x1708] sm:$0xff]
        %v1090 = vld [vmem:[%s211 + $0x1710] sm:$0xff]
        %v1091 = vld [vmem:[%s211 + $0x1718] sm:$0xff]
        %v1092 = vld [vmem:[%s211 + $0x1720] sm:$0xff]
        %v1093 = vld [vmem:[%s211 + $0x1728] sm:$0xff]
        %v1094 = vld [vmem:[%s211 + $0x1730] sm:$0xff]
        %v1095 = vld [vmem:[%s211 + $0x1738] sm:$0xff]
        %v1096 = vld [vmem:[%s211 + $0x1740] sm:$0xff]
        %v1097 = vld [vmem:[%s211 + $0x1748] sm:$0xff]
        %v1098 = vld [vmem:[%s211 + $0x1750] sm:$0xff]
        %v1099 = vld [vmem:[%s211 + $0x1758] sm:$0xff]
        %v1100 = vld [vmem:[%s211 + $0x1760] sm:$0xff]
        %v1101 = vld [vmem:[%s211 + $0x1768] sm:$0xff]
        %v1102 = vld [vmem:[%s211 + $0x1770] sm:$0xff]
        %v1103 = vld [vmem:[%s211 + $0x1778] sm:$0xff]
        %v1104 = vld [vmem:[%s211 + $0x1780] sm:$0xff]
        %v1105 = vld [vmem:[%s211 + $0x1788] sm:$0xff]
        %v1106 = vld [vmem:[%s211 + $0x1790] sm:$0xff]
        %v1107 = vld [vmem:[%s211 + $0x1798] sm:$0xff]
        %v1108 = vld [vmem:[%s211 + $0x17a0] sm:$0xff]
        %v1109 = vld [vmem:[%s211 + $0x17a8] sm:$0xff]
        %v1110 = vld [vmem:[%s211 + $0x17b0] sm:$0xff]
        %v1111 = vld [vmem:[%s211 + $0x17b8] sm:$0xff]
        %v1112 = vld [vmem:[%s211 + $0x17c0] sm:$0xff]
        %v1113 = vld [vmem:[%s211 + $0x17c8] sm:$0xff]
        %v1114 = vld [vmem:[%s211 + $0x17d0] sm:$0xff]
        %v1115 = vld [vmem:[%s211 + $0x17d8] sm:$0xff]
        %v1116 = vld [vmem:[%s211 + $0x17e0] sm:$0xff]
        %v1117 = vld [vmem:[%s211 + $0x17e8] sm:$0xff]
        %v1118 = vld [vmem:[%s211 + $0x17f0] sm:$0xff]
        %v1119 = vld [vmem:[%s211 + $0x17f8] sm:$0xff]
        %v1120 = vld [vmem:[%s211 + $0x1800] sm:$0xff]
        %v1121 = vld [vmem:[%s211 + $0x1808] sm:$0xff]
        %v1122 = vld [vmem:[%s211 + $0x1810] sm:$0xff]
        %v1123 = vld [vmem:[%s211 + $0x1818] sm:$0xff]
        %v1124 = vld [vmem:[%s211 + $0x1820] sm:$0xff]
        %v1125 = vld [vmem:[%s211 + $0x1828] sm:$0xff]
        %v1126 = vld [vmem:[%s211 + $0x1830] sm:$0xff]
        %v1127 = vld [vmem:[%s211 + $0x1838] sm:$0xff]
        %v1128 = vld [vmem:[%s211 + $0x1840] sm:$0xff]
        %v1129 = vld [vmem:[%s211 + $0x1848] sm:$0xff]
        %v1130 = vld [vmem:[%s211 + $0x1850] sm:$0xff]
        %v1131 = vld [vmem:[%s211 + $0x1858] sm:$0xff]
        %v1132 = vld [vmem:[%s211 + $0x1860] sm:$0xff]
        %v1133 = vld [vmem:[%s211 + $0x1868] sm:$0xff]
        %v1134 = vld [vmem:[%s211 + $0x1870] sm:$0xff]
        %v1135 = vld [vmem:[%s211 + $0x1878] sm:$0xff]
        %v1136 = vld [vmem:[%s211 + $0x1880] sm:$0xff]
        %v1137 = vld [vmem:[%s211 + $0x1888] sm:$0xff]
        %v1138 = vld [vmem:[%s211 + $0x1890] sm:$0xff]
        %v1139 = vld [vmem:[%s211 + $0x1898] sm:$0xff]
        %v1140 = vld [vmem:[%s211 + $0x18a0] sm:$0xff]
        %v1141 = vld [vmem:[%s211 + $0x18a8] sm:$0xff]
        %v1142 = vld [vmem:[%s211 + $0x18b0] sm:$0xff]
        %v1143 = vld [vmem:[%s211 + $0x18b8] sm:$0xff]
        %v1144 = vld [vmem:[%s211 + $0x18c0] sm:$0xff]
        %v1145 = vld [vmem:[%s211 + $0x18c8] sm:$0xff]
        %v1146 = vld [vmem:[%s211 + $0x18d0] sm:$0xff]
        %v1147 = vld [vmem:[%s211 + $0x18d8] sm:$0xff]
        %v1148 = vld [vmem:[%s211 + $0x18e0] sm:$0xff]
        %v1149 = vld [vmem:[%s211 + $0x18e8] sm:$0xff]
        %v1150 = vld [vmem:[%s211 + $0x18f0] sm:$0xff]
        %v1151 = vld [vmem:[%s211 + $0x18f8] sm:$0xff]
        %v1152 = vld [vmem:[%s211 + $0x1900] sm:$0xff]
        %v1153 = vld [vmem:[%s211 + $0x1908] sm:$0xff]
        %v1154 = vld [vmem:[%s211 + $0x1910] sm:$0xff]
        %v1155 = vld [vmem:[%s211 + $0x1918] sm:$0xff]
        %v1156 = vld [vmem:[%s211 + $0x1920] sm:$0xff]
        %v1157 = vld [vmem:[%s211 + $0x1928] sm:$0xff]
        %v1158 = vld [vmem:[%s211 + $0x1930] sm:$0xff]
        %v1159 = vld [vmem:[%s211 + $0x1938] sm:$0xff]
        %v1160 = vld [vmem:[%s211 + $0x1940] sm:$0xff]
        %v1161 = vld [vmem:[%s211 + $0x1948] sm:$0xff]
        %v1162 = vld [vmem:[%s211 + $0x1950] sm:$0xff]
        %v1163 = vld [vmem:[%s211 + $0x1958] sm:$0xff]
        %v1164 = vld [vmem:[%s211 + $0x1960] sm:$0xff]
        %v1165 = vld [vmem:[%s211 + $0x1968] sm:$0xff]
        %v1166 = vld [vmem:[%s211 + $0x1970] sm:$0xff]
        %v1167 = vld [vmem:[%s211 + $0x1978] sm:$0xff]
        %v1168 = vld [vmem:[%s211 + $0x1980] sm:$0xff]
        %v1169 = vld [vmem:[%s211 + $0x1988] sm:$0xff]
        %v1170 = vld [vmem:[%s211 + $0x1990] sm:$0xff]
        %v1171 = vld [vmem:[%s211 + $0x1998] sm:$0xff]
        %v1172 = vld [vmem:[%s211 + $0x19a0] sm:$0xff]
        %v1173 = vld [vmem:[%s211 + $0x19a8] sm:$0xff]
        %v1174 = vld [vmem:[%s211 + $0x19b0] sm:$0xff]
        %v1175 = vld [vmem:[%s211 + $0x19b8] sm:$0xff]
        %v1176 = vld [vmem:[%s211 + $0x19c0] sm:$0xff]
        %v1177 = vld [vmem:[%s211 + $0x19c8] sm:$0xff]
        %v1178 = vld [vmem:[%s211 + $0x19d0] sm:$0xff]
        %v1179 = vld [vmem:[%s211 + $0x19d8] sm:$0xff]
        %v1180 = vld [vmem:[%s211 + $0x19e0] sm:$0xff]
        %v1181 = vld [vmem:[%s211 + $0x19e8] sm:$0xff]
        %v1182 = vld [vmem:[%s211 + $0x19f0] sm:$0xff]
        %v1183 = vld [vmem:[%s211 + $0x19f8] sm:$0xff]
        %v1184 = vld [vmem:[%s211 + $0x1a00] sm:$0xff]
        %v1185 = vld [vmem:[%s211 + $0x1a08] sm:$0xff]
        %v1186 = vld [vmem:[%s211 + $0x1a10] sm:$0xff]
        %v1187 = vld [vmem:[%s211 + $0x1a18] sm:$0xff]
        %v1188 = vld [vmem:[%s211 + $0x1a20] sm:$0xff]
        %v1189 = vld [vmem:[%s211 + $0x1a28] sm:$0xff]
        %v1190 = vld [vmem:[%s211 + $0x1a30] sm:$0xff]
        %v1191 = vld [vmem:[%s211 + $0x1a38] sm:$0xff]
        %v1192 = vld [vmem:[%s211 + $0x1a40] sm:$0xff]
        %v1193 = vld [vmem:[%s211 + $0x1a48] sm:$0xff]
        %v1194 = vld [vmem:[%s211 + $0x1a50] sm:$0xff]
        %v1195 = vld [vmem:[%s211 + $0x1a58] sm:$0xff]
        %v1196 = vld [vmem:[%s211 + $0x1a60] sm:$0xff]
        %v1197 = vld [vmem:[%s211 + $0x1a68] sm:$0xff]
        %v1198 = vld [vmem:[%s211 + $0x1a70] sm:$0xff]
        %v1199 = vld [vmem:[%s211 + $0x1a78] sm:$0xff]
        %v1200 = vld [vmem:[%s211 + $0x1a80] sm:$0xff]
        %v1201 = vld [vmem:[%s211 + $0x1a88] sm:$0xff]
        %v1202 = vld [vmem:[%s211 + $0x1a90] sm:$0xff]
        %v1203 = vld [vmem:[%s211 + $0x1a98] sm:$0xff]
        %v1204 = vld [vmem:[%s211 + $0x1aa0] sm:$0xff]
        %v1205 = vld [vmem:[%s211 + $0x1aa8] sm:$0xff]
        %v1206 = vld [vmem:[%s211 + $0x1ab0] sm:$0xff]
        %v1207 = vld [vmem:[%s211 + $0x1ab8] sm:$0xff]
        %v1208 = vld [vmem:[%s211 + $0x1ac0] sm:$0xff]
        %v1209 = vld [vmem:[%s211 + $0x1ac8] sm:$0xff]
        %v1210 = vld [vmem:[%s211 + $0x1ad0] sm:$0xff]
        %v1211 = vld [vmem:[%s211 + $0x1ad8] sm:$0xff]
        %v1212 = vld [vmem:[%s211 + $0x1ae0] sm:$0xff]
        %v1213 = vld [vmem:[%s211 + $0x1ae8] sm:$0xff]
        %v1214 = vld [vmem:[%s211 + $0x1af0] sm:$0xff]
        %v1215 = vld [vmem:[%s211 + $0x1af8] sm:$0xff]
        %v1216 = vld [vmem:[%s211 + $0x1b00] sm:$0xff]
        %v1217 = vld [vmem:[%s211 + $0x1b08] sm:$0xff]
        %v1218 = vld [vmem:[%s211 + $0x1b10] sm:$0xff]
        %v1219 = vld [vmem:[%s211 + $0x1b18] sm:$0xff]
        %v1220 = vld [vmem:[%s211 + $0x1b20] sm:$0xff]
        %v1221 = vld [vmem:[%s211 + $0x1b28] sm:$0xff]
        %v1222 = vld [vmem:[%s211 + $0x1b30] sm:$0xff]
        %v1223 = vld [vmem:[%s211 + $0x1b38] sm:$0xff]
        %v1224 = vld [vmem:[%s211 + $0x1b40] sm:$0xff]
        %v1225 = vld [vmem:[%s211 + $0x1b48] sm:$0xff]
        %v1226 = vld [vmem:[%s211 + $0x1b50] sm:$0xff]
        %v1227 = vld [vmem:[%s211 + $0x1b58] sm:$0xff]
        %v1228 = vld [vmem:[%s211 + $0x1b60] sm:$0xff]
        %v1229 = vld [vmem:[%s211 + $0x1b68] sm:$0xff]
        %v1230 = vld [vmem:[%s211 + $0x1b70] sm:$0xff]
        %v1231 = vld [vmem:[%s211 + $0x1b78] sm:$0xff]
        %v1232 = vld [vmem:[%s211 + $0x1b80] sm:$0xff]
        %v1233 = vld [vmem:[%s211 + $0x1b88] sm:$0xff]
        %v1234 = vld [vmem:[%s211 + $0x1b90] sm:$0xff]
        %v1235 = vld [vmem:[%s211 + $0x1b98] sm:$0xff]
        %v1236 = vld [vmem:[%s211 + $0x1ba0] sm:$0xff]
        %v1237 = vld [vmem:[%s211 + $0x1ba8] sm:$0xff]
        %v1238 = vld [vmem:[%s211 + $0x1bb0] sm:$0xff]
        %v1239 = vld [vmem:[%s211 + $0x1bb8] sm:$0xff]
        %v1240 = vld [vmem:[%s211 + $0x1bc0] sm:$0xff]
        %v1241 = vld [vmem:[%s211 + $0x1bc8] sm:$0xff]
        %v1242 = vld [vmem:[%s211 + $0x1bd0] sm:$0xff]
        %v1243 = vld [vmem:[%s211 + $0x1bd8] sm:$0xff]
        %v1244 = vld [vmem:[%s211 + $0x1be0] sm:$0xff]
        %v1245 = vld [vmem:[%s211 + $0x1be8] sm:$0xff]
        %v1246 = vld [vmem:[%s211 + $0x1bf0] sm:$0xff]
        %v1247 = vld [vmem:[%s211 + $0x1bf8] sm:$0xff]
        %v1248 = vld [vmem:[%s211 + $0x1c00] sm:$0xff]
        %v1249 = vld [vmem:[%s211 + $0x1c08] sm:$0xff]
        %v1250 = vld [vmem:[%s211 + $0x1c10] sm:$0xff]
        %v1251 = vld [vmem:[%s211 + $0x1c18] sm:$0xff]
        %v1252 = vld [vmem:[%s211 + $0x1c20] sm:$0xff]
        %v1253 = vld [vmem:[%s211 + $0x1c28] sm:$0xff]
        %v1254 = vld [vmem:[%s211 + $0x1c30] sm:$0xff]
        %v1255 = vld [vmem:[%s211 + $0x1c38] sm:$0xff]
        %v1256 = vld [vmem:[%s211 + $0x1c40] sm:$0xff]
        %v1257 = vld [vmem:[%s211 + $0x1c48] sm:$0xff]
        %v1258 = vld [vmem:[%s211 + $0x1c50] sm:$0xff]
        %v1259 = vld [vmem:[%s211 + $0x1c58] sm:$0xff]
        %v1260 = vld [vmem:[%s211 + $0x1c60] sm:$0xff]
        %v1261 = vld [vmem:[%s211 + $0x1c68] sm:$0xff]
        %v1262 = vld [vmem:[%s211 + $0x1c70] sm:$0xff]
        %v1263 = vld [vmem:[%s211 + $0x1c78] sm:$0xff]
        %v1264 = vld [vmem:[%s211 + $0x1c80] sm:$0xff]
        %v1265 = vld [vmem:[%s211 + $0x1c88] sm:$0xff]
        %v1266 = vld [vmem:[%s211 + $0x1c90] sm:$0xff]
        %v1267 = vld [vmem:[%s211 + $0x1c98] sm:$0xff]
        %v1268 = vld [vmem:[%s211 + $0x1ca0] sm:$0xff]
        %v1269 = vld [vmem:[%s211 + $0x1ca8] sm:$0xff]
        %v1270 = vld [vmem:[%s211 + $0x1cb0] sm:$0xff]
        %v1271 = vld [vmem:[%s211 + $0x1cb8] sm:$0xff]
        %v1272 = vld [vmem:[%s211 + $0x1cc0] sm:$0xff]
        %v1273 = vld [vmem:[%s211 + $0x1cc8] sm:$0xff]
        %v1274 = vld [vmem:[%s211 + $0x1cd0] sm:$0xff]
        %v1275 = vld [vmem:[%s211 + $0x1cd8] sm:$0xff]
        %v1276 = vld [vmem:[%s211 + $0x1ce0] sm:$0xff]
        %v1277 = vld [vmem:[%s211 + $0x1ce8] sm:$0xff]
        %v1278 = vld [vmem:[%s211 + $0x1cf0] sm:$0xff]
        %v1279 = vld [vmem:[%s211 + $0x1cf8] sm:$0xff]
        %v1280 = vld [vmem:[%s211 + $0x1d00] sm:$0xff]
        %v1281 = vld [vmem:[%s211 + $0x1d08] sm:$0xff]
        %v1282 = vld [vmem:[%s211 + $0x1d10] sm:$0xff]
        %v1283 = vld [vmem:[%s211 + $0x1d18] sm:$0xff]
        %v1284 = vld [vmem:[%s211 + $0x1d20] sm:$0xff]
        %v1285 = vld [vmem:[%s211 + $0x1d28] sm:$0xff]
        %v1286 = vld [vmem:[%s211 + $0x1d30] sm:$0xff]
        %v1287 = vld [vmem:[%s211 + $0x1d38] sm:$0xff]
        %v1288 = vld [vmem:[%s211 + $0x1d40] sm:$0xff]
        %v1289 = vld [vmem:[%s211 + $0x1d48] sm:$0xff]
        %v1290 = vld [vmem:[%s211 + $0x1d50] sm:$0xff]
        %v1291 = vld [vmem:[%s211 + $0x1d58] sm:$0xff]
        %v1292 = vld [vmem:[%s211 + $0x1d60] sm:$0xff]
        %v1293 = vld [vmem:[%s211 + $0x1d68] sm:$0xff]
        %v1294 = vld [vmem:[%s211 + $0x1d70] sm:$0xff]
        %v1295 = vld [vmem:[%s211 + $0x1d78] sm:$0xff]
        %v1296 = vld [vmem:[%s211 + $0x1d80] sm:$0xff]
        %v1297 = vld [vmem:[%s211 + $0x1d88] sm:$0xff]
        %v1298 = vld [vmem:[%s211 + $0x1d90] sm:$0xff]
        %v1299 = vld [vmem:[%s211 + $0x1d98] sm:$0xff]
        %v1300 = vld [vmem:[%s211 + $0x1da0] sm:$0xff]
        %v1301 = vld [vmem:[%s211 + $0x1da8] sm:$0xff]
        %v1302 = vld [vmem:[%s211 + $0x1db0] sm:$0xff]
        %v1303 = vld [vmem:[%s211 + $0x1db8] sm:$0xff]
        %v1304 = vld [vmem:[%s211 + $0x1dc0] sm:$0xff]
        %v1305 = vld [vmem:[%s211 + $0x1dc8] sm:$0xff]
        %v1306 = vld [vmem:[%s211 + $0x1dd0] sm:$0xff]
        %v1307 = vld [vmem:[%s211 + $0x1dd8] sm:$0xff]
        %v1308 = vld [vmem:[%s211 + $0x1de0] sm:$0xff]
        %v1309 = vld [vmem:[%s211 + $0x1de8] sm:$0xff]
        %v1310 = vld [vmem:[%s211 + $0x1df0] sm:$0xff]
        %v1311 = vld [vmem:[%s211 + $0x1df8] sm:$0xff]
        %v1312 = vld [vmem:[%s211 + $0x1e00] sm:$0xff]
        %v1313 = vld [vmem:[%s211 + $0x1e08] sm:$0xff]
        %v1314 = vld [vmem:[%s211 + $0x1e10] sm:$0xff]
        %v1315 = vld [vmem:[%s211 + $0x1e18] sm:$0xff]
        %v1316 = vld [vmem:[%s211 + $0x1e20] sm:$0xff]
        %v1317 = vld [vmem:[%s211 + $0x1e28] sm:$0xff]
        %v1318 = vld [vmem:[%s211 + $0x1e30] sm:$0xff]
        %v1319 = vld [vmem:[%s211 + $0x1e38] sm:$0xff]
        %v1320 = vld [vmem:[%s211 + $0x1e40] sm:$0xff]
        %v1321 = vld [vmem:[%s211 + $0x1e48] sm:$0xff]
        %v1322 = vld [vmem:[%s211 + $0x1e50] sm:$0xff]
        %v1323 = vld [vmem:[%s211 + $0x1e58] sm:$0xff]
        %v1324 = vld [vmem:[%s211 + $0x1e60] sm:$0xff]
        %v1325 = vld [vmem:[%s211 + $0x1e68] sm:$0xff]
        %v1326 = vld [vmem:[%s211 + $0x1e70] sm:$0xff]
        %v1327 = vld [vmem:[%s211 + $0x1e78] sm:$0xff]
        %v1328 = vld [vmem:[%s211 + $0x1e80] sm:$0xff]
        %v1329 = vld [vmem:[%s211 + $0x1e88] sm:$0xff]
        %v1330 = vld [vmem:[%s211 + $0x1e90] sm:$0xff]
        %v1331 = vld [vmem:[%s211 + $0x1e98] sm:$0xff]
        %v1332 = vld [vmem:[%s211 + $0x1ea0] sm:$0xff]
        %v1333 = vld [vmem:[%s211 + $0x1ea8] sm:$0xff]
        %v1334 = vld [vmem:[%s211 + $0x1eb0] sm:$0xff]
        %v1335 = vld [vmem:[%s211 + $0x1eb8] sm:$0xff]
        %v1336 = vld [vmem:[%s211 + $0x1ec0] sm:$0xff]
        %v1337 = vld [vmem:[%s211 + $0x1ec8] sm:$0xff]
        %v1338 = vld [vmem:[%s211 + $0x1ed0] sm:$0xff]
        %v1339 = vld [vmem:[%s211 + $0x1ed8] sm:$0xff]
        %v1340 = vld [vmem:[%s211 + $0x1ee0] sm:$0xff]
        %v1341 = vld [vmem:[%s211 + $0x1ee8] sm:$0xff]
        %v1342 = vld [vmem:[%s211 + $0x1ef0] sm:$0xff]
        %v1343 = vld [vmem:[%s211 + $0x1ef8] sm:$0xff]
        %v1344 = vld [vmem:[%s211 + $0x1f00] sm:$0xff]
        %v1345 = vld [vmem:[%s211 + $0x1f08] sm:$0xff]
        %v1346 = vld [vmem:[%s211 + $0x1f10] sm:$0xff]
        %v1347 = vld [vmem:[%s211 + $0x1f18] sm:$0xff]
        %v1348 = vld [vmem:[%s211 + $0x1f20] sm:$0xff]
        %v1349 = vld [vmem:[%s211 + $0x1f28] sm:$0xff]
        %v1350 = vld [vmem:[%s211 + $0x1f30] sm:$0xff]
        %v1351 = vld [vmem:[%s211 + $0x1f38] sm:$0xff]
        %v1352 = vld [vmem:[%s211 + $0x1f40] sm:$0xff]
        %v1353 = vld [vmem:[%s211 + $0x1f48] sm:$0xff]
        %v1354 = vld [vmem:[%s211 + $0x1f50] sm:$0xff]
        %v1355 = vld [vmem:[%s211 + $0x1f58] sm:$0xff]
        %v1356 = vld [vmem:[%s211 + $0x1f60] sm:$0xff]
        %v1357 = vld [vmem:[%s211 + $0x1f68] sm:$0xff]
        %v1358 = vld [vmem:[%s211 + $0x1f70] sm:$0xff]
        %v1359 = vld [vmem:[%s211 + $0x1f78] sm:$0xff]
        %v1360 = vld [vmem:[%s211 + $0x1f80] sm:$0xff]
        %v1361 = vld [vmem:[%s211 + $0x1f88] sm:$0xff]
        %v1362 = vld [vmem:[%s211 + $0x1f90] sm:$0xff]
        %v1363 = vld [vmem:[%s211 + $0x1f98] sm:$0xff]
        %v1364 = vld [vmem:[%s211 + $0x1fa0] sm:$0xff]
        %v1365 = vld [vmem:[%s211 + $0x1fa8] sm:$0xff]
        %v1366 = vld [vmem:[%s211 + $0x1fb0] sm:$0xff]
        %v1367 = vld [vmem:[%s211 + $0x1fb8] sm:$0xff]
        %v1368 = vld [vmem:[%s211 + $0x1fc0] sm:$0xff]
        %v1369 = vld [vmem:[%s211 + $0x1fc8] sm:$0xff]
        %v1370 = vld [vmem:[%s211 + $0x1fd0] sm:$0xff]
        %v1371 = vld [vmem:[%s211 + $0x1fd8] sm:$0xff]
        %v1372 = vld [vmem:[%s211 + $0x1fe0] sm:$0xff]
        %v1373 = vld [vmem:[%s211 + $0x1fe8] sm:$0xff]
        %v1374 = vld [vmem:[%s211 + $0x1ff0] sm:$0xff]
        %v1375 = vld [vmem:[%s211 + $0x1ff8] sm:$0xff]
        %v1376 = vld [vmem:[%s211 + $0x2000] sm:$0xff]
        %v1377 = vld [vmem:[%s211 + $0x2008] sm:$0xff]
        %v1378 = vld [vmem:[%s211 + $0x2010] sm:$0xff]
        %v1379 = vld [vmem:[%s211 + $0x2018] sm:$0xff]
        %v1380 = vld [vmem:[%s211 + $0x2020] sm:$0xff]
        %v1381 = vld [vmem:[%s211 + $0x2028] sm:$0xff]
        %v1382 = vld [vmem:[%s211 + $0x2030] sm:$0xff]
        %v1383 = vld [vmem:[%s211 + $0x2038] sm:$0xff]
        %v1384 = vld [vmem:[%s211 + $0x2040] sm:$0xff]
        %v1385 = vld [vmem:[%s211 + $0x2048] sm:$0xff]
        %v1386 = vld [vmem:[%s211 + $0x2050] sm:$0xff]
        %v1387 = vld [vmem:[%s211 + $0x2058] sm:$0xff]
        %v1388 = vld [vmem:[%s211 + $0x2060] sm:$0xff]
        %v1389 = vld [vmem:[%s211 + $0x2068] sm:$0xff]
        %v1390 = vld [vmem:[%s211 + $0x2070] sm:$0xff]
        %v1391 = vld [vmem:[%s211 + $0x2078] sm:$0xff]
        %v1392 = vld [vmem:[%s211 + $0x2080] sm:$0xff]
        %v1393 = vld [vmem:[%s211 + $0x2088] sm:$0xff]
        %v1394 = vld [vmem:[%s211 + $0x2090] sm:$0xff]
        %v1395 = vld [vmem:[%s211 + $0x2098] sm:$0xff]
        %v1396 = vld [vmem:[%s211 + $0x20a0] sm:$0xff]
        %v1397 = vld [vmem:[%s211 + $0x20a8] sm:$0xff]
        %v1398 = vld [vmem:[%s211 + $0x20b0] sm:$0xff]
        %v1399 = vld [vmem:[%s211 + $0x20b8] sm:$0xff]
        %v1400 = vld [vmem:[%s211 + $0x20c0] sm:$0xff]
        %v1401 = vld [vmem:[%s211 + $0x20c8] sm:$0xff]
        %v1402 = vld [vmem:[%s211 + $0x20d0] sm:$0xff]
        %v1403 = vld [vmem:[%s211 + $0x20d8] sm:$0xff]
        %v1404 = vld [vmem:[%s211 + $0x20e0] sm:$0xff]
        %v1405 = vld [vmem:[%s211 + $0x20e8] sm:$0xff]
        %v1406 = vld [vmem:[%s211 + $0x20f0] sm:$0xff]
        %v1407 = vld [vmem:[%s211 + $0x20f8] sm:$0xff]
        %v1408 = vld [vmem:[%s211 + $0x2100] sm:$0xff]
        %v1409 = vld [vmem:[%s211 + $0x2108] sm:$0xff]
        %v1410 = vld [vmem:[%s211 + $0x2110] sm:$0xff]
        %v1411 = vld [vmem:[%s211 + $0x2118] sm:$0xff]
        %v1412 = vld [vmem:[%s211 + $0x2120] sm:$0xff]
        %v1413 = vld [vmem:[%s211 + $0x2128] sm:$0xff]
        %v1414 = vld [vmem:[%s211 + $0x2130] sm:$0xff]
        %v1415 = vld [vmem:[%s211 + $0x2138] sm:$0xff]
        %v1416 = vld [vmem:[%s211 + $0x2140] sm:$0xff]
        %v1417 = vld [vmem:[%s211 + $0x2148] sm:$0xff]
        %v1418 = vld [vmem:[%s211 + $0x2150] sm:$0xff]
        %v1419 = vld [vmem:[%s211 + $0x2158] sm:$0xff]
        %v1420 = vld [vmem:[%s211 + $0x2160] sm:$0xff]
        %v1421 = vld [vmem:[%s211 + $0x2168] sm:$0xff]
        %v1422 = vld [vmem:[%s211 + $0x2170] sm:$0xff]
        %v1423 = vld [vmem:[%s211 + $0x2178] sm:$0xff]
        %v1424 = vld [vmem:[%s211 + $0x2180] sm:$0xff]
        %v1425 = vld [vmem:[%s211 + $0x2188] sm:$0xff]
        %v1426 = vld [vmem:[%s211 + $0x2190] sm:$0xff]
        %v1427 = vld [vmem:[%s211 + $0x2198] sm:$0xff]
        %v1428 = vld [vmem:[%s211 + $0x21a0] sm:$0xff]
        %v1429 = vld [vmem:[%s211 + $0x21a8] sm:$0xff]
        %v1430 = vld [vmem:[%s211 + $0x21b0] sm:$0xff]
        %v1431 = vld [vmem:[%s211 + $0x21b8] sm:$0xff]
        %v1432 = vld [vmem:[%s211 + $0x21c0] sm:$0xff]
        %v1433 = vld [vmem:[%s211 + $0x21c8] sm:$0xff]
        %v1434 = vld [vmem:[%s211 + $0x21d0] sm:$0xff]
        %v1435 = vld [vmem:[%s211 + $0x21d8] sm:$0xff]
        %v1436 = vld [vmem:[%s211 + $0x21e0] sm:$0xff]
        %v1437 = vld [vmem:[%s211 + $0x21e8] sm:$0xff]
        %v1438 = vld [vmem:[%s211 + $0x21f0] sm:$0xff]
        %v1439 = vld [vmem:[%s211 + $0x21f8] sm:$0xff]
        %v1440 = vld [vmem:[%s211 + $0x2200] sm:$0xff]
        %v1441 = vld [vmem:[%s211 + $0x2208] sm:$0xff]
        %v1442 = vld [vmem:[%s211 + $0x2210] sm:$0xff]
        %v1443 = vld [vmem:[%s211 + $0x2218] sm:$0xff]
        %v1444 = vld [vmem:[%s211 + $0x2220] sm:$0xff]
        %v1445 = vld [vmem:[%s211 + $0x2228] sm:$0xff]
        %v1446 = vld [vmem:[%s211 + $0x2230] sm:$0xff]
        %v1447 = vld [vmem:[%s211 + $0x2238] sm:$0xff]
        %v1448 = vld [vmem:[%s211 + $0x2240] sm:$0xff]
        %v1449 = vld [vmem:[%s211 + $0x2248] sm:$0xff]
        %v1450 = vld [vmem:[%s211 + $0x2250] sm:$0xff]
        %v1451 = vld [vmem:[%s211 + $0x2258] sm:$0xff]
        %v1452 = vld [vmem:[%s211 + $0x2260] sm:$0xff]
        %v1453 = vld [vmem:[%s211 + $0x2268] sm:$0xff]
        %v1454 = vld [vmem:[%s211 + $0x2270] sm:$0xff]
        %v1455 = vld [vmem:[%s211 + $0x2278] sm:$0xff]
        %v1456 = vld [vmem:[%s211 + $0x2280] sm:$0xff]
        %v1457 = vld [vmem:[%s211 + $0x2288] sm:$0xff]
        %v1458 = vld [vmem:[%s211 + $0x2290] sm:$0xff]
        %v1459 = vld [vmem:[%s211 + $0x2298] sm:$0xff]
        %v1460 = vld [vmem:[%s211 + $0x22a0] sm:$0xff]
        %v1461 = vld [vmem:[%s211 + $0x22a8] sm:$0xff]
        %v1462 = vld [vmem:[%s211 + $0x22b0] sm:$0xff]
        %v1463 = vld [vmem:[%s211 + $0x22b8] sm:$0xff]
        %v1464 = vld [vmem:[%s211 + $0x22c0] sm:$0xff]
        %v1465 = vld [vmem:[%s211 + $0x22c8] sm:$0xff]
        %v1466 = vld [vmem:[%s211 + $0x22d0] sm:$0xff]
        %v1467 = vld [vmem:[%s211 + $0x22d8] sm:$0xff]
        %v1468 = vld [vmem:[%s211 + $0x22e0] sm:$0xff]
        %v1469 = vld [vmem:[%s211 + $0x22e8] sm:$0xff]
        %v1470 = vld [vmem:[%s211 + $0x22f0] sm:$0xff]
        %v1471 = vld [vmem:[%s211 + $0x22f8] sm:$0xff]
        %v1472 = vld [vmem:[%s211 + $0x2300] sm:$0xff]
        %v1473 = vld [vmem:[%s211 + $0x2308] sm:$0xff]
        %v1474 = vld [vmem:[%s211 + $0x2310] sm:$0xff]
        %v1475 = vld [vmem:[%s211 + $0x2318] sm:$0xff]
        %v1476 = vld [vmem:[%s211 + $0x2320] sm:$0xff]
        %v1477 = vld [vmem:[%s211 + $0x2328] sm:$0xff]
        %v1478 = vld [vmem:[%s211 + $0x2330] sm:$0xff]
        %v1479 = vld [vmem:[%s211 + $0x2338] sm:$0xff]
        %v1480 = vld [vmem:[%s211 + $0x2340] sm:$0xff]
        %v1481 = vld [vmem:[%s211 + $0x2348] sm:$0xff]
        %v1482 = vld [vmem:[%s211 + $0x2350] sm:$0xff]
        %v1483 = vld [vmem:[%s211 + $0x2358] sm:$0xff]
        %v1484 = vld [vmem:[%s211 + $0x2360] sm:$0xff]
        %v1485 = vld [vmem:[%s211 + $0x2368] sm:$0xff]
        %v1486 = vld [vmem:[%s211 + $0x2370] sm:$0xff]
        %v1487 = vld [vmem:[%s211 + $0x2378] sm:$0xff]
        %v1488 = vld [vmem:[%s211 + $0x2380] sm:$0xff]
        %v1489 = vld [vmem:[%s211 + $0x2388] sm:$0xff]
        %v1490 = vld [vmem:[%s211 + $0x2390] sm:$0xff]
        %v1491 = vld [vmem:[%s211 + $0x2398] sm:$0xff]
        %v1492 = vld [vmem:[%s211 + $0x23a0] sm:$0xff]
        %v1493 = vld [vmem:[%s211 + $0x23a8] sm:$0xff]
        %v1494 = vld [vmem:[%s211 + $0x23b0] sm:$0xff]
        %v1495 = vld [vmem:[%s211 + $0x23b8] sm:$0xff]
        %v1496 = vld [vmem:[%s211 + $0x23c0] sm:$0xff]
        %v1497 = vld [vmem:[%s211 + $0x23c8] sm:$0xff]
        %v1498 = vld [vmem:[%s211 + $0x23d0] sm:$0xff]
        %v1499 = vld [vmem:[%s211 + $0x23d8] sm:$0xff]
        %v1500 = vld [vmem:[%s211 + $0x23e0] sm:$0xff]
        %v1501 = vld [vmem:[%s211 + $0x23e8] sm:$0xff]
        %v1502 = vld [vmem:[%s211 + $0x23f0] sm:$0xff]
        %v1503 = vld [vmem:[%s211 + $0x23f8] sm:$0xff]
        %v1504 = vld [vmem:[%s211 + $0x2400] sm:$0xff]
        %v1505 = vld [vmem:[%s211 + $0x2408] sm:$0xff]
        %v1506 = vld [vmem:[%s211 + $0x2410] sm:$0xff]
        %v1507 = vld [vmem:[%s211 + $0x2418] sm:$0xff]
        %v1508 = vld [vmem:[%s211 + $0x2420] sm:$0xff]
        %v1509 = vld [vmem:[%s211 + $0x2428] sm:$0xff]
        %v1510 = vld [vmem:[%s211 + $0x2430] sm:$0xff]
        %v1511 = vld [vmem:[%s211 + $0x2438] sm:$0xff]
        %v1512 = vld [vmem:[%s211 + $0x2440] sm:$0xff]
        %v1513 = vld [vmem:[%s211 + $0x2448] sm:$0xff]
        %v1514 = vld [vmem:[%s211 + $0x2450] sm:$0xff]
        %v1515 = vld [vmem:[%s211 + $0x2458] sm:$0xff]
        %v1516 = vld [vmem:[%s211 + $0x2460] sm:$0xff]
        %v1517 = vld [vmem:[%s211 + $0x2468] sm:$0xff]
        %v1518 = vld [vmem:[%s211 + $0x2470] sm:$0xff]
        %v1519 = vld [vmem:[%s211 + $0x2478] sm:$0xff]
        %v1520 = vld [vmem:[%s211 + $0x2480] sm:$0xff]
        %v1521 = vld [vmem:[%s211 + $0x2488] sm:$0xff]
        %v1522 = vld [vmem:[%s211 + $0x2490] sm:$0xff]
        %v1523 = vld [vmem:[%s211 + $0x2498] sm:$0xff]
        %v1524 = vld [vmem:[%s211 + $0x24a0] sm:$0xff]
        %v1525 = vld [vmem:[%s211 + $0x24a8] sm:$0xff]
        %v1526 = vld [vmem:[%s211 + $0x24b0] sm:$0xff]
        %v1527 = vld [vmem:[%s211 + $0x24b8] sm:$0xff]
        %v1528 = vld [vmem:[%s211 + $0x24c0] sm:$0xff]
        %v1529 = vld [vmem:[%s211 + $0x24c8] sm:$0xff]
        %v1530 = vld [vmem:[%s211 + $0x24d0] sm:$0xff]
        %v1531 = vld [vmem:[%s211 + $0x24d8] sm:$0xff]
        %v1532 = vld [vmem:[%s211 + $0x24e0] sm:$0xff]
        %v1533 = vld [vmem:[%s211 + $0x24e8] sm:$0xff]
        %v1534 = vld [vmem:[%s211 + $0x24f0] sm:$0xff]
        %v1535 = vld [vmem:[%s211 + $0x24f8] sm:$0xff]
        %v1536 = vld [vmem:[%s211 + $0x2500] sm:$0xff]
        %v1537 = vld [vmem:[%s211 + $0x2508] sm:$0xff]
        %v1538 = vld [vmem:[%s211 + $0x2510] sm:$0xff]
        %v1539 = vld [vmem:[%s211 + $0x2518] sm:$0xff]
        %v1540 = vld [vmem:[%s211 + $0x2520] sm:$0xff]
        %v1541 = vld [vmem:[%s211 + $0x2528] sm:$0xff]
        %v1542 = vld [vmem:[%s211 + $0x2530] sm:$0xff]
        %v1543 = vld [vmem:[%s211 + $0x2538] sm:$0xff]
        %v1544 = vld [vmem:[%s211 + $0x2540] sm:$0xff]
        %v1545 = vld [vmem:[%s211 + $0x2548] sm:$0xff]
        %v1546 = vld [vmem:[%s211 + $0x2550] sm:$0xff]
        %v1547 = vld [vmem:[%s211 + $0x2558] sm:$0xff]
        %v1548 = vld [vmem:[%s211 + $0x2560] sm:$0xff]
        %v1549 = vld [vmem:[%s211 + $0x2568] sm:$0xff]
        %v1550 = vld [vmem:[%s211 + $0x2570] sm:$0xff]
        %v1551 = vld [vmem:[%s211 + $0x2578] sm:$0xff]
        %v1552 = vld [vmem:[%s211 + $0x2580] sm:$0xff]
        %v1553 = vld [vmem:[%s211 + $0x2588] sm:$0xff]
        %v1554 = vld [vmem:[%s211 + $0x2590] sm:$0xff]
        %v1555 = vld [vmem:[%s211 + $0x2598] sm:$0xff]
        %v1556 = vld [vmem:[%s211 + $0x25a0] sm:$0xff]
        %v1557 = vld [vmem:[%s211 + $0x25a8] sm:$0xff]
        %v1558 = vld [vmem:[%s211 + $0x25b0] sm:$0xff]
        %v1559 = vld [vmem:[%s211 + $0x25b8] sm:$0xff]
        %v1560 = vld [vmem:[%s211 + $0x25c0] sm:$0xff]
        %v1561 = vld [vmem:[%s211 + $0x25c8] sm:$0xff]
        %v1562 = vld [vmem:[%s211 + $0x25d0] sm:$0xff]
        %v1563 = vld [vmem:[%s211 + $0x25d8] sm:$0xff]
        %v1564 = vld [vmem:[%s211 + $0x25e0] sm:$0xff]
        %v1565 = vld [vmem:[%s211 + $0x25e8] sm:$0xff]
        %v1566 = vld [vmem:[%s211 + $0x25f0] sm:$0xff]
        %v1567 = vld [vmem:[%s211 + $0x25f8] sm:$0xff]
        %v1568 = vld [vmem:[%s211 + $0x2600] sm:$0xff]
        %v1569 = vld [vmem:[%s211 + $0x2608] sm:$0xff]
        %v1570 = vld [vmem:[%s211 + $0x2610] sm:$0xff]
        %v1571 = vld [vmem:[%s211 + $0x2618] sm:$0xff]
        %v1572 = vld [vmem:[%s211 + $0x2620] sm:$0xff]
        %v1573 = vld [vmem:[%s211 + $0x2628] sm:$0xff]
        %v1574 = vld [vmem:[%s211 + $0x2630] sm:$0xff]
        %v1575 = vld [vmem:[%s211 + $0x2638] sm:$0xff]
        %v1576 = vld [vmem:[%s211 + $0x2640] sm:$0xff]
        %v1577 = vld [vmem:[%s211 + $0x2648] sm:$0xff]
        %v1578 = vld [vmem:[%s211 + $0x2650] sm:$0xff]
        %v1579 = vld [vmem:[%s211 + $0x2658] sm:$0xff]
        %v1580 = vld [vmem:[%s211 + $0x2660] sm:$0xff]
        %v1581 = vld [vmem:[%s211 + $0x2668] sm:$0xff]
        %v1582 = vld [vmem:[%s211 + $0x2670] sm:$0xff]
        %v1583 = vld [vmem:[%s211 + $0x2678] sm:$0xff]
        %v1584 = vld [vmem:[%s211 + $0x2680] sm:$0xff]
        %v1585 = vld [vmem:[%s211 + $0x2688] sm:$0xff]
        %v1586 = vld [vmem:[%s211 + $0x2690] sm:$0xff]
        %v1587 = vld [vmem:[%s211 + $0x2698] sm:$0xff]
        %v1588 = vld [vmem:[%s211 + $0x26a0] sm:$0xff]
        %v1589 = vld [vmem:[%s211 + $0x26a8] sm:$0xff]
        %v1590 = vld [vmem:[%s211 + $0x26b0] sm:$0xff]
        %v1591 = vld [vmem:[%s211 + $0x26b8] sm:$0xff]
        %v1592 = vld [vmem:[%s211 + $0x26c0] sm:$0xff]
        %v1593 = vld [vmem:[%s211 + $0x26c8] sm:$0xff]
        %v1594 = vld [vmem:[%s211 + $0x26d0] sm:$0xff]
        %v1595 = vld [vmem:[%s211 + $0x26d8] sm:$0xff]
        %v1596 = vld [vmem:[%s211 + $0x26e0] sm:$0xff]
        %v1597 = vld [vmem:[%s211 + $0x26e8] sm:$0xff]
        %v1598 = vld [vmem:[%s211 + $0x26f0] sm:$0xff]
        %v1599 = vld [vmem:[%s211 + $0x26f8] sm:$0xff]
        %v1600 = vld [vmem:[%s211 + $0x2700] sm:$0xff]
        %v1601 = vld [vmem:[%s211 + $0x2708] sm:$0xff]
        %v1602 = vld [vmem:[%s211 + $0x2710] sm:$0xff]
        %v1603 = vld [vmem:[%s211 + $0x2718] sm:$0xff]
        %v1604 = vld [vmem:[%s211 + $0x2720] sm:$0xff]
        %v1605 = vld [vmem:[%s211 + $0x2728] sm:$0xff]
        %v1606 = vld [vmem:[%s211 + $0x2730] sm:$0xff]
        %v1607 = vld [vmem:[%s211 + $0x2738] sm:$0xff]
        %v1608 = vld [vmem:[%s211 + $0x2740] sm:$0xff]
        %v1609 = vld [vmem:[%s211 + $0x2748] sm:$0xff]
        %v1610 = vld [vmem:[%s211 + $0x2750] sm:$0xff]
        %v1611 = vld [vmem:[%s211 + $0x2758] sm:$0xff]
        %v1612 = vld [vmem:[%s211 + $0x2760] sm:$0xff]
        %v1613 = vld [vmem:[%s211 + $0x2768] sm:$0xff]
        %v1614 = vld [vmem:[%s211 + $0x2770] sm:$0xff]
        %v1615 = vld [vmem:[%s211 + $0x2778] sm:$0xff]
        %v1616 = vld [vmem:[%s211 + $0x2780] sm:$0xff]
        %v1617 = vld [vmem:[%s211 + $0x2788] sm:$0xff]
        %v1618 = vld [vmem:[%s211 + $0x2790] sm:$0xff]
        %v1619 = vld [vmem:[%s211 + $0x2798] sm:$0xff]
        %v1620 = vld [vmem:[%s211 + $0x27a0] sm:$0xff]
        %v1621 = vld [vmem:[%s211 + $0x27a8] sm:$0xff]
        %v1622 = vld [vmem:[%s211 + $0x27b0] sm:$0xff]
        %v1623 = vld [vmem:[%s211 + $0x27b8] sm:$0xff]
        %v1624 = vld [vmem:[%s211 + $0x27c0] sm:$0xff]
        %v1625 = vld [vmem:[%s211 + $0x27c8] sm:$0xff]
        %v1626 = vld [vmem:[%s211 + $0x27d0] sm:$0xff]
        %v1627 = vld [vmem:[%s211 + $0x27d8] sm:$0xff]
        %v1628 = vld [vmem:[%s211 + $0x27e0] sm:$0xff]
        %v1629 = vld [vmem:[%s211 + $0x27e8] sm:$0xff]
        %v1630 = vld [vmem:[%s211 + $0x27f0] sm:$0xff]
        %v1631 = vld [vmem:[%s211 + $0x27f8] sm:$0xff]
        %v1632 = vld [vmem:[%s211 + $0x2800] sm:$0xff]
        %v1633 = vld [vmem:[%s211 + $0x2808] sm:$0xff]
        %v1634 = vld [vmem:[%s211 + $0x2810] sm:$0xff]
        %v1635 = vld [vmem:[%s211 + $0x2818] sm:$0xff]
        %v1636 = vld [vmem:[%s211 + $0x2820] sm:$0xff]
        %v1637 = vld [vmem:[%s211 + $0x2828] sm:$0xff]
        %v1638 = vld [vmem:[%s211 + $0x2830] sm:$0xff]
        %v1639 = vld [vmem:[%s211 + $0x2838] sm:$0xff]
        %v1640 = vld [vmem:[%s211 + $0x2840] sm:$0xff]
        %v1641 = vld [vmem:[%s211 + $0x2848] sm:$0xff]
        %v1642 = vld [vmem:[%s211 + $0x2850] sm:$0xff]
        %v1643 = vld [vmem:[%s211 + $0x2858] sm:$0xff]
        %v1644 = vld [vmem:[%s211 + $0x2860] sm:$0xff]
        %v1645 = vld [vmem:[%s211 + $0x2868] sm:$0xff]
        %v1646 = vld [vmem:[%s211 + $0x2870] sm:$0xff]
        %v1647 = vld [vmem:[%s211 + $0x2878] sm:$0xff]
        %v1648 = vld [vmem:[%s211 + $0x2880] sm:$0xff]
        %v1649 = vld [vmem:[%s211 + $0x2888] sm:$0xff]
        %v1650 = vld [vmem:[%s211 + $0x2890] sm:$0xff]
        %v1651 = vld [vmem:[%s211 + $0x2898] sm:$0xff]
        %v1652 = vld [vmem:[%s211 + $0x28a0] sm:$0xff]
        %v1653 = vld [vmem:[%s211 + $0x28a8] sm:$0xff]
        %v1654 = vld [vmem:[%s211 + $0x28b0] sm:$0xff]
        %v1655 = vld [vmem:[%s211 + $0x28b8] sm:$0xff]
        %v1656 = vld [vmem:[%s211 + $0x28c0] sm:$0xff]
        %v1657 = vld [vmem:[%s211 + $0x28c8] sm:$0xff]
        %v1658 = vld [vmem:[%s211 + $0x28d0] sm:$0xff]
        %v1659 = vld [vmem:[%s211 + $0x28d8] sm:$0xff]
        %v1660 = vld [vmem:[%s211 + $0x28e0] sm:$0xff]
        %v1661 = vld [vmem:[%s211 + $0x28e8] sm:$0xff]
        %v1662 = vld [vmem:[%s211 + $0x28f0] sm:$0xff]
        %v1663 = vld [vmem:[%s211 + $0x28f8] sm:$0xff]
        %v1664 = vld [vmem:[%s211 + $0x2900] sm:$0xff]
        %v1665 = vld [vmem:[%s211 + $0x2908] sm:$0xff]
        %v1666 = vld [vmem:[%s211 + $0x2910] sm:$0xff]
        %v1667 = vld [vmem:[%s211 + $0x2918] sm:$0xff]
        %v1668 = vld [vmem:[%s211 + $0x2920] sm:$0xff]
        %v1669 = vld [vmem:[%s211 + $0x2928] sm:$0xff]
        %v1670 = vld [vmem:[%s211 + $0x2930] sm:$0xff]
        %v1671 = vld [vmem:[%s211 + $0x2938] sm:$0xff]
        %v1672 = vld [vmem:[%s211 + $0x2940] sm:$0xff]
        %v1673 = vld [vmem:[%s211 + $0x2948] sm:$0xff]
        %v1674 = vld [vmem:[%s211 + $0x2950] sm:$0xff]
        %v1675 = vld [vmem:[%s211 + $0x2958] sm:$0xff]
        %v1676 = vld [vmem:[%s211 + $0x2960] sm:$0xff]
        %v1677 = vld [vmem:[%s211 + $0x2968] sm:$0xff]
        %v1678 = vld [vmem:[%s211 + $0x2970] sm:$0xff]
        %v1679 = vld [vmem:[%s211 + $0x2978] sm:$0xff]
        %v1680 = vld [vmem:[%s211 + $0x2980] sm:$0xff]
        %v1681 = vld [vmem:[%s211 + $0x2988] sm:$0xff]
        %v1682 = vld [vmem:[%s211 + $0x2990] sm:$0xff]
        %v1683 = vld [vmem:[%s211 + $0x2998] sm:$0xff]
        %v1684 = vld [vmem:[%s211 + $0x29a0] sm:$0xff]
        %v1685 = vld [vmem:[%s211 + $0x29a8] sm:$0xff]
        %v1686 = vld [vmem:[%s211 + $0x29b0] sm:$0xff]
        %v1687 = vld [vmem:[%s211 + $0x29b8] sm:$0xff]
        %v1688 = vld [vmem:[%s211 + $0x29c0] sm:$0xff]
        %v1689 = vld [vmem:[%s211 + $0x29c8] sm:$0xff]
        %v1690 = vld [vmem:[%s211 + $0x29d0] sm:$0xff]
        %v1691 = vld [vmem:[%s211 + $0x29d8] sm:$0xff]
        %v1692 = vld [vmem:[%s211 + $0x29e0] sm:$0xff]
        %v1693 = vld [vmem:[%s211 + $0x29e8] sm:$0xff]
        %v1694 = vld [vmem:[%s211 + $0x29f0] sm:$0xff]
        %v1695 = vld [vmem:[%s211 + $0x29f8] sm:$0xff]
        %v1696 = vld [vmem:[%s211 + $0x2a00] sm:$0xff]
        %v1697 = vld [vmem:[%s211 + $0x2a08] sm:$0xff]
        %v1698 = vld [vmem:[%s211 + $0x2a10] sm:$0xff]
        %v1699 = vld [vmem:[%s211 + $0x2a18] sm:$0xff]
        %v1700 = vld [vmem:[%s211 + $0x2a20] sm:$0xff]
        %v1701 = vld [vmem:[%s211 + $0x2a28] sm:$0xff]
        %v1702 = vld [vmem:[%s211 + $0x2a30] sm:$0xff]
        %v1703 = vld [vmem:[%s211 + $0x2a38] sm:$0xff]
        %v1704 = vld [vmem:[%s211 + $0x2a40] sm:$0xff]
        %v1705 = vld [vmem:[%s211 + $0x2a48] sm:$0xff]
        %v1706 = vld [vmem:[%s211 + $0x2a50] sm:$0xff]
        %v1707 = vld [vmem:[%s211 + $0x2a58] sm:$0xff]
        %v1708 = vld [vmem:[%s211 + $0x2a60] sm:$0xff]
        %v1709 = vld [vmem:[%s211 + $0x2a68] sm:$0xff]
        %v1710 = vld [vmem:[%s211 + $0x2a70] sm:$0xff]
        %v1711 = vld [vmem:[%s211 + $0x2a78] sm:$0xff]
        %v1712 = vld [vmem:[%s211 + $0x2a80] sm:$0xff]
        %v1713 = vld [vmem:[%s211 + $0x2a88] sm:$0xff]
        %v1714 = vld [vmem:[%s211 + $0x2a90] sm:$0xff]
        %v1715 = vld [vmem:[%s211 + $0x2a98] sm:$0xff]
        %v1716 = vld [vmem:[%s211 + $0x2aa0] sm:$0xff]
        %v1717 = vld [vmem:[%s211 + $0x2aa8] sm:$0xff]
        %v1718 = vld [vmem:[%s211 + $0x2ab0] sm:$0xff]
        %v1719 = vld [vmem:[%s211 + $0x2ab8] sm:$0xff]
        %v1720 = vld [vmem:[%s211 + $0x2ac0] sm:$0xff]
        %v1721 = vld [vmem:[%s211 + $0x2ac8] sm:$0xff]
        %v1722 = vld [vmem:[%s211 + $0x2ad0] sm:$0xff]
        %v1723 = vld [vmem:[%s211 + $0x2ad8] sm:$0xff]
        %v1724 = vld [vmem:[%s211 + $0x2ae0] sm:$0xff]
        %v1725 = vld [vmem:[%s211 + $0x2ae8] sm:$0xff]
        %v1726 = vld [vmem:[%s211 + $0x2af0] sm:$0xff]
        %v1727 = vld [vmem:[%s211 + $0x2af8] sm:$0xff]
        %v1728 = vld [vmem:[%s211 + $0x2b00] sm:$0xff]
        %v1729 = vld [vmem:[%s211 + $0x2b08] sm:$0xff]
        %v1730 = vld [vmem:[%s211 + $0x2b10] sm:$0xff]
        %v1731 = vld [vmem:[%s211 + $0x2b18] sm:$0xff]
        %v1732 = vld [vmem:[%s211 + $0x2b20] sm:$0xff]
        %v1733 = vld [vmem:[%s211 + $0x2b28] sm:$0xff]
        %v1734 = vld [vmem:[%s211 + $0x2b30] sm:$0xff]
        %v1735 = vld [vmem:[%s211 + $0x2b38] sm:$0xff]
        %v1736 = vld [vmem:[%s211 + $0x2b40] sm:$0xff]
        %v1737 = vld [vmem:[%s211 + $0x2b48] sm:$0xff]
        %v1738 = vld [vmem:[%s211 + $0x2b50] sm:$0xff]
        %v1739 = vld [vmem:[%s211 + $0x2b58] sm:$0xff]
        %v1740 = vld [vmem:[%s211 + $0x2b60] sm:$0xff]
        %v1741 = vld [vmem:[%s211 + $0x2b68] sm:$0xff]
        %v1742 = vld [vmem:[%s211 + $0x2b70] sm:$0xff]
        %v1743 = vld [vmem:[%s211 + $0x2b78] sm:$0xff]
        %v1744 = vld [vmem:[%s211 + $0x2b80] sm:$0xff]
        %v1745 = vld [vmem:[%s211 + $0x2b88] sm:$0xff]
        %v1746 = vld [vmem:[%s211 + $0x2b90] sm:$0xff]
        %v1747 = vld [vmem:[%s211 + $0x2b98] sm:$0xff]
        %v1748 = vld [vmem:[%s211 + $0x2ba0] sm:$0xff]
        %v1749 = vld [vmem:[%s211 + $0x2ba8] sm:$0xff]
        %v1750 = vld [vmem:[%s211 + $0x2bb0] sm:$0xff]
        %v1751 = vld [vmem:[%s211 + $0x2bb8] sm:$0xff]
        %v1752 = vld [vmem:[%s211 + $0x2bc0] sm:$0xff]
        %v1753 = vld [vmem:[%s211 + $0x2bc8] sm:$0xff]
        %v1754 = vld [vmem:[%s211 + $0x2bd0] sm:$0xff]
        %v1755 = vld [vmem:[%s211 + $0x2bd8] sm:$0xff]
        %v1756 = vld [vmem:[%s211 + $0x2be0] sm:$0xff]
        %v1757 = vld [vmem:[%s211 + $0x2be8] sm:$0xff]
        %v1758 = vld [vmem:[%s211 + $0x2bf0] sm:$0xff]
        %v1759 = vld [vmem:[%s211 + $0x2bf8] sm:$0xff]
        %v1760 = vld [vmem:[%s211 + $0x2c00] sm:$0xff]
        %v1761 = vld [vmem:[%s211 + $0x2c08] sm:$0xff]
        %v1762 = vld [vmem:[%s211 + $0x2c10] sm:$0xff]
        %v1763 = vld [vmem:[%s211 + $0x2c18] sm:$0xff]
        %v1764 = vld [vmem:[%s211 + $0x2c20] sm:$0xff]
        %v1765 = vld [vmem:[%s211 + $0x2c28] sm:$0xff]
        %v1766 = vld [vmem:[%s211 + $0x2c30] sm:$0xff]
        %v1767 = vld [vmem:[%s211 + $0x2c38] sm:$0xff]
        %v1768 = vld [vmem:[%s211 + $0x2c40] sm:$0xff]
        %v1769 = vld [vmem:[%s211 + $0x2c48] sm:$0xff]
        %v1770 = vld [vmem:[%s211 + $0x2c50] sm:$0xff]
        %v1771 = vld [vmem:[%s211 + $0x2c58] sm:$0xff]
        %v1772 = vld [vmem:[%s211 + $0x2c60] sm:$0xff]
        %v1773 = vld [vmem:[%s211 + $0x2c68] sm:$0xff]
        %v1774 = vld [vmem:[%s211 + $0x2c70] sm:$0xff]
        %v1775 = vld [vmem:[%s211 + $0x2c78] sm:$0xff]
        %v1776 = vld [vmem:[%s211 + $0x2c80] sm:$0xff]
        %v1777 = vld [vmem:[%s211 + $0x2c88] sm:$0xff]
        %v1778 = vld [vmem:[%s211 + $0x2c90] sm:$0xff]
        %v1779 = vld [vmem:[%s211 + $0x2c98] sm:$0xff]
        %v1780 = vld [vmem:[%s211 + $0x2ca0] sm:$0xff]
        %v1781 = vld [vmem:[%s211 + $0x2ca8] sm:$0xff]
        %v1782 = vld [vmem:[%s211 + $0x2cb0] sm:$0xff]
        %v1783 = vld [vmem:[%s211 + $0x2cb8] sm:$0xff]
        %v1784 = vld [vmem:[%s211 + $0x2cc0] sm:$0xff]
        %v1785 = vld [vmem:[%s211 + $0x2cc8] sm:$0xff]
        %v1786 = vld [vmem:[%s211 + $0x2cd0] sm:$0xff]
        %v1787 = vld [vmem:[%s211 + $0x2cd8] sm:$0xff]
        %v1788 = vld [vmem:[%s211 + $0x2ce0] sm:$0xff]
        %v1789 = vld [vmem:[%s211 + $0x2ce8] sm:$0xff]
        %v1790 = vld [vmem:[%s211 + $0x2cf0] sm:$0xff]
        %v1791 = vld [vmem:[%s211 + $0x2cf8] sm:$0xff]
        %v1792 = vld [vmem:[%s211 + $0x2d00] sm:$0xff]
        %v1793 = vld [vmem:[%s211 + $0x2d08] sm:$0xff]
        %v1794 = vld [vmem:[%s211 + $0x2d10] sm:$0xff]
        %v1795 = vld [vmem:[%s211 + $0x2d18] sm:$0xff]
        %v1796 = vld [vmem:[%s211 + $0x2d20] sm:$0xff]
        %v1797 = vld [vmem:[%s211 + $0x2d28] sm:$0xff]
        %v1798 = vld [vmem:[%s211 + $0x2d30] sm:$0xff]
        %v1799 = vld [vmem:[%s211 + $0x2d38] sm:$0xff]
        %v1800 = vld [vmem:[%s211 + $0x2d40] sm:$0xff]
        %v1801 = vld [vmem:[%s211 + $0x2d48] sm:$0xff]
        %v1802 = vld [vmem:[%s211 + $0x2d50] sm:$0xff]
        %v1803 = vld [vmem:[%s211 + $0x2d58] sm:$0xff]
        %v1804 = vld [vmem:[%s211 + $0x2d60] sm:$0xff]
        %v1805 = vld [vmem:[%s211 + $0x2d68] sm:$0xff]
        %v1806 = vld [vmem:[%s211 + $0x2d70] sm:$0xff]
        %v1807 = vld [vmem:[%s211 + $0x2d78] sm:$0xff]
        %v1808 = vld [vmem:[%s211 + $0x2d80] sm:$0xff]
        %v1809 = vld [vmem:[%s211 + $0x2d88] sm:$0xff]
        %v1810 = vld [vmem:[%s211 + $0x2d90] sm:$0xff]
        %v1811 = vld [vmem:[%s211 + $0x2d98] sm:$0xff]
        %v1812 = vld [vmem:[%s211 + $0x2da0] sm:$0xff]
        %v1813 = vld [vmem:[%s211 + $0x2da8] sm:$0xff]
        %v1814 = vld [vmem:[%s211 + $0x2db0] sm:$0xff]
        %v1815 = vld [vmem:[%s211 + $0x2db8] sm:$0xff]
        %v1816 = vld [vmem:[%s211 + $0x2dc0] sm:$0xff]
        %v1817 = vld [vmem:[%s211 + $0x2dc8] sm:$0xff]
        %v1818 = vld [vmem:[%s211 + $0x2dd0] sm:$0xff]
        %v1819 = vld [vmem:[%s211 + $0x2dd8] sm:$0xff]
        %v1820 = vld [vmem:[%s211 + $0x2de0] sm:$0xff]
        %v1821 = vld [vmem:[%s211 + $0x2de8] sm:$0xff]
        %v1822 = vld [vmem:[%s211 + $0x2df0] sm:$0xff]
        %v1823 = vld [vmem:[%s211 + $0x2df8] sm:$0xff]
        %v1824 = vld [vmem:[%s211 + $0x2e00] sm:$0xff]
        %v1825 = vld [vmem:[%s211 + $0x2e08] sm:$0xff]
        %v1826 = vld [vmem:[%s211 + $0x2e10] sm:$0xff]
        %v1827 = vld [vmem:[%s211 + $0x2e18] sm:$0xff]
        %v1828 = vld [vmem:[%s211 + $0x2e20] sm:$0xff]
        %v1829 = vld [vmem:[%s211 + $0x2e28] sm:$0xff]
        %v1830 = vld [vmem:[%s211 + $0x2e30] sm:$0xff]
        %v1831 = vld [vmem:[%s211 + $0x2e38] sm:$0xff]
        %v1832 = vld [vmem:[%s211 + $0x2e40] sm:$0xff]
        %v1833 = vld [vmem:[%s211 + $0x2e48] sm:$0xff]
        %v1834 = vld [vmem:[%s211 + $0x2e50] sm:$0xff]
        %v1835 = vld [vmem:[%s211 + $0x2e58] sm:$0xff]
        %v1836 = vld [vmem:[%s211 + $0x2e60] sm:$0xff]
        %v1837 = vld [vmem:[%s211 + $0x2e68] sm:$0xff]
        %v1838 = vld [vmem:[%s211 + $0x2e70] sm:$0xff]
        %v1839 = vld [vmem:[%s211 + $0x2e78] sm:$0xff]
        %v1840 = vld [vmem:[%s211 + $0x2e80] sm:$0xff]
        %v1841 = vld [vmem:[%s211 + $0x2e88] sm:$0xff]
        %v1842 = vld [vmem:[%s211 + $0x2e90] sm:$0xff]
        %v1843 = vld [vmem:[%s211 + $0x2e98] sm:$0xff]
        %v1844 = vld [vmem:[%s211 + $0x2ea0] sm:$0xff]
        %v1845 = vld [vmem:[%s211 + $0x2ea8] sm:$0xff]
        %v1846 = vld [vmem:[%s211 + $0x2eb0] sm:$0xff]
        %v1847 = vld [vmem:[%s211 + $0x2eb8] sm:$0xff]
        %v1848 = vld [vmem:[%s211 + $0x2ec0] sm:$0xff]
        %v1849 = vld [vmem:[%s211 + $0x2ec8] sm:$0xff]
        %v1850 = vld [vmem:[%s211 + $0x2ed0] sm:$0xff]
        %v1851 = vld [vmem:[%s211 + $0x2ed8] sm:$0xff]
        %v1852 = vld [vmem:[%s211 + $0x2ee0] sm:$0xff]
        %v1853 = vld [vmem:[%s211 + $0x2ee8] sm:$0xff]
        %v1854 = vld [vmem:[%s211 + $0x2ef0] sm:$0xff]
        %v1855 = vld [vmem:[%s211 + $0x2ef8] sm:$0xff]
        %v1856 = vld [vmem:[%s211 + $0x2f00] sm:$0xff]
        %v1857 = vld [vmem:[%s211 + $0x2f08] sm:$0xff]
        %v1858 = vld [vmem:[%s211 + $0x2f10] sm:$0xff]
        %v1859 = vld [vmem:[%s211 + $0x2f18] sm:$0xff]
        %v1860 = vld [vmem:[%s211 + $0x2f20] sm:$0xff]
        %v1861 = vld [vmem:[%s211 + $0x2f28] sm:$0xff]
        %v1862 = vld [vmem:[%s211 + $0x2f30] sm:$0xff]
        %v1863 = vld [vmem:[%s211 + $0x2f38] sm:$0xff]
        %v1864 = vld [vmem:[%s211 + $0x2f40] sm:$0xff]
        %v1865 = vld [vmem:[%s211 + $0x2f48] sm:$0xff]
        %v1866 = vld [vmem:[%s211 + $0x2f50] sm:$0xff]
        %v1867 = vld [vmem:[%s211 + $0x2f58] sm:$0xff]
        %v1868 = vld [vmem:[%s211 + $0x2f60] sm:$0xff]
        %v1869 = vld [vmem:[%s211 + $0x2f68] sm:$0xff]
        %v1870 = vld [vmem:[%s211 + $0x2f70] sm:$0xff]
        %v1871 = vld [vmem:[%s211 + $0x2f78] sm:$0xff]
        %v1872 = vld [vmem:[%s211 + $0x2f80] sm:$0xff]
        %v1873 = vld [vmem:[%s211 + $0x2f88] sm:$0xff]
        %v1874 = vld [vmem:[%s211 + $0x2f90] sm:$0xff]
        %v1875 = vld [vmem:[%s211 + $0x2f98] sm:$0xff]
        %v1876 = vld [vmem:[%s211 + $0x2fa0] sm:$0xff]
        %v1877 = vld [vmem:[%s211 + $0x2fa8] sm:$0xff]
        %v1878 = vld [vmem:[%s211 + $0x2fb0] sm:$0xff]
        %v1879 = vld [vmem:[%s211 + $0x2fb8] sm:$0xff]
        %v1880 = vld [vmem:[%s211 + $0x2fc0] sm:$0xff]
        %v1881 = vld [vmem:[%s211 + $0x2fc8] sm:$0xff]
        %v1882 = vld [vmem:[%s211 + $0x2fd0] sm:$0xff]
        %v1883 = vld [vmem:[%s211 + $0x2fd8] sm:$0xff]
        %v1884 = vld [vmem:[%s211 + $0x2fe0] sm:$0xff]
        %v1885 = vld [vmem:[%s211 + $0x2fe8] sm:$0xff]
        %v1886 = vld [vmem:[%s211 + $0x2ff0] sm:$0xff]
        %v1887 = vld [vmem:[%s211 + $0x2ff8] sm:$0xff]
        %v1888 = vld [vmem:[%s211 + $0x3000] sm:$0xff]
        %v1889 = vld [vmem:[%s211 + $0x3008] sm:$0xff]
        %v1890 = vld [vmem:[%s211 + $0x3010] sm:$0xff]
        %v1891 = vld [vmem:[%s211 + $0x3018] sm:$0xff]
        %v1892 = vld [vmem:[%s211 + $0x3020] sm:$0xff]
        %v1893 = vld [vmem:[%s211 + $0x3028] sm:$0xff]
        %v1894 = vld [vmem:[%s211 + $0x3030] sm:$0xff]
        %v1895 = vld [vmem:[%s211 + $0x3038] sm:$0xff]
        %v1896 = vld [vmem:[%s211 + $0x3040] sm:$0xff]
        %v1897 = vld [vmem:[%s211 + $0x3048] sm:$0xff]
        %v1898 = vld [vmem:[%s211 + $0x3050] sm:$0xff]
        %v1899 = vld [vmem:[%s211 + $0x3058] sm:$0xff]
        %v1900 = vld [vmem:[%s211 + $0x3060] sm:$0xff]
        %v1901 = vld [vmem:[%s211 + $0x3068] sm:$0xff]
        %v1902 = vld [vmem:[%s211 + $0x3070] sm:$0xff]
        %v1903 = vld [vmem:[%s211 + $0x3078] sm:$0xff]
        %v1904 = vld [vmem:[%s211 + $0x3080] sm:$0xff]
        %v1905 = vld [vmem:[%s211 + $0x3088] sm:$0xff]
        %v1906 = vld [vmem:[%s211 + $0x3090] sm:$0xff]
        %v1907 = vld [vmem:[%s211 + $0x3098] sm:$0xff]
        %v1908 = vld [vmem:[%s211 + $0x30a0] sm:$0xff]
        %v1909 = vld [vmem:[%s211 + $0x30a8] sm:$0xff]
        %v1910 = vld [vmem:[%s211 + $0x30b0] sm:$0xff]
        %v1911 = vld [vmem:[%s211 + $0x30b8] sm:$0xff]
        %v1912 = vld [vmem:[%s211 + $0x30c0] sm:$0xff]
        %v1913 = vld [vmem:[%s211 + $0x30c8] sm:$0xff]
        %v1914 = vld [vmem:[%s211 + $0x30d0] sm:$0xff]
        %v1915 = vld [vmem:[%s211 + $0x30d8] sm:$0xff]
        %v1916 = vld [vmem:[%s211 + $0x30e0] sm:$0xff]
        %v1917 = vld [vmem:[%s211 + $0x30e8] sm:$0xff]
        %v1918 = vld [vmem:[%s211 + $0x30f0] sm:$0xff]
        %v1919 = vld [vmem:[%s211 + $0x30f8] sm:$0xff]
        %v1920 = vld [vmem:[%s211 + $0x3100] sm:$0xff]
        %v1921 = vld [vmem:[%s211 + $0x3108] sm:$0xff]
        %v1922 = vld [vmem:[%s211 + $0x3110] sm:$0xff]
        %v1923 = vld [vmem:[%s211 + $0x3118] sm:$0xff]
        %v1924 = vld [vmem:[%s211 + $0x3120] sm:$0xff]
        %v1925 = vld [vmem:[%s211 + $0x3128] sm:$0xff]
        %v1926 = vld [vmem:[%s211 + $0x3130] sm:$0xff]
        %v1927 = vld [vmem:[%s211 + $0x3138] sm:$0xff]
        %v1928 = vld [vmem:[%s211 + $0x3140] sm:$0xff]
        %v1929 = vld [vmem:[%s211 + $0x3148] sm:$0xff]
        %v1930 = vld [vmem:[%s211 + $0x3150] sm:$0xff]
        %v1931 = vld [vmem:[%s211 + $0x3158] sm:$0xff]
        %v1932 = vld [vmem:[%s211 + $0x3160] sm:$0xff]
        %v1933 = vld [vmem:[%s211 + $0x3168] sm:$0xff]
        %v1934 = vld [vmem:[%s211 + $0x3170] sm:$0xff]
        %v1935 = vld [vmem:[%s211 + $0x3178] sm:$0xff]
        %v1936 = vld [vmem:[%s211 + $0x3180] sm:$0xff]
        %v1937 = vld [vmem:[%s211 + $0x3188] sm:$0xff]
        %v1938 = vld [vmem:[%s211 + $0x3190] sm:$0xff]
        %v1939 = vld [vmem:[%s211 + $0x3198] sm:$0xff]
        %v1940 = vld [vmem:[%s211 + $0x31a0] sm:$0xff]
        %v1941 = vld [vmem:[%s211 + $0x31a8] sm:$0xff]
        %v1942 = vld [vmem:[%s211 + $0x31b0] sm:$0xff]
        %v1943 = vld [vmem:[%s211 + $0x31b8] sm:$0xff]
        %v1944 = vld [vmem:[%s211 + $0x31c0] sm:$0xff]
        %v1945 = vld [vmem:[%s211 + $0x31c8] sm:$0xff]
        %v1946 = vld [vmem:[%s211 + $0x31d0] sm:$0xff]
        %v1947 = vld [vmem:[%s211 + $0x31d8] sm:$0xff]
        %v1948 = vld [vmem:[%s211 + $0x31e0] sm:$0xff]
        %v1949 = vld [vmem:[%s211 + $0x31e8] sm:$0xff]
        %v1950 = vld [vmem:[%s211 + $0x31f0] sm:$0xff]
        %v1951 = vld [vmem:[%s211 + $0x31f8] sm:$0xff]
        %v1952 = vld [vmem:[%s211 + $0x3200] sm:$0xff]
        %v1953 = vld [vmem:[%s211 + $0x3208] sm:$0xff]
        %v1954 = vld [vmem:[%s211 + $0x3210] sm:$0xff]
        %v1955 = vld [vmem:[%s211 + $0x3218] sm:$0xff]
        %v1956 = vld [vmem:[%s211 + $0x3220] sm:$0xff]
        %v1957 = vld [vmem:[%s211 + $0x3228] sm:$0xff]
        %v1958 = vld [vmem:[%s211 + $0x3230] sm:$0xff]
        %v1959 = vld [vmem:[%s211 + $0x3238] sm:$0xff]
        %v1960 = vld [vmem:[%s211 + $0x3240] sm:$0xff]
        %v1961 = vld [vmem:[%s211 + $0x3248] sm:$0xff]
        %v1962 = vld [vmem:[%s211 + $0x3250] sm:$0xff]
        %v1963 = vld [vmem:[%s211 + $0x3258] sm:$0xff]
        %v1964 = vld [vmem:[%s211 + $0x3260] sm:$0xff]
        %v1965 = vld [vmem:[%s211 + $0x3268] sm:$0xff]
        %v1966 = vld [vmem:[%s211 + $0x3270] sm:$0xff]
        %v1967 = vld [vmem:[%s211 + $0x3278] sm:$0xff]
        %v1968 = vld [vmem:[%s211 + $0x3280] sm:$0xff]
        %v1969 = vld [vmem:[%s211 + $0x3288] sm:$0xff]
        %v1970 = vld [vmem:[%s211 + $0x3290] sm:$0xff]
        %v1971 = vld [vmem:[%s211 + $0x3298] sm:$0xff]
        %v1972 = vld [vmem:[%s211 + $0x32a0] sm:$0xff]
        %v1973 = vld [vmem:[%s211 + $0x32a8] sm:$0xff]
        %v1974 = vld [vmem:[%s211 + $0x32b0] sm:$0xff]
        %v1975 = vld [vmem:[%s211 + $0x32b8] sm:$0xff]
        %v1976 = vld [vmem:[%s211 + $0x32c0] sm:$0xff]
        %v1977 = vld [vmem:[%s211 + $0x32c8] sm:$0xff]
        %v1978 = vld [vmem:[%s211 + $0x32d0] sm:$0xff]
        %v1979 = vld [vmem:[%s211 + $0x32d8] sm:$0xff]
        %v1980 = vld [vmem:[%s211 + $0x32e0] sm:$0xff]
        %v1981 = vld [vmem:[%s211 + $0x32e8] sm:$0xff]
        %v1982 = vld [vmem:[%s211 + $0x32f0] sm:$0xff]
        %v1983 = vld [vmem:[%s211 + $0x32f8] sm:$0xff]
        %v1984 = vld [vmem:[%s211 + $0x3300] sm:$0xff]
        %v1985 = vld [vmem:[%s211 + $0x3308] sm:$0xff]
        %v1986 = vld [vmem:[%s211 + $0x3310] sm:$0xff]
        %v1987 = vld [vmem:[%s211 + $0x3318] sm:$0xff]
        %v1988 = vld [vmem:[%s211 + $0x3320] sm:$0xff]
        %v1989 = vld [vmem:[%s211 + $0x3328] sm:$0xff]
        %v1990 = vld [vmem:[%s211 + $0x3330] sm:$0xff]
        %v1991 = vld [vmem:[%s211 + $0x3338] sm:$0xff]
        %v1992 = vld [vmem:[%s211 + $0x3340] sm:$0xff]
        %v1993 = vld [vmem:[%s211 + $0x3348] sm:$0xff]
        %v1994 = vld [vmem:[%s211 + $0x3350] sm:$0xff]
        %v1995 = vld [vmem:[%s211 + $0x3358] sm:$0xff]
        %v1996 = vld [vmem:[%s211 + $0x3360] sm:$0xff]
        %v1997 = vld [vmem:[%s211 + $0x3368] sm:$0xff]
        %v1998 = vld [vmem:[%s211 + $0x3370] sm:$0xff]
        %v1999 = vld [vmem:[%s211 + $0x3378] sm:$0xff]
        %v2000 = vld [vmem:[%s211 + $0x3380] sm:$0xff]
        %v2001 = vld [vmem:[%s211 + $0x3388] sm:$0xff]
        %v2002 = vld [vmem:[%s211 + $0x3390] sm:$0xff]
        %v2003 = vld [vmem:[%s211 + $0x3398] sm:$0xff]
        %v2004 = vld [vmem:[%s211 + $0x33a0] sm:$0xff]
        %v2005 = vld [vmem:[%s211 + $0x33a8] sm:$0xff]
        %v2006 = vld [vmem:[%s211 + $0x33b0] sm:$0xff]
        %v2007 = vld [vmem:[%s211 + $0x33b8] sm:$0xff]
        %v2008 = vld [vmem:[%s211 + $0x33c0] sm:$0xff]
        %v2009 = vld [vmem:[%s211 + $0x33c8] sm:$0xff]
        %v2010 = vld [vmem:[%s211 + $0x33d0] sm:$0xff]
        %v2011 = vld [vmem:[%s211 + $0x33d8] sm:$0xff]
        %v2012 = vld [vmem:[%s211 + $0x33e0] sm:$0xff]
        %v2013 = vld [vmem:[%s211 + $0x33e8] sm:$0xff]
        %v2014 = vld [vmem:[%s211 + $0x33f0] sm:$0xff]
        %v2015 = vld [vmem:[%s211 + $0x33f8] sm:$0xff]
        %v2016 = vld [vmem:[%s211 + $0x3400] sm:$0xff]
        %v2017 = vld [vmem:[%s211 + $0x3408] sm:$0xff]
        %v2018 = vld [vmem:[%s211 + $0x3410] sm:$0xff]
        %v2019 = vld [vmem:[%s211 + $0x3418] sm:$0xff]
        %v2020 = vld [vmem:[%s211 + $0x3420] sm:$0xff]
        %v2021 = vld [vmem:[%s211 + $0x3428] sm:$0xff]
        %v2022 = vld [vmem:[%s211 + $0x3430] sm:$0xff]
        %v2023 = vld [vmem:[%s211 + $0x3438] sm:$0xff]
        %v2024 = vld [vmem:[%s211 + $0x3440] sm:$0xff]
        %v2025 = vld [vmem:[%s211 + $0x3448] sm:$0xff]
        %v2026 = vld [vmem:[%s211 + $0x3450] sm:$0xff]
        %v2027 = vld [vmem:[%s211 + $0x3458] sm:$0xff]
        %v2028 = vld [vmem:[%s211 + $0x3460] sm:$0xff]
        %v2029 = vld [vmem:[%s211 + $0x3468] sm:$0xff]
        %v2030 = vld [vmem:[%s211 + $0x3470] sm:$0xff]
        %v2031 = vld [vmem:[%s211 + $0x3478] sm:$0xff]
        %v2032 = vld [vmem:[%s211 + $0x3480] sm:$0xff]
        %v2033 = vld [vmem:[%s211 + $0x3488] sm:$0xff]
        %v2034 = vld [vmem:[%s211 + $0x3490] sm:$0xff]
        %v2035 = vld [vmem:[%s211 + $0x3498] sm:$0xff]
        %v2036 = vld [vmem:[%s211 + $0x34a0] sm:$0xff]
        %v2037 = vld [vmem:[%s211 + $0x34a8] sm:$0xff]
        %v2038 = vld [vmem:[%s211 + $0x34b0] sm:$0xff]
        %v2039 = vld [vmem:[%s211 + $0x34b8] sm:$0xff]
        %v2040 = vld [vmem:[%s211 + $0x34c0] sm:$0xff]
        %v2041 = vld [vmem:[%s211 + $0x34c8] sm:$0xff]
        %v2042 = vld [vmem:[%s211 + $0x34d0] sm:$0xff]
        %v2043 = vld [vmem:[%s211 + $0x34d8] sm:$0xff]
        %v2044 = vld [vmem:[%s211 + $0x34e0] sm:$0xff]
        %v2045 = vld [vmem:[%s211 + $0x34e8] sm:$0xff]
        %v2046 = vld [vmem:[%s211 + $0x34f0] sm:$0xff]
        %v2047 = vld [vmem:[%s211 + $0x34f8] sm:$0xff]
        %v2048 = vld [vmem:[%s211 + $0x3500] sm:$0xff]
        %v2049 = vld [vmem:[%s211 + $0x3508] sm:$0xff]
        %v2050 = vld [vmem:[%s211 + $0x3510] sm:$0xff]
        %v2051 = vld [vmem:[%s211 + $0x3518] sm:$0xff]
        %v2052 = vld [vmem:[%s211 + $0x3520] sm:$0xff]
        %v2053 = vld [vmem:[%s211 + $0x3528] sm:$0xff]
        %v2054 = vld [vmem:[%s211 + $0x3530] sm:$0xff]
        %v2055 = vld [vmem:[%s211 + $0x3538] sm:$0xff]
        %v2056 = vld [vmem:[%s211 + $0x3540] sm:$0xff]
        %v2057 = vld [vmem:[%s211 + $0x3548] sm:$0xff]
        %v2058 = vld [vmem:[%s211 + $0x3550] sm:$0xff]
        %v2059 = vld [vmem:[%s211 + $0x3558] sm:$0xff]
        %v2060 = vld [vmem:[%s211 + $0x3560] sm:$0xff]
        %v2061 = vld [vmem:[%s211 + $0x3568] sm:$0xff]
        %v2062 = vld [vmem:[%s211 + $0x3570] sm:$0xff]
        %v2063 = vld [vmem:[%s211 + $0x3578] sm:$0xff]
        %v2064 = vld [vmem:[%s211 + $0x3580] sm:$0xff]
        %v2065 = vld [vmem:[%s211 + $0x3588] sm:$0xff]
        %v2066 = vld [vmem:[%s211 + $0x3590] sm:$0xff]
        %v2067 = vld [vmem:[%s211 + $0x3598] sm:$0xff]
        %v2068 = vld [vmem:[%s211 + $0x35a0] sm:$0xff]
        %v2069 = vld [vmem:[%s211 + $0x35a8] sm:$0xff]
        %v2070 = vld [vmem:[%s211 + $0x35b0] sm:$0xff]
        %v2071 = vld [vmem:[%s211 + $0x35b8] sm:$0xff]
        %v2072 = vld [vmem:[%s211 + $0x35c0] sm:$0xff]
        %v2073 = vld [vmem:[%s211 + $0x35c8] sm:$0xff]
        %v2074 = vld [vmem:[%s211 + $0x35d0] sm:$0xff]
        %v2075 = vld [vmem:[%s211 + $0x35d8] sm:$0xff]
        %v2076 = vld [vmem:[%s211 + $0x35e0] sm:$0xff]
        %v2077 = vld [vmem:[%s211 + $0x35e8] sm:$0xff]
        %v2078 = vld [vmem:[%s211 + $0x35f0] sm:$0xff]
        %v2079 = vld [vmem:[%s211 + $0x35f8] sm:$0xff]
        %v2080 = vld [vmem:[%s211 + $0x3600] sm:$0xff]
        %v2081 = vld [vmem:[%s211 + $0x3608] sm:$0xff]
        %v2082 = vld [vmem:[%s211 + $0x3610] sm:$0xff]
        %v2083 = vld [vmem:[%s211 + $0x3618] sm:$0xff]
        %v2084 = vld [vmem:[%s211 + $0x3620] sm:$0xff]
        %v2085 = vld [vmem:[%s211 + $0x3628] sm:$0xff]
        %v2086 = vld [vmem:[%s211 + $0x3630] sm:$0xff]
        %v2087 = vld [vmem:[%s211 + $0x3638] sm:$0xff]
        %v2088 = vld [vmem:[%s211 + $0x3640] sm:$0xff]
        %v2089 = vld [vmem:[%s211 + $0x3648] sm:$0xff]
        %v2090 = vld [vmem:[%s211 + $0x3650] sm:$0xff]
        %v2091 = vld [vmem:[%s211 + $0x3658] sm:$0xff]
        %v2092 = vld [vmem:[%s211 + $0x3660] sm:$0xff]
        %v2093 = vld [vmem:[%s211 + $0x3668] sm:$0xff]
        %v2094 = vld [vmem:[%s211 + $0x3670] sm:$0xff]
        %v2095 = vld [vmem:[%s211 + $0x3678] sm:$0xff]
        %v2096 = vld [vmem:[%s211 + $0x3680] sm:$0xff]
        %v2097 = vld [vmem:[%s211 + $0x3688] sm:$0xff]
        %v2098 = vld [vmem:[%s211 + $0x3690] sm:$0xff]
        %v2099 = vld [vmem:[%s211 + $0x3698] sm:$0xff]
        %v2100 = vld [vmem:[%s211 + $0x36a0] sm:$0xff]
        %v2101 = vld [vmem:[%s211 + $0x36a8] sm:$0xff]
        %v2102 = vld [vmem:[%s211 + $0x36b0] sm:$0xff]
        %v2103 = vld [vmem:[%s211 + $0x36b8] sm:$0xff]
        %v2104 = vld [vmem:[%s211 + $0x36c0] sm:$0xff]
        %v2105 = vld [vmem:[%s211 + $0x36c8] sm:$0xff]
        %v2106 = vld [vmem:[%s211 + $0x36d0] sm:$0xff]
        %v2107 = vld [vmem:[%s211 + $0x36d8] sm:$0xff]
        %v2108 = vld [vmem:[%s211 + $0x36e0] sm:$0xff]
        %v2109 = vld [vmem:[%s211 + $0x36e8] sm:$0xff]
        %v2110 = vld [vmem:[%s211 + $0x36f0] sm:$0xff]
        %v2111 = vld [vmem:[%s211 + $0x36f8] sm:$0xff]
        %v2112 = vld [vmem:[%s211 + $0x3700] sm:$0xff]
        %v2113 = vld [vmem:[%s211 + $0x3708] sm:$0xff]
        %v2114 = vld [vmem:[%s211 + $0x3710] sm:$0xff]
        %v2115 = vld [vmem:[%s211 + $0x3718] sm:$0xff]
        %v2116 = vld [vmem:[%s211 + $0x3720] sm:$0xff]
        %v2117 = vld [vmem:[%s211 + $0x3728] sm:$0xff]
        %v2118 = vld [vmem:[%s211 + $0x3730] sm:$0xff]
        %v2119 = vld [vmem:[%s211 + $0x3738] sm:$0xff]
        %v2120 = vld [vmem:[%s211 + $0x3740] sm:$0xff]
        %v2121 = vld [vmem:[%s211 + $0x3748] sm:$0xff]
        %v2122 = vld [vmem:[%s211 + $0x3750] sm:$0xff]
        %v2123 = vld [vmem:[%s211 + $0x3758] sm:$0xff]
        %v2124 = vld [vmem:[%s211 + $0x3760] sm:$0xff]
        %v2125 = vld [vmem:[%s211 + $0x3768] sm:$0xff]
        %v2126 = vld [vmem:[%s211 + $0x3770] sm:$0xff]
        %v2127 = vld [vmem:[%s211 + $0x3778] sm:$0xff]
        %v2128 = vld [vmem:[%s211 + $0x3780] sm:$0xff]
        %v2129 = vld [vmem:[%s211 + $0x3788] sm:$0xff]
        %v2130 = vld [vmem:[%s211 + $0x3790] sm:$0xff]
        %v2131 = vld [vmem:[%s211 + $0x3798] sm:$0xff]
        %v2132 = vld [vmem:[%s211 + $0x37a0] sm:$0xff]
        %v2133 = vld [vmem:[%s211 + $0x37a8] sm:$0xff]
        %v2134 = vld [vmem:[%s211 + $0x37b0] sm:$0xff]
        %v2135 = vld [vmem:[%s211 + $0x37b8] sm:$0xff]
        %v2136 = vld [vmem:[%s211 + $0x37c0] sm:$0xff]
        %v2137 = vld [vmem:[%s211 + $0x37c8] sm:$0xff]
        %v2138 = vld [vmem:[%s211 + $0x37d0] sm:$0xff]
        %v2139 = vld [vmem:[%s211 + $0x37d8] sm:$0xff]
        %v2140 = vld [vmem:[%s211 + $0x37e0] sm:$0xff]
        %v2141 = vld [vmem:[%s211 + $0x37e8] sm:$0xff]
        %v2142 = vld [vmem:[%s211 + $0x37f0] sm:$0xff]
        %v2143 = vld [vmem:[%s211 + $0x37f8] sm:$0xff]
        %v2144 = vld [vmem:[%s211 + $0x3800] sm:$0xff]
        %v2145 = vld [vmem:[%s211 + $0x3808] sm:$0xff]
        %v2146 = vld [vmem:[%s211 + $0x3810] sm:$0xff]
        %v2147 = vld [vmem:[%s211 + $0x3818] sm:$0xff]
        %v2148 = vld [vmem:[%s211 + $0x3820] sm:$0xff]
        %v2149 = vld [vmem:[%s211 + $0x3828] sm:$0xff]
        %v2150 = vld [vmem:[%s211 + $0x3830] sm:$0xff]
        %v2151 = vld [vmem:[%s211 + $0x3838] sm:$0xff]
        %v2152 = vld [vmem:[%s211 + $0x3840] sm:$0xff]
        %v2153 = vld [vmem:[%s211 + $0x3848] sm:$0xff]
        %v2154 = vld [vmem:[%s211 + $0x3850] sm:$0xff]
        %v2155 = vld [vmem:[%s211 + $0x3858] sm:$0xff]
        %v2156 = vld [vmem:[%s211 + $0x3860] sm:$0xff]
        %v2157 = vld [vmem:[%s211 + $0x3868] sm:$0xff]
        %v2158 = vld [vmem:[%s211 + $0x3870] sm:$0xff]
        %v2159 = vld [vmem:[%s211 + $0x3878] sm:$0xff]
        %v2160 = vld [vmem:[%s211 + $0x3880] sm:$0xff]
        %v2161 = vld [vmem:[%s211 + $0x3888] sm:$0xff]
        %v2162 = vld [vmem:[%s211 + $0x3890] sm:$0xff]
        %v2163 = vld [vmem:[%s211 + $0x3898] sm:$0xff]
        %v2164 = vld [vmem:[%s211 + $0x38a0] sm:$0xff]
        %v2165 = vld [vmem:[%s211 + $0x38a8] sm:$0xff]
        %v2166 = vld [vmem:[%s211 + $0x38b0] sm:$0xff]
        %v2167 = vld [vmem:[%s211 + $0x38b8] sm:$0xff]
        %v2168 = vld [vmem:[%s211 + $0x38c0] sm:$0xff]
        %v2169 = vld [vmem:[%s211 + $0x38c8] sm:$0xff]
        %v2170 = vld [vmem:[%s211 + $0x38d0] sm:$0xff]
        %v2171 = vld [vmem:[%s211 + $0x38d8] sm:$0xff]
        %v2172 = vld [vmem:[%s211 + $0x38e0] sm:$0xff]
        %v2173 = vld [vmem:[%s211 + $0x38e8] sm:$0xff]
        %v2174 = vld [vmem:[%s211 + $0x38f0] sm:$0xff]
        %v2175 = vld [vmem:[%s211 + $0x38f8] sm:$0xff]
        %v2176 = vld [vmem:[%s211 + $0x3900] sm:$0xff]
        %v2177 = vld [vmem:[%s211 + $0x3908] sm:$0xff]
        %v2178 = vld [vmem:[%s211 + $0x3910] sm:$0xff]
        %v2179 = vld [vmem:[%s211 + $0x3918] sm:$0xff]
        %v2180 = vld [vmem:[%s211 + $0x3920] sm:$0xff]
        %v2181 = vld [vmem:[%s211 + $0x3928] sm:$0xff]
        %v2182 = vld [vmem:[%s211 + $0x3930] sm:$0xff]
        %v2183 = vld [vmem:[%s211 + $0x3938] sm:$0xff]
        %v2184 = vld [vmem:[%s211 + $0x3940] sm:$0xff]
        %v2185 = vld [vmem:[%s211 + $0x3948] sm:$0xff]
        %v2186 = vld [vmem:[%s211 + $0x3950] sm:$0xff]
        %v2187 = vld [vmem:[%s211 + $0x3958] sm:$0xff]
        %v2188 = vld [vmem:[%s211 + $0x3960] sm:$0xff]
        %v2189 = vld [vmem:[%s211 + $0x3968] sm:$0xff]
        %v2190 = vld [vmem:[%s211 + $0x3970] sm:$0xff]
        %v2191 = vld [vmem:[%s211 + $0x3978] sm:$0xff]
        %v2192 = vld [vmem:[%s211 + $0x3980] sm:$0xff]
        %v2193 = vld [vmem:[%s211 + $0x3988] sm:$0xff]
        %v2194 = vld [vmem:[%s211 + $0x3990] sm:$0xff]
        %v2195 = vld [vmem:[%s211 + $0x3998] sm:$0xff]
        %v2196 = vld [vmem:[%s211 + $0x39a0] sm:$0xff]
        %v2197 = vld [vmem:[%s211 + $0x39a8] sm:$0xff]
        %v2198 = vld [vmem:[%s211 + $0x39b0] sm:$0xff]
        %v2199 = vld [vmem:[%s211 + $0x39b8] sm:$0xff]
        %v2200 = vld [vmem:[%s211 + $0x39c0] sm:$0xff]
        %v2201 = vld [vmem:[%s211 + $0x39c8] sm:$0xff]
        %v2202 = vld [vmem:[%s211 + $0x39d0] sm:$0xff]
        %v2203 = vld [vmem:[%s211 + $0x39d8] sm:$0xff]
        %v2204 = vld [vmem:[%s211 + $0x39e0] sm:$0xff]
        %v2205 = vld [vmem:[%s211 + $0x39e8] sm:$0xff]
        %v2206 = vld [vmem:[%s211 + $0x39f0] sm:$0xff]
        %v2207 = vld [vmem:[%s211 + $0x39f8] sm:$0xff]
        %v2208 = vld [vmem:[%s211 + $0x3a00] sm:$0xff]
        %v2209 = vld [vmem:[%s211 + $0x3a08] sm:$0xff]
        %v2210 = vld [vmem:[%s211 + $0x3a10] sm:$0xff]
        %v2211 = vld [vmem:[%s211 + $0x3a18] sm:$0xff]
        %v2212 = vld [vmem:[%s211 + $0x3a20] sm:$0xff]
        %v2213 = vld [vmem:[%s211 + $0x3a28] sm:$0xff]
        %v2214 = vld [vmem:[%s211 + $0x3a30] sm:$0xff]
        %v2215 = vld [vmem:[%s211 + $0x3a38] sm:$0xff]
        %v2216 = vld [vmem:[%s211 + $0x3a40] sm:$0xff]
        %v2217 = vld [vmem:[%s211 + $0x3a48] sm:$0xff]
        %v2218 = vld [vmem:[%s211 + $0x3a50] sm:$0xff]
        %v2219 = vld [vmem:[%s211 + $0x3a58] sm:$0xff]
        %v2220 = vld [vmem:[%s211 + $0x3a60] sm:$0xff]
        %v2221 = vld [vmem:[%s211 + $0x3a68] sm:$0xff]
        %v2222 = vld [vmem:[%s211 + $0x3a70] sm:$0xff]
        %v2223 = vld [vmem:[%s211 + $0x3a78] sm:$0xff]
        %v2224 = vld [vmem:[%s211 + $0x3a80] sm:$0xff]
        %v2225 = vld [vmem:[%s211 + $0x3a88] sm:$0xff]
        %v2226 = vld [vmem:[%s211 + $0x3a90] sm:$0xff]
        %v2227 = vld [vmem:[%s211 + $0x3a98] sm:$0xff]
        %v2228 = vld [vmem:[%s211 + $0x3aa0] sm:$0xff]
        %v2229 = vld [vmem:[%s211 + $0x3aa8] sm:$0xff]
        %v2230 = vld [vmem:[%s211 + $0x3ab0] sm:$0xff]
        %v2231 = vld [vmem:[%s211 + $0x3ab8] sm:$0xff]
        %v2232 = vld [vmem:[%s211 + $0x3ac0] sm:$0xff]
        %v2233 = vld [vmem:[%s211 + $0x3ac8] sm:$0xff]
        %v2234 = vld [vmem:[%s211 + $0x3ad0] sm:$0xff]
        %v2235 = vld [vmem:[%s211 + $0x3ad8] sm:$0xff]
        %v2236 = vld [vmem:[%s211 + $0x3ae0] sm:$0xff]
        %v2237 = vld [vmem:[%s211 + $0x3ae8] sm:$0xff]
        %v2238 = vld [vmem:[%s211 + $0x3af0] sm:$0xff]
        %v2239 = vld [vmem:[%s211 + $0x3af8] sm:$0xff]
        %v2240 = vld [vmem:[%s211 + $0x3b00] sm:$0xff]
        %v2241 = vld [vmem:[%s211 + $0x3b08] sm:$0xff]
        %v2242 = vld [vmem:[%s211 + $0x3b10] sm:$0xff]
        %v2243 = vld [vmem:[%s211 + $0x3b18] sm:$0xff]
        %v2244 = vld [vmem:[%s211 + $0x3b20] sm:$0xff]
        %v2245 = vld [vmem:[%s211 + $0x3b28] sm:$0xff]
        %v2246 = vld [vmem:[%s211 + $0x3b30] sm:$0xff]
        %v2247 = vld [vmem:[%s211 + $0x3b38] sm:$0xff]
        %v2248 = vld [vmem:[%s211 + $0x3b40] sm:$0xff]
        %v2249 = vld [vmem:[%s211 + $0x3b48] sm:$0xff]
        %v2250 = vld [vmem:[%s211 + $0x3b50] sm:$0xff]
        %v2251 = vld [vmem:[%s211 + $0x3b58] sm:$0xff]
        %v2252 = vld [vmem:[%s211 + $0x3b60] sm:$0xff]
        %v2253 = vld [vmem:[%s211 + $0x3b68] sm:$0xff]
        %v2254 = vld [vmem:[%s211 + $0x3b70] sm:$0xff]
        %v2255 = vld [vmem:[%s211 + $0x3b78] sm:$0xff]
        %v2256 = vld [vmem:[%s211 + $0x3b80] sm:$0xff]
        %v2257 = vld [vmem:[%s211 + $0x3b88] sm:$0xff]
        %v2258 = vld [vmem:[%s211 + $0x3b90] sm:$0xff]
        %v2259 = vld [vmem:[%s211 + $0x3b98] sm:$0xff]
        %v2260 = vld [vmem:[%s211 + $0x3ba0] sm:$0xff]
        %v2261 = vld [vmem:[%s211 + $0x3ba8] sm:$0xff]
        %v2262 = vld [vmem:[%s211 + $0x3bb0] sm:$0xff]
        %v2263 = vld [vmem:[%s211 + $0x3bb8] sm:$0xff]
        %v2264 = vld [vmem:[%s211 + $0x3bc0] sm:$0xff]
        %v2265 = vld [vmem:[%s211 + $0x3bc8] sm:$0xff]
        %v2266 = vld [vmem:[%s211 + $0x3bd0] sm:$0xff]
        %v2267 = vld [vmem:[%s211 + $0x3bd8] sm:$0xff]
        %v2268 = vld [vmem:[%s211 + $0x3be0] sm:$0xff]
        %v2269 = vld [vmem:[%s211 + $0x3be8] sm:$0xff]
        %v2270 = vld [vmem:[%s211 + $0x3bf0] sm:$0xff]
        %v2271 = vld [vmem:[%s211 + $0x3bf8] sm:$0xff]
        %v2272 = vld [vmem:[%s211 + $0x3c00] sm:$0xff]
        %v2273 = vld [vmem:[%s211 + $0x3c08] sm:$0xff]
        %v2274 = vld [vmem:[%s211 + $0x3c10] sm:$0xff]
        %v2275 = vld [vmem:[%s211 + $0x3c18] sm:$0xff]
        %v2276 = vld [vmem:[%s211 + $0x3c20] sm:$0xff]
        %v2277 = vld [vmem:[%s211 + $0x3c28] sm:$0xff]
        %v2278 = vld [vmem:[%s211 + $0x3c30] sm:$0xff]
        %v2279 = vld [vmem:[%s211 + $0x3c38] sm:$0xff]
        %v2280 = vld [vmem:[%s211 + $0x3c40] sm:$0xff]
        %v2281 = vld [vmem:[%s211 + $0x3c48] sm:$0xff]
        %v2282 = vld [vmem:[%s211 + $0x3c50] sm:$0xff]
        %v2283 = vld [vmem:[%s211 + $0x3c58] sm:$0xff]
        %v2284 = vld [vmem:[%s211 + $0x3c60] sm:$0xff]
        %v2285 = vld [vmem:[%s211 + $0x3c68] sm:$0xff]
        %v2286 = vld [vmem:[%s211 + $0x3c70] sm:$0xff]
        %v2287 = vld [vmem:[%s211 + $0x3c78] sm:$0xff]
        %v2288 = vld [vmem:[%s211 + $0x3c80] sm:$0xff]
        %v2289 = vld [vmem:[%s211 + $0x3c88] sm:$0xff]
        %v2290 = vld [vmem:[%s211 + $0x3c90] sm:$0xff]
        %v2291 = vld [vmem:[%s211 + $0x3c98] sm:$0xff]
        %v2292 = vld [vmem:[%s211 + $0x3ca0] sm:$0xff]
        %v2293 = vld [vmem:[%s211 + $0x3ca8] sm:$0xff]
        %v2294 = vld [vmem:[%s211 + $0x3cb0] sm:$0xff]
        %v2295 = vld [vmem:[%s211 + $0x3cb8] sm:$0xff]
        %v2296 = vld [vmem:[%s211 + $0x3cc0] sm:$0xff]
        %v2297 = vld [vmem:[%s211 + $0x3cc8] sm:$0xff]
        %v2298 = vld [vmem:[%s211 + $0x3cd0] sm:$0xff]
        %v2299 = vld [vmem:[%s211 + $0x3cd8] sm:$0xff]
        %v2300 = vld [vmem:[%s211 + $0x3ce0] sm:$0xff]
        %v2301 = vld [vmem:[%s211 + $0x3ce8] sm:$0xff]
        %v2302 = vld [vmem:[%s211 + $0x3cf0] sm:$0xff]
        %v2303 = vld [vmem:[%s211 + $0x3cf8] sm:$0xff]
        %v2304 = vld [vmem:[%s211 + $0x3d00] sm:$0xff]
        %v2305 = vld [vmem:[%s211 + $0x3d08] sm:$0xff]
        %v2306 = vld [vmem:[%s211 + $0x3d10] sm:$0xff]
        %v2307 = vld [vmem:[%s211 + $0x3d18] sm:$0xff]
        %v2308 = vld [vmem:[%s211 + $0x3d20] sm:$0xff]
        %v2309 = vld [vmem:[%s211 + $0x3d28] sm:$0xff]
        %v2310 = vld [vmem:[%s211 + $0x3d30] sm:$0xff]
        %v2311 = vld [vmem:[%s211 + $0x3d38] sm:$0xff]
        %v2312 = vld [vmem:[%s211 + $0x3d40] sm:$0xff]
        %v2313 = vld [vmem:[%s211 + $0x3d48] sm:$0xff]
        %v2314 = vld [vmem:[%s211 + $0x3d50] sm:$0xff]
        %v2315 = vld [vmem:[%s211 + $0x3d58] sm:$0xff]
        %v2316 = vld [vmem:[%s211 + $0x3d60] sm:$0xff]
        %v2317 = vld [vmem:[%s211 + $0x3d68] sm:$0xff]
        %v2318 = vld [vmem:[%s211 + $0x3d70] sm:$0xff]
        %v2319 = vld [vmem:[%s211 + $0x3d78] sm:$0xff]
        %v2320 = vld [vmem:[%s211 + $0x3d80] sm:$0xff]
        %v2321 = vld [vmem:[%s211 + $0x3d88] sm:$0xff]
        %v2322 = vld [vmem:[%s211 + $0x3d90] sm:$0xff]
        %v2323 = vld [vmem:[%s211 + $0x3d98] sm:$0xff]
        %v2324 = vld [vmem:[%s211 + $0x3da0] sm:$0xff]
        %v2325 = vld [vmem:[%s211 + $0x3da8] sm:$0xff]
        %v2326 = vld [vmem:[%s211 + $0x3db0] sm:$0xff]
        %v2327 = vld [vmem:[%s211 + $0x3db8] sm:$0xff]
        %v2328 = vld [vmem:[%s211 + $0x3dc0] sm:$0xff]
        %v2329 = vld [vmem:[%s211 + $0x3dc8] sm:$0xff]
        %v2330 = vld [vmem:[%s211 + $0x3dd0] sm:$0xff]
        %v2331 = vld [vmem:[%s211 + $0x3dd8] sm:$0xff]
        %v2332 = vld [vmem:[%s211 + $0x3de0] sm:$0xff]
        %v2333 = vld [vmem:[%s211 + $0x3de8] sm:$0xff]
        %v2334 = vld [vmem:[%s211 + $0x3df0] sm:$0xff]
        %v2335 = vld [vmem:[%s211 + $0x3df8] sm:$0xff]
        %v2336 = vld [vmem:[%s211 + $0x3e00] sm:$0xff]
        %v2337 = vld [vmem:[%s211 + $0x3e08] sm:$0xff]
        %v2338 = vld [vmem:[%s211 + $0x3e10] sm:$0xff]
        %v2339 = vld [vmem:[%s211 + $0x3e18] sm:$0xff]
        %v2340 = vld [vmem:[%s211 + $0x3e20] sm:$0xff]
        %v2341 = vld [vmem:[%s211 + $0x3e28] sm:$0xff]
        %v2342 = vld [vmem:[%s211 + $0x3e30] sm:$0xff]
        %v2343 = vld [vmem:[%s211 + $0x3e38] sm:$0xff]
        %v2344 = vld [vmem:[%s211 + $0x3e40] sm:$0xff]
        %v2345 = vld [vmem:[%s211 + $0x3e48] sm:$0xff]
        %v2346 = vld [vmem:[%s211 + $0x3e50] sm:$0xff]
        %v2347 = vld [vmem:[%s211 + $0x3e58] sm:$0xff]
        %v2348 = vld [vmem:[%s211 + $0x3e60] sm:$0xff]
        %v2349 = vld [vmem:[%s211 + $0x3e68] sm:$0xff]
        %v2350 = vld [vmem:[%s211 + $0x3e70] sm:$0xff]
        %v2351 = vld [vmem:[%s211 + $0x3e78] sm:$0xff]
        %v2352 = vld [vmem:[%s211 + $0x3e80] sm:$0xff]
        %v2353 = vld [vmem:[%s211 + $0x3e88] sm:$0xff]
        %v2354 = vld [vmem:[%s211 + $0x3e90] sm:$0xff]
        %v2355 = vld [vmem:[%s211 + $0x3e98] sm:$0xff]
        %v2356 = vld [vmem:[%s211 + $0x3ea0] sm:$0xff]
        %v2357 = vld [vmem:[%s211 + $0x3ea8] sm:$0xff]
        %v2358 = vld [vmem:[%s211 + $0x3eb0] sm:$0xff]
        %v2359 = vld [vmem:[%s211 + $0x3eb8] sm:$0xff]
        %v2360 = vld [vmem:[%s211 + $0x3ec0] sm:$0xff]
        %v2361 = vld [vmem:[%s211 + $0x3ec8] sm:$0xff]
        %v2362 = vld [vmem:[%s211 + $0x3ed0] sm:$0xff]
        %v2363 = vld [vmem:[%s211 + $0x3ed8] sm:$0xff]
        %v2364 = vld [vmem:[%s211 + $0x3ee0] sm:$0xff]
        %v2365 = vld [vmem:[%s211 + $0x3ee8] sm:$0xff]
        %v2366 = vld [vmem:[%s211 + $0x3ef0] sm:$0xff]
        %v2367 = vld [vmem:[%s211 + $0x3ef8] sm:$0xff]
        %v2368 = vld [vmem:[%s211 + $0x3f00] sm:$0xff]
        %v2369 = vld [vmem:[%s211 + $0x3f08] sm:$0xff]
        %v2370 = vld [vmem:[%s211 + $0x3f10] sm:$0xff]
        %v2371 = vld [vmem:[%s211 + $0x3f18] sm:$0xff]
        %v2372 = vld [vmem:[%s211 + $0x3f20] sm:$0xff]
        %v2373 = vld [vmem:[%s211 + $0x3f28] sm:$0xff]
        %v2374 = vld [vmem:[%s211 + $0x3f30] sm:$0xff]
        %v2375 = vld [vmem:[%s211 + $0x3f38] sm:$0xff]
        %v2376 = vld [vmem:[%s211 + $0x3f40] sm:$0xff]
        %v2377 = vld [vmem:[%s211 + $0x3f48] sm:$0xff]
        %v2378 = vld [vmem:[%s211 + $0x3f50] sm:$0xff]
        %v2379 = vld [vmem:[%s211 + $0x3f58] sm:$0xff]
        %v2380 = vld [vmem:[%s211 + $0x3f60] sm:$0xff]
        %v2381 = vld [vmem:[%s211 + $0x3f68] sm:$0xff]
        %v2382 = vld [vmem:[%s211 + $0x3f70] sm:$0xff]
        %v2383 = vld [vmem:[%s211 + $0x3f78] sm:$0xff]
        %v2384 = vld [vmem:[%s211 + $0x3f80] sm:$0xff]
        %v2385 = vld [vmem:[%s211 + $0x3f88] sm:$0xff]
        %v2386 = vld [vmem:[%s211 + $0x3f90] sm:$0xff]
        %v2387 = vld [vmem:[%s211 + $0x3f98] sm:$0xff]
        %v2388 = vld [vmem:[%s211 + $0x3fa0] sm:$0xff]
        %v2389 = vld [vmem:[%s211 + $0x3fa8] sm:$0xff]
        %v2390 = vld [vmem:[%s211 + $0x3fb0] sm:$0xff]
        %v2391 = vld [vmem:[%s211 + $0x3fb8] sm:$0xff]
        %v2392 = vld [vmem:[%s211 + $0x3fc0] sm:$0xff]
        %v2393 = vld [vmem:[%s211 + $0x3fc8] sm:$0xff]
        %v2394 = vld [vmem:[%s211 + $0x3fd0] sm:$0xff]
        %v2395 = vld [vmem:[%s211 + $0x3fd8] sm:$0xff]
        %v2396 = vld [vmem:[%s211 + $0x3fe0] sm:$0xff]
        %v2397 = vld [vmem:[%s211 + $0x3fe8] sm:$0xff]
        %v2398 = vld [vmem:[%s211 + $0x3ff0] sm:$0xff]
        %v2399 = vld [vmem:[%s211 + $0x3ff8] sm:$0xff]
        %v2400 = vld [vmem:[%s211 + $0x4000] sm:$0xff]
        %v2401 = vld [vmem:[%s211 + $0x4008] sm:$0xff]
        %v2402 = vld [vmem:[%s211 + $0x4010] sm:$0xff]
        %v2403 = vld [vmem:[%s211 + $0x4018] sm:$0xff]
        %v2404 = vld [vmem:[%s211 + $0x4020] sm:$0xff]
        %v2405 = vld [vmem:[%s211 + $0x4028] sm:$0xff]
        %v2406 = vld [vmem:[%s211 + $0x4030] sm:$0xff]
        %v2407 = vld [vmem:[%s211 + $0x4038] sm:$0xff]
        %v2408 = vld [vmem:[%s211 + $0x4040] sm:$0xff]
        %v2409 = vld [vmem:[%s211 + $0x4048] sm:$0xff]
        %v2410 = vld [vmem:[%s211 + $0x4050] sm:$0xff]
        %v2411 = vld [vmem:[%s211 + $0x4058] sm:$0xff]
        %v2412 = vld [vmem:[%s211 + $0x4060] sm:$0xff]
        %v2413 = vld [vmem:[%s211 + $0x4068] sm:$0xff]
        %v2414 = vld [vmem:[%s211 + $0x4070] sm:$0xff]
        %v2415 = vld [vmem:[%s211 + $0x4078] sm:$0xff]
        %v2416 = vld [vmem:[%s211 + $0x4080] sm:$0xff]
        %v2417 = vld [vmem:[%s211 + $0x4088] sm:$0xff]
        %v2418 = vld [vmem:[%s211 + $0x4090] sm:$0xff]
        %v2419 = vld [vmem:[%s211 + $0x4098] sm:$0xff]
        %v2420 = vld [vmem:[%s211 + $0x40a0] sm:$0xff]
        %v2421 = vld [vmem:[%s211 + $0x40a8] sm:$0xff]
        %v2422 = vld [vmem:[%s211 + $0x40b0] sm:$0xff]
        %v2423 = vld [vmem:[%s211 + $0x40b8] sm:$0xff]
        %v2424 = vld [vmem:[%s211 + $0x40c0] sm:$0xff]
        %v2425 = vld [vmem:[%s211 + $0x40c8] sm:$0xff]
        %v2426 = vld [vmem:[%s211 + $0x40d0] sm:$0xff]
        %v2427 = vld [vmem:[%s211 + $0x40d8] sm:$0xff]
        %v2428 = vld [vmem:[%s211 + $0x40e0] sm:$0xff]
        %v2429 = vld [vmem:[%s211 + $0x40e8] sm:$0xff]
        %v2430 = vld [vmem:[%s211 + $0x40f0] sm:$0xff]
        %v2431 = vld [vmem:[%s211 + $0x40f8] sm:$0xff]
        %v2432 = vld [vmem:[%s211 + $0x4100] sm:$0xff]
        %v2433 = vld [vmem:[%s211 + $0x4108] sm:$0xff]
        %v2434 = vld [vmem:[%s211 + $0x4110] sm:$0xff]
        %v2435 = vld [vmem:[%s211 + $0x4118] sm:$0xff]
        %v2436 = vld [vmem:[%s211 + $0x4120] sm:$0xff]
        %v2437 = vld [vmem:[%s211 + $0x4128] sm:$0xff]
        %v2438 = vld [vmem:[%s211 + $0x4130] sm:$0xff]
        %v2439 = vld [vmem:[%s211 + $0x4138] sm:$0xff]
        %v2440 = vld [vmem:[%s211 + $0x4140] sm:$0xff]
        %v2441 = vld [vmem:[%s211 + $0x4148] sm:$0xff]
        %v2442 = vld [vmem:[%s211 + $0x4150] sm:$0xff]
        %v2443 = vld [vmem:[%s211 + $0x4158] sm:$0xff]
        %v2444 = vld [vmem:[%s211 + $0x4160] sm:$0xff]
        %v2445 = vld [vmem:[%s211 + $0x4168] sm:$0xff]
        %v2446 = vld [vmem:[%s211 + $0x4170] sm:$0xff]
        %v2447 = vld [vmem:[%s211 + $0x4178] sm:$0xff]
        %v2448 = vld [vmem:[%s211 + $0x4180] sm:$0xff]
        %v2449 = vld [vmem:[%s211 + $0x4188] sm:$0xff]
        %v2450 = vld [vmem:[%s211 + $0x4190] sm:$0xff]
        %v2451 = vld [vmem:[%s211 + $0x4198] sm:$0xff]
        %v2452 = vld [vmem:[%s211 + $0x41a0] sm:$0xff]
        %v2453 = vld [vmem:[%s211 + $0x41a8] sm:$0xff]
        %v2454 = vld [vmem:[%s211 + $0x41b0] sm:$0xff]
        %v2455 = vld [vmem:[%s211 + $0x41b8] sm:$0xff]
        %v2456 = vld [vmem:[%s211 + $0x41c0] sm:$0xff]
        %v2457 = vld [vmem:[%s211 + $0x41c8] sm:$0xff]
        %v2458 = vld [vmem:[%s211 + $0x41d0] sm:$0xff]
        %v2459 = vld [vmem:[%s211 + $0x41d8] sm:$0xff]
        %v2460 = vld [vmem:[%s211 + $0x41e0] sm:$0xff]
        %v2461 = vld [vmem:[%s211 + $0x41e8] sm:$0xff]
        %v2462 = vld [vmem:[%s211 + $0x41f0] sm:$0xff]
        %v2463 = vld [vmem:[%s211 + $0x41f8] sm:$0xff]
        %v2464 = vld [vmem:[%s211 + $0x4200] sm:$0xff]
        %v2465 = vld [vmem:[%s211 + $0x4208] sm:$0xff]
        %v2466 = vld [vmem:[%s211 + $0x4210] sm:$0xff]
        %v2467 = vld [vmem:[%s211 + $0x4218] sm:$0xff]
        %v2468 = vld [vmem:[%s211 + $0x4220] sm:$0xff]
        %v2469 = vld [vmem:[%s211 + $0x4228] sm:$0xff]
        %v2470 = vld [vmem:[%s211 + $0x4230] sm:$0xff]
        %v2471 = vld [vmem:[%s211 + $0x4238] sm:$0xff]
        %v2472 = vld [vmem:[%s211 + $0x4240] sm:$0xff]
        %v2473 = vld [vmem:[%s211 + $0x4248] sm:$0xff]
        %v2474 = vld [vmem:[%s211 + $0x4250] sm:$0xff]
        %v2475 = vld [vmem:[%s211 + $0x4258] sm:$0xff]
        %v2476 = vld [vmem:[%s211 + $0x4260] sm:$0xff]
        %v2477 = vld [vmem:[%s211 + $0x4268] sm:$0xff]
        %v2478 = vld [vmem:[%s211 + $0x4270] sm:$0xff]
        %v2479 = vld [vmem:[%s211 + $0x4278] sm:$0xff]
        %v2480 = vld [vmem:[%s211 + $0x4280] sm:$0xff]
        %v2481 = vld [vmem:[%s211 + $0x4288] sm:$0xff]
        %v2482 = vld [vmem:[%s211 + $0x4290] sm:$0xff]
        %v2483 = vld [vmem:[%s211 + $0x4298] sm:$0xff]
        %v2484 = vld [vmem:[%s211 + $0x42a0] sm:$0xff]
        %v2485 = vld [vmem:[%s211 + $0x42a8] sm:$0xff]
        %v2486 = vld [vmem:[%s211 + $0x42b0] sm:$0xff]
        %v2487 = vld [vmem:[%s211 + $0x42b8] sm:$0xff]
        %v2488 = vld [vmem:[%s211 + $0x42c0] sm:$0xff]
        %v2489 = vld [vmem:[%s211 + $0x42c8] sm:$0xff]
        %v2490 = vld [vmem:[%s211 + $0x42d0] sm:$0xff]
        %v2491 = vld [vmem:[%s211 + $0x42d8] sm:$0xff]
        %v2492 = vld [vmem:[%s211 + $0x42e0] sm:$0xff]
        %v2493 = vld [vmem:[%s211 + $0x42e8] sm:$0xff]
        %v2494 = vld [vmem:[%s211 + $0x42f0] sm:$0xff]
        %v2495 = vld [vmem:[%s211 + $0x42f8] sm:$0xff]
        %v2496 = vld [vmem:[%s211 + $0x4300] sm:$0xff]
        %v2497 = vld [vmem:[%s211 + $0x4308] sm:$0xff]
        %v2498 = vld [vmem:[%s211 + $0x4310] sm:$0xff]
        %v2499 = vld [vmem:[%s211 + $0x4318] sm:$0xff]
        %v2500 = vld [vmem:[%s211 + $0x4320] sm:$0xff]
        %v2501 = vld [vmem:[%s211 + $0x4328] sm:$0xff]
        %v2502 = vld [vmem:[%s211 + $0x4330] sm:$0xff]
        %v2503 = vld [vmem:[%s211 + $0x4338] sm:$0xff]
        %v2504 = vld [vmem:[%s211 + $0x4340] sm:$0xff]
        %v2505 = vld [vmem:[%s211 + $0x4348] sm:$0xff]
        %v2506 = vld [vmem:[%s211 + $0x4350] sm:$0xff]
        %v2507 = vld [vmem:[%s211 + $0x4358] sm:$0xff]
        %v2508 = vld [vmem:[%s211 + $0x4360] sm:$0xff]
        %v2509 = vld [vmem:[%s211 + $0x4368] sm:$0xff]
        %v2510 = vld [vmem:[%s211 + $0x4370] sm:$0xff]
        %v2511 = vld [vmem:[%s211 + $0x4378] sm:$0xff]
        %v2512 = vld [vmem:[%s211 + $0x4380] sm:$0xff]
        %v2513 = vld [vmem:[%s211 + $0x4388] sm:$0xff]
        %v2514 = vld [vmem:[%s211 + $0x4390] sm:$0xff]
        %v2515 = vld [vmem:[%s211 + $0x4398] sm:$0xff]
        %v2516 = vld [vmem:[%s211 + $0x43a0] sm:$0xff]
        %v2517 = vld [vmem:[%s211 + $0x43a8] sm:$0xff]
        %v2518 = vld [vmem:[%s211 + $0x43b0] sm:$0xff]
        %v2519 = vld [vmem:[%s211 + $0x43b8] sm:$0xff]
        %v2520 = vld [vmem:[%s211 + $0x43c0] sm:$0xff]
        %v2521 = vld [vmem:[%s211 + $0x43c8] sm:$0xff]
        %v2522 = vld [vmem:[%s211 + $0x43d0] sm:$0xff]
        %v2523 = vld [vmem:[%s211 + $0x43d8] sm:$0xff]
        %v2524 = vld [vmem:[%s211 + $0x43e0] sm:$0xff]
        %v2525 = vld [vmem:[%s211 + $0x43e8] sm:$0xff]
        %v2526 = vld [vmem:[%s211 + $0x43f0] sm:$0xff]
        %v2527 = vld [vmem:[%s211 + $0x43f8] sm:$0xff]
        %v2528 = vld [vmem:[%s211 + $0x4400] sm:$0xff]
        %v2529 = vld [vmem:[%s211 + $0x4408] sm:$0xff]
        %v2530 = vld [vmem:[%s211 + $0x4410] sm:$0xff]
        %v2531 = vld [vmem:[%s211 + $0x4418] sm:$0xff]
        %v2532 = vld [vmem:[%s211 + $0x4420] sm:$0xff]
        %v2533 = vld [vmem:[%s211 + $0x4428] sm:$0xff]
        %v2534 = vld [vmem:[%s211 + $0x4430] sm:$0xff]
        %v2535 = vld [vmem:[%s211 + $0x4438] sm:$0xff]
        %v2536 = vld [vmem:[%s211 + $0x4440] sm:$0xff]
        %v2537 = vld [vmem:[%s211 + $0x4448] sm:$0xff]
        %v2538 = vld [vmem:[%s211 + $0x4450] sm:$0xff]
        %v2539 = vld [vmem:[%s211 + $0x4458] sm:$0xff]
        %v2540 = vld [vmem:[%s211 + $0x4460] sm:$0xff]
        %v2541 = vld [vmem:[%s211 + $0x4468] sm:$0xff]
        %v2542 = vld [vmem:[%s211 + $0x4470] sm:$0xff]
        %v2543 = vld [vmem:[%s211 + $0x4478] sm:$0xff]
        %v2544 = vld [vmem:[%s211 + $0x4480] sm:$0xff]
        %v2545 = vld [vmem:[%s211 + $0x4488] sm:$0xff]
        %v2546 = vld [vmem:[%s211 + $0x4490] sm:$0xff]
        %v2547 = vld [vmem:[%s211 + $0x4498] sm:$0xff]
        %v2548 = vld [vmem:[%s211 + $0x44a0] sm:$0xff]
        %v2549 = vld [vmem:[%s211 + $0x44a8] sm:$0xff]
        %v2550 = vld [vmem:[%s211 + $0x44b0] sm:$0xff]
        %v2551 = vld [vmem:[%s211 + $0x44b8] sm:$0xff]
        %v2552 = vld [vmem:[%s211 + $0x44c0] sm:$0xff]
        %v2553 = vld [vmem:[%s211 + $0x44c8] sm:$0xff]
        %v2554 = vld [vmem:[%s211 + $0x44d0] sm:$0xff]
        %v2555 = vld [vmem:[%s211 + $0x44d8] sm:$0xff]
        %v2556 = vld [vmem:[%s211 + $0x44e0] sm:$0xff]
        %v2557 = vld [vmem:[%s211 + $0x44e8] sm:$0xff]
        %v2558 = vld [vmem:[%s211 + $0x44f0] sm:$0xff]
        %v2559 = vld [vmem:[%s211 + $0x44f8] sm:$0xff]
        %v2560 = vld [vmem:[%s211 + $0x4500] sm:$0xff]
        %v2561 = vld [vmem:[%s211 + $0x4508] sm:$0xff]
        %v2562 = vld [vmem:[%s211 + $0x4510] sm:$0xff]
        %v2563 = vld [vmem:[%s211 + $0x4518] sm:$0xff]
        %v2564 = vld [vmem:[%s211 + $0x4520] sm:$0xff]
        %v2565 = vld [vmem:[%s211 + $0x4528] sm:$0xff]
        %v2566 = vld [vmem:[%s211 + $0x4530] sm:$0xff]
        %v2567 = vld [vmem:[%s211 + $0x4538] sm:$0xff]
        %v2568 = vld [vmem:[%s211 + $0x4540] sm:$0xff]
        %v2569 = vld [vmem:[%s211 + $0x4548] sm:$0xff]
        %v2570 = vld [vmem:[%s211 + $0x4550] sm:$0xff]
        %v2571 = vld [vmem:[%s211 + $0x4558] sm:$0xff]
        %v2572 = vld [vmem:[%s211 + $0x4560] sm:$0xff]
        %v2573 = vld [vmem:[%s211 + $0x4568] sm:$0xff]
        %v2574 = vld [vmem:[%s211 + $0x4570] sm:$0xff]
        %v2575 = vld [vmem:[%s211 + $0x4578] sm:$0xff]
        %v2576 = vld [vmem:[%s211 + $0x4580] sm:$0xff]
        %v2577 = vld [vmem:[%s211 + $0x4588] sm:$0xff]
        %v2578 = vld [vmem:[%s211 + $0x4590] sm:$0xff]
        %v2579 = vld [vmem:[%s211 + $0x4598] sm:$0xff]
        %v2580 = vld [vmem:[%s211 + $0x45a0] sm:$0xff]
        %v2581 = vld [vmem:[%s211 + $0x45a8] sm:$0xff]
        %v2582 = vld [vmem:[%s211 + $0x45b0] sm:$0xff]
        %v2583 = vld [vmem:[%s211 + $0x45b8] sm:$0xff]
        %v2584 = vld [vmem:[%s211 + $0x45c0] sm:$0xff]
        %v2585 = vld [vmem:[%s211 + $0x45c8] sm:$0xff]
        %v2586 = vld [vmem:[%s211 + $0x45d0] sm:$0xff]
        %v2587 = vld [vmem:[%s211 + $0x45d8] sm:$0xff]
        %v2588 = vld [vmem:[%s211 + $0x45e0] sm:$0xff]
        %v2589 = vld [vmem:[%s211 + $0x45e8] sm:$0xff]
        %v2590 = vld [vmem:[%s211 + $0x45f0] sm:$0xff]
        %v2591 = vld [vmem:[%s211 + $0x45f8] sm:$0xff]
        %v2592 = vld [vmem:[%s211 + $0x4600] sm:$0xff]
        %v2593 = vld [vmem:[%s211 + $0x4608] sm:$0xff]
        %v2594 = vld [vmem:[%s211 + $0x4610] sm:$0xff]
        %v2595 = vld [vmem:[%s211 + $0x4618] sm:$0xff]
        %v2596 = vld [vmem:[%s211 + $0x4620] sm:$0xff]
        %v2597 = vld [vmem:[%s211 + $0x4628] sm:$0xff]
        %v2598 = vld [vmem:[%s211 + $0x4630] sm:$0xff]
        %v2599 = vld [vmem:[%s211 + $0x4638] sm:$0xff]
        %v2600 = vld [vmem:[%s211 + $0x4640] sm:$0xff]
        %v2601 = vld [vmem:[%s211 + $0x4648] sm:$0xff]
        %v2602 = vld [vmem:[%s211 + $0x4650] sm:$0xff]
        %v2603 = vld [vmem:[%s211 + $0x4658] sm:$0xff]
        %v2604 = vld [vmem:[%s211 + $0x4660] sm:$0xff]
        %v2605 = vld [vmem:[%s211 + $0x4668] sm:$0xff]
        %v2606 = vld [vmem:[%s211 + $0x4670] sm:$0xff]
        %v2607 = vld [vmem:[%s211 + $0x4678] sm:$0xff]
        %v2608 = vld [vmem:[%s211 + $0x4680] sm:$0xff]
        %v2609 = vld [vmem:[%s211 + $0x4688] sm:$0xff]
        %v2610 = vld [vmem:[%s211 + $0x4690] sm:$0xff]
        %v2611 = vld [vmem:[%s211 + $0x4698] sm:$0xff]
        %v2612 = vld [vmem:[%s211 + $0x46a0] sm:$0xff]
        %v2613 = vld [vmem:[%s211 + $0x46a8] sm:$0xff]
        %v2614 = vld [vmem:[%s211 + $0x46b0] sm:$0xff]
        %v2615 = vld [vmem:[%s211 + $0x46b8] sm:$0xff]
        %v2616 = vld [vmem:[%s211 + $0x46c0] sm:$0xff]
        %v2617 = vld [vmem:[%s211 + $0x46c8] sm:$0xff]
        %v2618 = vld [vmem:[%s211 + $0x46d0] sm:$0xff]
        %v2619 = vld [vmem:[%s211 + $0x46d8] sm:$0xff]
        %v2620 = vld [vmem:[%s211 + $0x46e0] sm:$0xff]
        %v2621 = vld [vmem:[%s211 + $0x46e8] sm:$0xff]
        %v2622 = vld [vmem:[%s211 + $0x46f0] sm:$0xff]
        %v2623 = vld [vmem:[%s211 + $0x46f8] sm:$0xff]
        %v2624 = vld [vmem:[%s211 + $0x4700] sm:$0xff]
        %v2625 = vld [vmem:[%s211 + $0x4708] sm:$0xff]
        %v2626 = vld [vmem:[%s211 + $0x4710] sm:$0xff]
        %v2627 = vld [vmem:[%s211 + $0x4718] sm:$0xff]
        %v2628 = vld [vmem:[%s211 + $0x4720] sm:$0xff]
        %v2629 = vld [vmem:[%s211 + $0x4728] sm:$0xff]
        %v2630 = vld [vmem:[%s211 + $0x4730] sm:$0xff]
        %v2631 = vld [vmem:[%s211 + $0x4738] sm:$0xff]
        %v2632 = vld [vmem:[%s211 + $0x4740] sm:$0xff]
        %v2633 = vld [vmem:[%s211 + $0x4748] sm:$0xff]
        %v2634 = vld [vmem:[%s211 + $0x4750] sm:$0xff]
        %v2635 = vld [vmem:[%s211 + $0x4758] sm:$0xff]
        %v2636 = vld [vmem:[%s211 + $0x4760] sm:$0xff]
        %v2637 = vld [vmem:[%s211 + $0x4768] sm:$0xff]
        %v2638 = vld [vmem:[%s211 + $0x4770] sm:$0xff]
        %v2639 = vld [vmem:[%s211 + $0x4778] sm:$0xff]
        %v2640 = vld [vmem:[%s211 + $0x4780] sm:$0xff]
        %v2641 = vld [vmem:[%s211 + $0x4788] sm:$0xff]
        %v2642 = vld [vmem:[%s211 + $0x4790] sm:$0xff]
        %v2643 = vld [vmem:[%s211 + $0x4798] sm:$0xff]
        %v2644 = vld [vmem:[%s211 + $0x47a0] sm:$0xff]
        %v2645 = vld [vmem:[%s211 + $0x47a8] sm:$0xff]
        %v2646 = vld [vmem:[%s211 + $0x47b0] sm:$0xff]
        %v2647 = vld [vmem:[%s211 + $0x47b8] sm:$0xff]
        %v2648 = vld [vmem:[%s211 + $0x47c0] sm:$0xff]
        %v2649 = vld [vmem:[%s211 + $0x47c8] sm:$0xff]
        %v2650 = vld [vmem:[%s211 + $0x47d0] sm:$0xff]
        %v2651 = vld [vmem:[%s211 + $0x47d8] sm:$0xff]
        %v2652 = vld [vmem:[%s211 + $0x47e0] sm:$0xff]
        %v2653 = vld [vmem:[%s211 + $0x47e8] sm:$0xff]
        %v2654 = vld [vmem:[%s211 + $0x47f0] sm:$0xff]
        %v2655 = vld [vmem:[%s211 + $0x47f8] sm:$0xff]
        %v2656 = vld [vmem:[%s211 + $0x4800] sm:$0xff]
        %v2657 = vld [vmem:[%s211 + $0x4808] sm:$0xff]
        %v2658 = vld [vmem:[%s211 + $0x4810] sm:$0xff]
        %v2659 = vld [vmem:[%s211 + $0x4818] sm:$0xff]
        %v2660 = vld [vmem:[%s211 + $0x4820] sm:$0xff]
        %v2661 = vld [vmem:[%s211 + $0x4828] sm:$0xff]
        %v2662 = vld [vmem:[%s211 + $0x4830] sm:$0xff]
        %v2663 = vld [vmem:[%s211 + $0x4838] sm:$0xff]
        %v2664 = vld [vmem:[%s211 + $0x4840] sm:$0xff]
        %v2665 = vld [vmem:[%s211 + $0x4848] sm:$0xff]
        %v2666 = vld [vmem:[%s211 + $0x4850] sm:$0xff]
        %v2667 = vld [vmem:[%s211 + $0x4858] sm:$0xff]
        %v2668 = vld [vmem:[%s211 + $0x4860] sm:$0xff]
        %v2669 = vld [vmem:[%s211 + $0x4868] sm:$0xff]
        %v2670 = vld [vmem:[%s211 + $0x4870] sm:$0xff]
        %v2671 = vld [vmem:[%s211 + $0x4878] sm:$0xff]
        %v2672 = vld [vmem:[%s211 + $0x4880] sm:$0xff]
        %v2673 = vld [vmem:[%s211 + $0x4888] sm:$0xff]
        %v2674 = vld [vmem:[%s211 + $0x4890] sm:$0xff]
        %v2675 = vld [vmem:[%s211 + $0x4898] sm:$0xff]
        %v2676 = vld [vmem:[%s211 + $0x48a0] sm:$0xff]
        %v2677 = vld [vmem:[%s211 + $0x48a8] sm:$0xff]
        %v2678 = vld [vmem:[%s211 + $0x48b0] sm:$0xff]
        %v2679 = vld [vmem:[%s211 + $0x48b8] sm:$0xff]
        %v2680 = vld [vmem:[%s211 + $0x48c0] sm:$0xff]
        %v2681 = vld [vmem:[%s211 + $0x48c8] sm:$0xff]
        %v2682 = vld [vmem:[%s211 + $0x48d0] sm:$0xff]
        %v2683 = vld [vmem:[%s211 + $0x48d8] sm:$0xff]
        %v2684 = vld [vmem:[%s211 + $0x48e0] sm:$0xff]
        %v2685 = vld [vmem:[%s211 + $0x48e8] sm:$0xff]
        %v2686 = vld [vmem:[%s211 + $0x48f0] sm:$0xff]
        %v2687 = vld [vmem:[%s211 + $0x48f8] sm:$0xff]
        %v2688 = vld [vmem:[%s211 + $0x4900] sm:$0xff]
        %v2689 = vld [vmem:[%s211 + $0x4908] sm:$0xff]
        %v2690 = vld [vmem:[%s211 + $0x4910] sm:$0xff]
        %v2691 = vld [vmem:[%s211 + $0x4918] sm:$0xff]
        %v2692 = vld [vmem:[%s211 + $0x4920] sm:$0xff]
        %v2693 = vld [vmem:[%s211 + $0x4928] sm:$0xff]
        %v2694 = vld [vmem:[%s211 + $0x4930] sm:$0xff]
        %v2695 = vld [vmem:[%s211 + $0x4938] sm:$0xff]
        %v2696 = vld [vmem:[%s211 + $0x4940] sm:$0xff]
        %v2697 = vld [vmem:[%s211 + $0x4948] sm:$0xff]
        %v2698 = vld [vmem:[%s211 + $0x4950] sm:$0xff]
        %v2699 = vld [vmem:[%s211 + $0x4958] sm:$0xff]
        %v2700 = vld [vmem:[%s211 + $0x4960] sm:$0xff]
        %v2701 = vld [vmem:[%s211 + $0x4968] sm:$0xff]
        %v2702 = vld [vmem:[%s211 + $0x4970] sm:$0xff]
        %v2703 = vld [vmem:[%s211 + $0x4978] sm:$0xff]
        %v2704 = vld [vmem:[%s211 + $0x4980] sm:$0xff]
        %v2705 = vld [vmem:[%s211 + $0x4988] sm:$0xff]
        %v2706 = vld [vmem:[%s211 + $0x4990] sm:$0xff]
        %v2707 = vld [vmem:[%s211 + $0x4998] sm:$0xff]
        %v2708 = vld [vmem:[%s211 + $0x49a0] sm:$0xff]
        %v2709 = vld [vmem:[%s211 + $0x49a8] sm:$0xff]
        %v2710 = vld [vmem:[%s211 + $0x49b0] sm:$0xff]
        %v2711 = vld [vmem:[%s211 + $0x49b8] sm:$0xff]
        %v2712 = vld [vmem:[%s211 + $0x49c0] sm:$0xff]
        %v2713 = vld [vmem:[%s211 + $0x49c8] sm:$0xff]
        %v2714 = vld [vmem:[%s211 + $0x49d0] sm:$0xff]
        %v2715 = vld [vmem:[%s211 + $0x49d8] sm:$0xff]
        %v2716 = vld [vmem:[%s211 + $0x49e0] sm:$0xff]
        %v2717 = vld [vmem:[%s211 + $0x49e8] sm:$0xff]
        %v2718 = vld [vmem:[%s211 + $0x49f0] sm:$0xff]
        %v2719 = vld [vmem:[%s211 + $0x49f8] sm:$0xff]
        %v2720 = vld [vmem:[%s211 + $0x4a00] sm:$0xff]
        %v2721 = vld [vmem:[%s211 + $0x4a08] sm:$0xff]
        %v2722 = vld [vmem:[%s211 + $0x4a10] sm:$0xff]
        %v2723 = vld [vmem:[%s211 + $0x4a18] sm:$0xff]
        %v2724 = vld [vmem:[%s211 + $0x4a20] sm:$0xff]
        %v2725 = vld [vmem:[%s211 + $0x4a28] sm:$0xff]
        %v2726 = vld [vmem:[%s211 + $0x4a30] sm:$0xff]
        %v2727 = vld [vmem:[%s211 + $0x4a38] sm:$0xff]
        %v2728 = vld [vmem:[%s211 + $0x4a40] sm:$0xff]
        %v2729 = vld [vmem:[%s211 + $0x4a48] sm:$0xff]
        %v2730 = vld [vmem:[%s211 + $0x4a50] sm:$0xff]
        %v2731 = vld [vmem:[%s211 + $0x4a58] sm:$0xff]
        %v2732 = vld [vmem:[%s211 + $0x4a60] sm:$0xff]
        %v2733 = vld [vmem:[%s211 + $0x4a68] sm:$0xff]
        %v2734 = vld [vmem:[%s211 + $0x4a70] sm:$0xff]
        %v2735 = vld [vmem:[%s211 + $0x4a78] sm:$0xff]
        %v2736 = vld [vmem:[%s211 + $0x4a80] sm:$0xff]
        %v2737 = vld [vmem:[%s211 + $0x4a88] sm:$0xff]
        %v2738 = vld [vmem:[%s211 + $0x4a90] sm:$0xff]
        %v2739 = vld [vmem:[%s211 + $0x4a98] sm:$0xff]
        %v2740 = vld [vmem:[%s211 + $0x4aa0] sm:$0xff]
        %v2741 = vld [vmem:[%s211 + $0x4aa8] sm:$0xff]
        %v2742 = vld [vmem:[%s211 + $0x4ab0] sm:$0xff]
        %v2743 = vld [vmem:[%s211 + $0x4ab8] sm:$0xff]
        %v2744 = vld [vmem:[%s211 + $0x4ac0] sm:$0xff]
        %v2745 = vld [vmem:[%s211 + $0x4ac8] sm:$0xff]
        %v2746 = vld [vmem:[%s211 + $0x4ad0] sm:$0xff]
        %v2747 = vld [vmem:[%s211 + $0x4ad8] sm:$0xff]
        %v2748 = vld [vmem:[%s211 + $0x4ae0] sm:$0xff]
        %v2749 = vld [vmem:[%s211 + $0x4ae8] sm:$0xff]
        %v2750 = vld [vmem:[%s211 + $0x4af0] sm:$0xff]
        %v2751 = vld [vmem:[%s211 + $0x4af8] sm:$0xff]
        %v2752 = vld [vmem:[%s211 + $0x4b00] sm:$0xff]
        %v2753 = vld [vmem:[%s211 + $0x4b08] sm:$0xff]
        %v2754 = vld [vmem:[%s211 + $0x4b10] sm:$0xff]
        %v2755 = vld [vmem:[%s211 + $0x4b18] sm:$0xff]
        %v2756 = vld [vmem:[%s211 + $0x4b20] sm:$0xff]
        %v2757 = vld [vmem:[%s211 + $0x4b28] sm:$0xff]
        %v2758 = vld [vmem:[%s211 + $0x4b30] sm:$0xff]
        %v2759 = vld [vmem:[%s211 + $0x4b38] sm:$0xff]
        %v2760 = vld [vmem:[%s211 + $0x4b40] sm:$0xff]
        %v2761 = vld [vmem:[%s211 + $0x4b48] sm:$0xff]
        %v2762 = vld [vmem:[%s211 + $0x4b50] sm:$0xff]
        %v2763 = vld [vmem:[%s211 + $0x4b58] sm:$0xff]
        %v2764 = vld [vmem:[%s211 + $0x4b60] sm:$0xff]
        %v2765 = vld [vmem:[%s211 + $0x4b68] sm:$0xff]
        %v2766 = vld [vmem:[%s211 + $0x4b70] sm:$0xff]
        %v2767 = vld [vmem:[%s211 + $0x4b78] sm:$0xff]
        %v2768 = vld [vmem:[%s211 + $0x4b80] sm:$0xff]
        %v2769 = vld [vmem:[%s211 + $0x4b88] sm:$0xff]
        %v2770 = vld [vmem:[%s211 + $0x4b90] sm:$0xff]
        %v2771 = vld [vmem:[%s211 + $0x4b98] sm:$0xff]
        %v2772 = vld [vmem:[%s211 + $0x4ba0] sm:$0xff]
        %v2773 = vld [vmem:[%s211 + $0x4ba8] sm:$0xff]
        %v2774 = vld [vmem:[%s211 + $0x4bb0] sm:$0xff]
        %v2775 = vld [vmem:[%s211 + $0x4bb8] sm:$0xff]
        %v2776 = vld [vmem:[%s211 + $0x4bc0] sm:$0xff]
        %v2777 = vld [vmem:[%s211 + $0x4bc8] sm:$0xff]
        %v2778 = vld [vmem:[%s211 + $0x4bd0] sm:$0xff]
        %v2779 = vld [vmem:[%s211 + $0x4bd8] sm:$0xff]
        %v2780 = vld [vmem:[%s211 + $0x4be0] sm:$0xff]
        %v2781 = vld [vmem:[%s211 + $0x4be8] sm:$0xff]
        %v2782 = vld [vmem:[%s211 + $0x4bf0] sm:$0xff]
        %v2783 = vld [vmem:[%s211 + $0x4bf8] sm:$0xff]
        %v2784 = vld [vmem:[%s211 + $0x4c00] sm:$0xff]
        %v2785 = vld [vmem:[%s211 + $0x4c08] sm:$0xff]
        %v2786 = vld [vmem:[%s211 + $0x4c10] sm:$0xff]
        %v2787 = vld [vmem:[%s211 + $0x4c18] sm:$0xff]
        %v2788 = vld [vmem:[%s211 + $0x4c20] sm:$0xff]
        %v2789 = vld [vmem:[%s211 + $0x4c28] sm:$0xff]
        %v2790 = vld [vmem:[%s211 + $0x4c30] sm:$0xff]
        %v2791 = vld [vmem:[%s211 + $0x4c38] sm:$0xff]
        %v2792 = vld [vmem:[%s211 + $0x4c40] sm:$0xff]
        %v2793 = vld [vmem:[%s211 + $0x4c48] sm:$0xff]
        %v2794 = vld [vmem:[%s211 + $0x4c50] sm:$0xff]
        %v2795 = vld [vmem:[%s211 + $0x4c58] sm:$0xff]
        %v2796 = vld [vmem:[%s211 + $0x4c60] sm:$0xff]
        %v2797 = vld [vmem:[%s211 + $0x4c68] sm:$0xff]
        %v2798 = vld [vmem:[%s211 + $0x4c70] sm:$0xff]
        %v2799 = vld [vmem:[%s211 + $0x4c78] sm:$0xff]
        %v2800 = vld [vmem:[%s211 + $0x4c80] sm:$0xff]
        %v2801 = vld [vmem:[%s211 + $0x4c88] sm:$0xff]
        %v2802 = vld [vmem:[%s211 + $0x4c90] sm:$0xff]
        %v2803 = vld [vmem:[%s211 + $0x4c98] sm:$0xff]
        %v2804 = vld [vmem:[%s211 + $0x4ca0] sm:$0xff]
        %v2805 = vld [vmem:[%s211 + $0x4ca8] sm:$0xff]
        %v2806 = vld [vmem:[%s211 + $0x4cb0] sm:$0xff]
        %v2807 = vld [vmem:[%s211 + $0x4cb8] sm:$0xff]
        %v2808 = vld [vmem:[%s211 + $0x4cc0] sm:$0xff]
        %v2809 = vld [vmem:[%s211 + $0x4cc8] sm:$0xff]
        %v2810 = vld [vmem:[%s211 + $0x4cd0] sm:$0xff]
        %v2811 = vld [vmem:[%s211 + $0x4cd8] sm:$0xff]
        %v2812 = vld [vmem:[%s211 + $0x4ce0] sm:$0xff]
        %v2813 = vld [vmem:[%s211 + $0x4ce8] sm:$0xff]
        %v2814 = vld [vmem:[%s211 + $0x4cf0] sm:$0xff]
        %v2815 = vld [vmem:[%s211 + $0x4cf8] sm:$0xff]
        %v2816 = vld [vmem:[%s211 + $0x4d00] sm:$0xff]
        %v2817 = vld [vmem:[%s211 + $0x4d08] sm:$0xff]
        %v2818 = vld [vmem:[%s211 + $0x4d10] sm:$0xff]
        %v2819 = vld [vmem:[%s211 + $0x4d18] sm:$0xff]
        %v2820 = vld [vmem:[%s211 + $0x4d20] sm:$0xff]
        %v2821 = vld [vmem:[%s211 + $0x4d28] sm:$0xff]
        %v2822 = vld [vmem:[%s211 + $0x4d30] sm:$0xff]
        %v2823 = vld [vmem:[%s211 + $0x4d38] sm:$0xff]
        %v2824 = vld [vmem:[%s211 + $0x4d40] sm:$0xff]
        %v2825 = vld [vmem:[%s211 + $0x4d48] sm:$0xff]
        %v2826 = vld [vmem:[%s211 + $0x4d50] sm:$0xff]
        %v2827 = vld [vmem:[%s211 + $0x4d58] sm:$0xff]
        %v2828 = vld [vmem:[%s211 + $0x4d60] sm:$0xff]
        %v2829 = vld [vmem:[%s211 + $0x4d68] sm:$0xff]
        %v2830 = vld [vmem:[%s211 + $0x4d70] sm:$0xff]
        %v2831 = vld [vmem:[%s211 + $0x4d78] sm:$0xff]
        %v2832 = vld [vmem:[%s211 + $0x4d80] sm:$0xff]
        %v2833 = vld [vmem:[%s211 + $0x4d88] sm:$0xff]
        %v2834 = vld [vmem:[%s211 + $0x4d90] sm:$0xff]
        %v2835 = vld [vmem:[%s211 + $0x4d98] sm:$0xff]
        %v2836 = vld [vmem:[%s211 + $0x4da0] sm:$0xff]
        %v2837 = vld [vmem:[%s211 + $0x4da8] sm:$0xff]
        %v2838 = vld [vmem:[%s211 + $0x4db0] sm:$0xff]
        %v2839 = vld [vmem:[%s211 + $0x4db8] sm:$0xff]
        %v2840 = vld [vmem:[%s211 + $0x4dc0] sm:$0xff]
        %v2841 = vld [vmem:[%s211 + $0x4dc8] sm:$0xff]
        %v2842 = vld [vmem:[%s211 + $0x4dd0] sm:$0xff]
        %v2843 = vld [vmem:[%s211 + $0x4dd8] sm:$0xff]
        %v2844 = vld [vmem:[%s211 + $0x4de0] sm:$0xff]
        %v2845 = vld [vmem:[%s211 + $0x4de8] sm:$0xff]
        %v2846 = vld [vmem:[%s211 + $0x4df0] sm:$0xff]
        %v2847 = vld [vmem:[%s211 + $0x4df8] sm:$0xff]
        %v2848 = vld [vmem:[%s211 + $0x4e00] sm:$0xff]
        %v2849 = vld [vmem:[%s211 + $0x4e08] sm:$0xff]
        %v2850 = vld [vmem:[%s211 + $0x4e10] sm:$0xff]
        %v2851 = vld [vmem:[%s211 + $0x4e18] sm:$0xff]
        %v2852 = vld [vmem:[%s220] sm:$0x3]
        %v2854 = vlaneseq
        %v2855 = vshrl.u32 %v2854, 7
        %v2856 = vsub.s32 0, %v2855
        %v2857 = vrot.slane %v2852, %v2856
        %v2858 = vlaneseq
        %v2859 = vshrl.u32 %v2858, 7
        %v2860 = vsub.s32 1, %v2859
        %v2861 = vrot.slane %v2852, %v2860
        %vm2864 = vcmask 130048
        %v2866 = vsel %vm2864, %v351, 0
        %2868 = vmatprep.subr.mxu0 %v353
        %2869 = vmatpush1.msra.mxu0 %v352
        %2870 = vmatprep.subr.mxu0 %v355
        %2871 = vmatpush1.msra.mxu0 %v354
        %2872 = vmatprep.subr.mxu0 %v357
        %2873 = vmatpush1.msra.mxu0 %v356
        %2874 = vmatprep.subr.mxu0 %v359
        %2875 = vmatpush1.msra.mxu0 %v358
        %2876 = vmatprep.subr.mxu0 %v361
        %2877 = vmatpush1.msra.mxu0 %v360
        %2878 = vmatprep.subr.mxu0 %v363
        %2879 = vmatpush1.msra.mxu0 %v362
        %2880 = vmatprep.subr.mxu0 %v365
        %2881 = vmatpush1.msra.mxu0 %v364
        %2882 = vmatprep.subr.mxu0 %v367
        %2883 = vmatpush1.msra.mxu0 %v366
        %2884 = vmatprep.subr.mxu0 %v369
        %2885 = vmatpush1.msra.mxu0 %v368
        %2886 = vmatprep.subr.mxu0 %v371
        %2887 = vmatpush1.msra.mxu0 %v370
        %2888 = vmatprep.subr.mxu0 %v373
        %2889 = vmatpush1.msra.mxu0 %v372
        %2890 = vmatprep.subr.mxu0 %v375
        %2891 = vmatpush1.msra.mxu0 %v374
        %2892 = vmatprep.subr.mxu0 %v377
        %2893 = vmatpush1.msra.mxu0 %v376
        %2894 = vmatprep.subr.mxu0 %v379
        %2895 = vmatpush1.msra.mxu0 %v378
        %2896 = vmatprep.subr.mxu0 %v381
        %2897 = vmatpush1.msra.mxu0 %v380
        %2898 = vmatprep.subr.mxu0 %v383
        %2899 = vmatpush1.msra.mxu0 %v382
        %2900 = vmatprep.subr.mxu0 %v385
        %2901 = vmatpush1.msra.mxu0 %v384
        %2902 = vmatprep.subr.mxu0 %v387
        %2903 = vmatpush1.msra.mxu0 %v386
        %2904 = vmatprep.subr.mxu0 %v389
        %2905 = vmatpush1.msra.mxu0 %v388
        %2906 = vmatprep.subr.mxu0 %v391
        %2907 = vmatpush1.msra.mxu0 %v390
        %2908 = vmatprep.subr.mxu0 %v393
        %2909 = vmatpush1.msra.mxu0 %v392
        %2910 = vmatprep.subr.mxu0 %v395
        %2911 = vmatpush1.msra.mxu0 %v394
        %2912 = vmatprep.subr.mxu0 %v397
        %2913 = vmatpush1.msra.mxu0 %v396
        %2914 = vmatprep.subr.mxu0 %v399
        %2915 = vmatpush1.msra.mxu0 %v398
        %2916 = vmatprep.subr.mxu0 %v401
        %2917 = vmatpush1.msra.mxu0 %v400
        %2918 = vmatprep.subr.mxu0 %v403
        %2919 = vmatpush1.msra.mxu0 %v402
        %2920 = vmatprep.subr.mxu0 %v405
        %2921 = vmatpush1.msra.mxu0 %v404
        %2922 = vmatprep.subr.mxu0 %v407
        %2923 = vmatpush1.msra.mxu0 %v406
        %2924 = vmatprep.subr.mxu0 %v409
        %2925 = vmatpush1.msra.mxu0 %v408
        %2926 = vmatprep.subr.mxu0 %v411
        %2927 = vmatpush1.msra.mxu0 %v410
        %2928 = vmatprep.subr.mxu0 %v413
        %2929 = vmatpush1.msra.mxu0 %v412
        %2930 = vmatprep.subr.mxu0 %v415
        %2931 = vmatpush1.msra.mxu0 %v414
        %2932 = vmatprep.mubr.f32.mxu0 %v274
        %2933 = vmatmul.mubr.f32.gmra.mrb[0].mxu0 %v273
        %v2934 = vpop.f32.mrb[0].mxu0
        %v2935 = vadd.f32 %v2857, %v2934
        %v2936 = vpop.f32.mrb[0].mxu0
        %v2937 = vadd.f32 %v2861, %v2936
        %2938 = vdwg.mxu0
        %2939 = vmatprep.subr.mxu0 %v417
        %2940 = vmatpush1.msra.mxu0 %v416
        %2941 = vmatprep.subr.mxu0 %v419
        %2942 = vmatpush1.msra.mxu0 %v418
        %2943 = vmatprep.subr.mxu0 %v421
        %2944 = vmatpush1.msra.mxu0 %v420
        %2945 = vmatprep.subr.mxu0 %v423
        %2946 = vmatpush1.msra.mxu0 %v422
        %2947 = vmatprep.subr.mxu0 %v425
        %2948 = vmatpush1.msra.mxu0 %v424
        %2949 = vmatprep.subr.mxu0 %v427
        %2950 = vmatpush1.msra.mxu0 %v426
        %2951 = vmatprep.subr.mxu0 %v429
        %2952 = vmatpush1.msra.mxu0 %v428
        %2953 = vmatprep.subr.mxu0 %v431
        %2954 = vmatpush1.msra.mxu0 %v430
        %2955 = vmatprep.subr.mxu0 %v433
        %2956 = vmatpush1.msra.mxu0 %v432
        %2957 = vmatprep.subr.mxu0 %v435
        %2958 = vmatpush1.msra.mxu0 %v434
        %2959 = vmatprep.subr.mxu0 %v437
        %2960 = vmatpush1.msra.mxu0 %v436
        %2961 = vmatprep.subr.mxu0 %v439
        %2962 = vmatpush1.msra.mxu0 %v438
        %2963 = vmatprep.subr.mxu0 %v441
        %2964 = vmatpush1.msra.mxu0 %v440
        %2965 = vmatprep.subr.mxu0 %v443
        %2966 = vmatpush1.msra.mxu0 %v442
        %2967 = vmatprep.subr.mxu0 %v445
        %2968 = vmatpush1.msra.mxu0 %v444
        %2969 = vmatprep.subr.mxu0 %v447
        %2970 = vmatpush1.msra.mxu0 %v446
        %2971 = vmatprep.subr.mxu0 %v449
        %2972 = vmatpush1.msra.mxu0 %v448
        %2973 = vmatprep.subr.mxu0 %v451
        %2974 = vmatpush1.msra.mxu0 %v450
        %2975 = vmatprep.subr.mxu0 %v453
        %2976 = vmatpush1.msra.mxu0 %v452
        %2977 = vmatprep.subr.mxu0 %v455
        %2978 = vmatpush1.msra.mxu0 %v454
        %2979 = vmatprep.subr.mxu0 %v457
        %2980 = vmatpush1.msra.mxu0 %v456
        %2981 = vmatprep.subr.mxu0 %v459
        %2982 = vmatpush1.msra.mxu0 %v458
        %2983 = vmatprep.subr.mxu0 %v461
        %2984 = vmatpush1.msra.mxu0 %v460
        %2985 = vmatprep.subr.mxu0 %v463
        %2986 = vmatpush1.msra.mxu0 %v462
        %2987 = vmatprep.subr.mxu0 %v465
        %2988 = vmatpush1.msra.mxu0 %v464
        %2989 = vmatprep.subr.mxu0 %v467
        %2990 = vmatpush1.msra.mxu0 %v466
        %2991 = vmatprep.subr.mxu0 %v469
        %2992 = vmatpush1.msra.mxu0 %v468
        %2993 = vmatprep.subr.mxu0 %v471
        %2994 = vmatpush1.msra.mxu0 %v470
        %2995 = vmatprep.subr.mxu0 %v473
        %2996 = vmatpush1.msra.mxu0 %v472
        %2997 = vmatprep.subr.mxu0 %v475
        %2998 = vmatpush1.msra.mxu0 %v474
        %2999 = vmatprep.subr.mxu0 %v477
        %3000 = vmatpush1.msra.mxu0 %v476
        %3001 = vmatprep.subr.mxu0 %v479
        %3002 = vmatpush1.msra.mxu0 %v478
        %3003 = vmatprep.mubr.f32.mxu0 %v276
        %3004 = vmatmul.mubr.f32.gmra.mrb[0].mxu0 %v275
        %v3005 = vpop.f32.mrb[0].mxu0
        %v3006 = vadd.f32 %v2935, %v3005
        %v3007 = vpop.f32.mrb[0].mxu0
        %v3008 = vadd.f32 %v2937, %v3007
        %3009 = vdwg.mxu0
        %3010 = vmatprep.subr.mxu0 %v481
        %3011 = vmatpush1.msra.mxu0 %v480
        %3012 = vmatprep.subr.mxu0 %v483
        %3013 = vmatpush1.msra.mxu0 %v482
        %3014 = vmatprep.subr.mxu0 %v485
        %3015 = vmatpush1.msra.mxu0 %v484
        %3016 = vmatprep.subr.mxu0 %v487
        %3017 = vmatpush1.msra.mxu0 %v486
        %3018 = vmatprep.subr.mxu0 %v489
        %3019 = vmatpush1.msra.mxu0 %v488
        %3020 = vmatprep.subr.mxu0 %v491
        %3021 = vmatpush1.msra.mxu0 %v490
        %3022 = vmatprep.subr.mxu0 %v493
        %3023 = vmatpush1.msra.mxu0 %v492
        %3024 = vmatprep.subr.mxu0 %v495
        %3025 = vmatpush1.msra.mxu0 %v494
        %3026 = vmatprep.subr.mxu0 %v497
        %3027 = vmatpush1.msra.mxu0 %v496
        %3028 = vmatprep.subr.mxu0 %v499
        %3029 = vmatpush1.msra.mxu0 %v498
        %3030 = vmatprep.subr.mxu0 %v501
        %3031 = vmatpush1.msra.mxu0 %v500
        %3032 = vmatprep.subr.mxu0 %v503
        %3033 = vmatpush1.msra.mxu0 %v502
        %3034 = vmatprep.subr.mxu0 %v505
        %3035 = vmatpush1.msra.mxu0 %v504
        %3036 = vmatprep.subr.mxu0 %v507
        %3037 = vmatpush1.msra.mxu0 %v506
        %3038 = vmatprep.subr.mxu0 %v509
        %3039 = vmatpush1.msra.mxu0 %v508
        %3040 = vmatprep.subr.mxu0 %v511
        %3041 = vmatpush1.msra.mxu0 %v510
        %3042 = vmatprep.subr.mxu0 %v513
        %3043 = vmatpush1.msra.mxu0 %v512
        %3044 = vmatprep.subr.mxu0 %v515
        %3045 = vmatpush1.msra.mxu0 %v514
        %3046 = vmatprep.subr.mxu0 %v517
        %3047 = vmatpush1.msra.mxu0 %v516
        %3048 = vmatprep.subr.mxu0 %v519
        %3049 = vmatpush1.msra.mxu0 %v518
        %3050 = vmatprep.subr.mxu0 %v521
        %3051 = vmatpush1.msra.mxu0 %v520
        %3052 = vmatprep.subr.mxu0 %v523
        %3053 = vmatpush1.msra.mxu0 %v522
        %3054 = vmatprep.subr.mxu0 %v525
        %3055 = vmatpush1.msra.mxu0 %v524
        %3056 = vmatprep.subr.mxu0 %v527
        %3057 = vmatpush1.msra.mxu0 %v526
        %3058 = vmatprep.subr.mxu0 %v529
        %3059 = vmatpush1.msra.mxu0 %v528
        %3060 = vmatprep.subr.mxu0 %v531
        %3061 = vmatpush1.msra.mxu0 %v530
        %3062 = vmatprep.subr.mxu0 %v533
        %3063 = vmatpush1.msra.mxu0 %v532
        %3064 = vmatprep.subr.mxu0 %v535
        %3065 = vmatpush1.msra.mxu0 %v534
        %3066 = vmatprep.subr.mxu0 %v537
        %3067 = vmatpush1.msra.mxu0 %v536
        %3068 = vmatprep.subr.mxu0 %v539
        %3069 = vmatpush1.msra.mxu0 %v538
        %3070 = vmatprep.subr.mxu0 %v541
        %3071 = vmatpush1.msra.mxu0 %v540
        %3072 = vmatprep.subr.mxu0 %v543
        %3073 = vmatpush1.msra.mxu0 %v542
        %3074 = vmatprep.mubr.f32.mxu0 %v278
        %3075 = vmatmul.mubr.f32.gmra.mrb[0].mxu0 %v277
        %v3076 = vpop.f32.mrb[0].mxu0
        %v3077 = vadd.f32 %v3006, %v3076
        %v3078 = vpop.f32.mrb[0].mxu0
        %v3079 = vadd.f32 %v3008, %v3078
        %3080 = vdwg.mxu0
        %3081 = vmatprep.subr.mxu0 %v545
        %3082 = vmatpush1.msra.mxu0 %v544
        %3083 = vmatprep.subr.mxu0 %v547
        %3084 = vmatpush1.msra.mxu0 %v546
        %3085 = vmatprep.subr.mxu0 %v549
        %3086 = vmatpush1.msra.mxu0 %v548
        %3087 = vmatprep.subr.mxu0 %v551
        %3088 = vmatpush1.msra.mxu0 %v550
        %3089 = vmatprep.subr.mxu0 %v553
        %3090 = vmatpush1.msra.mxu0 %v552
        %3091 = vmatprep.subr.mxu0 %v555
        %3092 = vmatpush1.msra.mxu0 %v554
        %3093 = vmatprep.subr.mxu0 %v557
        %3094 = vmatpush1.msra.mxu0 %v556
        %3095 = vmatprep.subr.mxu0 %v559
        %3096 = vmatpush1.msra.mxu0 %v558
        %3097 = vmatprep.subr.mxu0 %v561
        %3098 = vmatpush1.msra.mxu0 %v560
        %3099 = vmatprep.subr.mxu0 %v563
        %3100 = vmatpush1.msra.mxu0 %v562
        %3101 = vmatprep.subr.mxu0 %v565
        %3102 = vmatpush1.msra.mxu0 %v564
        %3103 = vmatprep.subr.mxu0 %v567
        %3104 = vmatpush1.msra.mxu0 %v566
        %3105 = vmatprep.subr.mxu0 %v569
        %3106 = vmatpush1.msra.mxu0 %v568
        %3107 = vmatprep.subr.mxu0 %v571
        %3108 = vmatpush1.msra.mxu0 %v570
        %3109 = vmatprep.subr.mxu0 %v573
        %3110 = vmatpush1.msra.mxu0 %v572
        %3111 = vmatprep.subr.mxu0 %v575
        %3112 = vmatpush1.msra.mxu0 %v574
        %3113 = vmatprep.subr.mxu0 %v577
        %3114 = vmatpush1.msra.mxu0 %v576
        %3115 = vmatprep.subr.mxu0 %v579
        %3116 = vmatpush1.msra.mxu0 %v578
        %3117 = vmatprep.subr.mxu0 %v581
        %3118 = vmatpush1.msra.mxu0 %v580
        %3119 = vmatprep.subr.mxu0 %v583
        %3120 = vmatpush1.msra.mxu0 %v582
        %3121 = vmatprep.subr.mxu0 %v585
        %3122 = vmatpush1.msra.mxu0 %v584
        %3123 = vmatprep.subr.mxu0 %v587
        %3124 = vmatpush1.msra.mxu0 %v586
        %3125 = vmatprep.subr.mxu0 %v589
        %3126 = vmatpush1.msra.mxu0 %v588
        %3127 = vmatprep.subr.mxu0 %v591
        %3128 = vmatpush1.msra.mxu0 %v590
        %3129 = vmatprep.subr.mxu0 %v593
        %3130 = vmatpush1.msra.mxu0 %v592
        %3131 = vmatprep.subr.mxu0 %v595
        %3132 = vmatpush1.msra.mxu0 %v594
        %3133 = vmatprep.subr.mxu0 %v597
        %3134 = vmatpush1.msra.mxu0 %v596
        %3135 = vmatprep.subr.mxu0 %v599
        %3136 = vmatpush1.msra.mxu0 %v598
        %3137 = vmatprep.subr.mxu0 %v601
        %3138 = vmatpush1.msra.mxu0 %v600
        %3139 = vmatprep.subr.mxu0 %v603
        %3140 = vmatpush1.msra.mxu0 %v602
        %3141 = vmatprep.subr.mxu0 %v605
        %3142 = vmatpush1.msra.mxu0 %v604
        %3143 = vmatprep.subr.mxu0 %v607
        %3144 = vmatpush1.msra.mxu0 %v606
        %3145 = vmatprep.mubr.f32.mxu0 %v280
        %3146 = vmatmul.mubr.f32.gmra.mrb[0].mxu0 %v279
        %v3147 = vpop.f32.mrb[0].mxu0
        %v3148 = vadd.f32 %v3077, %v3147
        %v3149 = vpop.f32.mrb[0].mxu0
        %v3150 = vadd.f32 %v3079, %v3149
        %3151 = vdwg.mxu0
        %3152 = vmatprep.subr.mxu0 %v609
        %3153 = vmatpush1.msra.mxu0 %v608
        %3154 = vmatprep.subr.mxu0 %v611
        %3155 = vmatpush1.msra.mxu0 %v610
        %3156 = vmatprep.subr.mxu0 %v613
        %3157 = vmatpush1.msra.mxu0 %v612
        %3158 = vmatprep.subr.mxu0 %v615
        %3159 = vmatpush1.msra.mxu0 %v614
        %3160 = vmatprep.subr.mxu0 %v617
        %3161 = vmatpush1.msra.mxu0 %v616
        %3162 = vmatprep.subr.mxu0 %v619
        %3163 = vmatpush1.msra.mxu0 %v618
        %3164 = vmatprep.subr.mxu0 %v621
        %3165 = vmatpush1.msra.mxu0 %v620
        %3166 = vmatprep.subr.mxu0 %v623
        %3167 = vmatpush1.msra.mxu0 %v622
        %3168 = vmatprep.subr.mxu0 %v625
        %3169 = vmatpush1.msra.mxu0 %v624
        %3170 = vmatprep.subr.mxu0 %v627
        %3171 = vmatpush1.msra.mxu0 %v626
        %3172 = vmatprep.subr.mxu0 %v629
        %3173 = vmatpush1.msra.mxu0 %v628
        %3174 = vmatprep.subr.mxu0 %v631
        %3175 = vmatpush1.msra.mxu0 %v630
        %3176 = vmatprep.subr.mxu0 %v633
        %3177 = vmatpush1.msra.mxu0 %v632
        %3178 = vmatprep.subr.mxu0 %v635
        %3179 = vmatpush1.msra.mxu0 %v634
        %3180 = vmatprep.subr.mxu0 %v637
        %3181 = vmatpush1.msra.mxu0 %v636
        %3182 = vmatprep.subr.mxu0 %v639
        %3183 = vmatpush1.msra.mxu0 %v638
        %3184 = vmatprep.subr.mxu0 %v641
        %3185 = vmatpush1.msra.mxu0 %v640
        %3186 = vmatprep.subr.mxu0 %v643
        %3187 = vmatpush1.msra.mxu0 %v642
        %3188 = vmatprep.subr.mxu0 %v645
        %3189 = vmatpush1.msra.mxu0 %v644
        %3190 = vmatprep.subr.mxu0 %v647
        %3191 = vmatpush1.msra.mxu0 %v646
        %3192 = vmatprep.subr.mxu0 %v649
        %3193 = vmatpush1.msra.mxu0 %v648
        %3194 = vmatprep.subr.mxu0 %v651
        %3195 = vmatpush1.msra.mxu0 %v650
        %3196 = vmatprep.subr.mxu0 %v653
        %3197 = vmatpush1.msra.mxu0 %v652
        %3198 = vmatprep.subr.mxu0 %v655
        %3199 = vmatpush1.msra.mxu0 %v654
        %3200 = vmatprep.subr.mxu0 %v657
        %3201 = vmatpush1.msra.mxu0 %v656
        %3202 = vmatprep.subr.mxu0 %v659
        %3203 = vmatpush1.msra.mxu0 %v658
        %3204 = vmatprep.subr.mxu0 %v661
        %3205 = vmatpush1.msra.mxu0 %v660
        %3206 = vmatprep.subr.mxu0 %v663
        %3207 = vmatpush1.msra.mxu0 %v662
        %3208 = vmatprep.subr.mxu0 %v665
        %3209 = vmatpush1.msra.mxu0 %v664
        %3210 = vmatprep.subr.mxu0 %v667
        %3211 = vmatpush1.msra.mxu0 %v666
        %3212 = vmatprep.subr.mxu0 %v669
        %3213 = vmatpush1.msra.mxu0 %v668
        %3214 = vmatprep.subr.mxu0 %v671
        %3215 = vmatpush1.msra.mxu0 %v670
        %3216 = vmatprep.mubr.f32.mxu0 %v282
        %3217 = vmatmul.mubr.f32.gmra.mrb[0].mxu0 %v281
        %v3218 = vpop.f32.mrb[0].mxu0
        %v3219 = vadd.f32 %v3148, %v3218
        %v3220 = vpop.f32.mrb[0].mxu0
        %v3221 = vadd.f32 %v3150, %v3220
        %3222 = vdwg.mxu0
        %3223 = vmatprep.subr.mxu0 %v673
        %3224 = vmatpush1.msra.mxu0 %v672
        %3225 = vmatprep.subr.mxu0 %v675
        %3226 = vmatpush1.msra.mxu0 %v674
        %3227 = vmatprep.subr.mxu0 %v677
        %3228 = vmatpush1.msra.mxu0 %v676
        %3229 = vmatprep.subr.mxu0 %v679
        %3230 = vmatpush1.msra.mxu0 %v678
        %3231 = vmatprep.subr.mxu0 %v681
        %3232 = vmatpush1.msra.mxu0 %v680
        %3233 = vmatprep.subr.mxu0 %v683
        %3234 = vmatpush1.msra.mxu0 %v682
        %3235 = vmatprep.subr.mxu0 %v685
        %3236 = vmatpush1.msra.mxu0 %v684
        %3237 = vmatprep.subr.mxu0 %v687
        %3238 = vmatpush1.msra.mxu0 %v686
        %3239 = vmatprep.subr.mxu0 %v689
        %3240 = vmatpush1.msra.mxu0 %v688
        %3241 = vmatprep.subr.mxu0 %v691
        %3242 = vmatpush1.msra.mxu0 %v690
        %3243 = vmatprep.subr.mxu0 %v693
        %3244 = vmatpush1.msra.mxu0 %v692
        %3245 = vmatprep.subr.mxu0 %v695
        %3246 = vmatpush1.msra.mxu0 %v694
        %3247 = vmatprep.subr.mxu0 %v697
        %3248 = vmatpush1.msra.mxu0 %v696
        %3249 = vmatprep.subr.mxu0 %v699
        %3250 = vmatpush1.msra.mxu0 %v698
        %3251 = vmatprep.subr.mxu0 %v701
        %3252 = vmatpush1.msra.mxu0 %v700
        %3253 = vmatprep.subr.mxu0 %v703
        %3254 = vmatpush1.msra.mxu0 %v702
        %3255 = vmatprep.subr.mxu0 %v705
        %3256 = vmatpush1.msra.mxu0 %v704
        %3257 = vmatprep.subr.mxu0 %v707
        %3258 = vmatpush1.msra.mxu0 %v706
        %3259 = vmatprep.subr.mxu0 %v709
        %3260 = vmatpush1.msra.mxu0 %v708
        %3261 = vmatprep.subr.mxu0 %v711
        %3262 = vmatpush1.msra.mxu0 %v710
        %3263 = vmatprep.subr.mxu0 %v713
        %3264 = vmatpush1.msra.mxu0 %v712
        %3265 = vmatprep.subr.mxu0 %v715
        %3266 = vmatpush1.msra.mxu0 %v714
        %3267 = vmatprep.subr.mxu0 %v717
        %3268 = vmatpush1.msra.mxu0 %v716
        %3269 = vmatprep.subr.mxu0 %v719
        %3270 = vmatpush1.msra.mxu0 %v718
        %3271 = vmatprep.subr.mxu0 %v721
        %3272 = vmatpush1.msra.mxu0 %v720
        %3273 = vmatprep.subr.mxu0 %v723
        %3274 = vmatpush1.msra.mxu0 %v722
        %3275 = vmatprep.subr.mxu0 %v725
        %3276 = vmatpush1.msra.mxu0 %v724
        %3277 = vmatprep.subr.mxu0 %v727
        %3278 = vmatpush1.msra.mxu0 %v726
        %3279 = vmatprep.subr.mxu0 %v729
        %3280 = vmatpush1.msra.mxu0 %v728
        %3281 = vmatprep.subr.mxu0 %v731
        %3282 = vmatpush1.msra.mxu0 %v730
        %3283 = vmatprep.subr.mxu0 %v733
        %3284 = vmatpush1.msra.mxu0 %v732
        %3285 = vmatprep.subr.mxu0 %v735
        %3286 = vmatpush1.msra.mxu0 %v734
        %3287 = vmatprep.mubr.f32.mxu0 %v284
        %3288 = vmatmul.mubr.f32.gmra.mrb[0].mxu0 %v283
        %v3289 = vpop.f32.mrb[0].mxu0
        %v3290 = vadd.f32 %v3219, %v3289
        %v3291 = vpop.f32.mrb[0].mxu0
        %v3292 = vadd.f32 %v3221, %v3291
        %3293 = vdwg.mxu0
        %3294 = vmatprep.subr.mxu0 %v737
        %3295 = vmatpush1.msra.mxu0 %v736
        %3296 = vmatprep.subr.mxu0 %v739
        %3297 = vmatpush1.msra.mxu0 %v738
        %3298 = vmatprep.subr.mxu0 %v741
        %3299 = vmatpush1.msra.mxu0 %v740
        %3300 = vmatprep.subr.mxu0 %v743
        %3301 = vmatpush1.msra.mxu0 %v742
        %3302 = vmatprep.subr.mxu0 %v745
        %3303 = vmatpush1.msra.mxu0 %v744
        %3304 = vmatprep.subr.mxu0 %v747
        %3305 = vmatpush1.msra.mxu0 %v746
        %3306 = vmatprep.subr.mxu0 %v749
        %3307 = vmatpush1.msra.mxu0 %v748
        %3308 = vmatprep.subr.mxu0 %v751
        %3309 = vmatpush1.msra.mxu0 %v750
        %3310 = vmatprep.subr.mxu0 %v753
        %3311 = vmatpush1.msra.mxu0 %v752
        %3312 = vmatprep.subr.mxu0 %v755
        %3313 = vmatpush1.msra.mxu0 %v754
        %3314 = vmatprep.subr.mxu0 %v757
        %3315 = vmatpush1.msra.mxu0 %v756
        %3316 = vmatprep.subr.mxu0 %v759
        %3317 = vmatpush1.msra.mxu0 %v758
        %3318 = vmatprep.subr.mxu0 %v761
        %3319 = vmatpush1.msra.mxu0 %v760
        %3320 = vmatprep.subr.mxu0 %v763
        %3321 = vmatpush1.msra.mxu0 %v762
        %3322 = vmatprep.subr.mxu0 %v765
        %3323 = vmatpush1.msra.mxu0 %v764
        %3324 = vmatprep.subr.mxu0 %v767
        %3325 = vmatpush1.msra.mxu0 %v766
        %3326 = vmatprep.subr.mxu0 %v769
        %3327 = vmatpush1.msra.mxu0 %v768
        %3328 = vmatprep.subr.mxu0 %v771
        %3329 = vmatpush1.msra.mxu0 %v770
        %3330 = vmatprep.subr.mxu0 %v773
        %3331 = vmatpush1.msra.mxu0 %v772
        %3332 = vmatprep.subr.mxu0 %v775
        %3333 = vmatpush1.msra.mxu0 %v774
        %3334 = vmatprep.subr.mxu0 %v777
        %3335 = vmatpush1.msra.mxu0 %v776
        %3336 = vmatprep.subr.mxu0 %v779
        %3337 = vmatpush1.msra.mxu0 %v778
        %3338 = vmatprep.subr.mxu0 %v781
        %3339 = vmatpush1.msra.mxu0 %v780
        %3340 = vmatprep.subr.mxu0 %v783
        %3341 = vmatpush1.msra.mxu0 %v782
        %3342 = vmatprep.subr.mxu0 %v785
        %3343 = vmatpush1.msra.mxu0 %v784
        %3344 = vmatprep.subr.mxu0 %v787
        %3345 = vmatpush1.msra.mxu0 %v786
        %3346 = vmatprep.subr.mxu0 %v789
        %3347 = vmatpush1.msra.mxu0 %v788
        %3348 = vmatprep.subr.mxu0 %v791
        %3349 = vmatpush1.msra.mxu0 %v790
        %3350 = vmatprep.subr.mxu0 %v793
        %3351 = vmatpush1.msra.mxu0 %v792
        %3352 = vmatprep.subr.mxu0 %v795
        %3353 = vmatpush1.msra.mxu0 %v794
        %3354 = vmatprep.subr.mxu0 %v797
        %3355 = vmatpush1.msra.mxu0 %v796
        %3356 = vmatprep.subr.mxu0 %v799
        %3357 = vmatpush1.msra.mxu0 %v798
        %3358 = vmatprep.mubr.f32.mxu0 %v286
        %3359 = vmatmul.mubr.f32.gmra.mrb[0].mxu0 %v285
        %v3360 = vpop.f32.mrb[0].mxu0
        %v3361 = vadd.f32 %v3290, %v3360
        %v3362 = vpop.f32.mrb[0].mxu0
        %v3363 = vadd.f32 %v3292, %v3362
        %3364 = vdwg.mxu0
        %3365 = vmatprep.subr.mxu0 %v801
        %3366 = vmatpush1.msra.mxu0 %v800
        %3367 = vmatprep.subr.mxu0 %v803
        %3368 = vmatpush1.msra.mxu0 %v802
        %3369 = vmatprep.subr.mxu0 %v805
        %3370 = vmatpush1.msra.mxu0 %v804
        %3371 = vmatprep.subr.mxu0 %v807
        %3372 = vmatpush1.msra.mxu0 %v806
        %3373 = vmatprep.subr.mxu0 %v809
        %3374 = vmatpush1.msra.mxu0 %v808
        %3375 = vmatprep.subr.mxu0 %v811
        %3376 = vmatpush1.msra.mxu0 %v810
        %3377 = vmatprep.subr.mxu0 %v813
        %3378 = vmatpush1.msra.mxu0 %v812
        %3379 = vmatprep.subr.mxu0 %v815
        %3380 = vmatpush1.msra.mxu0 %v814
        %3381 = vmatprep.subr.mxu0 %v817
        %3382 = vmatpush1.msra.mxu0 %v816
        %3383 = vmatprep.subr.mxu0 %v819
        %3384 = vmatpush1.msra.mxu0 %v818
        %3385 = vmatprep.subr.mxu0 %v821
        %3386 = vmatpush1.msra.mxu0 %v820
        %3387 = vmatprep.subr.mxu0 %v823
        %3388 = vmatpush1.msra.mxu0 %v822
        %3389 = vmatprep.subr.mxu0 %v825
        %3390 = vmatpush1.msra.mxu0 %v824
        %3391 = vmatprep.subr.mxu0 %v827
        %3392 = vmatpush1.msra.mxu0 %v826
        %3393 = vmatprep.subr.mxu0 %v829
        %3394 = vmatpush1.msra.mxu0 %v828
        %3395 = vmatprep.subr.mxu0 %v831
        %3396 = vmatpush1.msra.mxu0 %v830
        %3397 = vmatprep.subr.mxu0 %v833
        %3398 = vmatpush1.msra.mxu0 %v832
        %3399 = vmatprep.subr.mxu0 %v835
        %3400 = vmatpush1.msra.mxu0 %v834
        %3401 = vmatprep.subr.mxu0 %v837
        %3402 = vmatpush1.msra.mxu0 %v836
        %3403 = vmatprep.subr.mxu0 %v839
        %3404 = vmatpush1.msra.mxu0 %v838
        %3405 = vmatprep.subr.mxu0 %v841
        %3406 = vmatpush1.msra.mxu0 %v840
        %3407 = vmatprep.subr.mxu0 %v843
        %3408 = vmatpush1.msra.mxu0 %v842
        %3409 = vmatprep.subr.mxu0 %v845
        %3410 = vmatpush1.msra.mxu0 %v844
        %3411 = vmatprep.subr.mxu0 %v847
        %3412 = vmatpush1.msra.mxu0 %v846
        %3413 = vmatprep.subr.mxu0 %v849
        %3414 = vmatpush1.msra.mxu0 %v848
        %3415 = vmatprep.subr.mxu0 %v851
        %3416 = vmatpush1.msra.mxu0 %v850
        %3417 = vmatprep.subr.mxu0 %v853
        %3418 = vmatpush1.msra.mxu0 %v852
        %3419 = vmatprep.subr.mxu0 %v855
        %3420 = vmatpush1.msra.mxu0 %v854
        %3421 = vmatprep.subr.mxu0 %v857
        %3422 = vmatpush1.msra.mxu0 %v856
        %3423 = vmatprep.subr.mxu0 %v859
        %3424 = vmatpush1.msra.mxu0 %v858
        %3425 = vmatprep.subr.mxu0 %v861
        %3426 = vmatpush1.msra.mxu0 %v860
        %3427 = vmatprep.subr.mxu0 %v863
        %3428 = vmatpush1.msra.mxu0 %v862
        %3429 = vmatprep.mubr.f32.mxu0 %v288
        %3430 = vmatmul.mubr.f32.gmra.mrb[0].mxu0 %v287
        %v3431 = vpop.f32.mrb[0].mxu0
        %v3432 = vadd.f32 %v3361, %v3431
        %v3433 = vpop.f32.mrb[0].mxu0
        %v3434 = vadd.f32 %v3363, %v3433
        %3435 = vdwg.mxu0
        %3436 = vmatprep.subr.mxu0 %v865
        %3437 = vmatpush1.msra.mxu0 %v864
        %3438 = vmatprep.subr.mxu0 %v867
        %3439 = vmatpush1.msra.mxu0 %v866
        %3440 = vmatprep.subr.mxu0 %v869
        %3441 = vmatpush1.msra.mxu0 %v868
        %3442 = vmatprep.subr.mxu0 %v871
        %3443 = vmatpush1.msra.mxu0 %v870
        %3444 = vmatprep.subr.mxu0 %v873
        %3445 = vmatpush1.msra.mxu0 %v872
        %3446 = vmatprep.subr.mxu0 %v875
        %3447 = vmatpush1.msra.mxu0 %v874
        %3448 = vmatprep.subr.mxu0 %v877
        %3449 = vmatpush1.msra.mxu0 %v876
        %3450 = vmatprep.subr.mxu0 %v879
        %3451 = vmatpush1.msra.mxu0 %v878
        %3452 = vmatprep.subr.mxu0 %v881
        %3453 = vmatpush1.msra.mxu0 %v880
        %3454 = vmatprep.subr.mxu0 %v883
        %3455 = vmatpush1.msra.mxu0 %v882
        %3456 = vmatprep.subr.mxu0 %v885
        %3457 = vmatpush1.msra.mxu0 %v884
        %3458 = vmatprep.subr.mxu0 %v887
        %3459 = vmatpush1.msra.mxu0 %v886
        %3460 = vmatprep.subr.mxu0 %v889
        %3461 = vmatpush1.msra.mxu0 %v888
        %3462 = vmatprep.subr.mxu0 %v891
        %3463 = vmatpush1.msra.mxu0 %v890
        %3464 = vmatprep.subr.mxu0 %v893
        %3465 = vmatpush1.msra.mxu0 %v892
        %3466 = vmatprep.subr.mxu0 %v895
        %3467 = vmatpush1.msra.mxu0 %v894
        %3468 = vmatprep.subr.mxu0 %v897
        %3469 = vmatpush1.msra.mxu0 %v896
        %3470 = vmatprep.subr.mxu0 %v899
        %3471 = vmatpush1.msra.mxu0 %v898
        %3472 = vmatprep.subr.mxu0 %v901
        %3473 = vmatpush1.msra.mxu0 %v900
        %3474 = vmatprep.subr.mxu0 %v903
        %3475 = vmatpush1.msra.mxu0 %v902
        %3476 = vmatprep.subr.mxu0 %v905
        %3477 = vmatpush1.msra.mxu0 %v904
        %3478 = vmatprep.subr.mxu0 %v907
        %3479 = vmatpush1.msra.mxu0 %v906
        %3480 = vmatprep.subr.mxu0 %v909
        %3481 = vmatpush1.msra.mxu0 %v908
        %3482 = vmatprep.subr.mxu0 %v911
        %3483 = vmatpush1.msra.mxu0 %v910
        %3484 = vmatprep.subr.mxu0 %v913
        %3485 = vmatpush1.msra.mxu0 %v912
        %3486 = vmatprep.subr.mxu0 %v915
        %3487 = vmatpush1.msra.mxu0 %v914
        %3488 = vmatprep.subr.mxu0 %v917
        %3489 = vmatpush1.msra.mxu0 %v916
        %3490 = vmatprep.subr.mxu0 %v919
        %3491 = vmatpush1.msra.mxu0 %v918
        %3492 = vmatprep.subr.mxu0 %v921
        %3493 = vmatpush1.msra.mxu0 %v920
        %3494 = vmatprep.subr.mxu0 %v923
        %3495 = vmatpush1.msra.mxu0 %v922
        %3496 = vmatprep.subr.mxu0 %v925
        %3497 = vmatpush1.msra.mxu0 %v924
        %3498 = vmatprep.subr.mxu0 %v927
        %3499 = vmatpush1.msra.mxu0 %v926
        %3500 = vmatprep.mubr.f32.mxu0 %v290
        %3501 = vmatmul.mubr.f32.gmra.mrb[0].mxu0 %v289
        %v3502 = vpop.f32.mrb[0].mxu0
        %v3503 = vadd.f32 %v3432, %v3502
        %v3504 = vpop.f32.mrb[0].mxu0
        %v3505 = vadd.f32 %v3434, %v3504
        %3506 = vdwg.mxu0
        %3507 = vmatprep.subr.mxu0 %v929
        %3508 = vmatpush1.msra.mxu0 %v928
        %3509 = vmatprep.subr.mxu0 %v931
        %3510 = vmatpush1.msra.mxu0 %v930
        %3511 = vmatprep.subr.mxu0 %v933
        %3512 = vmatpush1.msra.mxu0 %v932
        %3513 = vmatprep.subr.mxu0 %v935
        %3514 = vmatpush1.msra.mxu0 %v934
        %3515 = vmatprep.subr.mxu0 %v937
        %3516 = vmatpush1.msra.mxu0 %v936
        %3517 = vmatprep.subr.mxu0 %v939
        %3518 = vmatpush1.msra.mxu0 %v938
        %3519 = vmatprep.subr.mxu0 %v941
        %3520 = vmatpush1.msra.mxu0 %v940
        %3521 = vmatprep.subr.mxu0 %v943
        %3522 = vmatpush1.msra.mxu0 %v942
        %3523 = vmatprep.subr.mxu0 %v945
        %3524 = vmatpush1.msra.mxu0 %v944
        %3525 = vmatprep.subr.mxu0 %v947
        %3526 = vmatpush1.msra.mxu0 %v946
        %3527 = vmatprep.subr.mxu0 %v949
        %3528 = vmatpush1.msra.mxu0 %v948
        %3529 = vmatprep.subr.mxu0 %v951
        %3530 = vmatpush1.msra.mxu0 %v950
        %3531 = vmatprep.subr.mxu0 %v953
        %3532 = vmatpush1.msra.mxu0 %v952
        %3533 = vmatprep.subr.mxu0 %v955
        %3534 = vmatpush1.msra.mxu0 %v954
        %3535 = vmatprep.subr.mxu0 %v957
        %3536 = vmatpush1.msra.mxu0 %v956
        %3537 = vmatprep.subr.mxu0 %v959
        %3538 = vmatpush1.msra.mxu0 %v958
        %3539 = vmatprep.subr.mxu0 %v961
        %3540 = vmatpush1.msra.mxu0 %v960
        %3541 = vmatprep.subr.mxu0 %v963
        %3542 = vmatpush1.msra.mxu0 %v962
        %3543 = vmatprep.subr.mxu0 %v965
        %3544 = vmatpush1.msra.mxu0 %v964
        %3545 = vmatprep.subr.mxu0 %v967
        %3546 = vmatpush1.msra.mxu0 %v966
        %3547 = vmatprep.subr.mxu0 %v969
        %3548 = vmatpush1.msra.mxu0 %v968
        %3549 = vmatprep.subr.mxu0 %v971
        %3550 = vmatpush1.msra.mxu0 %v970
        %3551 = vmatprep.subr.mxu0 %v973
        %3552 = vmatpush1.msra.mxu0 %v972
        %3553 = vmatprep.subr.mxu0 %v975
        %3554 = vmatpush1.msra.mxu0 %v974
        %3555 = vmatprep.subr.mxu0 %v977
        %3556 = vmatpush1.msra.mxu0 %v976
        %3557 = vmatprep.subr.mxu0 %v979
        %3558 = vmatpush1.msra.mxu0 %v978
        %3559 = vmatprep.subr.mxu0 %v981
        %3560 = vmatpush1.msra.mxu0 %v980
        %3561 = vmatprep.subr.mxu0 %v983
        %3562 = vmatpush1.msra.mxu0 %v982
        %3563 = vmatprep.subr.mxu0 %v985
        %3564 = vmatpush1.msra.mxu0 %v984
        %3565 = vmatprep.subr.mxu0 %v987
        %3566 = vmatpush1.msra.mxu0 %v986
        %3567 = vmatprep.subr.mxu0 %v989
        %3568 = vmatpush1.msra.mxu0 %v988
        %3569 = vmatprep.subr.mxu0 %v991
        %3570 = vmatpush1.msra.mxu0 %v990
        %3571 = vmatprep.mubr.f32.mxu0 %v292
        %3572 = vmatmul.mubr.f32.gmra.mrb[0].mxu0 %v291
        %v3573 = vpop.f32.mrb[0].mxu0
        %v3574 = vadd.f32 %v3503, %v3573
        %v3575 = vpop.f32.mrb[0].mxu0
        %v3576 = vadd.f32 %v3505, %v3575
        %3577 = vdwg.mxu0
        %3578 = vmatprep.subr.mxu0 %v993
        %3579 = vmatpush1.msra.mxu0 %v992
        %3580 = vmatprep.subr.mxu0 %v995
        %3581 = vmatpush1.msra.mxu0 %v994
        %3582 = vmatprep.subr.mxu0 %v997
        %3583 = vmatpush1.msra.mxu0 %v996
        %3584 = vmatprep.subr.mxu0 %v999
        %3585 = vmatpush1.msra.mxu0 %v998
        %3586 = vmatprep.subr.mxu0 %v1001
        %3587 = vmatpush1.msra.mxu0 %v1000
        %3588 = vmatprep.subr.mxu0 %v1003
        %3589 = vmatpush1.msra.mxu0 %v1002
        %3590 = vmatprep.subr.mxu0 %v1005
        %3591 = vmatpush1.msra.mxu0 %v1004
        %3592 = vmatprep.subr.mxu0 %v1007
        %3593 = vmatpush1.msra.mxu0 %v1006
        %3594 = vmatprep.subr.mxu0 %v1009
        %3595 = vmatpush1.msra.mxu0 %v1008
        %3596 = vmatprep.subr.mxu0 %v1011
        %3597 = vmatpush1.msra.mxu0 %v1010
        %3598 = vmatprep.subr.mxu0 %v1013
        %3599 = vmatpush1.msra.mxu0 %v1012
        %3600 = vmatprep.subr.mxu0 %v1015
        %3601 = vmatpush1.msra.mxu0 %v1014
        %3602 = vmatprep.subr.mxu0 %v1017
        %3603 = vmatpush1.msra.mxu0 %v1016
        %3604 = vmatprep.subr.mxu0 %v1019
        %3605 = vmatpush1.msra.mxu0 %v1018
        %3606 = vmatprep.subr.mxu0 %v1021
        %3607 = vmatpush1.msra.mxu0 %v1020
        %3608 = vmatprep.subr.mxu0 %v1023
        %3609 = vmatpush1.msra.mxu0 %v1022
        %3610 = vmatprep.subr.mxu0 %v1025
        %3611 = vmatpush1.msra.mxu0 %v1024
        %3612 = vmatprep.subr.mxu0 %v1027
        %3613 = vmatpush1.msra.mxu0 %v1026
        %3614 = vmatprep.subr.mxu0 %v1029
        %3615 = vmatpush1.msra.mxu0 %v1028
        %3616 = vmatprep.subr.mxu0 %v1031
        %3617 = vmatpush1.msra.mxu0 %v1030
        %3618 = vmatprep.subr.mxu0 %v1033
        %3619 = vmatpush1.msra.mxu0 %v1032
        %3620 = vmatprep.subr.mxu0 %v1035
        %3621 = vmatpush1.msra.mxu0 %v1034
        %3622 = vmatprep.subr.mxu0 %v1037
        %3623 = vmatpush1.msra.mxu0 %v1036
        %3624 = vmatprep.subr.mxu0 %v1039
        %3625 = vmatpush1.msra.mxu0 %v1038
        %3626 = vmatprep.subr.mxu0 %v1041
        %3627 = vmatpush1.msra.mxu0 %v1040
        %3628 = vmatprep.subr.mxu0 %v1043
        %3629 = vmatpush1.msra.mxu0 %v1042
        %3630 = vmatprep.subr.mxu0 %v1045
        %3631 = vmatpush1.msra.mxu0 %v1044
        %3632 = vmatprep.subr.mxu0 %v1047
        %3633 = vmatpush1.msra.mxu0 %v1046
        %3634 = vmatprep.subr.mxu0 %v1049
        %3635 = vmatpush1.msra.mxu0 %v1048
        %3636 = vmatprep.subr.mxu0 %v1051
        %3637 = vmatpush1.msra.mxu0 %v1050
        %3638 = vmatprep.subr.mxu0 %v1053
        %3639 = vmatpush1.msra.mxu0 %v1052
        %3640 = vmatprep.subr.mxu0 %v1055
        %3641 = vmatpush1.msra.mxu0 %v1054
        %3642 = vmatprep.mubr.f32.mxu0 %v294
        %3643 = vmatmul.mubr.f32.gmra.mrb[0].mxu0 %v293
        %v3644 = vpop.f32.mrb[0].mxu0
        %v3645 = vadd.f32 %v3574, %v3644
        %v3646 = vpop.f32.mrb[0].mxu0
        %v3647 = vadd.f32 %v3576, %v3646
        %3648 = vdwg.mxu0
        %3649 = vmatprep.subr.mxu0 %v1057
        %3650 = vmatpush1.msra.mxu0 %v1056
        %3651 = vmatprep.subr.mxu0 %v1059
        %3652 = vmatpush1.msra.mxu0 %v1058
        %3653 = vmatprep.subr.mxu0 %v1061
        %3654 = vmatpush1.msra.mxu0 %v1060
        %3655 = vmatprep.subr.mxu0 %v1063
        %3656 = vmatpush1.msra.mxu0 %v1062
        %3657 = vmatprep.subr.mxu0 %v1065
        %3658 = vmatpush1.msra.mxu0 %v1064
        %3659 = vmatprep.subr.mxu0 %v1067
        %3660 = vmatpush1.msra.mxu0 %v1066
        %3661 = vmatprep.subr.mxu0 %v1069
        %3662 = vmatpush1.msra.mxu0 %v1068
        %3663 = vmatprep.subr.mxu0 %v1071
        %3664 = vmatpush1.msra.mxu0 %v1070
        %3665 = vmatprep.subr.mxu0 %v1073
        %3666 = vmatpush1.msra.mxu0 %v1072
        %3667 = vmatprep.subr.mxu0 %v1075
        %3668 = vmatpush1.msra.mxu0 %v1074
        %3669 = vmatprep.subr.mxu0 %v1077
        %3670 = vmatpush1.msra.mxu0 %v1076
        %3671 = vmatprep.subr.mxu0 %v1079
        %3672 = vmatpush1.msra.mxu0 %v1078
        %3673 = vmatprep.subr.mxu0 %v1081
        %3674 = vmatpush1.msra.mxu0 %v1080
        %3675 = vmatprep.subr.mxu0 %v1083
        %3676 = vmatpush1.msra.mxu0 %v1082
        %3677 = vmatprep.subr.mxu0 %v1085
        %3678 = vmatpush1.msra.mxu0 %v1084
        %3679 = vmatprep.subr.mxu0 %v1087
        %3680 = vmatpush1.msra.mxu0 %v1086
        %3681 = vmatprep.subr.mxu0 %v1089
        %3682 = vmatpush1.msra.mxu0 %v1088
        %3683 = vmatprep.subr.mxu0 %v1091
        %3684 = vmatpush1.msra.mxu0 %v1090
        %3685 = vmatprep.subr.mxu0 %v1093
        %3686 = vmatpush1.msra.mxu0 %v1092
        %3687 = vmatprep.subr.mxu0 %v1095
        %3688 = vmatpush1.msra.mxu0 %v1094
        %3689 = vmatprep.subr.mxu0 %v1097
        %3690 = vmatpush1.msra.mxu0 %v1096
        %3691 = vmatprep.subr.mxu0 %v1099
        %3692 = vmatpush1.msra.mxu0 %v1098
        %3693 = vmatprep.subr.mxu0 %v1101
        %3694 = vmatpush1.msra.mxu0 %v1100
        %3695 = vmatprep.subr.mxu0 %v1103
        %3696 = vmatpush1.msra.mxu0 %v1102
        %3697 = vmatprep.subr.mxu0 %v1105
        %3698 = vmatpush1.msra.mxu0 %v1104
        %3699 = vmatprep.subr.mxu0 %v1107
        %3700 = vmatpush1.msra.mxu0 %v1106
        %3701 = vmatprep.subr.mxu0 %v1109
        %3702 = vmatpush1.msra.mxu0 %v1108
        %3703 = vmatprep.subr.mxu0 %v1111
        %3704 = vmatpush1.msra.mxu0 %v1110
        %3705 = vmatprep.subr.mxu0 %v1113
        %3706 = vmatpush1.msra.mxu0 %v1112
        %3707 = vmatprep.subr.mxu0 %v1115
        %3708 = vmatpush1.msra.mxu0 %v1114
        %3709 = vmatprep.subr.mxu0 %v1117
        %3710 = vmatpush1.msra.mxu0 %v1116
        %3711 = vmatprep.subr.mxu0 %v1119
        %3712 = vmatpush1.msra.mxu0 %v1118
        %3713 = vmatprep.mubr.f32.mxu0 %v296
        %3714 = vmatmul.mubr.f32.gmra.mrb[0].mxu0 %v295
        %v3715 = vpop.f32.mrb[0].mxu0
        %v3716 = vadd.f32 %v3645, %v3715
        %v3717 = vpop.f32.mrb[0].mxu0
        %v3718 = vadd.f32 %v3647, %v3717
        %3719 = vdwg.mxu0
        %3720 = vmatprep.subr.mxu0 %v1121
        %3721 = vmatpush1.msra.mxu0 %v1120
        %3722 = vmatprep.subr.mxu0 %v1123
        %3723 = vmatpush1.msra.mxu0 %v1122
        %3724 = vmatprep.subr.mxu0 %v1125
        %3725 = vmatpush1.msra.mxu0 %v1124
        %3726 = vmatprep.subr.mxu0 %v1127
        %3727 = vmatpush1.msra.mxu0 %v1126
        %3728 = vmatprep.subr.mxu0 %v1129
        %3729 = vmatpush1.msra.mxu0 %v1128
        %3730 = vmatprep.subr.mxu0 %v1131
        %3731 = vmatpush1.msra.mxu0 %v1130
        %3732 = vmatprep.subr.mxu0 %v1133
        %3733 = vmatpush1.msra.mxu0 %v1132
        %3734 = vmatprep.subr.mxu0 %v1135
        %3735 = vmatpush1.msra.mxu0 %v1134
        %3736 = vmatprep.subr.mxu0 %v1137
        %3737 = vmatpush1.msra.mxu0 %v1136
        %3738 = vmatprep.subr.mxu0 %v1139
        %3739 = vmatpush1.msra.mxu0 %v1138
        %3740 = vmatprep.subr.mxu0 %v1141
        %3741 = vmatpush1.msra.mxu0 %v1140
        %3742 = vmatprep.subr.mxu0 %v1143
        %3743 = vmatpush1.msra.mxu0 %v1142
        %3744 = vmatprep.subr.mxu0 %v1145
        %3745 = vmatpush1.msra.mxu0 %v1144
        %3746 = vmatprep.subr.mxu0 %v1147
        %3747 = vmatpush1.msra.mxu0 %v1146
        %3748 = vmatprep.subr.mxu0 %v1149
        %3749 = vmatpush1.msra.mxu0 %v1148
        %3750 = vmatprep.subr.mxu0 %v1151
        %3751 = vmatpush1.msra.mxu0 %v1150
        %3752 = vmatprep.subr.mxu0 %v1153
        %3753 = vmatpush1.msra.mxu0 %v1152
        %3754 = vmatprep.subr.mxu0 %v1155
        %3755 = vmatpush1.msra.mxu0 %v1154
        %3756 = vmatprep.subr.mxu0 %v1157
        %3757 = vmatpush1.msra.mxu0 %v1156
        %3758 = vmatprep.subr.mxu0 %v1159
        %3759 = vmatpush1.msra.mxu0 %v1158
        %3760 = vmatprep.subr.mxu0 %v1161
        %3761 = vmatpush1.msra.mxu0 %v1160
        %3762 = vmatprep.subr.mxu0 %v1163
        %3763 = vmatpush1.msra.mxu0 %v1162
        %3764 = vmatprep.subr.mxu0 %v1165
        %3765 = vmatpush1.msra.mxu0 %v1164
        %3766 = vmatprep.subr.mxu0 %v1167
        %3767 = vmatpush1.msra.mxu0 %v1166
        %3768 = vmatprep.subr.mxu0 %v1169
        %3769 = vmatpush1.msra.mxu0 %v1168
        %3770 = vmatprep.subr.mxu0 %v1171
        %3771 = vmatpush1.msra.mxu0 %v1170
        %3772 = vmatprep.subr.mxu0 %v1173
        %3773 = vmatpush1.msra.mxu0 %v1172
        %3774 = vmatprep.subr.mxu0 %v1175
        %3775 = vmatpush1.msra.mxu0 %v1174
        %3776 = vmatprep.subr.mxu0 %v1177
        %3777 = vmatpush1.msra.mxu0 %v1176
        %3778 = vmatprep.subr.mxu0 %v1179
        %3779 = vmatpush1.msra.mxu0 %v1178
        %3780 = vmatprep.subr.mxu0 %v1181
        %3781 = vmatpush1.msra.mxu0 %v1180
        %3782 = vmatprep.subr.mxu0 %v1183
        %3783 = vmatpush1.msra.mxu0 %v1182
        %3784 = vmatprep.mubr.f32.mxu0 %v298
        %3785 = vmatmul.mubr.f32.gmra.mrb[0].mxu0 %v297
        %v3786 = vpop.f32.mrb[0].mxu0
        %v3787 = vadd.f32 %v3716, %v3786
        %v3788 = vpop.f32.mrb[0].mxu0
        %v3789 = vadd.f32 %v3718, %v3788
        %3790 = vdwg.mxu0
        %3791 = vmatprep.subr.mxu0 %v1185
        %3792 = vmatpush1.msra.mxu0 %v1184
        %3793 = vmatprep.subr.mxu0 %v1187
        %3794 = vmatpush1.msra.mxu0 %v1186
        %3795 = vmatprep.subr.mxu0 %v1189
        %3796 = vmatpush1.msra.mxu0 %v1188
        %3797 = vmatprep.subr.mxu0 %v1191
        %3798 = vmatpush1.msra.mxu0 %v1190
        %3799 = vmatprep.subr.mxu0 %v1193
        %3800 = vmatpush1.msra.mxu0 %v1192
        %3801 = vmatprep.subr.mxu0 %v1195
        %3802 = vmatpush1.msra.mxu0 %v1194
        %3803 = vmatprep.subr.mxu0 %v1197
        %3804 = vmatpush1.msra.mxu0 %v1196
        %3805 = vmatprep.subr.mxu0 %v1199
        %3806 = vmatpush1.msra.mxu0 %v1198
        %3807 = vmatprep.subr.mxu0 %v1201
        %3808 = vmatpush1.msra.mxu0 %v1200
        %3809 = vmatprep.subr.mxu0 %v1203
        %3810 = vmatpush1.msra.mxu0 %v1202
        %3811 = vmatprep.subr.mxu0 %v1205
        %3812 = vmatpush1.msra.mxu0 %v1204
        %3813 = vmatprep.subr.mxu0 %v1207
        %3814 = vmatpush1.msra.mxu0 %v1206
        %3815 = vmatprep.subr.mxu0 %v1209
        %3816 = vmatpush1.msra.mxu0 %v1208
        %3817 = vmatprep.subr.mxu0 %v1211
        %3818 = vmatpush1.msra.mxu0 %v1210
        %3819 = vmatprep.subr.mxu0 %v1213
        %3820 = vmatpush1.msra.mxu0 %v1212
        %3821 = vmatprep.subr.mxu0 %v1215
        %3822 = vmatpush1.msra.mxu0 %v1214
        %3823 = vmatprep.subr.mxu0 %v1217
        %3824 = vmatpush1.msra.mxu0 %v1216
        %3825 = vmatprep.subr.mxu0 %v1219
        %3826 = vmatpush1.msra.mxu0 %v1218
        %3827 = vmatprep.subr.mxu0 %v1221
        %3828 = vmatpush1.msra.mxu0 %v1220
        %3829 = vmatprep.subr.mxu0 %v1223
        %3830 = vmatpush1.msra.mxu0 %v1222
        %3831 = vmatprep.subr.mxu0 %v1225
        %3832 = vmatpush1.msra.mxu0 %v1224
        %3833 = vmatprep.subr.mxu0 %v1227
        %3834 = vmatpush1.msra.mxu0 %v1226
        %3835 = vmatprep.subr.mxu0 %v1229
        %3836 = vmatpush1.msra.mxu0 %v1228
        %3837 = vmatprep.subr.mxu0 %v1231
        %3838 = vmatpush1.msra.mxu0 %v1230
        %3839 = vmatprep.subr.mxu0 %v1233
        %3840 = vmatpush1.msra.mxu0 %v1232
        %3841 = vmatprep.subr.mxu0 %v1235
        %3842 = vmatpush1.msra.mxu0 %v1234
        %3843 = vmatprep.subr.mxu0 %v1237
        %3844 = vmatpush1.msra.mxu0 %v1236
        %3845 = vmatprep.subr.mxu0 %v1239
        %3846 = vmatpush1.msra.mxu0 %v1238
        %3847 = vmatprep.subr.mxu0 %v1241
        %3848 = vmatpush1.msra.mxu0 %v1240
        %3849 = vmatprep.subr.mxu0 %v1243
        %3850 = vmatpush1.msra.mxu0 %v1242
        %3851 = vmatprep.subr.mxu0 %v1245
        %3852 = vmatpush1.msra.mxu0 %v1244
        %3853 = vmatprep.subr.mxu0 %v1247
        %3854 = vmatpush1.msra.mxu0 %v1246
        %3855 = vmatprep.mubr.f32.mxu0 %v300
        %3856 = vmatmul.mubr.f32.gmra.mrb[0].mxu0 %v299
        %v3857 = vpop.f32.mrb[0].mxu0
        %v3858 = vadd.f32 %v3787, %v3857
        %v3859 = vpop.f32.mrb[0].mxu0
        %v3860 = vadd.f32 %v3789, %v3859
        %3861 = vdwg.mxu0
        %3862 = vmatprep.subr.mxu0 %v1249
        %3863 = vmatpush1.msra.mxu0 %v1248
        %3864 = vmatprep.subr.mxu0 %v1251
        %3865 = vmatpush1.msra.mxu0 %v1250
        %3866 = vmatprep.subr.mxu0 %v1253
        %3867 = vmatpush1.msra.mxu0 %v1252
        %3868 = vmatprep.subr.mxu0 %v1255
        %3869 = vmatpush1.msra.mxu0 %v1254
        %3870 = vmatprep.subr.mxu0 %v1257
        %3871 = vmatpush1.msra.mxu0 %v1256
        %3872 = vmatprep.subr.mxu0 %v1259
        %3873 = vmatpush1.msra.mxu0 %v1258
        %3874 = vmatprep.subr.mxu0 %v1261
        %3875 = vmatpush1.msra.mxu0 %v1260
        %3876 = vmatprep.subr.mxu0 %v1263
        %3877 = vmatpush1.msra.mxu0 %v1262
        %3878 = vmatprep.subr.mxu0 %v1265
        %3879 = vmatpush1.msra.mxu0 %v1264
        %3880 = vmatprep.subr.mxu0 %v1267
        %3881 = vmatpush1.msra.mxu0 %v1266
        %3882 = vmatprep.subr.mxu0 %v1269
        %3883 = vmatpush1.msra.mxu0 %v1268
        %3884 = vmatprep.subr.mxu0 %v1271
        %3885 = vmatpush1.msra.mxu0 %v1270
        %3886 = vmatprep.subr.mxu0 %v1273
        %3887 = vmatpush1.msra.mxu0 %v1272
        %3888 = vmatprep.subr.mxu0 %v1275
        %3889 = vmatpush1.msra.mxu0 %v1274
        %3890 = vmatprep.subr.mxu0 %v1277
        %3891 = vmatpush1.msra.mxu0 %v1276
        %3892 = vmatprep.subr.mxu0 %v1279
        %3893 = vmatpush1.msra.mxu0 %v1278
        %3894 = vmatprep.subr.mxu0 %v1281
        %3895 = vmatpush1.msra.mxu0 %v1280
        %3896 = vmatprep.subr.mxu0 %v1283
        %3897 = vmatpush1.msra.mxu0 %v1282
        %3898 = vmatprep.subr.mxu0 %v1285
        %3899 = vmatpush1.msra.mxu0 %v1284
        %3900 = vmatprep.subr.mxu0 %v1287
        %3901 = vmatpush1.msra.mxu0 %v1286
        %3902 = vmatprep.subr.mxu0 %v1289
        %3903 = vmatpush1.msra.mxu0 %v1288
        %3904 = vmatprep.subr.mxu0 %v1291
        %3905 = vmatpush1.msra.mxu0 %v1290
        %3906 = vmatprep.subr.mxu0 %v1293
        %3907 = vmatpush1.msra.mxu0 %v1292
        %3908 = vmatprep.subr.mxu0 %v1295
        %3909 = vmatpush1.msra.mxu0 %v1294
        %3910 = vmatprep.subr.mxu0 %v1297
        %3911 = vmatpush1.msra.mxu0 %v1296
        %3912 = vmatprep.subr.mxu0 %v1299
        %3913 = vmatpush1.msra.mxu0 %v1298
        %3914 = vmatprep.subr.mxu0 %v1301
        %3915 = vmatpush1.msra.mxu0 %v1300
        %3916 = vmatprep.subr.mxu0 %v1303
        %3917 = vmatpush1.msra.mxu0 %v1302
        %3918 = vmatprep.subr.mxu0 %v1305
        %3919 = vmatpush1.msra.mxu0 %v1304
        %3920 = vmatprep.subr.mxu0 %v1307
        %3921 = vmatpush1.msra.mxu0 %v1306
        %3922 = vmatprep.subr.mxu0 %v1309
        %3923 = vmatpush1.msra.mxu0 %v1308
        %3924 = vmatprep.subr.mxu0 %v1311
        %3925 = vmatpush1.msra.mxu0 %v1310
        %3926 = vmatprep.mubr.f32.mxu0 %v302
        %3927 = vmatmul.mubr.f32.gmra.mrb[0].mxu0 %v301
        %v3928 = vpop.f32.mrb[0].mxu0
        %v3929 = vadd.f32 %v3858, %v3928
        %v3930 = vpop.f32.mrb[0].mxu0
        %v3931 = vadd.f32 %v3860, %v3930
        %3932 = vdwg.mxu0
        %3933 = vmatprep.subr.mxu0 %v1313
        %3934 = vmatpush1.msra.mxu0 %v1312
        %3935 = vmatprep.subr.mxu0 %v1315
        %3936 = vmatpush1.msra.mxu0 %v1314
        %3937 = vmatprep.subr.mxu0 %v1317
        %3938 = vmatpush1.msra.mxu0 %v1316
        %3939 = vmatprep.subr.mxu0 %v1319
        %3940 = vmatpush1.msra.mxu0 %v1318
        %3941 = vmatprep.subr.mxu0 %v1321
        %3942 = vmatpush1.msra.mxu0 %v1320
        %3943 = vmatprep.subr.mxu0 %v1323
        %3944 = vmatpush1.msra.mxu0 %v1322
        %3945 = vmatprep.subr.mxu0 %v1325
        %3946 = vmatpush1.msra.mxu0 %v1324
        %3947 = vmatprep.subr.mxu0 %v1327
        %3948 = vmatpush1.msra.mxu0 %v1326
        %3949 = vmatprep.subr.mxu0 %v1329
        %3950 = vmatpush1.msra.mxu0 %v1328
        %3951 = vmatprep.subr.mxu0 %v1331
        %3952 = vmatpush1.msra.mxu0 %v1330
        %3953 = vmatprep.subr.mxu0 %v1333
        %3954 = vmatpush1.msra.mxu0 %v1332
        %3955 = vmatprep.subr.mxu0 %v1335
        %3956 = vmatpush1.msra.mxu0 %v1334
        %3957 = vmatprep.subr.mxu0 %v1337
        %3958 = vmatpush1.msra.mxu0 %v1336
        %3959 = vmatprep.subr.mxu0 %v1339
        %3960 = vmatpush1.msra.mxu0 %v1338
        %3961 = vmatprep.subr.mxu0 %v1341
        %3962 = vmatpush1.msra.mxu0 %v1340
        %3963 = vmatprep.subr.mxu0 %v1343
        %3964 = vmatpush1.msra.mxu0 %v1342
        %3965 = vmatprep.subr.mxu0 %v1345
        %3966 = vmatpush1.msra.mxu0 %v1344
        %3967 = vmatprep.subr.mxu0 %v1347
        %3968 = vmatpush1.msra.mxu0 %v1346
        %3969 = vmatprep.subr.mxu0 %v1349
        %3970 = vmatpush1.msra.mxu0 %v1348
        %3971 = vmatprep.subr.mxu0 %v1351
        %3972 = vmatpush1.msra.mxu0 %v1350
        %3973 = vmatprep.subr.mxu0 %v1353
        %3974 = vmatpush1.msra.mxu0 %v1352
        %3975 = vmatprep.subr.mxu0 %v1355
        %3976 = vmatpush1.msra.mxu0 %v1354
        %3977 = vmatprep.subr.mxu0 %v1357
        %3978 = vmatpush1.msra.mxu0 %v1356
        %3979 = vmatprep.subr.mxu0 %v1359
        %3980 = vmatpush1.msra.mxu0 %v1358
        %3981 = vmatprep.subr.mxu0 %v1361
        %3982 = vmatpush1.msra.mxu0 %v1360
        %3983 = vmatprep.subr.mxu0 %v1363
        %3984 = vmatpush1.msra.mxu0 %v1362
        %3985 = vmatprep.subr.mxu0 %v1365
        %3986 = vmatpush1.msra.mxu0 %v1364
        %3987 = vmatprep.subr.mxu0 %v1367
        %3988 = vmatpush1.msra.mxu0 %v1366
        %3989 = vmatprep.subr.mxu0 %v1369
        %3990 = vmatpush1.msra.mxu0 %v1368
        %3991 = vmatprep.subr.mxu0 %v1371
        %3992 = vmatpush1.msra.mxu0 %v1370
        %3993 = vmatprep.subr.mxu0 %v1373
        %3994 = vmatpush1.msra.mxu0 %v1372
        %3995 = vmatprep.subr.mxu0 %v1375
        %3996 = vmatpush1.msra.mxu0 %v1374
        %3997 = vmatprep.mubr.f32.mxu0 %v304
        %3998 = vmatmul.mubr.f32.gmra.mrb[0].mxu0 %v303
        %v3999 = vpop.f32.mrb[0].mxu0
        %v4000 = vadd.f32 %v3929, %v3999
        %v4001 = vpop.f32.mrb[0].mxu0
        %v4002 = vadd.f32 %v3931, %v4001
        %4003 = vdwg.mxu0
        %4004 = vmatprep.subr.mxu0 %v1377
        %4005 = vmatpush1.msra.mxu0 %v1376
        %4006 = vmatprep.subr.mxu0 %v1379
        %4007 = vmatpush1.msra.mxu0 %v1378
        %4008 = vmatprep.subr.mxu0 %v1381
        %4009 = vmatpush1.msra.mxu0 %v1380
        %4010 = vmatprep.subr.mxu0 %v1383
        %4011 = vmatpush1.msra.mxu0 %v1382
        %4012 = vmatprep.subr.mxu0 %v1385
        %4013 = vmatpush1.msra.mxu0 %v1384
        %4014 = vmatprep.subr.mxu0 %v1387
        %4015 = vmatpush1.msra.mxu0 %v1386
        %4016 = vmatprep.subr.mxu0 %v1389
        %4017 = vmatpush1.msra.mxu0 %v1388
        %4018 = vmatprep.subr.mxu0 %v1391
        %4019 = vmatpush1.msra.mxu0 %v1390
        %4020 = vmatprep.subr.mxu0 %v1393
        %4021 = vmatpush1.msra.mxu0 %v1392
        %4022 = vmatprep.subr.mxu0 %v1395
        %4023 = vmatpush1.msra.mxu0 %v1394
        %4024 = vmatprep.subr.mxu0 %v1397
        %4025 = vmatpush1.msra.mxu0 %v1396
        %4026 = vmatprep.subr.mxu0 %v1399
        %4027 = vmatpush1.msra.mxu0 %v1398
        %4028 = vmatprep.subr.mxu0 %v1401
        %4029 = vmatpush1.msra.mxu0 %v1400
        %4030 = vmatprep.subr.mxu0 %v1403
        %4031 = vmatpush1.msra.mxu0 %v1402
        %4032 = vmatprep.subr.mxu0 %v1405
        %4033 = vmatpush1.msra.mxu0 %v1404
        %4034 = vmatprep.subr.mxu0 %v1407
        %4035 = vmatpush1.msra.mxu0 %v1406
        %4036 = vmatprep.subr.mxu0 %v1409
        %4037 = vmatpush1.msra.mxu0 %v1408
        %4038 = vmatprep.subr.mxu0 %v1411
        %4039 = vmatpush1.msra.mxu0 %v1410
        %4040 = vmatprep.subr.mxu0 %v1413
        %4041 = vmatpush1.msra.mxu0 %v1412
        %4042 = vmatprep.subr.mxu0 %v1415
        %4043 = vmatpush1.msra.mxu0 %v1414
        %4044 = vmatprep.subr.mxu0 %v1417
        %4045 = vmatpush1.msra.mxu0 %v1416
        %4046 = vmatprep.subr.mxu0 %v1419
        %4047 = vmatpush1.msra.mxu0 %v1418
        %4048 = vmatprep.subr.mxu0 %v1421
        %4049 = vmatpush1.msra.mxu0 %v1420
        %4050 = vmatprep.subr.mxu0 %v1423
        %4051 = vmatpush1.msra.mxu0 %v1422
        %4052 = vmatprep.subr.mxu0 %v1425
        %4053 = vmatpush1.msra.mxu0 %v1424
        %4054 = vmatprep.subr.mxu0 %v1427
        %4055 = vmatpush1.msra.mxu0 %v1426
        %4056 = vmatprep.subr.mxu0 %v1429
        %4057 = vmatpush1.msra.mxu0 %v1428
        %4058 = vmatprep.subr.mxu0 %v1431
        %4059 = vmatpush1.msra.mxu0 %v1430
        %4060 = vmatprep.subr.mxu0 %v1433
        %4061 = vmatpush1.msra.mxu0 %v1432
        %4062 = vmatprep.subr.mxu0 %v1435
        %4063 = vmatpush1.msra.mxu0 %v1434
        %4064 = vmatprep.subr.mxu0 %v1437
        %4065 = vmatpush1.msra.mxu0 %v1436
        %4066 = vmatprep.subr.mxu0 %v1439
        %4067 = vmatpush1.msra.mxu0 %v1438
        %4068 = vmatprep.mubr.f32.mxu0 %v306
        %4069 = vmatmul.mubr.f32.gmra.mrb[0].mxu0 %v305
        %v4070 = vpop.f32.mrb[0].mxu0
        %v4071 = vadd.f32 %v4000, %v4070
        %v4072 = vpop.f32.mrb[0].mxu0
        %v4073 = vadd.f32 %v4002, %v4072
        %4074 = vdwg.mxu0
        %4075 = vmatprep.subr.mxu0 %v1441
        %4076 = vmatpush1.msra.mxu0 %v1440
        %4077 = vmatprep.subr.mxu0 %v1443
        %4078 = vmatpush1.msra.mxu0 %v1442
        %4079 = vmatprep.subr.mxu0 %v1445
        %4080 = vmatpush1.msra.mxu0 %v1444
        %4081 = vmatprep.subr.mxu0 %v1447
        %4082 = vmatpush1.msra.mxu0 %v1446
        %4083 = vmatprep.subr.mxu0 %v1449
        %4084 = vmatpush1.msra.mxu0 %v1448
        %4085 = vmatprep.subr.mxu0 %v1451
        %4086 = vmatpush1.msra.mxu0 %v1450
        %4087 = vmatprep.subr.mxu0 %v1453
        %4088 = vmatpush1.msra.mxu0 %v1452
        %4089 = vmatprep.subr.mxu0 %v1455
        %4090 = vmatpush1.msra.mxu0 %v1454
        %4091 = vmatprep.subr.mxu0 %v1457
        %4092 = vmatpush1.msra.mxu0 %v1456
        %4093 = vmatprep.subr.mxu0 %v1459
        %4094 = vmatpush1.msra.mxu0 %v1458
        %4095 = vmatprep.subr.mxu0 %v1461
        %4096 = vmatpush1.msra.mxu0 %v1460
        %4097 = vmatprep.subr.mxu0 %v1463
        %4098 = vmatpush1.msra.mxu0 %v1462
        %4099 = vmatprep.subr.mxu0 %v1465
        %4100 = vmatpush1.msra.mxu0 %v1464
        %4101 = vmatprep.subr.mxu0 %v1467
        %4102 = vmatpush1.msra.mxu0 %v1466
        %4103 = vmatprep.subr.mxu0 %v1469
        %4104 = vmatpush1.msra.mxu0 %v1468
        %4105 = vmatprep.subr.mxu0 %v1471
        %4106 = vmatpush1.msra.mxu0 %v1470
        %4107 = vmatprep.subr.mxu0 %v1473
        %4108 = vmatpush1.msra.mxu0 %v1472
        %4109 = vmatprep.subr.mxu0 %v1475
        %4110 = vmatpush1.msra.mxu0 %v1474
        %4111 = vmatprep.subr.mxu0 %v1477
        %4112 = vmatpush1.msra.mxu0 %v1476
        %4113 = vmatprep.subr.mxu0 %v1479
        %4114 = vmatpush1.msra.mxu0 %v1478
        %4115 = vmatprep.subr.mxu0 %v1481
        %4116 = vmatpush1.msra.mxu0 %v1480
        %4117 = vmatprep.subr.mxu0 %v1483
        %4118 = vmatpush1.msra.mxu0 %v1482
        %4119 = vmatprep.subr.mxu0 %v1485
        %4120 = vmatpush1.msra.mxu0 %v1484
        %4121 = vmatprep.subr.mxu0 %v1487
        %4122 = vmatpush1.msra.mxu0 %v1486
        %4123 = vmatprep.subr.mxu0 %v1489
        %4124 = vmatpush1.msra.mxu0 %v1488
        %4125 = vmatprep.subr.mxu0 %v1491
        %4126 = vmatpush1.msra.mxu0 %v1490
        %4127 = vmatprep.subr.mxu0 %v1493
        %4128 = vmatpush1.msra.mxu0 %v1492
        %4129 = vmatprep.subr.mxu0 %v1495
        %4130 = vmatpush1.msra.mxu0 %v1494
        %4131 = vmatprep.subr.mxu0 %v1497
        %4132 = vmatpush1.msra.mxu0 %v1496
        %4133 = vmatprep.subr.mxu0 %v1499
        %4134 = vmatpush1.msra.mxu0 %v1498
        %4135 = vmatprep.subr.mxu0 %v1501
        %4136 = vmatpush1.msra.mxu0 %v1500
        %4137 = vmatprep.subr.mxu0 %v1503
        %4138 = vmatpush1.msra.mxu0 %v1502
        %4139 = vmatprep.mubr.f32.mxu0 %v308
        %4140 = vmatmul.mubr.f32.gmra.mrb[0].mxu0 %v307
        %v4141 = vpop.f32.mrb[0].mxu0
        %v4142 = vadd.f32 %v4071, %v4141
        %v4143 = vpop.f32.mrb[0].mxu0
        %v4144 = vadd.f32 %v4073, %v4143
        %4145 = vdwg.mxu0
        %4146 = vmatprep.subr.mxu0 %v1505
        %4147 = vmatpush1.msra.mxu0 %v1504
        %4148 = vmatprep.subr.mxu0 %v1507
        %4149 = vmatpush1.msra.mxu0 %v1506
        %4150 = vmatprep.subr.mxu0 %v1509
        %4151 = vmatpush1.msra.mxu0 %v1508
        %4152 = vmatprep.subr.mxu0 %v1511
        %4153 = vmatpush1.msra.mxu0 %v1510
        %4154 = vmatprep.subr.mxu0 %v1513
        %4155 = vmatpush1.msra.mxu0 %v1512
        %4156 = vmatprep.subr.mxu0 %v1515
        %4157 = vmatpush1.msra.mxu0 %v1514
        %4158 = vmatprep.subr.mxu0 %v1517
        %4159 = vmatpush1.msra.mxu0 %v1516
        %4160 = vmatprep.subr.mxu0 %v1519
        %4161 = vmatpush1.msra.mxu0 %v1518
        %4162 = vmatprep.subr.mxu0 %v1521
        %4163 = vmatpush1.msra.mxu0 %v1520
        %4164 = vmatprep.subr.mxu0 %v1523
        %4165 = vmatpush1.msra.mxu0 %v1522
        %4166 = vmatprep.subr.mxu0 %v1525
        %4167 = vmatpush1.msra.mxu0 %v1524
        %4168 = vmatprep.subr.mxu0 %v1527
        %4169 = vmatpush1.msra.mxu0 %v1526
        %4170 = vmatprep.subr.mxu0 %v1529
        %4171 = vmatpush1.msra.mxu0 %v1528
        %4172 = vmatprep.subr.mxu0 %v1531
        %4173 = vmatpush1.msra.mxu0 %v1530
        %4174 = vmatprep.subr.mxu0 %v1533
        %4175 = vmatpush1.msra.mxu0 %v1532
        %4176 = vmatprep.subr.mxu0 %v1535
        %4177 = vmatpush1.msra.mxu0 %v1534
        %4178 = vmatprep.subr.mxu0 %v1537
        %4179 = vmatpush1.msra.mxu0 %v1536
        %4180 = vmatprep.subr.mxu0 %v1539
        %4181 = vmatpush1.msra.mxu0 %v1538
        %4182 = vmatprep.subr.mxu0 %v1541
        %4183 = vmatpush1.msra.mxu0 %v1540
        %4184 = vmatprep.subr.mxu0 %v1543
        %4185 = vmatpush1.msra.mxu0 %v1542
        %4186 = vmatprep.subr.mxu0 %v1545
        %4187 = vmatpush1.msra.mxu0 %v1544
        %4188 = vmatprep.subr.mxu0 %v1547
        %4189 = vmatpush1.msra.mxu0 %v1546
        %4190 = vmatprep.subr.mxu0 %v1549
        %4191 = vmatpush1.msra.mxu0 %v1548
        %4192 = vmatprep.subr.mxu0 %v1551
        %4193 = vmatpush1.msra.mxu0 %v1550
        %4194 = vmatprep.subr.mxu0 %v1553
        %4195 = vmatpush1.msra.mxu0 %v1552
        %4196 = vmatprep.subr.mxu0 %v1555
        %4197 = vmatpush1.msra.mxu0 %v1554
        %4198 = vmatprep.subr.mxu0 %v1557
        %4199 = vmatpush1.msra.mxu0 %v1556
        %4200 = vmatprep.subr.mxu0 %v1559
        %4201 = vmatpush1.msra.mxu0 %v1558
        %4202 = vmatprep.subr.mxu0 %v1561
        %4203 = vmatpush1.msra.mxu0 %v1560
        %4204 = vmatprep.subr.mxu0 %v1563
        %4205 = vmatpush1.msra.mxu0 %v1562
        %4206 = vmatprep.subr.mxu0 %v1565
        %4207 = vmatpush1.msra.mxu0 %v1564
        %4208 = vmatprep.subr.mxu0 %v1567
        %4209 = vmatpush1.msra.mxu0 %v1566
        %4210 = vmatprep.mubr.f32.mxu0 %v310
        %4211 = vmatmul.mubr.f32.gmra.mrb[0].mxu0 %v309
        %v4212 = vpop.f32.mrb[0].mxu0
        %v4213 = vadd.f32 %v4142, %v4212
        %v4214 = vpop.f32.mrb[0].mxu0
        %v4215 = vadd.f32 %v4144, %v4214
        %4216 = vdwg.mxu0
        %4217 = vmatprep.subr.mxu0 %v1569
        %4218 = vmatpush1.msra.mxu0 %v1568
        %4219 = vmatprep.subr.mxu0 %v1571
        %4220 = vmatpush1.msra.mxu0 %v1570
        %4221 = vmatprep.subr.mxu0 %v1573
        %4222 = vmatpush1.msra.mxu0 %v1572
        %4223 = vmatprep.subr.mxu0 %v1575
        %4224 = vmatpush1.msra.mxu0 %v1574
        %4225 = vmatprep.subr.mxu0 %v1577
        %4226 = vmatpush1.msra.mxu0 %v1576
        %4227 = vmatprep.subr.mxu0 %v1579
        %4228 = vmatpush1.msra.mxu0 %v1578
        %4229 = vmatprep.subr.mxu0 %v1581
        %4230 = vmatpush1.msra.mxu0 %v1580
        %4231 = vmatprep.subr.mxu0 %v1583
        %4232 = vmatpush1.msra.mxu0 %v1582
        %4233 = vmatprep.subr.mxu0 %v1585
        %4234 = vmatpush1.msra.mxu0 %v1584
        %4235 = vmatprep.subr.mxu0 %v1587
        %4236 = vmatpush1.msra.mxu0 %v1586
        %4237 = vmatprep.subr.mxu0 %v1589
        %4238 = vmatpush1.msra.mxu0 %v1588
        %4239 = vmatprep.subr.mxu0 %v1591
        %4240 = vmatpush1.msra.mxu0 %v1590
        %4241 = vmatprep.subr.mxu0 %v1593
        %4242 = vmatpush1.msra.mxu0 %v1592
        %4243 = vmatprep.subr.mxu0 %v1595
        %4244 = vmatpush1.msra.mxu0 %v1594
        %4245 = vmatprep.subr.mxu0 %v1597
        %4246 = vmatpush1.msra.mxu0 %v1596
        %4247 = vmatprep.subr.mxu0 %v1599
        %4248 = vmatpush1.msra.mxu0 %v1598
        %4249 = vmatprep.subr.mxu0 %v1601
        %4250 = vmatpush1.msra.mxu0 %v1600
        %4251 = vmatprep.subr.mxu0 %v1603
        %4252 = vmatpush1.msra.mxu0 %v1602
        %4253 = vmatprep.subr.mxu0 %v1605
        %4254 = vmatpush1.msra.mxu0 %v1604
        %4255 = vmatprep.subr.mxu0 %v1607
        %4256 = vmatpush1.msra.mxu0 %v1606
        %4257 = vmatprep.subr.mxu0 %v1609
        %4258 = vmatpush1.msra.mxu0 %v1608
        %4259 = vmatprep.subr.mxu0 %v1611
        %4260 = vmatpush1.msra.mxu0 %v1610
        %4261 = vmatprep.subr.mxu0 %v1613
        %4262 = vmatpush1.msra.mxu0 %v1612
        %4263 = vmatprep.subr.mxu0 %v1615
        %4264 = vmatpush1.msra.mxu0 %v1614
        %4265 = vmatprep.subr.mxu0 %v1617
        %4266 = vmatpush1.msra.mxu0 %v1616
        %4267 = vmatprep.subr.mxu0 %v1619
        %4268 = vmatpush1.msra.mxu0 %v1618
        %4269 = vmatprep.subr.mxu0 %v1621
        %4270 = vmatpush1.msra.mxu0 %v1620
        %4271 = vmatprep.subr.mxu0 %v1623
        %4272 = vmatpush1.msra.mxu0 %v1622
        %4273 = vmatprep.subr.mxu0 %v1625
        %4274 = vmatpush1.msra.mxu0 %v1624
        %4275 = vmatprep.subr.mxu0 %v1627
        %4276 = vmatpush1.msra.mxu0 %v1626
        %4277 = vmatprep.subr.mxu0 %v1629
        %4278 = vmatpush1.msra.mxu0 %v1628
        %4279 = vmatprep.subr.mxu0 %v1631
        %4280 = vmatpush1.msra.mxu0 %v1630
        %4281 = vmatprep.mubr.f32.mxu0 %v312
        %4282 = vmatmul.mubr.f32.gmra.mrb[0].mxu0 %v311
        %v4283 = vpop.f32.mrb[0].mxu0
        %v4284 = vadd.f32 %v4213, %v4283
        %v4285 = vpop.f32.mrb[0].mxu0
        %v4286 = vadd.f32 %v4215, %v4285
        %4287 = vdwg.mxu0
        %4288 = vmatprep.subr.mxu0 %v1633
        %4289 = vmatpush1.msra.mxu0 %v1632
        %4290 = vmatprep.subr.mxu0 %v1635
        %4291 = vmatpush1.msra.mxu0 %v1634
        %4292 = vmatprep.subr.mxu0 %v1637
        %4293 = vmatpush1.msra.mxu0 %v1636
        %4294 = vmatprep.subr.mxu0 %v1639
        %4295 = vmatpush1.msra.mxu0 %v1638
        %4296 = vmatprep.subr.mxu0 %v1641
        %4297 = vmatpush1.msra.mxu0 %v1640
        %4298 = vmatprep.subr.mxu0 %v1643
        %4299 = vmatpush1.msra.mxu0 %v1642
        %4300 = vmatprep.subr.mxu0 %v1645
        %4301 = vmatpush1.msra.mxu0 %v1644
        %4302 = vmatprep.subr.mxu0 %v1647
        %4303 = vmatpush1.msra.mxu0 %v1646
        %4304 = vmatprep.subr.mxu0 %v1649
        %4305 = vmatpush1.msra.mxu0 %v1648
        %4306 = vmatprep.subr.mxu0 %v1651
        %4307 = vmatpush1.msra.mxu0 %v1650
        %4308 = vmatprep.subr.mxu0 %v1653
        %4309 = vmatpush1.msra.mxu0 %v1652
        %4310 = vmatprep.subr.mxu0 %v1655
        %4311 = vmatpush1.msra.mxu0 %v1654
        %4312 = vmatprep.subr.mxu0 %v1657
        %4313 = vmatpush1.msra.mxu0 %v1656
        %4314 = vmatprep.subr.mxu0 %v1659
        %4315 = vmatpush1.msra.mxu0 %v1658
        %4316 = vmatprep.subr.mxu0 %v1661
        %4317 = vmatpush1.msra.mxu0 %v1660
        %4318 = vmatprep.subr.mxu0 %v1663
        %4319 = vmatpush1.msra.mxu0 %v1662
        %4320 = vmatprep.subr.mxu0 %v1665
        %4321 = vmatpush1.msra.mxu0 %v1664
        %4322 = vmatprep.subr.mxu0 %v1667
        %4323 = vmatpush1.msra.mxu0 %v1666
        %4324 = vmatprep.subr.mxu0 %v1669
        %4325 = vmatpush1.msra.mxu0 %v1668
        %4326 = vmatprep.subr.mxu0 %v1671
        %4327 = vmatpush1.msra.mxu0 %v1670
        %4328 = vmatprep.subr.mxu0 %v1673
        %4329 = vmatpush1.msra.mxu0 %v1672
        %4330 = vmatprep.subr.mxu0 %v1675
        %4331 = vmatpush1.msra.mxu0 %v1674
        %4332 = vmatprep.subr.mxu0 %v1677
        %4333 = vmatpush1.msra.mxu0 %v1676
        %4334 = vmatprep.subr.mxu0 %v1679
        %4335 = vmatpush1.msra.mxu0 %v1678
        %4336 = vmatprep.subr.mxu0 %v1681
        %4337 = vmatpush1.msra.mxu0 %v1680
        %4338 = vmatprep.subr.mxu0 %v1683
        %4339 = vmatpush1.msra.mxu0 %v1682
        %4340 = vmatprep.subr.mxu0 %v1685
        %4341 = vmatpush1.msra.mxu0 %v1684
        %4342 = vmatprep.subr.mxu0 %v1687
        %4343 = vmatpush1.msra.mxu0 %v1686
        %4344 = vmatprep.subr.mxu0 %v1689
        %4345 = vmatpush1.msra.mxu0 %v1688
        %4346 = vmatprep.subr.mxu0 %v1691
        %4347 = vmatpush1.msra.mxu0 %v1690
        %4348 = vmatprep.subr.mxu0 %v1693
        %4349 = vmatpush1.msra.mxu0 %v1692
        %4350 = vmatprep.subr.mxu0 %v1695
        %4351 = vmatpush1.msra.mxu0 %v1694
        %4352 = vmatprep.mubr.f32.mxu0 %v314
        %4353 = vmatmul.mubr.f32.gmra.mrb[0].mxu0 %v313
        %v4354 = vpop.f32.mrb[0].mxu0
        %v4355 = vadd.f32 %v4284, %v4354
        %v4356 = vpop.f32.mrb[0].mxu0
        %v4357 = vadd.f32 %v4286, %v4356
        %4358 = vdwg.mxu0
        %4359 = vmatprep.subr.mxu0 %v1697
        %4360 = vmatpush1.msra.mxu0 %v1696
        %4361 = vmatprep.subr.mxu0 %v1699
        %4362 = vmatpush1.msra.mxu0 %v1698
        %4363 = vmatprep.subr.mxu0 %v1701
        %4364 = vmatpush1.msra.mxu0 %v1700
        %4365 = vmatprep.subr.mxu0 %v1703
        %4366 = vmatpush1.msra.mxu0 %v1702
        %4367 = vmatprep.subr.mxu0 %v1705
        %4368 = vmatpush1.msra.mxu0 %v1704
        %4369 = vmatprep.subr.mxu0 %v1707
        %4370 = vmatpush1.msra.mxu0 %v1706
        %4371 = vmatprep.subr.mxu0 %v1709
        %4372 = vmatpush1.msra.mxu0 %v1708
        %4373 = vmatprep.subr.mxu0 %v1711
        %4374 = vmatpush1.msra.mxu0 %v1710
        %4375 = vmatprep.subr.mxu0 %v1713
        %4376 = vmatpush1.msra.mxu0 %v1712
        %4377 = vmatprep.subr.mxu0 %v1715
        %4378 = vmatpush1.msra.mxu0 %v1714
        %4379 = vmatprep.subr.mxu0 %v1717
        %4380 = vmatpush1.msra.mxu0 %v1716
        %4381 = vmatprep.subr.mxu0 %v1719
        %4382 = vmatpush1.msra.mxu0 %v1718
        %4383 = vmatprep.subr.mxu0 %v1721
        %4384 = vmatpush1.msra.mxu0 %v1720
        %4385 = vmatprep.subr.mxu0 %v1723
        %4386 = vmatpush1.msra.mxu0 %v1722
        %4387 = vmatprep.subr.mxu0 %v1725
        %4388 = vmatpush1.msra.mxu0 %v1724
        %4389 = vmatprep.subr.mxu0 %v1727
        %4390 = vmatpush1.msra.mxu0 %v1726
        %4391 = vmatprep.subr.mxu0 %v1729
        %4392 = vmatpush1.msra.mxu0 %v1728
        %4393 = vmatprep.subr.mxu0 %v1731
        %4394 = vmatpush1.msra.mxu0 %v1730
        %4395 = vmatprep.subr.mxu0 %v1733
        %4396 = vmatpush1.msra.mxu0 %v1732
        %4397 = vmatprep.subr.mxu0 %v1735
        %4398 = vmatpush1.msra.mxu0 %v1734
        %4399 = vmatprep.subr.mxu0 %v1737
        %4400 = vmatpush1.msra.mxu0 %v1736
        %4401 = vmatprep.subr.mxu0 %v1739
        %4402 = vmatpush1.msra.mxu0 %v1738
        %4403 = vmatprep.subr.mxu0 %v1741
        %4404 = vmatpush1.msra.mxu0 %v1740
        %4405 = vmatprep.subr.mxu0 %v1743
        %4406 = vmatpush1.msra.mxu0 %v1742
        %4407 = vmatprep.subr.mxu0 %v1745
        %4408 = vmatpush1.msra.mxu0 %v1744
        %4409 = vmatprep.subr.mxu0 %v1747
        %4410 = vmatpush1.msra.mxu0 %v1746
        %4411 = vmatprep.subr.mxu0 %v1749
        %4412 = vmatpush1.msra.mxu0 %v1748
        %4413 = vmatprep.subr.mxu0 %v1751
        %4414 = vmatpush1.msra.mxu0 %v1750
        %4415 = vmatprep.subr.mxu0 %v1753
        %4416 = vmatpush1.msra.mxu0 %v1752
        %4417 = vmatprep.subr.mxu0 %v1755
        %4418 = vmatpush1.msra.mxu0 %v1754
        %4419 = vmatprep.subr.mxu0 %v1757
        %4420 = vmatpush1.msra.mxu0 %v1756
        %4421 = vmatprep.subr.mxu0 %v1759
        %4422 = vmatpush1.msra.mxu0 %v1758
        %4423 = vmatprep.mubr.f32.mxu0 %v316
        %4424 = vmatmul.mubr.f32.gmra.mrb[0].mxu0 %v315
        %v4425 = vpop.f32.mrb[0].mxu0
        %v4426 = vadd.f32 %v4355, %v4425
        %v4427 = vpop.f32.mrb[0].mxu0
        %v4428 = vadd.f32 %v4357, %v4427
        %4429 = vdwg.mxu0
        %4430 = vmatprep.subr.mxu0 %v1761
        %4431 = vmatpush1.msra.mxu0 %v1760
        %4432 = vmatprep.subr.mxu0 %v1763
        %4433 = vmatpush1.msra.mxu0 %v1762
        %4434 = vmatprep.subr.mxu0 %v1765
        %4435 = vmatpush1.msra.mxu0 %v1764
        %4436 = vmatprep.subr.mxu0 %v1767
        %4437 = vmatpush1.msra.mxu0 %v1766
        %4438 = vmatprep.subr.mxu0 %v1769
        %4439 = vmatpush1.msra.mxu0 %v1768
        %4440 = vmatprep.subr.mxu0 %v1771
        %4441 = vmatpush1.msra.mxu0 %v1770
        %4442 = vmatprep.subr.mxu0 %v1773
        %4443 = vmatpush1.msra.mxu0 %v1772
        %4444 = vmatprep.subr.mxu0 %v1775
        %4445 = vmatpush1.msra.mxu0 %v1774
        %4446 = vmatprep.subr.mxu0 %v1777
        %4447 = vmatpush1.msra.mxu0 %v1776
        %4448 = vmatprep.subr.mxu0 %v1779
        %4449 = vmatpush1.msra.mxu0 %v1778
        %4450 = vmatprep.subr.mxu0 %v1781
        %4451 = vmatpush1.msra.mxu0 %v1780
        %4452 = vmatprep.subr.mxu0 %v1783
        %4453 = vmatpush1.msra.mxu0 %v1782
        %4454 = vmatprep.subr.mxu0 %v1785
        %4455 = vmatpush1.msra.mxu0 %v1784
        %4456 = vmatprep.subr.mxu0 %v1787
        %4457 = vmatpush1.msra.mxu0 %v1786
        %4458 = vmatprep.subr.mxu0 %v1789
        %4459 = vmatpush1.msra.mxu0 %v1788
        %4460 = vmatprep.subr.mxu0 %v1791
        %4461 = vmatpush1.msra.mxu0 %v1790
        %4462 = vmatprep.subr.mxu0 %v1793
        %4463 = vmatpush1.msra.mxu0 %v1792
        %4464 = vmatprep.subr.mxu0 %v1795
        %4465 = vmatpush1.msra.mxu0 %v1794
        %4466 = vmatprep.subr.mxu0 %v1797
        %4467 = vmatpush1.msra.mxu0 %v1796
        %4468 = vmatprep.subr.mxu0 %v1799
        %4469 = vmatpush1.msra.mxu0 %v1798
        %4470 = vmatprep.subr.mxu0 %v1801
        %4471 = vmatpush1.msra.mxu0 %v1800
        %4472 = vmatprep.subr.mxu0 %v1803
        %4473 = vmatpush1.msra.mxu0 %v1802
        %4474 = vmatprep.subr.mxu0 %v1805
        %4475 = vmatpush1.msra.mxu0 %v1804
        %4476 = vmatprep.subr.mxu0 %v1807
        %4477 = vmatpush1.msra.mxu0 %v1806
        %4478 = vmatprep.subr.mxu0 %v1809
        %4479 = vmatpush1.msra.mxu0 %v1808
        %4480 = vmatprep.subr.mxu0 %v1811
        %4481 = vmatpush1.msra.mxu0 %v1810
        %4482 = vmatprep.subr.mxu0 %v1813
        %4483 = vmatpush1.msra.mxu0 %v1812
        %4484 = vmatprep.subr.mxu0 %v1815
        %4485 = vmatpush1.msra.mxu0 %v1814
        %4486 = vmatprep.subr.mxu0 %v1817
        %4487 = vmatpush1.msra.mxu0 %v1816
        %4488 = vmatprep.subr.mxu0 %v1819
        %4489 = vmatpush1.msra.mxu0 %v1818
        %4490 = vmatprep.subr.mxu0 %v1821
        %4491 = vmatpush1.msra.mxu0 %v1820
        %4492 = vmatprep.subr.mxu0 %v1823
        %4493 = vmatpush1.msra.mxu0 %v1822
        %4494 = vmatprep.mubr.f32.mxu0 %v318
        %4495 = vmatmul.mubr.f32.gmra.mrb[0].mxu0 %v317
        %v4496 = vpop.f32.mrb[0].mxu0
        %v4497 = vadd.f32 %v4426, %v4496
        %v4498 = vpop.f32.mrb[0].mxu0
        %v4499 = vadd.f32 %v4428, %v4498
        %4500 = vdwg.mxu0
        %4501 = vmatprep.subr.mxu0 %v1825
        %4502 = vmatpush1.msra.mxu0 %v1824
        %4503 = vmatprep.subr.mxu0 %v1827
        %4504 = vmatpush1.msra.mxu0 %v1826
        %4505 = vmatprep.subr.mxu0 %v1829
        %4506 = vmatpush1.msra.mxu0 %v1828
        %4507 = vmatprep.subr.mxu0 %v1831
        %4508 = vmatpush1.msra.mxu0 %v1830
        %4509 = vmatprep.subr.mxu0 %v1833
        %4510 = vmatpush1.msra.mxu0 %v1832
        %4511 = vmatprep.subr.mxu0 %v1835
        %4512 = vmatpush1.msra.mxu0 %v1834
        %4513 = vmatprep.subr.mxu0 %v1837
        %4514 = vmatpush1.msra.mxu0 %v1836
        %4515 = vmatprep.subr.mxu0 %v1839
        %4516 = vmatpush1.msra.mxu0 %v1838
        %4517 = vmatprep.subr.mxu0 %v1841
        %4518 = vmatpush1.msra.mxu0 %v1840
        %4519 = vmatprep.subr.mxu0 %v1843
        %4520 = vmatpush1.msra.mxu0 %v1842
        %4521 = vmatprep.subr.mxu0 %v1845
        %4522 = vmatpush1.msra.mxu0 %v1844
        %4523 = vmatprep.subr.mxu0 %v1847
        %4524 = vmatpush1.msra.mxu0 %v1846
        %4525 = vmatprep.subr.mxu0 %v1849
        %4526 = vmatpush1.msra.mxu0 %v1848
        %4527 = vmatprep.subr.mxu0 %v1851
        %4528 = vmatpush1.msra.mxu0 %v1850
        %4529 = vmatprep.subr.mxu0 %v1853
        %4530 = vmatpush1.msra.mxu0 %v1852
        %4531 = vmatprep.subr.mxu0 %v1855
        %4532 = vmatpush1.msra.mxu0 %v1854
        %4533 = vmatprep.subr.mxu0 %v1857
        %4534 = vmatpush1.msra.mxu0 %v1856
        %4535 = vmatprep.subr.mxu0 %v1859
        %4536 = vmatpush1.msra.mxu0 %v1858
        %4537 = vmatprep.subr.mxu0 %v1861
        %4538 = vmatpush1.msra.mxu0 %v1860
        %4539 = vmatprep.subr.mxu0 %v1863
        %4540 = vmatpush1.msra.mxu0 %v1862
        %4541 = vmatprep.subr.mxu0 %v1865
        %4542 = vmatpush1.msra.mxu0 %v1864
        %4543 = vmatprep.subr.mxu0 %v1867
        %4544 = vmatpush1.msra.mxu0 %v1866
        %4545 = vmatprep.subr.mxu0 %v1869
        %4546 = vmatpush1.msra.mxu0 %v1868
        %4547 = vmatprep.subr.mxu0 %v1871
        %4548 = vmatpush1.msra.mxu0 %v1870
        %4549 = vmatprep.subr.mxu0 %v1873
        %4550 = vmatpush1.msra.mxu0 %v1872
        %4551 = vmatprep.subr.mxu0 %v1875
        %4552 = vmatpush1.msra.mxu0 %v1874
        %4553 = vmatprep.subr.mxu0 %v1877
        %4554 = vmatpush1.msra.mxu0 %v1876
        %4555 = vmatprep.subr.mxu0 %v1879
        %4556 = vmatpush1.msra.mxu0 %v1878
        %4557 = vmatprep.subr.mxu0 %v1881
        %4558 = vmatpush1.msra.mxu0 %v1880
        %4559 = vmatprep.subr.mxu0 %v1883
        %4560 = vmatpush1.msra.mxu0 %v1882
        %4561 = vmatprep.subr.mxu0 %v1885
        %4562 = vmatpush1.msra.mxu0 %v1884
        %4563 = vmatprep.subr.mxu0 %v1887
        %4564 = vmatpush1.msra.mxu0 %v1886
        %4565 = vmatprep.mubr.f32.mxu0 %v320
        %4566 = vmatmul.mubr.f32.gmra.mrb[0].mxu0 %v319
        %v4567 = vpop.f32.mrb[0].mxu0
        %v4568 = vadd.f32 %v4497, %v4567
        %v4569 = vpop.f32.mrb[0].mxu0
        %v4570 = vadd.f32 %v4499, %v4569
        %4571 = vdwg.mxu0
        %4572 = vmatprep.subr.mxu0 %v1889
        %4573 = vmatpush1.msra.mxu0 %v1888
        %4574 = vmatprep.subr.mxu0 %v1891
        %4575 = vmatpush1.msra.mxu0 %v1890
        %4576 = vmatprep.subr.mxu0 %v1893
        %4577 = vmatpush1.msra.mxu0 %v1892
        %4578 = vmatprep.subr.mxu0 %v1895
        %4579 = vmatpush1.msra.mxu0 %v1894
        %4580 = vmatprep.subr.mxu0 %v1897
        %4581 = vmatpush1.msra.mxu0 %v1896
        %4582 = vmatprep.subr.mxu0 %v1899
        %4583 = vmatpush1.msra.mxu0 %v1898
        %4584 = vmatprep.subr.mxu0 %v1901
        %4585 = vmatpush1.msra.mxu0 %v1900
        %4586 = vmatprep.subr.mxu0 %v1903
        %4587 = vmatpush1.msra.mxu0 %v1902
        %4588 = vmatprep.subr.mxu0 %v1905
        %4589 = vmatpush1.msra.mxu0 %v1904
        %4590 = vmatprep.subr.mxu0 %v1907
        %4591 = vmatpush1.msra.mxu0 %v1906
        %4592 = vmatprep.subr.mxu0 %v1909
        %4593 = vmatpush1.msra.mxu0 %v1908
        %4594 = vmatprep.subr.mxu0 %v1911
        %4595 = vmatpush1.msra.mxu0 %v1910
        %4596 = vmatprep.subr.mxu0 %v1913
        %4597 = vmatpush1.msra.mxu0 %v1912
        %4598 = vmatprep.subr.mxu0 %v1915
        %4599 = vmatpush1.msra.mxu0 %v1914
        %4600 = vmatprep.subr.mxu0 %v1917
        %4601 = vmatpush1.msra.mxu0 %v1916
        %4602 = vmatprep.subr.mxu0 %v1919
        %4603 = vmatpush1.msra.mxu0 %v1918
        %4604 = vmatprep.subr.mxu0 %v1921
        %4605 = vmatpush1.msra.mxu0 %v1920
        %4606 = vmatprep.subr.mxu0 %v1923
        %4607 = vmatpush1.msra.mxu0 %v1922
        %4608 = vmatprep.subr.mxu0 %v1925
        %4609 = vmatpush1.msra.mxu0 %v1924
        %4610 = vmatprep.subr.mxu0 %v1927
        %4611 = vmatpush1.msra.mxu0 %v1926
        %4612 = vmatprep.subr.mxu0 %v1929
        %4613 = vmatpush1.msra.mxu0 %v1928
        %4614 = vmatprep.subr.mxu0 %v1931
        %4615 = vmatpush1.msra.mxu0 %v1930
        %4616 = vmatprep.subr.mxu0 %v1933
        %4617 = vmatpush1.msra.mxu0 %v1932
        %4618 = vmatprep.subr.mxu0 %v1935
        %4619 = vmatpush1.msra.mxu0 %v1934
        %4620 = vmatprep.subr.mxu0 %v1937
        %4621 = vmatpush1.msra.mxu0 %v1936
        %4622 = vmatprep.subr.mxu0 %v1939
        %4623 = vmatpush1.msra.mxu0 %v1938
        %4624 = vmatprep.subr.mxu0 %v1941
        %4625 = vmatpush1.msra.mxu0 %v1940
        %4626 = vmatprep.subr.mxu0 %v1943
        %4627 = vmatpush1.msra.mxu0 %v1942
        %4628 = vmatprep.subr.mxu0 %v1945
        %4629 = vmatpush1.msra.mxu0 %v1944
        %4630 = vmatprep.subr.mxu0 %v1947
        %4631 = vmatpush1.msra.mxu0 %v1946
        %4632 = vmatprep.subr.mxu0 %v1949
        %4633 = vmatpush1.msra.mxu0 %v1948
        %4634 = vmatprep.subr.mxu0 %v1951
        %4635 = vmatpush1.msra.mxu0 %v1950
        %4636 = vmatprep.mubr.f32.mxu0 %v322
        %4637 = vmatmul.mubr.f32.gmra.mrb[0].mxu0 %v321
        %v4638 = vpop.f32.mrb[0].mxu0
        %v4639 = vadd.f32 %v4568, %v4638
        %v4640 = vpop.f32.mrb[0].mxu0
        %v4641 = vadd.f32 %v4570, %v4640
        %4642 = vdwg.mxu0
        %4643 = vmatprep.subr.mxu0 %v1953
        %4644 = vmatpush1.msra.mxu0 %v1952
        %4645 = vmatprep.subr.mxu0 %v1955
        %4646 = vmatpush1.msra.mxu0 %v1954
        %4647 = vmatprep.subr.mxu0 %v1957
        %4648 = vmatpush1.msra.mxu0 %v1956
        %4649 = vmatprep.subr.mxu0 %v1959
        %4650 = vmatpush1.msra.mxu0 %v1958
        %4651 = vmatprep.subr.mxu0 %v1961
        %4652 = vmatpush1.msra.mxu0 %v1960
        %4653 = vmatprep.subr.mxu0 %v1963
        %4654 = vmatpush1.msra.mxu0 %v1962
        %4655 = vmatprep.subr.mxu0 %v1965
        %4656 = vmatpush1.msra.mxu0 %v1964
        %4657 = vmatprep.subr.mxu0 %v1967
        %4658 = vmatpush1.msra.mxu0 %v1966
        %4659 = vmatprep.subr.mxu0 %v1969
        %4660 = vmatpush1.msra.mxu0 %v1968
        %4661 = vmatprep.subr.mxu0 %v1971
        %4662 = vmatpush1.msra.mxu0 %v1970
        %4663 = vmatprep.subr.mxu0 %v1973
        %4664 = vmatpush1.msra.mxu0 %v1972
        %4665 = vmatprep.subr.mxu0 %v1975
        %4666 = vmatpush1.msra.mxu0 %v1974
        %4667 = vmatprep.subr.mxu0 %v1977
        %4668 = vmatpush1.msra.mxu0 %v1976
        %4669 = vmatprep.subr.mxu0 %v1979
        %4670 = vmatpush1.msra.mxu0 %v1978
        %4671 = vmatprep.subr.mxu0 %v1981
        %4672 = vmatpush1.msra.mxu0 %v1980
        %4673 = vmatprep.subr.mxu0 %v1983
        %4674 = vmatpush1.msra.mxu0 %v1982
        %4675 = vmatprep.subr.mxu0 %v1985
        %4676 = vmatpush1.msra.mxu0 %v1984
        %4677 = vmatprep.subr.mxu0 %v1987
        %4678 = vmatpush1.msra.mxu0 %v1986
        %4679 = vmatprep.subr.mxu0 %v1989
        %4680 = vmatpush1.msra.mxu0 %v1988
        %4681 = vmatprep.subr.mxu0 %v1991
        %4682 = vmatpush1.msra.mxu0 %v1990
        %4683 = vmatprep.subr.mxu0 %v1993
        %4684 = vmatpush1.msra.mxu0 %v1992
        %4685 = vmatprep.subr.mxu0 %v1995
        %4686 = vmatpush1.msra.mxu0 %v1994
        %4687 = vmatprep.subr.mxu0 %v1997
        %4688 = vmatpush1.msra.mxu0 %v1996
        %4689 = vmatprep.subr.mxu0 %v1999
        %4690 = vmatpush1.msra.mxu0 %v1998
        %4691 = vmatprep.subr.mxu0 %v2001
        %4692 = vmatpush1.msra.mxu0 %v2000
        %4693 = vmatprep.subr.mxu0 %v2003
        %4694 = vmatpush1.msra.mxu0 %v2002
        %4695 = vmatprep.subr.mxu0 %v2005
        %4696 = vmatpush1.msra.mxu0 %v2004
        %4697 = vmatprep.subr.mxu0 %v2007
        %4698 = vmatpush1.msra.mxu0 %v2006
        %4699 = vmatprep.subr.mxu0 %v2009
        %4700 = vmatpush1.msra.mxu0 %v2008
        %4701 = vmatprep.subr.mxu0 %v2011
        %4702 = vmatpush1.msra.mxu0 %v2010
        %4703 = vmatprep.subr.mxu0 %v2013
        %4704 = vmatpush1.msra.mxu0 %v2012
        %4705 = vmatprep.subr.mxu0 %v2015
        %4706 = vmatpush1.msra.mxu0 %v2014
        %4707 = vmatprep.mubr.f32.mxu0 %v324
        %4708 = vmatmul.mubr.f32.gmra.mrb[0].mxu0 %v323
        %v4709 = vpop.f32.mrb[0].mxu0
        %v4710 = vadd.f32 %v4639, %v4709
        %v4711 = vpop.f32.mrb[0].mxu0
        %v4712 = vadd.f32 %v4641, %v4711
        %4713 = vdwg.mxu0
        %4714 = vmatprep.subr.mxu0 %v2017
        %4715 = vmatpush1.msra.mxu0 %v2016
        %4716 = vmatprep.subr.mxu0 %v2019
        %4717 = vmatpush1.msra.mxu0 %v2018
        %4718 = vmatprep.subr.mxu0 %v2021
        %4719 = vmatpush1.msra.mxu0 %v2020
        %4720 = vmatprep.subr.mxu0 %v2023
        %4721 = vmatpush1.msra.mxu0 %v2022
        %4722 = vmatprep.subr.mxu0 %v2025
        %4723 = vmatpush1.msra.mxu0 %v2024
        %4724 = vmatprep.subr.mxu0 %v2027
        %4725 = vmatpush1.msra.mxu0 %v2026
        %4726 = vmatprep.subr.mxu0 %v2029
        %4727 = vmatpush1.msra.mxu0 %v2028
        %4728 = vmatprep.subr.mxu0 %v2031
        %4729 = vmatpush1.msra.mxu0 %v2030
        %4730 = vmatprep.subr.mxu0 %v2033
        %4731 = vmatpush1.msra.mxu0 %v2032
        %4732 = vmatprep.subr.mxu0 %v2035
        %4733 = vmatpush1.msra.mxu0 %v2034
        %4734 = vmatprep.subr.mxu0 %v2037
        %4735 = vmatpush1.msra.mxu0 %v2036
        %4736 = vmatprep.subr.mxu0 %v2039
        %4737 = vmatpush1.msra.mxu0 %v2038
        %4738 = vmatprep.subr.mxu0 %v2041
        %4739 = vmatpush1.msra.mxu0 %v2040
        %4740 = vmatprep.subr.mxu0 %v2043
        %4741 = vmatpush1.msra.mxu0 %v2042
        %4742 = vmatprep.subr.mxu0 %v2045
        %4743 = vmatpush1.msra.mxu0 %v2044
        %4744 = vmatprep.subr.mxu0 %v2047
        %4745 = vmatpush1.msra.mxu0 %v2046
        %4746 = vmatprep.subr.mxu0 %v2049
        %4747 = vmatpush1.msra.mxu0 %v2048
        %4748 = vmatprep.subr.mxu0 %v2051
        %4749 = vmatpush1.msra.mxu0 %v2050
        %4750 = vmatprep.subr.mxu0 %v2053
        %4751 = vmatpush1.msra.mxu0 %v2052
        %4752 = vmatprep.subr.mxu0 %v2055
        %4753 = vmatpush1.msra.mxu0 %v2054
        %4754 = vmatprep.subr.mxu0 %v2057
        %4755 = vmatpush1.msra.mxu0 %v2056
        %4756 = vmatprep.subr.mxu0 %v2059
        %4757 = vmatpush1.msra.mxu0 %v2058
        %4758 = vmatprep.subr.mxu0 %v2061
        %4759 = vmatpush1.msra.mxu0 %v2060
        %4760 = vmatprep.subr.mxu0 %v2063
        %4761 = vmatpush1.msra.mxu0 %v2062
        %4762 = vmatprep.subr.mxu0 %v2065
        %4763 = vmatpush1.msra.mxu0 %v2064
        %4764 = vmatprep.subr.mxu0 %v2067
        %4765 = vmatpush1.msra.mxu0 %v2066
        %4766 = vmatprep.subr.mxu0 %v2069
        %4767 = vmatpush1.msra.mxu0 %v2068
        %4768 = vmatprep.subr.mxu0 %v2071
        %4769 = vmatpush1.msra.mxu0 %v2070
        %4770 = vmatprep.subr.mxu0 %v2073
        %4771 = vmatpush1.msra.mxu0 %v2072
        %4772 = vmatprep.subr.mxu0 %v2075
        %4773 = vmatpush1.msra.mxu0 %v2074
        %4774 = vmatprep.subr.mxu0 %v2077
        %4775 = vmatpush1.msra.mxu0 %v2076
        %4776 = vmatprep.subr.mxu0 %v2079
        %4777 = vmatpush1.msra.mxu0 %v2078
        %4778 = vmatprep.mubr.f32.mxu0 %v326
        %4779 = vmatmul.mubr.f32.gmra.mrb[0].mxu0 %v325
        %v4780 = vpop.f32.mrb[0].mxu0
        %v4781 = vadd.f32 %v4710, %v4780
        %v4782 = vpop.f32.mrb[0].mxu0
        %v4783 = vadd.f32 %v4712, %v4782
        %4784 = vdwg.mxu0
        %4785 = vmatprep.subr.mxu0 %v2081
        %4786 = vmatpush1.msra.mxu0 %v2080
        %4787 = vmatprep.subr.mxu0 %v2083
        %4788 = vmatpush1.msra.mxu0 %v2082
        %4789 = vmatprep.subr.mxu0 %v2085
        %4790 = vmatpush1.msra.mxu0 %v2084
        %4791 = vmatprep.subr.mxu0 %v2087
        %4792 = vmatpush1.msra.mxu0 %v2086
        %4793 = vmatprep.subr.mxu0 %v2089
        %4794 = vmatpush1.msra.mxu0 %v2088
        %4795 = vmatprep.subr.mxu0 %v2091
        %4796 = vmatpush1.msra.mxu0 %v2090
        %4797 = vmatprep.subr.mxu0 %v2093
        %4798 = vmatpush1.msra.mxu0 %v2092
        %4799 = vmatprep.subr.mxu0 %v2095
        %4800 = vmatpush1.msra.mxu0 %v2094
        %4801 = vmatprep.subr.mxu0 %v2097
        %4802 = vmatpush1.msra.mxu0 %v2096
        %4803 = vmatprep.subr.mxu0 %v2099
        %4804 = vmatpush1.msra.mxu0 %v2098
        %4805 = vmatprep.subr.mxu0 %v2101
        %4806 = vmatpush1.msra.mxu0 %v2100
        %4807 = vmatprep.subr.mxu0 %v2103
        %4808 = vmatpush1.msra.mxu0 %v2102
        %4809 = vmatprep.subr.mxu0 %v2105
        %4810 = vmatpush1.msra.mxu0 %v2104
        %4811 = vmatprep.subr.mxu0 %v2107
        %4812 = vmatpush1.msra.mxu0 %v2106
        %4813 = vmatprep.subr.mxu0 %v2109
        %4814 = vmatpush1.msra.mxu0 %v2108
        %4815 = vmatprep.subr.mxu0 %v2111
        %4816 = vmatpush1.msra.mxu0 %v2110
        %4817 = vmatprep.subr.mxu0 %v2113
        %4818 = vmatpush1.msra.mxu0 %v2112
        %4819 = vmatprep.subr.mxu0 %v2115
        %4820 = vmatpush1.msra.mxu0 %v2114
        %4821 = vmatprep.subr.mxu0 %v2117
        %4822 = vmatpush1.msra.mxu0 %v2116
        %4823 = vmatprep.subr.mxu0 %v2119
        %4824 = vmatpush1.msra.mxu0 %v2118
        %4825 = vmatprep.subr.mxu0 %v2121
        %4826 = vmatpush1.msra.mxu0 %v2120
        %4827 = vmatprep.subr.mxu0 %v2123
        %4828 = vmatpush1.msra.mxu0 %v2122
        %4829 = vmatprep.subr.mxu0 %v2125
        %4830 = vmatpush1.msra.mxu0 %v2124
        %4831 = vmatprep.subr.mxu0 %v2127
        %4832 = vmatpush1.msra.mxu0 %v2126
        %4833 = vmatprep.subr.mxu0 %v2129
        %4834 = vmatpush1.msra.mxu0 %v2128
        %4835 = vmatprep.subr.mxu0 %v2131
        %4836 = vmatpush1.msra.mxu0 %v2130
        %4837 = vmatprep.subr.mxu0 %v2133
        %4838 = vmatpush1.msra.mxu0 %v2132
        %4839 = vmatprep.subr.mxu0 %v2135
        %4840 = vmatpush1.msra.mxu0 %v2134
        %4841 = vmatprep.subr.mxu0 %v2137
        %4842 = vmatpush1.msra.mxu0 %v2136
        %4843 = vmatprep.subr.mxu0 %v2139
        %4844 = vmatpush1.msra.mxu0 %v2138
        %4845 = vmatprep.subr.mxu0 %v2141
        %4846 = vmatpush1.msra.mxu0 %v2140
        %4847 = vmatprep.subr.mxu0 %v2143
        %4848 = vmatpush1.msra.mxu0 %v2142
        %4849 = vmatprep.mubr.f32.mxu0 %v328
        %4850 = vmatmul.mubr.f32.gmra.mrb[0].mxu0 %v327
        %v4851 = vpop.f32.mrb[0].mxu0
        %v4852 = vadd.f32 %v4781, %v4851
        %v4853 = vpop.f32.mrb[0].mxu0
        %v4854 = vadd.f32 %v4783, %v4853
        %4855 = vdwg.mxu0
        %4856 = vmatprep.subr.mxu0 %v2145
        %4857 = vmatpush1.msra.mxu0 %v2144
        %4858 = vmatprep.subr.mxu0 %v2147
        %4859 = vmatpush1.msra.mxu0 %v2146
        %4860 = vmatprep.subr.mxu0 %v2149
        %4861 = vmatpush1.msra.mxu0 %v2148
        %4862 = vmatprep.subr.mxu0 %v2151
        %4863 = vmatpush1.msra.mxu0 %v2150
        %4864 = vmatprep.subr.mxu0 %v2153
        %4865 = vmatpush1.msra.mxu0 %v2152
        %4866 = vmatprep.subr.mxu0 %v2155
        %4867 = vmatpush1.msra.mxu0 %v2154
        %4868 = vmatprep.subr.mxu0 %v2157
        %4869 = vmatpush1.msra.mxu0 %v2156
        %4870 = vmatprep.subr.mxu0 %v2159
        %4871 = vmatpush1.msra.mxu0 %v2158
        %4872 = vmatprep.subr.mxu0 %v2161
        %4873 = vmatpush1.msra.mxu0 %v2160
        %4874 = vmatprep.subr.mxu0 %v2163
        %4875 = vmatpush1.msra.mxu0 %v2162
        %4876 = vmatprep.subr.mxu0 %v2165
        %4877 = vmatpush1.msra.mxu0 %v2164
        %4878 = vmatprep.subr.mxu0 %v2167
        %4879 = vmatpush1.msra.mxu0 %v2166
        %4880 = vmatprep.subr.mxu0 %v2169
        %4881 = vmatpush1.msra.mxu0 %v2168
        %4882 = vmatprep.subr.mxu0 %v2171
        %4883 = vmatpush1.msra.mxu0 %v2170
        %4884 = vmatprep.subr.mxu0 %v2173
        %4885 = vmatpush1.msra.mxu0 %v2172
        %4886 = vmatprep.subr.mxu0 %v2175
        %4887 = vmatpush1.msra.mxu0 %v2174
        %4888 = vmatprep.subr.mxu0 %v2177
        %4889 = vmatpush1.msra.mxu0 %v2176
        %4890 = vmatprep.subr.mxu0 %v2179
        %4891 = vmatpush1.msra.mxu0 %v2178
        %4892 = vmatprep.subr.mxu0 %v2181
        %4893 = vmatpush1.msra.mxu0 %v2180
        %4894 = vmatprep.subr.mxu0 %v2183
        %4895 = vmatpush1.msra.mxu0 %v2182
        %4896 = vmatprep.subr.mxu0 %v2185
        %4897 = vmatpush1.msra.mxu0 %v2184
        %4898 = vmatprep.subr.mxu0 %v2187
        %4899 = vmatpush1.msra.mxu0 %v2186
        %4900 = vmatprep.subr.mxu0 %v2189
        %4901 = vmatpush1.msra.mxu0 %v2188
        %4902 = vmatprep.subr.mxu0 %v2191
        %4903 = vmatpush1.msra.mxu0 %v2190
        %4904 = vmatprep.subr.mxu0 %v2193
        %4905 = vmatpush1.msra.mxu0 %v2192
        %4906 = vmatprep.subr.mxu0 %v2195
        %4907 = vmatpush1.msra.mxu0 %v2194
        %4908 = vmatprep.subr.mxu0 %v2197
        %4909 = vmatpush1.msra.mxu0 %v2196
        %4910 = vmatprep.subr.mxu0 %v2199
        %4911 = vmatpush1.msra.mxu0 %v2198
        %4912 = vmatprep.subr.mxu0 %v2201
        %4913 = vmatpush1.msra.mxu0 %v2200
        %4914 = vmatprep.subr.mxu0 %v2203
        %4915 = vmatpush1.msra.mxu0 %v2202
        %4916 = vmatprep.subr.mxu0 %v2205
        %4917 = vmatpush1.msra.mxu0 %v2204
        %4918 = vmatprep.subr.mxu0 %v2207
        %4919 = vmatpush1.msra.mxu0 %v2206
        %4920 = vmatprep.mubr.f32.mxu0 %v330
        %4921 = vmatmul.mubr.f32.gmra.mrb[0].mxu0 %v329
        %v4922 = vpop.f32.mrb[0].mxu0
        %v4923 = vadd.f32 %v4852, %v4922
        %v4924 = vpop.f32.mrb[0].mxu0
        %v4925 = vadd.f32 %v4854, %v4924
        %4926 = vdwg.mxu0
        %4927 = vmatprep.subr.mxu0 %v2209
        %4928 = vmatpush1.msra.mxu0 %v2208
        %4929 = vmatprep.subr.mxu0 %v2211
        %4930 = vmatpush1.msra.mxu0 %v2210
        %4931 = vmatprep.subr.mxu0 %v2213
        %4932 = vmatpush1.msra.mxu0 %v2212
        %4933 = vmatprep.subr.mxu0 %v2215
        %4934 = vmatpush1.msra.mxu0 %v2214
        %4935 = vmatprep.subr.mxu0 %v2217
        %4936 = vmatpush1.msra.mxu0 %v2216
        %4937 = vmatprep.subr.mxu0 %v2219
        %4938 = vmatpush1.msra.mxu0 %v2218
        %4939 = vmatprep.subr.mxu0 %v2221
        %4940 = vmatpush1.msra.mxu0 %v2220
        %4941 = vmatprep.subr.mxu0 %v2223
        %4942 = vmatpush1.msra.mxu0 %v2222
        %4943 = vmatprep.subr.mxu0 %v2225
        %4944 = vmatpush1.msra.mxu0 %v2224
        %4945 = vmatprep.subr.mxu0 %v2227
        %4946 = vmatpush1.msra.mxu0 %v2226
        %4947 = vmatprep.subr.mxu0 %v2229
        %4948 = vmatpush1.msra.mxu0 %v2228
        %4949 = vmatprep.subr.mxu0 %v2231
        %4950 = vmatpush1.msra.mxu0 %v2230
        %4951 = vmatprep.subr.mxu0 %v2233
        %4952 = vmatpush1.msra.mxu0 %v2232
        %4953 = vmatprep.subr.mxu0 %v2235
        %4954 = vmatpush1.msra.mxu0 %v2234
        %4955 = vmatprep.subr.mxu0 %v2237
        %4956 = vmatpush1.msra.mxu0 %v2236
        %4957 = vmatprep.subr.mxu0 %v2239
        %4958 = vmatpush1.msra.mxu0 %v2238
        %4959 = vmatprep.subr.mxu0 %v2241
        %4960 = vmatpush1.msra.mxu0 %v2240
        %4961 = vmatprep.subr.mxu0 %v2243
        %4962 = vmatpush1.msra.mxu0 %v2242
        %4963 = vmatprep.subr.mxu0 %v2245
        %4964 = vmatpush1.msra.mxu0 %v2244
        %4965 = vmatprep.subr.mxu0 %v2247
        %4966 = vmatpush1.msra.mxu0 %v2246
        %4967 = vmatprep.subr.mxu0 %v2249
        %4968 = vmatpush1.msra.mxu0 %v2248
        %4969 = vmatprep.subr.mxu0 %v2251
        %4970 = vmatpush1.msra.mxu0 %v2250
        %4971 = vmatprep.subr.mxu0 %v2253
        %4972 = vmatpush1.msra.mxu0 %v2252
        %4973 = vmatprep.subr.mxu0 %v2255
        %4974 = vmatpush1.msra.mxu0 %v2254
        %4975 = vmatprep.subr.mxu0 %v2257
        %4976 = vmatpush1.msra.mxu0 %v2256
        %4977 = vmatprep.subr.mxu0 %v2259
        %4978 = vmatpush1.msra.mxu0 %v2258
        %4979 = vmatprep.subr.mxu0 %v2261
        %4980 = vmatpush1.msra.mxu0 %v2260
        %4981 = vmatprep.subr.mxu0 %v2263
        %4982 = vmatpush1.msra.mxu0 %v2262
        %4983 = vmatprep.subr.mxu0 %v2265
        %4984 = vmatpush1.msra.mxu0 %v2264
        %4985 = vmatprep.subr.mxu0 %v2267
        %4986 = vmatpush1.msra.mxu0 %v2266
        %4987 = vmatprep.subr.mxu0 %v2269
        %4988 = vmatpush1.msra.mxu0 %v2268
        %4989 = vmatprep.subr.mxu0 %v2271
        %4990 = vmatpush1.msra.mxu0 %v2270
        %4991 = vmatprep.mubr.f32.mxu0 %v332
        %4992 = vmatmul.mubr.f32.gmra.mrb[0].mxu0 %v331
        %v4993 = vpop.f32.mrb[0].mxu0
        %v4994 = vadd.f32 %v4923, %v4993
        %v4995 = vpop.f32.mrb[0].mxu0
        %v4996 = vadd.f32 %v4925, %v4995
        %4997 = vdwg.mxu0
        %4998 = vmatprep.subr.mxu0 %v2273
        %4999 = vmatpush1.msra.mxu0 %v2272
        %5000 = vmatprep.subr.mxu0 %v2275
        %5001 = vmatpush1.msra.mxu0 %v2274
        %5002 = vmatprep.subr.mxu0 %v2277
        %5003 = vmatpush1.msra.mxu0 %v2276
        %5004 = vmatprep.subr.mxu0 %v2279
        %5005 = vmatpush1.msra.mxu0 %v2278
        %5006 = vmatprep.subr.mxu0 %v2281
        %5007 = vmatpush1.msra.mxu0 %v2280
        %5008 = vmatprep.subr.mxu0 %v2283
        %5009 = vmatpush1.msra.mxu0 %v2282
        %5010 = vmatprep.subr.mxu0 %v2285
        %5011 = vmatpush1.msra.mxu0 %v2284
        %5012 = vmatprep.subr.mxu0 %v2287
        %5013 = vmatpush1.msra.mxu0 %v2286
        %5014 = vmatprep.subr.mxu0 %v2289
        %5015 = vmatpush1.msra.mxu0 %v2288
        %5016 = vmatprep.subr.mxu0 %v2291
        %5017 = vmatpush1.msra.mxu0 %v2290
        %5018 = vmatprep.subr.mxu0 %v2293
        %5019 = vmatpush1.msra.mxu0 %v2292
        %5020 = vmatprep.subr.mxu0 %v2295
        %5021 = vmatpush1.msra.mxu0 %v2294
        %5022 = vmatprep.subr.mxu0 %v2297
        %5023 = vmatpush1.msra.mxu0 %v2296
        %5024 = vmatprep.subr.mxu0 %v2299
        %5025 = vmatpush1.msra.mxu0 %v2298
        %5026 = vmatprep.subr.mxu0 %v2301
        %5027 = vmatpush1.msra.mxu0 %v2300
        %5028 = vmatprep.subr.mxu0 %v2303
        %5029 = vmatpush1.msra.mxu0 %v2302
        %5030 = vmatprep.subr.mxu0 %v2305
        %5031 = vmatpush1.msra.mxu0 %v2304
        %5032 = vmatprep.subr.mxu0 %v2307
        %5033 = vmatpush1.msra.mxu0 %v2306
        %5034 = vmatprep.subr.mxu0 %v2309
        %5035 = vmatpush1.msra.mxu0 %v2308
        %5036 = vmatprep.subr.mxu0 %v2311
        %5037 = vmatpush1.msra.mxu0 %v2310
        %5038 = vmatprep.subr.mxu0 %v2313
        %5039 = vmatpush1.msra.mxu0 %v2312
        %5040 = vmatprep.subr.mxu0 %v2315
        %5041 = vmatpush1.msra.mxu0 %v2314
        %5042 = vmatprep.subr.mxu0 %v2317
        %5043 = vmatpush1.msra.mxu0 %v2316
        %5044 = vmatprep.subr.mxu0 %v2319
        %5045 = vmatpush1.msra.mxu0 %v2318
        %5046 = vmatprep.subr.mxu0 %v2321
        %5047 = vmatpush1.msra.mxu0 %v2320
        %5048 = vmatprep.subr.mxu0 %v2323
        %5049 = vmatpush1.msra.mxu0 %v2322
        %5050 = vmatprep.subr.mxu0 %v2325
        %5051 = vmatpush1.msra.mxu0 %v2324
        %5052 = vmatprep.subr.mxu0 %v2327
        %5053 = vmatpush1.msra.mxu0 %v2326
        %5054 = vmatprep.subr.mxu0 %v2329
        %5055 = vmatpush1.msra.mxu0 %v2328
        %5056 = vmatprep.subr.mxu0 %v2331
        %5057 = vmatpush1.msra.mxu0 %v2330
        %5058 = vmatprep.subr.mxu0 %v2333
        %5059 = vmatpush1.msra.mxu0 %v2332
        %5060 = vmatprep.subr.mxu0 %v2335
        %5061 = vmatpush1.msra.mxu0 %v2334
        %5062 = vmatprep.mubr.f32.mxu0 %v334
        %5063 = vmatmul.mubr.f32.gmra.mrb[0].mxu0 %v333
        %v5064 = vpop.f32.mrb[0].mxu0
        %v5065 = vadd.f32 %v4994, %v5064
        %v5066 = vpop.f32.mrb[0].mxu0
        %v5067 = vadd.f32 %v4996, %v5066
        %5068 = vdwg.mxu0
        %5069 = vmatprep.subr.mxu0 %v2337
        %5070 = vmatpush1.msra.mxu0 %v2336
        %5071 = vmatprep.subr.mxu0 %v2339
        %5072 = vmatpush1.msra.mxu0 %v2338
        %5073 = vmatprep.subr.mxu0 %v2341
        %5074 = vmatpush1.msra.mxu0 %v2340
        %5075 = vmatprep.subr.mxu0 %v2343
        %5076 = vmatpush1.msra.mxu0 %v2342
        %5077 = vmatprep.subr.mxu0 %v2345
        %5078 = vmatpush1.msra.mxu0 %v2344
        %5079 = vmatprep.subr.mxu0 %v2347
        %5080 = vmatpush1.msra.mxu0 %v2346
        %5081 = vmatprep.subr.mxu0 %v2349
        %5082 = vmatpush1.msra.mxu0 %v2348
        %5083 = vmatprep.subr.mxu0 %v2351
        %5084 = vmatpush1.msra.mxu0 %v2350
        %5085 = vmatprep.subr.mxu0 %v2353
        %5086 = vmatpush1.msra.mxu0 %v2352
        %5087 = vmatprep.subr.mxu0 %v2355
        %5088 = vmatpush1.msra.mxu0 %v2354
        %5089 = vmatprep.subr.mxu0 %v2357
        %5090 = vmatpush1.msra.mxu0 %v2356
        %5091 = vmatprep.subr.mxu0 %v2359
        %5092 = vmatpush1.msra.mxu0 %v2358
        %5093 = vmatprep.subr.mxu0 %v2361
        %5094 = vmatpush1.msra.mxu0 %v2360
        %5095 = vmatprep.subr.mxu0 %v2363
        %5096 = vmatpush1.msra.mxu0 %v2362
        %5097 = vmatprep.subr.mxu0 %v2365
        %5098 = vmatpush1.msra.mxu0 %v2364
        %5099 = vmatprep.subr.mxu0 %v2367
        %5100 = vmatpush1.msra.mxu0 %v2366
        %5101 = vmatprep.subr.mxu0 %v2369
        %5102 = vmatpush1.msra.mxu0 %v2368
        %5103 = vmatprep.subr.mxu0 %v2371
        %5104 = vmatpush1.msra.mxu0 %v2370
        %5105 = vmatprep.subr.mxu0 %v2373
        %5106 = vmatpush1.msra.mxu0 %v2372
        %5107 = vmatprep.subr.mxu0 %v2375
        %5108 = vmatpush1.msra.mxu0 %v2374
        %5109 = vmatprep.subr.mxu0 %v2377
        %5110 = vmatpush1.msra.mxu0 %v2376
        %5111 = vmatprep.subr.mxu0 %v2379
        %5112 = vmatpush1.msra.mxu0 %v2378
        %5113 = vmatprep.subr.mxu0 %v2381
        %5114 = vmatpush1.msra.mxu0 %v2380
        %5115 = vmatprep.subr.mxu0 %v2383
        %5116 = vmatpush1.msra.mxu0 %v2382
        %5117 = vmatprep.subr.mxu0 %v2385
        %5118 = vmatpush1.msra.mxu0 %v2384
        %5119 = vmatprep.subr.mxu0 %v2387
        %5120 = vmatpush1.msra.mxu0 %v2386
        %5121 = vmatprep.subr.mxu0 %v2389
        %5122 = vmatpush1.msra.mxu0 %v2388
        %5123 = vmatprep.subr.mxu0 %v2391
        %5124 = vmatpush1.msra.mxu0 %v2390
        %5125 = vmatprep.subr.mxu0 %v2393
        %5126 = vmatpush1.msra.mxu0 %v2392
        %5127 = vmatprep.subr.mxu0 %v2395
        %5128 = vmatpush1.msra.mxu0 %v2394
        %5129 = vmatprep.subr.mxu0 %v2397
        %5130 = vmatpush1.msra.mxu0 %v2396
        %5131 = vmatprep.subr.mxu0 %v2399
        %5132 = vmatpush1.msra.mxu0 %v2398
        %5133 = vmatprep.mubr.f32.mxu0 %v336
        %5134 = vmatmul.mubr.f32.gmra.mrb[0].mxu0 %v335
        %v5135 = vpop.f32.mrb[0].mxu0
        %v5136 = vadd.f32 %v5065, %v5135
        %v5137 = vpop.f32.mrb[0].mxu0
        %v5138 = vadd.f32 %v5067, %v5137
        %5139 = vdwg.mxu0
        %5140 = vmatprep.subr.mxu0 %v2401
        %5141 = vmatpush1.msra.mxu0 %v2400
        %5142 = vmatprep.subr.mxu0 %v2403
        %5143 = vmatpush1.msra.mxu0 %v2402
        %5144 = vmatprep.subr.mxu0 %v2405
        %5145 = vmatpush1.msra.mxu0 %v2404
        %5146 = vmatprep.subr.mxu0 %v2407
        %5147 = vmatpush1.msra.mxu0 %v2406
        %5148 = vmatprep.subr.mxu0 %v2409
        %5149 = vmatpush1.msra.mxu0 %v2408
        %5150 = vmatprep.subr.mxu0 %v2411
        %5151 = vmatpush1.msra.mxu0 %v2410
        %5152 = vmatprep.subr.mxu0 %v2413
        %5153 = vmatpush1.msra.mxu0 %v2412
        %5154 = vmatprep.subr.mxu0 %v2415
        %5155 = vmatpush1.msra.mxu0 %v2414
        %5156 = vmatprep.subr.mxu0 %v2417
        %5157 = vmatpush1.msra.mxu0 %v2416
        %5158 = vmatprep.subr.mxu0 %v2419
        %5159 = vmatpush1.msra.mxu0 %v2418
        %5160 = vmatprep.subr.mxu0 %v2421
        %5161 = vmatpush1.msra.mxu0 %v2420
        %5162 = vmatprep.subr.mxu0 %v2423
        %5163 = vmatpush1.msra.mxu0 %v2422
        %5164 = vmatprep.subr.mxu0 %v2425
        %5165 = vmatpush1.msra.mxu0 %v2424
        %5166 = vmatprep.subr.mxu0 %v2427
        %5167 = vmatpush1.msra.mxu0 %v2426
        %5168 = vmatprep.subr.mxu0 %v2429
        %5169 = vmatpush1.msra.mxu0 %v2428
        %5170 = vmatprep.subr.mxu0 %v2431
        %5171 = vmatpush1.msra.mxu0 %v2430
        %5172 = vmatprep.subr.mxu0 %v2433
        %5173 = vmatpush1.msra.mxu0 %v2432
        %5174 = vmatprep.subr.mxu0 %v2435
        %5175 = vmatpush1.msra.mxu0 %v2434
        %5176 = vmatprep.subr.mxu0 %v2437
        %5177 = vmatpush1.msra.mxu0 %v2436
        %5178 = vmatprep.subr.mxu0 %v2439
        %5179 = vmatpush1.msra.mxu0 %v2438
        %5180 = vmatprep.subr.mxu0 %v2441
        %5181 = vmatpush1.msra.mxu0 %v2440
        %5182 = vmatprep.subr.mxu0 %v2443
        %5183 = vmatpush1.msra.mxu0 %v2442
        %5184 = vmatprep.subr.mxu0 %v2445
        %5185 = vmatpush1.msra.mxu0 %v2444
        %5186 = vmatprep.subr.mxu0 %v2447
        %5187 = vmatpush1.msra.mxu0 %v2446
        %5188 = vmatprep.subr.mxu0 %v2449
        %5189 = vmatpush1.msra.mxu0 %v2448
        %5190 = vmatprep.subr.mxu0 %v2451
        %5191 = vmatpush1.msra.mxu0 %v2450
        %5192 = vmatprep.subr.mxu0 %v2453
        %5193 = vmatpush1.msra.mxu0 %v2452
        %5194 = vmatprep.subr.mxu0 %v2455
        %5195 = vmatpush1.msra.mxu0 %v2454
        %5196 = vmatprep.subr.mxu0 %v2457
        %5197 = vmatpush1.msra.mxu0 %v2456
        %5198 = vmatprep.subr.mxu0 %v2459
        %5199 = vmatpush1.msra.mxu0 %v2458
        %5200 = vmatprep.subr.mxu0 %v2461
        %5201 = vmatpush1.msra.mxu0 %v2460
        %5202 = vmatprep.subr.mxu0 %v2463
        %5203 = vmatpush1.msra.mxu0 %v2462
        %5204 = vmatprep.mubr.f32.mxu0 %v338
        %5205 = vmatmul.mubr.f32.gmra.mrb[0].mxu0 %v337
        %v5206 = vpop.f32.mrb[0].mxu0
        %v5207 = vadd.f32 %v5136, %v5206
        %v5208 = vpop.f32.mrb[0].mxu0
        %v5209 = vadd.f32 %v5138, %v5208
        %5210 = vdwg.mxu0
        %5211 = vmatprep.subr.mxu0 %v2465
        %5212 = vmatpush1.msra.mxu0 %v2464
        %5213 = vmatprep.subr.mxu0 %v2467
        %5214 = vmatpush1.msra.mxu0 %v2466
        %5215 = vmatprep.subr.mxu0 %v2469
        %5216 = vmatpush1.msra.mxu0 %v2468
        %5217 = vmatprep.subr.mxu0 %v2471
        %5218 = vmatpush1.msra.mxu0 %v2470
        %5219 = vmatprep.subr.mxu0 %v2473
        %5220 = vmatpush1.msra.mxu0 %v2472
        %5221 = vmatprep.subr.mxu0 %v2475
        %5222 = vmatpush1.msra.mxu0 %v2474
        %5223 = vmatprep.subr.mxu0 %v2477
        %5224 = vmatpush1.msra.mxu0 %v2476
        %5225 = vmatprep.subr.mxu0 %v2479
        %5226 = vmatpush1.msra.mxu0 %v2478
        %5227 = vmatprep.subr.mxu0 %v2481
        %5228 = vmatpush1.msra.mxu0 %v2480
        %5229 = vmatprep.subr.mxu0 %v2483
        %5230 = vmatpush1.msra.mxu0 %v2482
        %5231 = vmatprep.subr.mxu0 %v2485
        %5232 = vmatpush1.msra.mxu0 %v2484
        %5233 = vmatprep.subr.mxu0 %v2487
        %5234 = vmatpush1.msra.mxu0 %v2486
        %5235 = vmatprep.subr.mxu0 %v2489
        %5236 = vmatpush1.msra.mxu0 %v2488
        %5237 = vmatprep.subr.mxu0 %v2491
        %5238 = vmatpush1.msra.mxu0 %v2490
        %5239 = vmatprep.subr.mxu0 %v2493
        %5240 = vmatpush1.msra.mxu0 %v2492
        %5241 = vmatprep.subr.mxu0 %v2495
        %5242 = vmatpush1.msra.mxu0 %v2494
        %5243 = vmatprep.subr.mxu0 %v2497
        %5244 = vmatpush1.msra.mxu0 %v2496
        %5245 = vmatprep.subr.mxu0 %v2499
        %5246 = vmatpush1.msra.mxu0 %v2498
        %5247 = vmatprep.subr.mxu0 %v2501
        %5248 = vmatpush1.msra.mxu0 %v2500
        %5249 = vmatprep.subr.mxu0 %v2503
        %5250 = vmatpush1.msra.mxu0 %v2502
        %5251 = vmatprep.subr.mxu0 %v2505
        %5252 = vmatpush1.msra.mxu0 %v2504
        %5253 = vmatprep.subr.mxu0 %v2507
        %5254 = vmatpush1.msra.mxu0 %v2506
        %5255 = vmatprep.subr.mxu0 %v2509
        %5256 = vmatpush1.msra.mxu0 %v2508
        %5257 = vmatprep.subr.mxu0 %v2511
        %5258 = vmatpush1.msra.mxu0 %v2510
        %5259 = vmatprep.subr.mxu0 %v2513
        %5260 = vmatpush1.msra.mxu0 %v2512
        %5261 = vmatprep.subr.mxu0 %v2515
        %5262 = vmatpush1.msra.mxu0 %v2514
        %5263 = vmatprep.subr.mxu0 %v2517
        %5264 = vmatpush1.msra.mxu0 %v2516
        %5265 = vmatprep.subr.mxu0 %v2519
        %5266 = vmatpush1.msra.mxu0 %v2518
        %5267 = vmatprep.subr.mxu0 %v2521
        %5268 = vmatpush1.msra.mxu0 %v2520
        %5269 = vmatprep.subr.mxu0 %v2523
        %5270 = vmatpush1.msra.mxu0 %v2522
        %5271 = vmatprep.subr.mxu0 %v2525
        %5272 = vmatpush1.msra.mxu0 %v2524
        %5273 = vmatprep.subr.mxu0 %v2527
        %5274 = vmatpush1.msra.mxu0 %v2526
        %5275 = vmatprep.mubr.f32.mxu0 %v340
        %5276 = vmatmul.mubr.f32.gmra.mrb[0].mxu0 %v339
        %v5277 = vpop.f32.mrb[0].mxu0
        %v5278 = vadd.f32 %v5207, %v5277
        %v5279 = vpop.f32.mrb[0].mxu0
        %v5280 = vadd.f32 %v5209, %v5279
        %5281 = vdwg.mxu0
        %5282 = vmatprep.subr.mxu0 %v2529
        %5283 = vmatpush1.msra.mxu0 %v2528
        %5284 = vmatprep.subr.mxu0 %v2531
        %5285 = vmatpush1.msra.mxu0 %v2530
        %5286 = vmatprep.subr.mxu0 %v2533
        %5287 = vmatpush1.msra.mxu0 %v2532
        %5288 = vmatprep.subr.mxu0 %v2535
        %5289 = vmatpush1.msra.mxu0 %v2534
        %5290 = vmatprep.subr.mxu0 %v2537
        %5291 = vmatpush1.msra.mxu0 %v2536
        %5292 = vmatprep.subr.mxu0 %v2539
        %5293 = vmatpush1.msra.mxu0 %v2538
        %5294 = vmatprep.subr.mxu0 %v2541
        %5295 = vmatpush1.msra.mxu0 %v2540
        %5296 = vmatprep.subr.mxu0 %v2543
        %5297 = vmatpush1.msra.mxu0 %v2542
        %5298 = vmatprep.subr.mxu0 %v2545
        %5299 = vmatpush1.msra.mxu0 %v2544
        %5300 = vmatprep.subr.mxu0 %v2547
        %5301 = vmatpush1.msra.mxu0 %v2546
        %5302 = vmatprep.subr.mxu0 %v2549
        %5303 = vmatpush1.msra.mxu0 %v2548
        %5304 = vmatprep.subr.mxu0 %v2551
        %5305 = vmatpush1.msra.mxu0 %v2550
        %5306 = vmatprep.subr.mxu0 %v2553
        %5307 = vmatpush1.msra.mxu0 %v2552
        %5308 = vmatprep.subr.mxu0 %v2555
        %5309 = vmatpush1.msra.mxu0 %v2554
        %5310 = vmatprep.subr.mxu0 %v2557
        %5311 = vmatpush1.msra.mxu0 %v2556
        %5312 = vmatprep.subr.mxu0 %v2559
        %5313 = vmatpush1.msra.mxu0 %v2558
        %5314 = vmatprep.subr.mxu0 %v2561
        %5315 = vmatpush1.msra.mxu0 %v2560
        %5316 = vmatprep.subr.mxu0 %v2563
        %5317 = vmatpush1.msra.mxu0 %v2562
        %5318 = vmatprep.subr.mxu0 %v2565
        %5319 = vmatpush1.msra.mxu0 %v2564
        %5320 = vmatprep.subr.mxu0 %v2567
        %5321 = vmatpush1.msra.mxu0 %v2566
        %5322 = vmatprep.subr.mxu0 %v2569
        %5323 = vmatpush1.msra.mxu0 %v2568
        %5324 = vmatprep.subr.mxu0 %v2571
        %5325 = vmatpush1.msra.mxu0 %v2570
        %5326 = vmatprep.subr.mxu0 %v2573
        %5327 = vmatpush1.msra.mxu0 %v2572
        %5328 = vmatprep.subr.mxu0 %v2575
        %5329 = vmatpush1.msra.mxu0 %v2574
        %5330 = vmatprep.subr.mxu0 %v2577
        %5331 = vmatpush1.msra.mxu0 %v2576
        %5332 = vmatprep.subr.mxu0 %v2579
        %5333 = vmatpush1.msra.mxu0 %v2578
        %5334 = vmatprep.subr.mxu0 %v2581
        %5335 = vmatpush1.msra.mxu0 %v2580
        %5336 = vmatprep.subr.mxu0 %v2583
        %5337 = vmatpush1.msra.mxu0 %v2582
        %5338 = vmatprep.subr.mxu0 %v2585
        %5339 = vmatpush1.msra.mxu0 %v2584
        %5340 = vmatprep.subr.mxu0 %v2587
        %5341 = vmatpush1.msra.mxu0 %v2586
        %5342 = vmatprep.subr.mxu0 %v2589
        %5343 = vmatpush1.msra.mxu0 %v2588
        %5344 = vmatprep.subr.mxu0 %v2591
        %5345 = vmatpush1.msra.mxu0 %v2590
        %5346 = vmatprep.mubr.f32.mxu0 %v342
        %5347 = vmatmul.mubr.f32.gmra.mrb[0].mxu0 %v341
        %v5348 = vpop.f32.mrb[0].mxu0
        %v5349 = vadd.f32 %v5278, %v5348
        %v5350 = vpop.f32.mrb[0].mxu0
        %v5351 = vadd.f32 %v5280, %v5350
        %5352 = vdwg.mxu0
        %5353 = vmatprep.subr.mxu0 %v2593
        %5354 = vmatpush1.msra.mxu0 %v2592
        %5355 = vmatprep.subr.mxu0 %v2595
        %5356 = vmatpush1.msra.mxu0 %v2594
        %5357 = vmatprep.subr.mxu0 %v2597
        %5358 = vmatpush1.msra.mxu0 %v2596
        %5359 = vmatprep.subr.mxu0 %v2599
        %5360 = vmatpush1.msra.mxu0 %v2598
        %5361 = vmatprep.subr.mxu0 %v2601
        %5362 = vmatpush1.msra.mxu0 %v2600
        %5363 = vmatprep.subr.mxu0 %v2603
        %5364 = vmatpush1.msra.mxu0 %v2602
        %5365 = vmatprep.subr.mxu0 %v2605
        %5366 = vmatpush1.msra.mxu0 %v2604
        %5367 = vmatprep.subr.mxu0 %v2607
        %5368 = vmatpush1.msra.mxu0 %v2606
        %5369 = vmatprep.subr.mxu0 %v2609
        %5370 = vmatpush1.msra.mxu0 %v2608
        %5371 = vmatprep.subr.mxu0 %v2611
        %5372 = vmatpush1.msra.mxu0 %v2610
        %5373 = vmatprep.subr.mxu0 %v2613
        %5374 = vmatpush1.msra.mxu0 %v2612
        %5375 = vmatprep.subr.mxu0 %v2615
        %5376 = vmatpush1.msra.mxu0 %v2614
        %5377 = vmatprep.subr.mxu0 %v2617
        %5378 = vmatpush1.msra.mxu0 %v2616
        %5379 = vmatprep.subr.mxu0 %v2619
        %5380 = vmatpush1.msra.mxu0 %v2618
        %5381 = vmatprep.subr.mxu0 %v2621
        %5382 = vmatpush1.msra.mxu0 %v2620
        %5383 = vmatprep.subr.mxu0 %v2623
        %5384 = vmatpush1.msra.mxu0 %v2622
        %5385 = vmatprep.subr.mxu0 %v2625
        %5386 = vmatpush1.msra.mxu0 %v2624
        %5387 = vmatprep.subr.mxu0 %v2627
        %5388 = vmatpush1.msra.mxu0 %v2626
        %5389 = vmatprep.subr.mxu0 %v2629
        %5390 = vmatpush1.msra.mxu0 %v2628
        %5391 = vmatprep.subr.mxu0 %v2631
        %5392 = vmatpush1.msra.mxu0 %v2630
        %5393 = vmatprep.subr.mxu0 %v2633
        %5394 = vmatpush1.msra.mxu0 %v2632
        %5395 = vmatprep.subr.mxu0 %v2635
        %5396 = vmatpush1.msra.mxu0 %v2634
        %5397 = vmatprep.subr.mxu0 %v2637
        %5398 = vmatpush1.msra.mxu0 %v2636
        %5399 = vmatprep.subr.mxu0 %v2639
        %5400 = vmatpush1.msra.mxu0 %v2638
        %5401 = vmatprep.subr.mxu0 %v2641
        %5402 = vmatpush1.msra.mxu0 %v2640
        %5403 = vmatprep.subr.mxu0 %v2643
        %5404 = vmatpush1.msra.mxu0 %v2642
        %5405 = vmatprep.subr.mxu0 %v2645
        %5406 = vmatpush1.msra.mxu0 %v2644
        %5407 = vmatprep.subr.mxu0 %v2647
        %5408 = vmatpush1.msra.mxu0 %v2646
        %5409 = vmatprep.subr.mxu0 %v2649
        %5410 = vmatpush1.msra.mxu0 %v2648
        %5411 = vmatprep.subr.mxu0 %v2651
        %5412 = vmatpush1.msra.mxu0 %v2650
        %5413 = vmatprep.subr.mxu0 %v2653
        %5414 = vmatpush1.msra.mxu0 %v2652
        %5415 = vmatprep.subr.mxu0 %v2655
        %5416 = vmatpush1.msra.mxu0 %v2654
        %5417 = vmatprep.mubr.f32.mxu0 %v344
        %5418 = vmatmul.mubr.f32.gmra.mrb[0].mxu0 %v343
        %v5419 = vpop.f32.mrb[0].mxu0
        %v5420 = vadd.f32 %v5349, %v5419
        %v5421 = vpop.f32.mrb[0].mxu0
        %v5422 = vadd.f32 %v5351, %v5421
        %5423 = vdwg.mxu0
        %5424 = vmatprep.subr.mxu0 %v2657
        %5425 = vmatpush1.msra.mxu0 %v2656
        %5426 = vmatprep.subr.mxu0 %v2659
        %5427 = vmatpush1.msra.mxu0 %v2658
        %5428 = vmatprep.subr.mxu0 %v2661
        %5429 = vmatpush1.msra.mxu0 %v2660
        %5430 = vmatprep.subr.mxu0 %v2663
        %5431 = vmatpush1.msra.mxu0 %v2662
        %5432 = vmatprep.subr.mxu0 %v2665
        %5433 = vmatpush1.msra.mxu0 %v2664
        %5434 = vmatprep.subr.mxu0 %v2667
        %5435 = vmatpush1.msra.mxu0 %v2666
        %5436 = vmatprep.subr.mxu0 %v2669
        %5437 = vmatpush1.msra.mxu0 %v2668
        %5438 = vmatprep.subr.mxu0 %v2671
        %5439 = vmatpush1.msra.mxu0 %v2670
        %5440 = vmatprep.subr.mxu0 %v2673
        %5441 = vmatpush1.msra.mxu0 %v2672
        %5442 = vmatprep.subr.mxu0 %v2675
        %5443 = vmatpush1.msra.mxu0 %v2674
        %5444 = vmatprep.subr.mxu0 %v2677
        %5445 = vmatpush1.msra.mxu0 %v2676
        %5446 = vmatprep.subr.mxu0 %v2679
        %5447 = vmatpush1.msra.mxu0 %v2678
        %5448 = vmatprep.subr.mxu0 %v2681
        %5449 = vmatpush1.msra.mxu0 %v2680
        %5450 = vmatprep.subr.mxu0 %v2683
        %5451 = vmatpush1.msra.mxu0 %v2682
        %5452 = vmatprep.subr.mxu0 %v2685
        %5453 = vmatpush1.msra.mxu0 %v2684
        %5454 = vmatprep.subr.mxu0 %v2687
        %5455 = vmatpush1.msra.mxu0 %v2686
        %5456 = vmatprep.subr.mxu0 %v2689
        %5457 = vmatpush1.msra.mxu0 %v2688
        %5458 = vmatprep.subr.mxu0 %v2691
        %5459 = vmatpush1.msra.mxu0 %v2690
        %5460 = vmatprep.subr.mxu0 %v2693
        %5461 = vmatpush1.msra.mxu0 %v2692
        %5462 = vmatprep.subr.mxu0 %v2695
        %5463 = vmatpush1.msra.mxu0 %v2694
        %5464 = vmatprep.subr.mxu0 %v2697
        %5465 = vmatpush1.msra.mxu0 %v2696
        %5466 = vmatprep.subr.mxu0 %v2699
        %5467 = vmatpush1.msra.mxu0 %v2698
        %5468 = vmatprep.subr.mxu0 %v2701
        %5469 = vmatpush1.msra.mxu0 %v2700
        %5470 = vmatprep.subr.mxu0 %v2703
        %5471 = vmatpush1.msra.mxu0 %v2702
        %5472 = vmatprep.subr.mxu0 %v2705
        %5473 = vmatpush1.msra.mxu0 %v2704
        %5474 = vmatprep.subr.mxu0 %v2707
        %5475 = vmatpush1.msra.mxu0 %v2706
        %5476 = vmatprep.subr.mxu0 %v2709
        %5477 = vmatpush1.msra.mxu0 %v2708
        %5478 = vmatprep.subr.mxu0 %v2711
        %5479 = vmatpush1.msra.mxu0 %v2710
        %5480 = vmatprep.subr.mxu0 %v2713
        %5481 = vmatpush1.msra.mxu0 %v2712
        %5482 = vmatprep.subr.mxu0 %v2715
        %5483 = vmatpush1.msra.mxu0 %v2714
        %5484 = vmatprep.subr.mxu0 %v2717
        %5485 = vmatpush1.msra.mxu0 %v2716
        %5486 = vmatprep.subr.mxu0 %v2719
        %5487 = vmatpush1.msra.mxu0 %v2718
        %5488 = vmatprep.mubr.f32.mxu0 %v346
        %5489 = vmatmul.mubr.f32.gmra.mrb[0].mxu0 %v345
        %v5490 = vpop.f32.mrb[0].mxu0
        %v5491 = vadd.f32 %v5420, %v5490
        %v5492 = vpop.f32.mrb[0].mxu0
        %v5493 = vadd.f32 %v5422, %v5492
        %5494 = vdwg.mxu0
        %5495 = vmatprep.subr.mxu0 %v2721
        %5496 = vmatpush1.msra.mxu0 %v2720
        %5497 = vmatprep.subr.mxu0 %v2723
        %5498 = vmatpush1.msra.mxu0 %v2722
        %5499 = vmatprep.subr.mxu0 %v2725
        %5500 = vmatpush1.msra.mxu0 %v2724
        %5501 = vmatprep.subr.mxu0 %v2727
        %5502 = vmatpush1.msra.mxu0 %v2726
        %5503 = vmatprep.subr.mxu0 %v2729
        %5504 = vmatpush1.msra.mxu0 %v2728
        %5505 = vmatprep.subr.mxu0 %v2731
        %5506 = vmatpush1.msra.mxu0 %v2730
        %5507 = vmatprep.subr.mxu0 %v2733
        %5508 = vmatpush1.msra.mxu0 %v2732
        %5509 = vmatprep.subr.mxu0 %v2735
        %5510 = vmatpush1.msra.mxu0 %v2734
        %5511 = vmatprep.subr.mxu0 %v2737
        %5512 = vmatpush1.msra.mxu0 %v2736
        %5513 = vmatprep.subr.mxu0 %v2739
        %5514 = vmatpush1.msra.mxu0 %v2738
        %5515 = vmatprep.subr.mxu0 %v2741
        %5516 = vmatpush1.msra.mxu0 %v2740
        %5517 = vmatprep.subr.mxu0 %v2743
        %5518 = vmatpush1.msra.mxu0 %v2742
        %5519 = vmatprep.subr.mxu0 %v2745
        %5520 = vmatpush1.msra.mxu0 %v2744
        %5521 = vmatprep.subr.mxu0 %v2747
        %5522 = vmatpush1.msra.mxu0 %v2746
        %5523 = vmatprep.subr.mxu0 %v2749
        %5524 = vmatpush1.msra.mxu0 %v2748
        %5525 = vmatprep.subr.mxu0 %v2751
        %5526 = vmatpush1.msra.mxu0 %v2750
        %5527 = vmatprep.subr.mxu0 %v2753
        %5528 = vmatpush1.msra.mxu0 %v2752
        %5529 = vmatprep.subr.mxu0 %v2755
        %5530 = vmatpush1.msra.mxu0 %v2754
        %5531 = vmatprep.subr.mxu0 %v2757
        %5532 = vmatpush1.msra.mxu0 %v2756
        %5533 = vmatprep.subr.mxu0 %v2759
        %5534 = vmatpush1.msra.mxu0 %v2758
        %5535 = vmatprep.subr.mxu0 %v2761
        %5536 = vmatpush1.msra.mxu0 %v2760
        %5537 = vmatprep.subr.mxu0 %v2763
        %5538 = vmatpush1.msra.mxu0 %v2762
        %5539 = vmatprep.subr.mxu0 %v2765
        %5540 = vmatpush1.msra.mxu0 %v2764
        %5541 = vmatprep.subr.mxu0 %v2767
        %5542 = vmatpush1.msra.mxu0 %v2766
        %5543 = vmatprep.subr.mxu0 %v2769
        %5544 = vmatpush1.msra.mxu0 %v2768
        %5545 = vmatprep.subr.mxu0 %v2771
        %5546 = vmatpush1.msra.mxu0 %v2770
        %5547 = vmatprep.subr.mxu0 %v2773
        %5548 = vmatpush1.msra.mxu0 %v2772
        %5549 = vmatprep.subr.mxu0 %v2775
        %5550 = vmatpush1.msra.mxu0 %v2774
        %5551 = vmatprep.subr.mxu0 %v2777
        %5552 = vmatpush1.msra.mxu0 %v2776
        %5553 = vmatprep.subr.mxu0 %v2779
        %5554 = vmatpush1.msra.mxu0 %v2778
        %5555 = vmatprep.subr.mxu0 %v2781
        %5556 = vmatpush1.msra.mxu0 %v2780
        %5557 = vmatprep.subr.mxu0 %v2783
        %5558 = vmatpush1.msra.mxu0 %v2782
        %5559 = vmatprep.mubr.f32.mxu0 %v348
        %5560 = vmatmul.mubr.f32.gmra.mrb[0].mxu0 %v347
        %v5561 = vpop.f32.mrb[0].mxu0
        %v5562 = vadd.f32 %v5491, %v5561
        %v5563 = vpop.f32.mrb[0].mxu0
        %v5564 = vadd.f32 %v5493, %v5563
        %5565 = vdwg.mxu0
        %5566 = vmatprep.subr.mxu0 %v2785
        %5567 = vmatpush1.msra.mxu0 %v2784
        %5568 = vmatprep.subr.mxu0 %v2787
        %5569 = vmatpush1.msra.mxu0 %v2786
        %5570 = vmatprep.subr.mxu0 %v2789
        %5571 = vmatpush1.msra.mxu0 %v2788
        %5572 = vmatprep.subr.mxu0 %v2791
        %5573 = vmatpush1.msra.mxu0 %v2790
        %5574 = vmatprep.subr.mxu0 %v2793
        %5575 = vmatpush1.msra.mxu0 %v2792
        %5576 = vmatprep.subr.mxu0 %v2795
        %5577 = vmatpush1.msra.mxu0 %v2794
        %5578 = vmatprep.subr.mxu0 %v2797
        %5579 = vmatpush1.msra.mxu0 %v2796
        %5580 = vmatprep.subr.mxu0 %v2799
        %5581 = vmatpush1.msra.mxu0 %v2798
        %5582 = vmatprep.subr.mxu0 %v2801
        %5583 = vmatpush1.msra.mxu0 %v2800
        %5584 = vmatprep.subr.mxu0 %v2803
        %5585 = vmatpush1.msra.mxu0 %v2802
        %5586 = vmatprep.subr.mxu0 %v2805
        %5587 = vmatpush1.msra.mxu0 %v2804
        %5588 = vmatprep.subr.mxu0 %v2807
        %5589 = vmatpush1.msra.mxu0 %v2806
        %5590 = vmatprep.subr.mxu0 %v2809
        %5591 = vmatpush1.msra.mxu0 %v2808
        %5592 = vmatprep.subr.mxu0 %v2811
        %5593 = vmatpush1.msra.mxu0 %v2810
        %5594 = vmatprep.subr.mxu0 %v2813
        %5595 = vmatpush1.msra.mxu0 %v2812
        %5596 = vmatprep.subr.mxu0 %v2815
        %5597 = vmatpush1.msra.mxu0 %v2814
        %5598 = vmatprep.subr.mxu0 %v2817
        %5599 = vmatpush1.msra.mxu0 %v2816
        %5600 = vmatprep.subr.mxu0 %v2819
        %5601 = vmatpush1.msra.mxu0 %v2818
        %5602 = vmatprep.subr.mxu0 %v2821
        %5603 = vmatpush1.msra.mxu0 %v2820
        %5604 = vmatprep.subr.mxu0 %v2823
        %5605 = vmatpush1.msra.mxu0 %v2822
        %5606 = vmatprep.subr.mxu0 %v2825
        %5607 = vmatpush1.msra.mxu0 %v2824
        %5608 = vmatprep.subr.mxu0 %v2827
        %5609 = vmatpush1.msra.mxu0 %v2826
        %5610 = vmatprep.subr.mxu0 %v2829
        %5611 = vmatpush1.msra.mxu0 %v2828
        %5612 = vmatprep.subr.mxu0 %v2831
        %5613 = vmatpush1.msra.mxu0 %v2830
        %5614 = vmatprep.subr.mxu0 %v2833
        %5615 = vmatpush1.msra.mxu0 %v2832
        %5616 = vmatprep.subr.mxu0 %v2835
        %5617 = vmatpush1.msra.mxu0 %v2834
        %5618 = vmatprep.subr.mxu0 %v2837
        %5619 = vmatpush1.msra.mxu0 %v2836
        %5620 = vmatprep.subr.mxu0 %v2839
        %5621 = vmatpush1.msra.mxu0 %v2838
        %5622 = vmatprep.subr.mxu0 %v2841
        %5623 = vmatpush1.msra.mxu0 %v2840
        %5624 = vmatprep.subr.mxu0 %v2843
        %5625 = vmatpush1.msra.mxu0 %v2842
        %5626 = vmatprep.subr.mxu0 %v2845
        %5627 = vmatpush1.msra.mxu0 %v2844
        %5628 = vmatprep.subr.mxu0 %v2847
        %5629 = vmatpush1.msra.mxu0 %v2846
        %5630 = vmatprep.mubr.f32.mxu0 %v350
        %5631 = vmatmul.mubr.f32.gmra.mrb[0].mxu0 %v349
        %v5632 = vpop.f32.mrb[0].mxu0
        %v5633 = vadd.f32 %v5562, %v5632
        %v5634 = vpop.f32.mrb[0].mxu0
        %v5635 = vadd.f32 %v5564, %v5634
        %5636 = vdwg.mxu0
        %5637 = vmatprep.subr.mxu0 %v2849
        %5638 = vmatpush1.msra.mxu0 %v2848
        %5639 = vmatprep.subr.mxu0 %v2851
        %5640 = vmatpush1.msra.mxu0 %v2850
        %5641 = vmatprep.subr.mxu0 0.0
        %5642 = vmatpush1.msra.mxu0 0.0
        %5643 = vmatprep.subr.mxu0 0.0
        %5644 = vmatpush1.msra.mxu0 0.0
        %5645 = vmatprep.subr.mxu0 0.0
        %5646 = vmatpush1.msra.mxu0 0.0
        %5647 = vmatprep.subr.mxu0 0.0
        %5648 = vmatpush1.msra.mxu0 0.0
        %5649 = vmatprep.subr.mxu0 0.0
        %5650 = vmatpush1.msra.mxu0 0.0
        %5651 = vmatprep.subr.mxu0 0.0
        %5652 = vmatpush1.msra.mxu0 0.0
        %5653 = vmatprep.subr.mxu0 0.0
        %5654 = vmatpush1.msra.mxu0 0.0
        %5655 = vmatprep.subr.mxu0 0.0
        %5656 = vmatpush1.msra.mxu0 0.0
        %5657 = vmatprep.subr.mxu0 0.0
        %5658 = vmatpush1.msra.mxu0 0.0
        %5659 = vmatprep.subr.mxu0 0.0
        %5660 = vmatpush1.msra.mxu0 0.0
        %5661 = vmatprep.subr.mxu0 0.0
        %5662 = vmatpush1.msra.mxu0 0.0
        %5663 = vmatprep.subr.mxu0 0.0
        %5664 = vmatpush1.msra.mxu0 0.0
        %5665 = vmatprep.subr.mxu0 0.0
        %5666 = vmatpush1.msra.mxu0 0.0
        %5667 = vmatprep.subr.mxu0 0.0
        %5668 = vmatpush1.msra.mxu0 0.0
        %5669 = vmatprep.subr.mxu0 0.0
        %5670 = vmatpush1.msra.mxu0 0.0
        %5671 = vmatprep.subr.mxu0 0.0
        %5672 = vmatpush1.msra.mxu0 0.0
        %5673 = vmatprep.subr.mxu0 0.0
        %5674 = vmatpush1.msra.mxu0 0.0
        %5675 = vmatprep.subr.mxu0 0.0
        %5676 = vmatpush1.msra.mxu0 0.0
        %5677 = vmatprep.subr.mxu0 0.0
        %5678 = vmatpush1.msra.mxu0 0.0
        %5679 = vmatprep.subr.mxu0 0.0
        %5680 = vmatpush1.msra.mxu0 0.0
        %5681 = vmatprep.subr.mxu0 0.0
        %5682 = vmatpush1.msra.mxu0 0.0
        %5683 = vmatprep.subr.mxu0 0.0
        %5684 = vmatpush1.msra.mxu0 0.0
        %5685 = vmatprep.subr.mxu0 0.0
        %5686 = vmatpush1.msra.mxu0 0.0
        %5687 = vmatprep.subr.mxu0 0.0
        %5688 = vmatpush1.msra.mxu0 0.0
        %5689 = vmatprep.subr.mxu0 0.0
        %5690 = vmatpush1.msra.mxu0 0.0
        %5691 = vmatprep.subr.mxu0 0.0
        %5692 = vmatpush1.msra.mxu0 0.0
        %5693 = vmatprep.subr.mxu0 0.0
        %5694 = vmatpush1.msra.mxu0 0.0
        %5695 = vmatprep.subr.mxu0 0.0
        %5696 = vmatpush1.msra.mxu0 0.0
        %5697 = vmatprep.subr.mxu0 0.0
        %5698 = vmatpush1.msra.mxu0 0.0
        %5699 = vmatprep.subr.mxu0 0.0
        %5700 = vmatpush1.msra.mxu0 0.0
        %5701 = vmatprep.mubr.f32.mxu0 0.0
        %5702 = vmatmul.mubr.f32.gmra.mrb[0].mxu0 %v2866
        %v5703 = vpop.f32.mrb[0].mxu0
        %v5704 = vadd.f32 %v5633, %v5703
        %v5705 = vpop.f32.mrb[0].mxu0
        %v5706 = vadd.f32 %v5635, %v5705
        %5707 = vdwg.mxu0
        %5708 = vst [vmem:[%s271] sm:$0xff] %v5704
        %5709 = vst [vmem:[%s271 + $0x8] sm:$0xff] %v5706
        %s5710 = smul.u32 2, %s24
        %p5711 = scmp.lt.s32.totalorder %s25, 0
        %s5712 = scalar_select %p5711, %s25, 0
        %p5713 = scmp.lt.s32.totalorder %s5710, 3
        %s5714 = scalar_select %p5713, %s5710, 3
        %s5715 = smul.addr %s5712, 4
        %s5716 = sadd.s32 %s5714, %s5715
        %s5717 = smul.addr %s5716, 8
        %s5718 = scalar_lea.vmem %s3, %s5717
        // Predicated region
        $region41: #{_linear_m_forward_impl.1} parent=31 // pred_check
          %p5719 = pneg %p130
        $region42: #{_linear_m_forward_impl.1} parent=31 // pred_check_branch
          %5721 = sbr.rel (%p5719) target = $region44
        $region43: #{_linear_m_forward_impl.1} parent=31 // pred_region
          %s5722 = smul.u32 2, %s24
        $region44: #{_linear_m_forward_impl.1} parent=31 // pred_fallthru
          _
      $region32: #{_linear_m_forward_impl.1} parent=5 // pred_fallthru
        _
      %p5723 = scmp.le.s32.totalorder 2, %s15
      // Predicated region
      $region45: #{_linear_m_forward_impl.1} parent=5 // pred_check
        %p5724 = pneg %p5723
      $region46: #{_linear_m_forward_impl.1} parent=5 // pred_check_branch
        %5726 = sbr.rel (%p5724) target = $region48
      $region47: #{_linear_m_forward_impl.1} parent=5 // pred_region
        %s5727 = ssub.s32 %s15, 2
        // Predicated region
        $region49: #{_linear_m_forward_impl.1} parent=47 // pred_check
          %p5728 = pneg %p136
        $region50: #{_linear_m_forward_impl.1} parent=47 // pred_check_branch
          %5730 = sbr.rel (%p5728) target = $region52
        $region51: #{_linear_m_forward_impl.1} parent=47 // pred_region
          %s5731 = smul.u32 2, %s26
          %p5732 = scmp.lt.s32.totalorder %s27, 0
          %s5733 = scalar_select %p5732, %s27, 0
          %p5734 = scmp.lt.s32.totalorder %s5731, 3
          %s5735 = scalar_select %p5734, %s5731, 3
          %s5736 = smul.addr %s5733, 4
          %s5737 = sadd.s32 %s5735, %s5736
          %s5738 = smul.addr %s5737, 8
          %s5739 = scalar_lea.vmem %s3, %s5738
        $region52: #{_linear_m_forward_impl.1} parent=47 // pred_fallthru
          _
      $region48: #{_linear_m_forward_impl.1} parent=5 // pred_fallthru
        _
    $region6: #{_linear_m_forward_impl.1} parent=1 // loop_footer
      %s19 = sadd.s32 1, %s15
    $region7: #{_linear_m_forward_impl.1} parent=1 // loop_footer_branch
      %14 = sbr.rel target = $region3
    $region8: #{_linear_m_forward_impl.1} parent=1 // loop_exit
      _
    %5740 = vsyncpa [#allocation3], 1
    %s5741 = scalar_lea.sflag [#allocation3], 1
    %5742 = vsyncpa %s5741, 1
    %5743 = vsyncpa [#allocation5], 1
    %s5744 = scalar_lea.sflag [#allocation5], 1
    %5745 = vsyncpa %s5744, 1

</llo_original>
